<compile_context>
chip_gen: v7x
topology: tpu7x:2x2x1
jax: 0.10.0
libtpu: 0.0.40
codegen_flags: <defaults>
</compile_context>

<pallas_src>
import functools

import jax
import jax.numpy as jnp
from jax.experimental import pallas as pl
from jax.experimental.pallas import tpu as pltpu


def _round_up(n, m):
    return ((n + m - 1) // m) * m


def _tile_n(coutp):
    # 256-wide channel tiles feed the v6e/v7x 256x256 MXU; 128 otherwise (v5e ok).
    return 256 if coutp % 256 == 0 else 128


# ----------------------------- Pallas kernels --------------------------------
def _conv1_kernel(x_ref, w_ref, b_ref, o_ref, *, stride, out_hw):
    """3x3 conv (stride 1/2) + folded BN + ReLU, implicit im2col.

    x_ref: (s*s, Hq, Wq, Cinp) bf16 polyphase view of the zero-padded input.
    w_ref: (9, Cinp, TN) bf16 folded weights.   b_ref: (1, TN) f32 shift.
    o_ref: (Ho+2, Wo+2, TN) bf16 -- written spatially zero-padded so the
           stride-1 conv2 kernel can consume it directly.
    """
    ho, wo = out_hw
    tn = o_ref.shape[-1]
    o_ref[...] = jnp.zeros(o_ref.shape, o_ref.dtype)          # zero border
    acc = jnp.zeros((ho * wo, tn), jnp.float32)
    t = 0
    for di in range(3):
        for dj in range(3):
            phase = (di % stride) * stride + (dj % stride)
            i0, j0 = di // stride, dj // stride
            patch = x_ref[phase, i0:i0 + ho, j0:j0 + wo, :]
            acc += jnp.dot(patch.reshape(ho * wo, patch.shape[-1]), w_ref[t],
                           preferred_element_type=jnp.float32)
            t += 1
    y = jnp.maximum(acc + b_ref[...], 0.0)
    o_ref[1:1 + ho, 1:1 + wo, :] = y.reshape(ho, wo, tn).astype(o_ref.dtype)


def _conv2_identity_kernel(h_ref, w_ref, b_ref, r_ref, o_ref, *, out_hw):
    """3x3 stride-1 conv + folded BN + identity residual (f32 add) + ReLU."""
    ho, wo = out_hw
    tn = o_ref.shape[-1]
    acc = jnp.zeros((ho * wo, tn), jnp.float32)
    t = 0
    for di in range(3):
        for dj in range(3):
            patch = h_ref[di:di + ho, dj:dj + wo, :]
            acc += jnp.dot(patch.reshape(ho * wo, patch.shape[-1]), w_ref[t],
                           preferred_element_type=jnp.float32)
            t += 1
    res = r_ref[1:1 + ho, 1:1 + wo, :].reshape(ho * wo, tn).astype(jnp.float32)
    y = jnp.maximum(acc + b_ref[...] + res, 0.0)
    o_ref[...] = y.reshape(ho, wo, tn).astype(o_ref.dtype)


def _conv2_proj_kernel(h_ref, w_ref, b_ref, s_ref, ws_ref, bs_ref, o_ref, *,
                       stride, out_hw):
    """3x3 stride-1 conv + folded BN + fused (1x1 stride-s conv + BN) shortcut + ReLU."""
    ho, wo = out_hw
    tn = o_ref.shape[-1]
    acc = jnp.zeros((ho * wo, tn), jnp.float32)
    t = 0
    for di in range(3):
        for dj in range(3):
            patch = h_ref[di:di + ho, dj:dj + wo, :]
            acc += jnp.dot(patch.reshape(ho * wo, patch.shape[-1]), w_ref[t],
                           preferred_element_type=jnp.float32)
            t += 1
    # shortcut input x[s*ho, s*wo] == phase(a, a)[ho + off, wo + off] of the
    # padded polyphase input (a = 1 % s, off = (1 - a) // s).
    a = 1 % stride
    off = (1 - a) // stride
    xs = s_ref[a * stride + a, off:off + ho, off:off + wo, :]
    sc = jnp.dot(xs.reshape(ho * wo, xs.shape[-1]), ws_ref[...],
                 preferred_element_type=jnp.float32)
    y = jnp.maximum(acc + b_ref[...] + sc + bs_ref[...], 0.0)
    o_ref[...] = y.reshape(ho, wo, tn).astype(o_ref.dtype)


# ------------------------------ pallas_call wrappers --------------------------
_VMEM_LIMIT = 32 * 1024 * 1024


def _conv1_call(xph, w1, b1, out_hw, stride):
    ss = stride * stride
    n = xph.shape[0] // ss
    hq, wq, cinp = xph.shape[1], xph.shape[2], xph.shape[3]
    coutp = w1.shape[-1]
    tn = _tile_n(coutp)
    ho, wo = out_hw
    hop, wop = ho + 2, wo + 2
    kernel = functools.partial(_conv1_kernel, stride=stride, out_hw=out_hw)
    flops = 2 * n * ho * wo * 9 * cinp * coutp
    bytes_acc = xph.size * 2 + w1.size * 2 + b1.size * 4 + n * hop * wop * coutp * 2
    return pl.pallas_call(
        kernel,
        out_shape=jax.ShapeDtypeStruct((n, hop, wop, coutp), jnp.bfloat16),
        grid=(n, coutp // tn),
        in_specs=[
            pl.BlockSpec((ss, hq, wq, cinp), lambda i, c: (i, 0, 0, 0)),
            pl.BlockSpec((9, cinp, tn), lambda i, c: (0, 0, c)),
            pl.BlockSpec((1, tn), lambda i, c: (0, c)),
        ],
        out_specs=pl.BlockSpec((None, hop, wop, tn), lambda i, c: (i, 0, 0, c)),
        compiler_params=pltpu.CompilerParams(
            dimension_semantics=("parallel", "parallel"),
            vmem_limit_bytes=_VMEM_LIMIT),
        cost_estimate=pl.CostEstimate(flops=flops, bytes_accessed=bytes_acc,
                                      transcendentals=0),
    )(xph, w1, b1)


def _conv2_call(h_pad, w2, b2, xph, sc, out_hw, stride):
    """sc is None (identity residual read from xph) or (ws, bs) (projection)."""
    n, hop, wop, cp1 = h_pad.shape
    coutp = w2.shape[-1]
    ss = stride * stride
    hq, wq, cinp = xph.shape[1], xph.shape[2], xph.shape[3]
    tn = _tile_n(coutp)
    ho, wo = out_hw
    in_specs = [
        pl.BlockSpec((None, hop, wop, cp1), lambda i, c: (i, 0, 0, 0)),
        pl.BlockSpec((9, cp1, tn), lambda i, c: (0, 0, c)),
        pl.BlockSpec((1, tn), lambda i, c: (0, c)),
    ]
    flops = 2 * n * ho * wo * 9 * cp1 * coutp
    bytes_acc = (h_pad.size * 2 + w2.size * 2 + xph.size * 2
                 + n * ho * wo * coutp * 2)
    if sc is None:                                   # identity shortcut
        kernel = functools.partial(_conv2_identity_kernel, out_hw=out_hw)
        in_specs.append(
            pl.BlockSpec((None, hq, wq, tn), lambda i, c: (i, 0, 0, c)))
        operands = (h_pad, w2, b2, xph)
    else:                                            # projection shortcut
        ws, bs = sc
        kernel = functools.partial(_conv2_proj_kernel, stride=stride,
                                   out_hw=out_hw)
        in_specs += [
            pl.BlockSpec((ss, hq, wq, cinp), lambda i, c: (i, 0, 0, 0)),
            pl.BlockSpec((cinp, tn), lambda i, c: (0, c)),
            pl.BlockSpec((1, tn), lambda i, c: (0, c)),
        ]
        operands = (h_pad, w2, b2, xph, ws, bs)
        flops += 2 * n * ho * wo * cinp * coutp
    return pl.pallas_call(
        kernel,
        out_shape=jax.ShapeDtypeStruct((n, ho, wo, coutp), jnp.bfloat16),
        grid=(n, coutp // tn),
        in_specs=in_specs,
        out_specs=pl.BlockSpec((None, ho, wo, tn), lambda i, c: (i, 0, 0, c)),
        compiler_params=pltpu.CompilerParams(
            dimension_semantics=("parallel", "parallel"),
            vmem_limit_bytes=_VMEM_LIMIT),
        cost_estimate=pl.CostEstimate(flops=flops, bytes_accessed=bytes_acc,
                                      transcendentals=0),
    )(*operands)


# ------------------------------ trace-time prep -------------------------------
def _to_phases(x_nhwc, cin_pad, stride):
    """NHWC f32 -> (N*s*s, Hq, Wq, Cp) bf16: spatial zero-pad 1, channel pad,
    bf16 cast and polyphase split, all fused into one XLA layout pass.
    phase[n*s*s + a*s + b, i, j, :] == x_padded[n, s*i + a, s*j + b, :]."""
    n, h, w, c = x_nhwc.shape
    hq = -(-(h + 2) // stride)
    wq = -(-(w + 2) // stride)
    xp = jnp.pad(x_nhwc, ((0, 0),
                          (1, hq * stride - h - 1),
                          (1, wq * stride - w - 1),
                          (0, cin_pad - c)))
    xph = xp.reshape(n, hq, stride, wq, stride, cin_pad)
    xph = jnp.transpose(xph, (0, 2, 4, 1, 3, 5))
    return xph.reshape(n * stride * stride, hq, wq, cin_pad).astype(jnp.bfloat16)


def _fold_bn(w, bn, eps=1e-5):
    """Fold eval-mode BN into the conv weight columns; return (scaled_w, shift)."""
    scale = bn["gamma"] * jax.lax.rsqrt(bn["var"] + eps)
    shift = bn["beta"] - bn["mean"] * scale
    return w * scale, shift


def _prep_taps(w_scaled, cin_pad, cout_pad):
    """(3,3,cin,cout) -> (9, cin_pad, cout_pad) bf16, zero rows/cols for padding."""
    kh, kw, cin, cout = w_scaled.shape
    wp = jnp.pad(w_scaled, ((0, 0), (0, 0),
                            (0, cin_pad - cin), (0, cout_pad - cout)))
    return wp.reshape(kh * kw, cin_pad, cout_pad).astype(jnp.bfloat16)


def _prep_shift(shift, cout_pad):
    return jnp.pad(shift, (0, cout_pad - shift.shape[0])
                   ).reshape(1, cout_pad).astype(jnp.float32)


# ---------------------------- BasicBlock forward ------------------------------
@functools.partial(jax.jit, static_argnames=("stride",))
def basic_block(params, x_nchw, *, stride):
    """Forward of one ResNet BasicBlock (eval-mode BN). x_nchw: (N, Cin, H, W) f32."""
    x = jnp.transpose(x_nchw, (0, 2, 3, 1))            # NCHW -> NHWC
    n, h, w, cin = x.shape
    planes = params["w1"].shape[-1]
    cinp = _round_up(cin, 128)
    cp = _round_up(planes, 128)
    ho = (h - 1) // stride + 1
    wo = (w - 1) // stride + 1

    # entry layout pass (pad + bf16 cast + polyphase split, one fused pass)
    xph = _to_phases(x, cinp, stride)

    # conv1 (3x3, stride) + bn1 + relu -> zero-padded bf16 slab for conv2
    w1, b1 = _fold_bn(params["w1"], params["bn1"])
    h_pad = _conv1_call(xph, _prep_taps(w1, cinp, cp), _prep_shift(b1, cp),
                        (ho, wo), stride)

    # conv2 (3x3, s=1) + bn2 + shortcut + add + relu, fused in one kernel
    w2, b2 = _fold_bn(params["w2"], params["bn2"])
    if "sc_w" in params:                               # projection shortcut
        ws, bs = _fold_bn(params["sc_w"], params["sc_bn"])
        ws = jnp.pad(ws.reshape(cin, planes),
                     ((0, cinp - cin), (0, cp - planes))).astype(jnp.bfloat16)
        sc = (ws, _prep_shift(bs, cp))
    else:                                              # identity shortcut
        sc = None
    out = _conv2_call(h_pad, _prep_taps(w2, cp, cp), _prep_shift(b2, cp),
                      xph, sc, (ho, wo), stride)

    # exit layout pass: channel slice + f32 cast + NHWC -> NCHW (one fused pass)
    out = out[..., :planes].astype(jnp.float32)
    return jnp.transpose(out, (0, 3, 1, 2))


# ---------------------------- pure-JAX reference -------------------------------
def _ref_block(params, x, *, stride, eps=1e-5):
    def conv(z, w, s, pad):
        return jax.lax.conv_general_dilated(
            z, w, (s, s), [(pad, pad), (pad, pad)],
            dimension_numbers=("NCHW", "HWIO", "NCHW"))

    def bn(z, p):
        sc = p["gamma"] / jnp.sqrt(p["var"] + eps)
        sh = p["beta"] - p["mean"] * sc
        return z * sc[None, :, None, None] + sh[None, :, None, None]

    h = jax.nn.relu(bn(conv(x, params["w1"], stride, 1), params["bn1"]))
    out = bn(conv(h, params["w2"], 1, 1), params["bn2"])
    if "sc_w" in params:
        short = bn(conv(x, params["sc_w"], stride, 0), params["sc_bn"])
    else:
        short = x
    return jax.nn.relu(out + short)


# --------------------------- deterministic init --------------------------------
def init_conv(key, kh, kw, cin, cout):
    fan = kh * kw * cin
    return jax.random.normal(key, (kh, kw, cin, cout), jnp.float32) * (2.0 / fan) ** 0.5


def init_bn(key, c):
    k1, k2, k3, k4 = jax.random.split(key, 4)
    return dict(
        gamma=1.0 + 0.1 * jax.random.normal(k1, (c,), jnp.float32),
        beta=0.1 * jax.random.normal(k2, (c,), jnp.float32),
        mean=0.1 * jax.random.normal(k3, (c,), jnp.float32),
        var=jnp.abs(jax.random.normal(k4, (c,), jnp.float32)) + 0.5,
    )


def init_block(key, in_planes, planes, stride):
    keys = jax.random.split(key, 6)
    p = {
        "w1": init_conv(keys[0], 3, 3, in_planes, planes),
        "bn1": init_bn(keys[1], planes),
        "w2": init_conv(keys[2], 3, 3, planes, planes),
        "bn2": init_bn(keys[3], planes),
    }
    if stride != 1 or in_planes != planes:  # BasicBlock.expansion == 1
        p["sc_w"] = init_conv(keys[4], 1, 1, in_planes, planes)
        p["sc_bn"] = init_bn(keys[5], planes)
    return p


def _max_rel_err(a, b):
    return float(jnp.max(jnp.abs(a - b) / (1.0 + jnp.abs(b))))


if __name__ == "__main__":
    key = jax.random.PRNGKey(0)
    kpa, kpb, kx = jax.random.split(key, 3)
    x = jax.random.normal(kx, (2, 32, 16, 16), jnp.float32)   # NCHW like PyTorch

    # identity-shortcut block: stride=1, in_planes == planes
    blk_id = init_block(kpa, 32, 32, stride=1)
    y_id = jax.block_until_ready(basic_block(blk_id, x, stride=1))
    assert y_id.shape == (2, 32, 16, 16) and y_id.dtype == jnp.float32

    # projection-shortcut block: stride=2, in_planes != planes
    blk_pr = init_block(kpb, 32, 64, stride=2)
    y_pr = jax.block_until_ready(basic_block(blk_pr, x, stride=2))
    assert y_pr.shape == (2, 64, 8, 8) and y_pr.dtype == jnp.float32

    assert bool(jnp.all(jnp.isfinite(y_id))) and bool(jnp.all(jnp.isfinite(y_pr)))
    assert bool(jnp.all(y_id >= 0)) and bool(jnp.all(y_pr >= 0))  # post-ReLU

    # correctness vs. pure-JAX/XLA reference (bf16 MXU -> loose tolerance)
    ref_id = jax.block_until_ready(_ref_block(blk_id, x, stride=1))
    ref_pr = jax.block_until_ready(_ref_block(blk_pr, x, stride=2))
    assert _max_rel_err(y_id, ref_id) < 0.1, _max_rel_err(y_id, ref_id)
    assert _max_rel_err(y_pr, ref_pr) < 0.1, _max_rel_err(y_pr, ref_pr)

    print("KERNEL_OK")
</pallas_src>

<mosaic_0001>
module attributes {stable_mosaic.version = 11 : i64} {
  func.func @_conv2_identity_kernel(%arg0: i32, %arg1: i32, %arg2: memref<1x18x18x128xbf16, #tpu.memory_space<vmem>>, %arg3: memref<9x128x128xbf16, #tpu.memory_space<vmem>>, %arg4: memref<1x128xf32, #tpu.memory_space<vmem>>, %arg5: memref<1x18x18x128xbf16, #tpu.memory_space<vmem>>, %arg6: memref<1x16x16x128xbf16, #tpu.memory_space<vmem>>) attributes {dimension_semantics = [#tpu.dimension_semantics<parallel>, #tpu.dimension_semantics<parallel>], iteration_bounds = array<i64: 2, 1>, scalar_prefetch = 0 : i64, scratch_operands = 0 : i64, tpu.core_type = #tpu.core_type<tc>, window_params = [{transform_indices = @transform_0, window_bounds = array<i64: 1, 18, 18, 128>}, {transform_indices = @transform_1, window_bounds = array<i64: 9, 128, 128>}, {transform_indices = @transform_2, window_bounds = array<i64: 1, 128>}, {transform_indices = @transform_3, window_bounds = array<i64: 1, 18, 18, 128>}, {transform_indices = @transform_4, window_bounds = array<i64: 1, 16, 16, 128>}]} {
    %cst = arith.constant 0.000000e+00 : f32
    %0 = vector.broadcast %cst : f32 to vector<256x128xf32>
    %c0 = arith.constant 0 : index
    %c0_0 = arith.constant 0 : index
    %c0_1 = arith.constant 0 : index
    %c0_2 = arith.constant 0 : index
    %1 = vector.load %arg2[%c0, %c0_0, %c0_1, %c0_2] : memref<1x18x18x128xbf16, #tpu.memory_space<vmem>>, vector<1x16x16x128xbf16>
    %2 = vector.shape_cast %1 : vector<1x16x16x128xbf16> to vector<16x16x128xbf16>
    %3 = vector.shape_cast %2 : vector<16x16x128xbf16> to vector<256x128xbf16>
    %c0_3 = arith.constant 0 : index
    %c0_4 = arith.constant 0 : index
    %c0_5 = arith.constant 0 : index
    %4 = vector.load %arg3[%c0_3, %c0_4, %c0_5] : memref<9x128x128xbf16, #tpu.memory_space<vmem>>, vector<1x128x128xbf16>
    %5 = vector.shape_cast %4 : vector<1x128x128xbf16> to vector<128x128xbf16>
    %cst_6 = arith.constant dense<0.000000e+00> : vector<256x128xf32>
    %6 = tpu.matmul %3, %5, %cst_6 {dimension_numbers = #tpu.dot_dimension_numbers<[1], [0], [0], [1], [0, 0, 1, 1], [], []>} : vector<256x128xbf16>, vector<128x128xbf16>, vector<256x128xf32> -> vector<256x128xf32>
    %7 = arith.addf %0, %6 : vector<256x128xf32>
    %c0_7 = arith.constant 0 : index
    %c0_8 = arith.constant 0 : index
    %c1 = arith.constant 1 : index
    %c0_9 = arith.constant 0 : index
    %8 = vector.load %arg2[%c0_7, %c0_8, %c1, %c0_9] : memref<1x18x18x128xbf16, #tpu.memory_space<vmem>>, vector<1x16x16x128xbf16>
    %9 = vector.shape_cast %8 : vector<1x16x16x128xbf16> to vector<16x16x128xbf16>
    %10 = vector.shape_cast %9 : vector<16x16x128xbf16> to vector<256x128xbf16>
    %c1_10 = arith.constant 1 : index
    %c0_11 = arith.constant 0 : index
    %c0_12 = arith.constant 0 : index
    %11 = vector.load %arg3[%c1_10, %c0_11, %c0_12] : memref<9x128x128xbf16, #tpu.memory_space<vmem>>, vector<1x128x128xbf16>
    %12 = vector.shape_cast %11 : vector<1x128x128xbf16> to vector<128x128xbf16>
    %cst_13 = arith.constant dense<0.000000e+00> : vector<256x128xf32>
    %13 = tpu.matmul %10, %12, %cst_13 {dimension_numbers = #tpu.dot_dimension_numbers<[1], [0], [0], [1], [0, 0, 1, 1], [], []>} : vector<256x128xbf16>, vector<128x128xbf16>, vector<256x128xf32> -> vector<256x128xf32>
    %14 = arith.addf %7, %13 : vector<256x128xf32>
    %c0_14 = arith.constant 0 : index
    %c0_15 = arith.constant 0 : index
    %c2 = arith.constant 2 : index
    %c0_16 = arith.constant 0 : index
    %15 = vector.load %arg2[%c0_14, %c0_15, %c2, %c0_16] : memref<1x18x18x128xbf16, #tpu.memory_space<vmem>>, vector<1x16x16x128xbf16>
    %16 = vector.shape_cast %15 : vector<1x16x16x128xbf16> to vector<16x16x128xbf16>
    %17 = vector.shape_cast %16 : vector<16x16x128xbf16> to vector<256x128xbf16>
    %c2_17 = arith.constant 2 : index
    %c0_18 = arith.constant 0 : index
    %c0_19 = arith.constant 0 : index
    %18 = vector.load %arg3[%c2_17, %c0_18, %c0_19] : memref<9x128x128xbf16, #tpu.memory_space<vmem>>, vector<1x128x128xbf16>
    %19 = vector.shape_cast %18 : vector<1x128x128xbf16> to vector<128x128xbf16>
    %cst_20 = arith.constant dense<0.000000e+00> : vector<256x128xf32>
    %20 = tpu.matmul %17, %19, %cst_20 {dimension_numbers = #tpu.dot_dimension_numbers<[1], [0], [0], [1], [0, 0, 1, 1], [], []>} : vector<256x128xbf16>, vector<128x128xbf16>, vector<256x128xf32> -> vector<256x128xf32>
    %21 = arith.addf %14, %20 : vector<256x128xf32>
    %c0_21 = arith.constant 0 : index
    %c1_22 = arith.constant 1 : index
    %c0_23 = arith.constant 0 : index
    %c0_24 = arith.constant 0 : index
    %22 = vector.load %arg2[%c0_21, %c1_22, %c0_23, %c0_24] : memref<1x18x18x128xbf16, #tpu.memory_space<vmem>>, vector<1x16x16x128xbf16>
    %23 = vector.shape_cast %22 : vector<1x16x16x128xbf16> to vector<16x16x128xbf16>
    %24 = vector.shape_cast %23 : vector<16x16x128xbf16> to vector<256x128xbf16>
    %c3 = arith.constant 3 : index
    %c0_25 = arith.constant 0 : index
    %c0_26 = arith.constant 0 : index
    %25 = vector.load %arg3[%c3, %c0_25, %c0_26] : memref<9x128x128xbf16, #tpu.memory_space<vmem>>, vector<1x128x128xbf16>
    %26 = vector.shape_cast %25 : vector<1x128x128xbf16> to vector<128x128xbf16>
    %cst_27 = arith.constant dense<0.000000e+00> : vector<256x128xf32>
    %27 = tpu.matmul %24, %26, %cst_27 {dimension_numbers = #tpu.dot_dimension_numbers<[1], [0], [0], [1], [0, 0, 1, 1], [], []>} : vector<256x128xbf16>, vector<128x128xbf16>, vector<256x128xf32> -> vector<256x128xf32>
    %28 = arith.addf %21, %27 : vector<256x128xf32>
    %c0_28 = arith.constant 0 : index
    %c1_29 = arith.constant 1 : index
    %c1_30 = arith.constant 1 : index
    %c0_31 = arith.constant 0 : index
    %29 = vector.load %arg2[%c0_28, %c1_29, %c1_30, %c0_31] : memref<1x18x18x128xbf16, #tpu.memory_space<vmem>>, vector<1x16x16x128xbf16>
    %30 = vector.shape_cast %29 : vector<1x16x16x128xbf16> to vector<16x16x128xbf16>
    %31 = vector.shape_cast %30 : vector<16x16x128xbf16> to vector<256x128xbf16>
    %c4 = arith.constant 4 : index
    %c0_32 = arith.constant 0 : index
    %c0_33 = arith.constant 0 : index
    %32 = vector.load %arg3[%c4, %c0_32, %c0_33] : memref<9x128x128xbf16, #tpu.memory_space<vmem>>, vector<1x128x128xbf16>
    %33 = vector.shape_cast %32 : vector<1x128x128xbf16> to vector<128x128xbf16>
    %cst_34 = arith.constant dense<0.000000e+00> : vector<256x128xf32>
    %34 = tpu.matmul %31, %33, %cst_34 {dimension_numbers = #tpu.dot_dimension_numbers<[1], [0], [0], [1], [0, 0, 1, 1], [], []>} : vector<256x128xbf16>, vector<128x128xbf16>, vector<256x128xf32> -> vector<256x128xf32>
    %35 = arith.addf %28, %34 : vector<256x128xf32>
    %c0_35 = arith.constant 0 : index
    %c1_36 = arith.constant 1 : index
    %c2_37 = arith.constant 2 : index
    %c0_38 = arith.constant 0 : index
    %36 = vector.load %arg2[%c0_35, %c1_36, %c2_37, %c0_38] : memref<1x18x18x128xbf16, #tpu.memory_space<vmem>>, vector<1x16x16x128xbf16>
    %37 = vector.shape_cast %36 : vector<1x16x16x128xbf16> to vector<16x16x128xbf16>
    %38 = vector.shape_cast %37 : vector<16x16x128xbf16> to vector<256x128xbf16>
    %c5 = arith.constant 5 : index
    %c0_39 = arith.constant 0 : index
    %c0_40 = arith.constant 0 : index
    %39 = vector.load %arg3[%c5, %c0_39, %c0_40] : memref<9x128x128xbf16, #tpu.memory_space<vmem>>, vector<1x128x128xbf16>
    %40 = vector.shape_cast %39 : vector<1x128x128xbf16> to vector<128x128xbf16>
    %cst_41 = arith.constant dense<0.000000e+00> : vector<256x128xf32>
    %41 = tpu.matmul %38, %40, %cst_41 {dimension_numbers = #tpu.dot_dimension_numbers<[1], [0], [0], [1], [0, 0, 1, 1], [], []>} : vector<256x128xbf16>, vector<128x128xbf16>, vector<256x128xf32> -> vector<256x128xf32>
    %42 = arith.addf %35, %41 : vector<256x128xf32>
    %c0_42 = arith.constant 0 : index
    %c2_43 = arith.constant 2 : index
    %c0_44 = arith.constant 0 : index
    %c0_45 = arith.constant 0 : index
    %43 = vector.load %arg2[%c0_42, %c2_43, %c0_44, %c0_45] : memref<1x18x18x128xbf16, #tpu.memory_space<vmem>>, vector<1x16x16x128xbf16>
    %44 = vector.shape_cast %43 : vector<1x16x16x128xbf16> to vector<16x16x128xbf16>
    %45 = vector.shape_cast %44 : vector<16x16x128xbf16> to vector<256x128xbf16>
    %c6 = arith.constant 6 : index
    %c0_46 = arith.constant 0 : index
    %c0_47 = arith.constant 0 : index
    %46 = vector.load %arg3[%c6, %c0_46, %c0_47] : memref<9x128x128xbf16, #tpu.memory_space<vmem>>, vector<1x128x128xbf16>
    %47 = vector.shape_cast %46 : vector<1x128x128xbf16> to vector<128x128xbf16>
    %cst_48 = arith.constant dense<0.000000e+00> : vector<256x128xf32>
    %48 = tpu.matmul %45, %47, %cst_48 {dimension_numbers = #tpu.dot_dimension_numbers<[1], [0], [0], [1], [0, 0, 1, 1], [], []>} : vector<256x128xbf16>, vector<128x128xbf16>, vector<256x128xf32> -> vector<256x128xf32>
    %49 = arith.addf %42, %48 : vector<256x128xf32>
    %c0_49 = arith.constant 0 : index
    %c2_50 = arith.constant 2 : index
    %c1_51 = arith.constant 1 : index
    %c0_52 = arith.constant 0 : index
    %50 = vector.load %arg2[%c0_49, %c2_50, %c1_51, %c0_52] : memref<1x18x18x128xbf16, #tpu.memory_space<vmem>>, vector<1x16x16x128xbf16>
    %51 = vector.shape_cast %50 : vector<1x16x16x128xbf16> to vector<16x16x128xbf16>
    %52 = vector.shape_cast %51 : vector<16x16x128xbf16> to vector<256x128xbf16>
    %c7 = arith.constant 7 : index
    %c0_53 = arith.constant 0 : index
    %c0_54 = arith.constant 0 : index
    %53 = vector.load %arg3[%c7, %c0_53, %c0_54] : memref<9x128x128xbf16, #tpu.memory_space<vmem>>, vector<1x128x128xbf16>
    %54 = vector.shape_cast %53 : vector<1x128x128xbf16> to vector<128x128xbf16>
    %cst_55 = arith.constant dense<0.000000e+00> : vector<256x128xf32>
    %55 = tpu.matmul %52, %54, %cst_55 {dimension_numbers = #tpu.dot_dimension_numbers<[1], [0], [0], [1], [0, 0, 1, 1], [], []>} : vector<256x128xbf16>, vector<128x128xbf16>, vector<256x128xf32> -> vector<256x128xf32>
    %56 = arith.addf %49, %55 : vector<256x128xf32>
    %c0_56 = arith.constant 0 : index
    %c2_57 = arith.constant 2 : index
    %c2_58 = arith.constant 2 : index
    %c0_59 = arith.constant 0 : index
    %57 = vector.load %arg2[%c0_56, %c2_57, %c2_58, %c0_59] : memref<1x18x18x128xbf16, #tpu.memory_space<vmem>>, vector<1x16x16x128xbf16>
    %58 = vector.shape_cast %57 : vector<1x16x16x128xbf16> to vector<16x16x128xbf16>
    %59 = vector.shape_cast %58 : vector<16x16x128xbf16> to vector<256x128xbf16>
    %c8 = arith.constant 8 : index
    %c0_60 = arith.constant 0 : index
    %c0_61 = arith.constant 0 : index
    %60 = vector.load %arg3[%c8, %c0_60, %c0_61] : memref<9x128x128xbf16, #tpu.memory_space<vmem>>, vector<1x128x128xbf16>
    %61 = vector.shape_cast %60 : vector<1x128x128xbf16> to vector<128x128xbf16>
    %cst_62 = arith.constant dense<0.000000e+00> : vector<256x128xf32>
    %62 = tpu.matmul %59, %61, %cst_62 {dimension_numbers = #tpu.dot_dimension_numbers<[1], [0], [0], [1], [0, 0, 1, 1], [], []>} : vector<256x128xbf16>, vector<128x128xbf16>, vector<256x128xf32> -> vector<256x128xf32>
    %63 = arith.addf %56, %62 : vector<256x128xf32>
    %c0_63 = arith.constant 0 : index
    %c1_64 = arith.constant 1 : index
    %c1_65 = arith.constant 1 : index
    %c0_66 = arith.constant 0 : index
    %64 = vector.load %arg5[%c0_63, %c1_64, %c1_65, %c0_66] : memref<1x18x18x128xbf16, #tpu.memory_space<vmem>>, vector<1x16x16x128xbf16>
    %65 = vector.shape_cast %64 : vector<1x16x16x128xbf16> to vector<16x16x128xbf16>
    %66 = vector.shape_cast %65 : vector<16x16x128xbf16> to vector<256x128xbf16>
    %67 = arith.extf %66 : vector<256x128xbf16> to vector<256x128xf32>
    %c0_67 = arith.constant 0 : index
    %c0_68 = arith.constant 0 : index
    %68 = vector.load %arg4[%c0_67, %c0_68] : memref<1x128xf32, #tpu.memory_space<vmem>>, vector<1x128xf32>
    %69 = vector.broadcast %68 : vector<1x128xf32> to vector<256x128xf32>
    %70 = arith.addf %63, %69 : vector<256x128xf32>
    %71 = arith.addf %70, %67 : vector<256x128xf32>
    %cst_69 = arith.constant 0.000000e+00 : f32
    %72 = vector.broadcast %cst_69 : f32 to vector<256x128xf32>
    %73 = arith.maximumf %71, %72 : vector<256x128xf32>
    %74 = vector.shape_cast %73 : vector<256x128xf32> to vector<16x16x128xf32>
    %75 = arith.truncf %74 : vector<16x16x128xf32> to vector<16x16x128xbf16>
    %c0_70 = arith.constant 0 : index
    %c0_71 = arith.constant 0 : index
    %c0_72 = arith.constant 0 : index
    %c0_73 = arith.constant 0 : index
    %76 = vector.load %arg6[%c0_70, %c0_71, %c0_72, %c0_73] : memref<1x16x16x128xbf16, #tpu.memory_space<vmem>>, vector<1x16x16x128xbf16>
    %77 = vector.shape_cast %76 : vector<1x16x16x128xbf16> to vector<16x16x128xbf16>
    %78 = vector.shape_cast %75 : vector<16x16x128xbf16> to vector<1x16x16x128xbf16>
    tpu.vector_store %arg6[%c0_70, %c0_71, %c0_72, %c0_73], %78 {strides = array<i32>} : memref<1x16x16x128xbf16, #tpu.memory_space<vmem>>, vector<1x16x16x128xbf16>,
    return
  }
  func.func @transform_0(%arg0: i32, %arg1: i32) -> (i32, i32, i32, i32) {
    %c0_i32 = arith.constant 0 : i32
    %c0_i32_0 = arith.constant 0 : i32
    %c0_i32_1 = arith.constant 0 : i32
    %c0_i32_2 = arith.constant 0 : i32
    return %arg0, %c0_i32, %c0_i32_0, %c0_i32_1 : i32, i32, i32, i32
  }
  func.func @transform_1(%arg0: i32, %arg1: i32) -> (i32, i32, i32) {
    %c0_i32 = arith.constant 0 : i32
    %c0_i32_0 = arith.constant 0 : i32
    %c0_i32_1 = arith.constant 0 : i32
    return %c0_i32, %c0_i32_0, %arg1 : i32, i32, i32
  }
  func.func @transform_2(%arg0: i32, %arg1: i32) -> (i32, i32) {
    %c0_i32 = arith.constant 0 : i32
    %c0_i32_0 = arith.constant 0 : i32
    return %c0_i32, %arg1 : i32, i32
  }
  func.func @transform_3(%arg0: i32, %arg1: i32) -> (i32, i32, i32, i32) {
    %c0_i32 = arith.constant 0 : i32
    %c0_i32_0 = arith.constant 0 : i32
    %c0_i32_1 = arith.constant 0 : i32
    return %arg0, %c0_i32, %c0_i32_0, %arg1 : i32, i32, i32, i32
  }
  func.func @transform_4(%arg0: i32, %arg1: i32) -> (i32, i32, i32, i32) {
    %c0_i32 = arith.constant 0 : i32
    %c0_i32_0 = arith.constant 0 : i32
    %c0_i32_1 = arith.constant 0 : i32
    return %arg0, %c0_i32, %c0_i32_0, %arg1 : i32, i32, i32, i32
  }
}

module attributes {stable_mosaic.version = 11 : i64} {
  func.func @_conv1_kernel(%arg0: i32, %arg1: i32, %arg2: memref<1x18x18x128xbf16, #tpu.memory_space<vmem>>, %arg3: memref<9x128x128xbf16, #tpu.memory_space<vmem>>, %arg4: memref<1x128xf32, #tpu.memory_space<vmem>>, %arg5: memref<1x18x18x128xbf16, #tpu.memory_space<vmem>>) attributes {dimension_semantics = [#tpu.dimension_semantics<parallel>, #tpu.dimension_semantics<parallel>], iteration_bounds = array<i64: 2, 1>, scalar_prefetch = 0 : i64, scratch_operands = 0 : i64, tpu.core_type = #tpu.core_type<tc>, window_params = [{transform_indices = @transform_0, window_bounds = array<i64: 1, 18, 18, 128>}, {transform_indices = @transform_1, window_bounds = array<i64: 9, 128, 128>}, {transform_indices = @transform_2, window_bounds = array<i64: 1, 128>}, {transform_indices = @transform_3, window_bounds = array<i64: 1, 18, 18, 128>}]} {
    %cst = arith.constant 0.000000e+00 : bf16
    %0 = vector.broadcast %cst : bf16 to vector<18x18x128xbf16>
    %c0 = arith.constant 0 : index
    %c0_0 = arith.constant 0 : index
    %c0_1 = arith.constant 0 : index
    %c0_2 = arith.constant 0 : index
    %1 = vector.load %arg5[%c0, %c0_0, %c0_1, %c0_2] : memref<1x18x18x128xbf16, #tpu.memory_space<vmem>>, vector<1x18x18x128xbf16>
    %2 = vector.shape_cast %1 : vector<1x18x18x128xbf16> to vector<18x18x128xbf16>
    %3 = vector.shape_cast %0 : vector<18x18x128xbf16> to vector<1x18x18x128xbf16>
    tpu.vector_store %arg5[%c0, %c0_0, %c0_1, %c0_2], %3 {strides = array<i32>} : memref<1x18x18x128xbf16, #tpu.memory_space<vmem>>, vector<1x18x18x128xbf16>,
    %cst_3 = arith.constant 0.000000e+00 : f32
    %4 = vector.broadcast %cst_3 : f32 to vector<256x128xf32>
    %c0_4 = arith.constant 0 : index
    %c0_5 = arith.constant 0 : index
    %c0_6 = arith.constant 0 : index
    %c0_7 = arith.constant 0 : index
    %5 = vector.load %arg2[%c0_4, %c0_5, %c0_6, %c0_7] : memref<1x18x18x128xbf16, #tpu.memory_space<vmem>>, vector<1x16x16x128xbf16>
    %6 = vector.shape_cast %5 : vector<1x16x16x128xbf16> to vector<16x16x128xbf16>
    %7 = vector.shape_cast %6 : vector<16x16x128xbf16> to vector<256x128xbf16>
    %c0_8 = arith.constant 0 : index
    %c0_9 = arith.constant 0 : index
    %c0_10 = arith.constant 0 : index
    %8 = vector.load %arg3[%c0_8, %c0_9, %c0_10] : memref<9x128x128xbf16, #tpu.memory_space<vmem>>, vector<1x128x128xbf16>
    %9 = vector.shape_cast %8 : vector<1x128x128xbf16> to vector<128x128xbf16>
    %cst_11 = arith.constant dense<0.000000e+00> : vector<256x128xf32>
    %10 = tpu.matmul %7, %9, %cst_11 {dimension_numbers = #tpu.dot_dimension_numbers<[1], [0], [0], [1], [0, 0, 1, 1], [], []>} : vector<256x128xbf16>, vector<128x128xbf16>, vector<256x128xf32> -> vector<256x128xf32>
    %11 = arith.addf %4, %10 : vector<256x128xf32>
    %c0_12 = arith.constant 0 : index
    %c0_13 = arith.constant 0 : index
    %c1 = arith.constant 1 : index
    %c0_14 = arith.constant 0 : index
    %12 = vector.load %arg2[%c0_12, %c0_13, %c1, %c0_14] : memref<1x18x18x128xbf16, #tpu.memory_space<vmem>>, vector<1x16x16x128xbf16>
    %13 = vector.shape_cast %12 : vector<1x16x16x128xbf16> to vector<16x16x128xbf16>
    %14 = vector.shape_cast %13 : vector<16x16x128xbf16> to vector<256x128xbf16>
    %c1_15 = arith.constant 1 : index
    %c0_16 = arith.constant 0 : index
    %c0_17 = arith.constant 0 : index
    %15 = vector.load %arg3[%c1_15, %c0_16, %c0_17] : memref<9x128x128xbf16, #tpu.memory_space<vmem>>, vector<1x128x128xbf16>
    %16 = vector.shape_cast %15 : vector<1x128x128xbf16> to vector<128x128xbf16>
    %cst_18 = arith.constant dense<0.000000e+00> : vector<256x128xf32>
    %17 = tpu.matmul %14, %16, %cst_18 {dimension_numbers = #tpu.dot_dimension_numbers<[1], [0], [0], [1], [0, 0, 1, 1], [], []>} : vector<256x128xbf16>, vector<128x128xbf16>, vector<256x128xf32> -> vector<256x128xf32>
    %18 = arith.addf %11, %17 : vector<256x128xf32>
    %c0_19 = arith.constant 0 : index
    %c0_20 = arith.constant 0 : index
    %c2 = arith.constant 2 : index
    %c0_21 = arith.constant 0 : index
    %19 = vector.load %arg2[%c0_19, %c0_20, %c2, %c0_21] : memref<1x18x18x128xbf16, #tpu.memory_space<vmem>>, vector<1x16x16x128xbf16>
    %20 = vector.shape_cast %19 : vector<1x16x16x128xbf16> to vector<16x16x128xbf16>
    %21 = vector.shape_cast %20 : vector<16x16x128xbf16> to vector<256x128xbf16>
    %c2_22 = arith.constant 2 : index
    %c0_23 = arith.constant 0 : index
    %c0_24 = arith.constant 0 : index
    %22 = vector.load %arg3[%c2_22, %c0_23, %c0_24] : memref<9x128x128xbf16, #tpu.memory_space<vmem>>, vector<1x128x128xbf16>
    %23 = vector.shape_cast %22 : vector<1x128x128xbf16> to vector<128x128xbf16>
    %cst_25 = arith.constant dense<0.000000e+00> : vector<256x128xf32>
    %24 = tpu.matmul %21, %23, %cst_25 {dimension_numbers = #tpu.dot_dimension_numbers<[1], [0], [0], [1], [0, 0, 1, 1], [], []>} : vector<256x128xbf16>, vector<128x128xbf16>, vector<256x128xf32> -> vector<256x128xf32>
    %25 = arith.addf %18, %24 : vector<256x128xf32>
    %c0_26 = arith.constant 0 : index
    %c1_27 = arith.constant 1 : index
    %c0_28 = arith.constant 0 : index
    %c0_29 = arith.constant 0 : index
    %26 = vector.load %arg2[%c0_26, %c1_27, %c0_28, %c0_29] : memref<1x18x18x128xbf16, #tpu.memory_space<vmem>>, vector<1x16x16x128xbf16>
    %27 = vector.shape_cast %26 : vector<1x16x16x128xbf16> to vector<16x16x128xbf16>
    %28 = vector.shape_cast %27 : vector<16x16x128xbf16> to vector<256x128xbf16>
    %c3 = arith.constant 3 : index
    %c0_30 = arith.constant 0 : index
    %c0_31 = arith.constant 0 : index
    %29 = vector.load %arg3[%c3, %c0_30, %c0_31] : memref<9x128x128xbf16, #tpu.memory_space<vmem>>, vector<1x128x128xbf16>
    %30 = vector.shape_cast %29 : vector<1x128x128xbf16> to vector<128x128xbf16>
    %cst_32 = arith.constant dense<0.000000e+00> : vector<256x128xf32>
    %31 = tpu.matmul %28, %30, %cst_32 {dimension_numbers = #tpu.dot_dimension_numbers<[1], [0], [0], [1], [0, 0, 1, 1], [], []>} : vector<256x128xbf16>, vector<128x128xbf16>, vector<256x128xf32> -> vector<256x128xf32>
    %32 = arith.addf %25, %31 : vector<256x128xf32>
    %c0_33 = arith.constant 0 : index
    %c1_34 = arith.constant 1 : index
    %c1_35 = arith.constant 1 : index
    %c0_36 = arith.constant 0 : index
    %33 = vector.load %arg2[%c0_33, %c1_34, %c1_35, %c0_36] : memref<1x18x18x128xbf16, #tpu.memory_space<vmem>>, vector<1x16x16x128xbf16>
    %34 = vector.shape_cast %33 : vector<1x16x16x128xbf16> to vector<16x16x128xbf16>
    %35 = vector.shape_cast %34 : vector<16x16x128xbf16> to vector<256x128xbf16>
    %c4 = arith.constant 4 : index
    %c0_37 = arith.constant 0 : index
    %c0_38 = arith.constant 0 : index
    %36 = vector.load %arg3[%c4, %c0_37, %c0_38] : memref<9x128x128xbf16, #tpu.memory_space<vmem>>, vector<1x128x128xbf16>
    %37 = vector.shape_cast %36 : vector<1x128x128xbf16> to vector<128x128xbf16>
    %cst_39 = arith.constant dense<0.000000e+00> : vector<256x128xf32>
    %38 = tpu.matmul %35, %37, %cst_39 {dimension_numbers = #tpu.dot_dimension_numbers<[1], [0], [0], [1], [0, 0, 1, 1], [], []>} : vector<256x128xbf16>, vector<128x128xbf16>, vector<256x128xf32> -> vector<256x128xf32>
    %39 = arith.addf %32, %38 : vector<256x128xf32>
    %c0_40 = arith.constant 0 : index
    %c1_41 = arith.constant 1 : index
    %c2_42 = arith.constant 2 : index
    %c0_43 = arith.constant 0 : index
    %40 = vector.load %arg2[%c0_40, %c1_41, %c2_42, %c0_43] : memref<1x18x18x128xbf16, #tpu.memory_space<vmem>>, vector<1x16x16x128xbf16>
    %41 = vector.shape_cast %40 : vector<1x16x16x128xbf16> to vector<16x16x128xbf16>
    %42 = vector.shape_cast %41 : vector<16x16x128xbf16> to vector<256x128xbf16>
    %c5 = arith.constant 5 : index
    %c0_44 = arith.constant 0 : index
    %c0_45 = arith.constant 0 : index
    %43 = vector.load %arg3[%c5, %c0_44, %c0_45] : memref<9x128x128xbf16, #tpu.memory_space<vmem>>, vector<1x128x128xbf16>
    %44 = vector.shape_cast %43 : vector<1x128x128xbf16> to vector<128x128xbf16>
    %cst_46 = arith.constant dense<0.000000e+00> : vector<256x128xf32>
    %45 = tpu.matmul %42, %44, %cst_46 {dimension_numbers = #tpu.dot_dimension_numbers<[1], [0], [0], [1], [0, 0, 1, 1], [], []>} : vector<256x128xbf16>, vector<128x128xbf16>, vector<256x128xf32> -> vector<256x128xf32>
    %46 = arith.addf %39, %45 : vector<256x128xf32>
    %c0_47 = arith.constant 0 : index
    %c2_48 = arith.constant 2 : index
    %c0_49 = arith.constant 0 : index
    %c0_50 = arith.constant 0 : index
    %47 = vector.load %arg2[%c0_47, %c2_48, %c0_49, %c0_50] : memref<1x18x18x128xbf16, #tpu.memory_space<vmem>>, vector<1x16x16x128xbf16>
    %48 = vector.shape_cast %47 : vector<1x16x16x128xbf16> to vector<16x16x128xbf16>
    %49 = vector.shape_cast %48 : vector<16x16x128xbf16> to vector<256x128xbf16>
    %c6 = arith.constant 6 : index
    %c0_51 = arith.constant 0 : index
    %c0_52 = arith.constant 0 : index
    %50 = vector.load %arg3[%c6, %c0_51, %c0_52] : memref<9x128x128xbf16, #tpu.memory_space<vmem>>, vector<1x128x128xbf16>
    %51 = vector.shape_cast %50 : vector<1x128x128xbf16> to vector<128x128xbf16>
    %cst_53 = arith.constant dense<0.000000e+00> : vector<256x128xf32>
    %52 = tpu.matmul %49, %51, %cst_53 {dimension_numbers = #tpu.dot_dimension_numbers<[1], [0], [0], [1], [0, 0, 1, 1], [], []>} : vector<256x128xbf16>, vector<128x128xbf16>, vector<256x128xf32> -> vector<256x128xf32>
    %53 = arith.addf %46, %52 : vector<256x128xf32>
    %c0_54 = arith.constant 0 : index
    %c2_55 = arith.constant 2 : index
    %c1_56 = arith.constant 1 : index
    %c0_57 = arith.constant 0 : index
    %54 = vector.load %arg2[%c0_54, %c2_55, %c1_56, %c0_57] : memref<1x18x18x128xbf16, #tpu.memory_space<vmem>>, vector<1x16x16x128xbf16>
    %55 = vector.shape_cast %54 : vector<1x16x16x128xbf16> to vector<16x16x128xbf16>
    %56 = vector.shape_cast %55 : vector<16x16x128xbf16> to vector<256x128xbf16>
    %c7 = arith.constant 7 : index
    %c0_58 = arith.constant 0 : index
    %c0_59 = arith.constant 0 : index
    %57 = vector.load %arg3[%c7, %c0_58, %c0_59] : memref<9x128x128xbf16, #tpu.memory_space<vmem>>, vector<1x128x128xbf16>
    %58 = vector.shape_cast %57 : vector<1x128x128xbf16> to vector<128x128xbf16>
    %cst_60 = arith.constant dense<0.000000e+00> : vector<256x128xf32>
    %59 = tpu.matmul %56, %58, %cst_60 {dimension_numbers = #tpu.dot_dimension_numbers<[1], [0], [0], [1], [0, 0, 1, 1], [], []>} : vector<256x128xbf16>, vector<128x128xbf16>, vector<256x128xf32> -> vector<256x128xf32>
    %60 = arith.addf %53, %59 : vector<256x128xf32>
    %c0_61 = arith.constant 0 : index
    %c2_62 = arith.constant 2 : index
    %c2_63 = arith.constant 2 : index
    %c0_64 = arith.constant 0 : index
    %61 = vector.load %arg2[%c0_61, %c2_62, %c2_63, %c0_64] : memref<1x18x18x128xbf16, #tpu.memory_space<vmem>>, vector<1x16x16x128xbf16>
    %62 = vector.shape_cast %61 : vector<1x16x16x128xbf16> to vector<16x16x128xbf16>
    %63 = vector.shape_cast %62 : vector<16x16x128xbf16> to vector<256x128xbf16>
    %c8 = arith.constant 8 : index
    %c0_65 = arith.constant 0 : index
    %c0_66 = arith.constant 0 : index
    %64 = vector.load %arg3[%c8, %c0_65, %c0_66] : memref<9x128x128xbf16, #tpu.memory_space<vmem>>, vector<1x128x128xbf16>
    %65 = vector.shape_cast %64 : vector<1x128x128xbf16> to vector<128x128xbf16>
    %cst_67 = arith.constant dense<0.000000e+00> : vector<256x128xf32>
    %66 = tpu.matmul %63, %65, %cst_67 {dimension_numbers = #tpu.dot_dimension_numbers<[1], [0], [0], [1], [0, 0, 1, 1], [], []>} : vector<256x128xbf16>, vector<128x128xbf16>, vector<256x128xf32> -> vector<256x128xf32>
    %67 = arith.addf %60, %66 : vector<256x128xf32>
    %c0_68 = arith.constant 0 : index
    %c0_69 = arith.constant 0 : index
    %68 = vector.load %arg4[%c0_68, %c0_69] : memref<1x128xf32, #tpu.memory_space<vmem>>, vector<1x128xf32>
    %69 = vector.broadcast %68 : vector<1x128xf32> to vector<256x128xf32>
    %70 = arith.addf %67, %69 : vector<256x128xf32>
    %cst_70 = arith.constant 0.000000e+00 : f32
    %71 = vector.broadcast %cst_70 : f32 to vector<256x128xf32>
    %72 = arith.maximumf %70, %71 : vector<256x128xf32>
    %73 = vector.shape_cast %72 : vector<256x128xf32> to vector<16x16x128xf32>
    %74 = arith.truncf %73 : vector<16x16x128xf32> to vector<16x16x128xbf16>
    %c0_71 = arith.constant 0 : index
    %c1_72 = arith.constant 1 : index
    %c1_73 = arith.constant 1 : index
    %c0_74 = arith.constant 0 : index
    %75 = vector.load %arg5[%c0_71, %c1_72, %c1_73, %c0_74] : memref<1x18x18x128xbf16, #tpu.memory_space<vmem>>, vector<1x16x16x128xbf16>
    %76 = vector.shape_cast %75 : vector<1x16x16x128xbf16> to vector<16x16x128xbf16>
    %77 = vector.shape_cast %74 : vector<16x16x128xbf16> to vector<1x16x16x128xbf16>
    tpu.vector_store %arg5[%c0_71, %c1_72, %c1_73, %c0_74], %77 {strides = array<i32>} : memref<1x18x18x128xbf16, #tpu.memory_space<vmem>>, vector<1x16x16x128xbf16>,
    return
  }
  func.func @transform_0(%arg0: i32, %arg1: i32) -> (i32, i32, i32, i32) {
    %c0_i32 = arith.constant 0 : i32
    %c0_i32_0 = arith.constant 0 : i32
    %c0_i32_1 = arith.constant 0 : i32
    %c0_i32_2 = arith.constant 0 : i32
    return %arg0, %c0_i32, %c0_i32_0, %c0_i32_1 : i32, i32, i32, i32
  }
  func.func @transform_1(%arg0: i32, %arg1: i32) -> (i32, i32, i32) {
    %c0_i32 = arith.constant 0 : i32
    %c0_i32_0 = arith.constant 0 : i32
    %c0_i32_1 = arith.constant 0 : i32
    return %c0_i32, %c0_i32_0, %arg1 : i32, i32, i32
  }
  func.func @transform_2(%arg0: i32, %arg1: i32) -> (i32, i32) {
    %c0_i32 = arith.constant 0 : i32
    %c0_i32_0 = arith.constant 0 : i32
    return %c0_i32, %arg1 : i32, i32
  }
  func.func @transform_3(%arg0: i32, %arg1: i32) -> (i32, i32, i32, i32) {
    %c0_i32 = arith.constant 0 : i32
    %c0_i32_0 = arith.constant 0 : i32
    %c0_i32_1 = arith.constant 0 : i32
    return %arg0, %c0_i32, %c0_i32_0, %arg1 : i32, i32, i32, i32
  }
}

</mosaic_0001>

<llo_original>
// kernel: basic_block.3
$region0: #{basic_block.3}
  #allocation0 [shape = 'u32[]', space=smem, size = 0x4, offset = 0x4, fixed_abs, tag = 'smem constant byte address 0x4 - core index']
  #allocation1 [shape = 'u32[144,128]{1,0:T(1,128)}', space=vmem, size = 0x12000, scoped, tag = 'internal scratch']
  %s0 = inlined_call_operand.vmem [shape: bf16[2,18,18,128], index: 0, kind: input, shape index: {}]
  %s1 = inlined_call_operand.vmem [shape: bf16[9,128,128], index: 1, kind: input, shape index: {}]
  %s2 = inlined_call_operand.vmem [shape: f32[1,128], index: 2, kind: input, shape index: {}]
  %s3 = inlined_call_operand.vmem [shape: bf16[2,18,18,128], index: 3, kind: input, shape index: {}]
  %s4 = inlined_call_operand.vmem [shape: bf16[2,16,16,128], index: 4, kind: output, shape index: {}]
  %s5 = sld [smem:[#allocation0]]
  $region49: #{basic_block.3} parent=0
    _
  %s7 = ssub.s32 1, %s5
  %s8 = scalar_select 0, %s7, %s5
  loop: start=0, step=1, limit=4
  $region2: #{basic_block.3} parent=0 // loop_pre_header
    _
  $region3: #{basic_block.3} parent=0 // loop_header
    %s10 = sphi 0, %s14
    %p11 = scmp.ge.s32.totalorder %s10, 4
    %s17 = sphi 0, %s29
    %s18 = sphi 0, %s25
    %s19 = sphi 0, %s17
    %s20 = sphi 0, %s18
    %s21 = sphi 0, %s19
    %s22 = sphi 0, %s20
    %s32 = sphi 0, %s34
    %s35 = sphi 0, %s32
    %s36 = sphi 0, %s35
    %s52 = sphi 0, %s36
    %s58 = sphi 0, %s60
    %s61 = sphi 0, %s58
    %s62 = sphi 0, %s61
    %s78 = sphi 0, %s62
    %s84 = sphi 0, %s86
    %s87 = sphi 0, %s84
    %s88 = sphi 0, %s87
    %s104 = sphi 0, %s88
    %s112 = sphi 0, %s114
    %s115 = sphi 0, %s112
    %s116 = sphi 0, %s115
    %s132 = sphi 0, %s116
    %s140 = sphi 0, %s142
    %s143 = sphi 0, %s140
    %s144 = sphi 0, %s143
    %s160 = sphi 0, %s144
  $region4: #{basic_block.3} parent=0 // loop_header_branch
    %13 = sbr.rel (%p11) target = $region8
  $region5: #{basic_block.3} parent=0 // loop_body
    %s15 = ssub.s32 %s10, 1
    %s16 = ssub.s32 %s10, 2
    %s23 = sadd.s32 1, %s18
    %p24 = scmp.ge.s32.totalorder %s23, 1
    %s25 = scalar_select %p24, 0, %s23
    %s26 = sadd.s32 1, %s17
    %s27 = scalar_select %p24, %s26, %s17
    %p28 = scmp.ge.s32.totalorder %s27, 2
    %s29 = scalar_select %p28, 0, %s27
    %s30 = ssub.s32 %s17, %s29
    %p31 = scmp.eq.s32.totalorder %s30, 0
    %s33 = sadd.s32 %s32, 1
    %s34 = scalar_select %p31, %s32, %s33
    %p37 = pneg %p31
    %p38 = scmp.eq.s32.totalorder %s10, 1
    %p39 = por %p37, %p38
    %p40 = scmp.ne.s32.totalorder %s32, %s35
    %p41 = scmp.eq.s32.totalorder %s10, 0
    %p42 = por %p40, %p41
    %p43 = scmp.ne.s32.totalorder %s32, %s35
    %p44 = scmp.eq.s32.totalorder %s15, 1
    %p45 = por %p43, %p44
    %p46 = scmp.ne.s32.totalorder %s35, %s36
    %p47 = scmp.eq.s32.totalorder %s15, 0
    %p48 = por %p46, %p47
    %p49 = scmp.ne.s32.totalorder %s35, %s36
    %p50 = scmp.eq.s32.totalorder %s16, 1
    %p51 = por %p49, %p50
    %p53 = scmp.ne.s32.totalorder %s36, %s52
    %p54 = scmp.eq.s32.totalorder %s16, 0
    %p55 = por %p53, %p54
    %s56 = ssub.s32 %s18, %s25
    %p57 = scmp.eq.s32.totalorder %s56, 0
    %s59 = sadd.s32 %s58, 1
    %s60 = scalar_select %p57, %s58, %s59
    %p63 = pneg %p57
    %p64 = scmp.eq.s32.totalorder %s10, 1
    %p65 = por %p63, %p64
    %p66 = scmp.ne.s32.totalorder %s58, %s61
    %p67 = scmp.eq.s32.totalorder %s10, 0
    %p68 = por %p66, %p67
    %p69 = scmp.ne.s32.totalorder %s58, %s61
    %p70 = scmp.eq.s32.totalorder %s15, 1
    %p71 = por %p69, %p70
    %p72 = scmp.ne.s32.totalorder %s61, %s62
    %p73 = scmp.eq.s32.totalorder %s15, 0
    %p74 = por %p72, %p73
    %p75 = scmp.ne.s32.totalorder %s61, %s62
    %p76 = scmp.eq.s32.totalorder %s16, 1
    %p77 = por %p75, %p76
    %p79 = scmp.ne.s32.totalorder %s62, %s78
    %p80 = scmp.eq.s32.totalorder %s16, 0
    %p81 = por %p79, %p80
    %s82 = ssub.s32 %s18, %s25
    %p83 = scmp.eq.s32.totalorder %s82, 0
    %s85 = sadd.s32 %s84, 1
    %s86 = scalar_select %p83, %s84, %s85
    %p89 = pneg %p83
    %p90 = scmp.eq.s32.totalorder %s10, 1
    %p91 = por %p89, %p90
    %p92 = scmp.ne.s32.totalorder %s84, %s87
    %p93 = scmp.eq.s32.totalorder %s10, 0
    %p94 = por %p92, %p93
    %p95 = scmp.ne.s32.totalorder %s84, %s87
    %p96 = scmp.eq.s32.totalorder %s15, 1
    %p97 = por %p95, %p96
    %p98 = scmp.ne.s32.totalorder %s87, %s88
    %p99 = scmp.eq.s32.totalorder %s15, 0
    %p100 = por %p98, %p99
    %p101 = scmp.ne.s32.totalorder %s87, %s88
    %p102 = scmp.eq.s32.totalorder %s16, 1
    %p103 = por %p101, %p102
    %p105 = scmp.ne.s32.totalorder %s88, %s104
    %p106 = scmp.eq.s32.totalorder %s16, 0
    %p107 = por %p105, %p106
    %s108 = ssub.s32 %s17, %s29
    %s109 = ssub.s32 %s18, %s25
    %s110 = sor.u32 %s108, %s109
    %p111 = scmp.eq.s32.totalorder %s110, 0
    %s113 = sadd.s32 %s112, 1
    %s114 = scalar_select %p111, %s112, %s113
    %p117 = pneg %p111
    %p118 = scmp.eq.s32.totalorder %s10, 1
    %p119 = por %p117, %p118
    %p120 = scmp.ne.s32.totalorder %s112, %s115
    %p121 = scmp.eq.s32.totalorder %s10, 0
    %p122 = por %p120, %p121
    %p123 = scmp.ne.s32.totalorder %s112, %s115
    %p124 = scmp.eq.s32.totalorder %s15, 1
    %p125 = por %p123, %p124
    %p126 = scmp.ne.s32.totalorder %s115, %s116
    %p127 = scmp.eq.s32.totalorder %s15, 0
    %p128 = por %p126, %p127
    %p129 = scmp.ne.s32.totalorder %s115, %s116
    %p130 = scmp.eq.s32.totalorder %s16, 1
    %p131 = por %p129, %p130
    %p133 = scmp.ne.s32.totalorder %s116, %s132
    %p134 = scmp.eq.s32.totalorder %s16, 0
    %p135 = por %p133, %p134
    %s136 = ssub.s32 %s17, %s29
    %s137 = ssub.s32 %s18, %s25
    %s138 = sor.u32 %s136, %s137
    %p139 = scmp.eq.s32.totalorder %s138, 0
    %s141 = sadd.s32 %s140, 1
    %s142 = scalar_select %p139, %s140, %s141
    %p145 = pneg %p139
    %p146 = scmp.eq.s32.totalorder %s10, 1
    %p147 = por %p145, %p146
    %p148 = scmp.ne.s32.totalorder %s140, %s143
    %p149 = scmp.eq.s32.totalorder %s10, 0
    %p150 = por %p148, %p149
    %p151 = scmp.ne.s32.totalorder %s140, %s143
    %p152 = scmp.eq.s32.totalorder %s15, 1
    %p153 = por %p151, %p152
    %p154 = scmp.ne.s32.totalorder %s143, %s144
    %p155 = scmp.eq.s32.totalorder %s15, 0
    %p156 = por %p154, %p155
    %p157 = scmp.ne.s32.totalorder %s143, %s144
    %p158 = scmp.eq.s32.totalorder %s16, 1
    %p159 = por %p157, %p158
    %p161 = scmp.ne.s32.totalorder %s144, %s160
    %p162 = scmp.eq.s32.totalorder %s16, 0
    %p163 = por %p161, %p162
    %p164 = scmp.le.s32.totalorder 1, %s10
    %p165 = scmp.lt.s32.totalorder %s10, 3
    %p166 = pnand %p164, %p165
    %p167 = pneg %p166
    // Predicated region
    $region9: #{basic_block.3} parent=5 // pred_check
      _
    $region10: #{basic_block.3} parent=5 // pred_check_branch
      %169 = sbr.rel (%p166) target = $region12
    $region11: #{basic_block.3} parent=5 // pred_region
      %s170 = ssub.s32 %s10, 1
      // Predicated region
      $region13: #{basic_block.3} parent=11 // pred_check
        %p171 = pneg %p74
      $region14: #{basic_block.3} parent=11 // pred_check_branch
        %173 = sbr.rel (%p171) target = $region16
      $region15: #{basic_block.3} parent=11 // pred_region
        %p174 = scmp.lt.s32.totalorder %s20, 0
        %s175 = scalar_select %p174, %s20, 0
        %s176 = smul.addr %s175, 4
        %s177 = scalar_lea.vmem %s1, %s176
      $region16: #{basic_block.3} parent=11 // pred_fallthru
        _
      // Predicated region
      $region17: #{basic_block.3} parent=11 // pred_check
        %p178 = pneg %p100
      $region18: #{basic_block.3} parent=11 // pred_check_branch
        %180 = sbr.rel (%p178) target = $region20
      $region19: #{basic_block.3} parent=11 // pred_region
        %p181 = scmp.lt.s32.totalorder %s20, 0
        %s182 = scalar_select %p181, %s20, 0
        %s183 = scalar_lea.vmem %s2, %s182
      $region20: #{basic_block.3} parent=11 // pred_fallthru
        _
    $region12: #{basic_block.3} parent=5 // pred_fallthru
      _
    %p184 = scmp.lt.s32.totalorder %s10, 2
    // Predicated region
    $region21: #{basic_block.3} parent=5 // pred_check
      %p185 = pneg %p184
    $region22: #{basic_block.3} parent=5 // pred_check_branch
      %187 = sbr.rel (%p185) target = $region24
    $region23: #{basic_block.3} parent=5 // pred_region
      // Predicated region
      $region25: #{basic_block.3} parent=23 // pred_check
        %p188 = pneg %p42
      $region26: #{basic_block.3} parent=23 // pred_check_branch
        %190 = sbr.rel (%p188) target = $region28
      $region27: #{basic_block.3} parent=23 // pred_region
        %p191 = scmp.lt.s32.totalorder %s17, 1
        %s192 = scalar_select %p191, %s17, 1
        %s193 = smul.addr %s192, 54
        %s194 = smul.addr %s193, 4
        %s195 = scalar_lea.vmem %s0, %s194
      $region28: #{basic_block.3} parent=23 // pred_fallthru
        _
      // Predicated region
      $region29: #{basic_block.3} parent=23 // pred_check
        %p196 = pneg %p122
      $region30: #{basic_block.3} parent=23 // pred_check_branch
        %198 = sbr.rel (%p196) target = $region32
      $region31: #{basic_block.3} parent=23 // pred_region
        %p199 = scmp.lt.s32.totalorder %s17, 1
        %s200 = scalar_select %p199, %s17, 1
        %p201 = scmp.lt.s32.totalorder %s18, 0
        %s202 = scalar_select %p201, %s18, 0
        %s203 = smul.addr %s200, 54
        %s204 = sadd.s32 %s202, %s203
        %s205 = smul.addr %s204, 4
        %s206 = scalar_lea.vmem %s3, %s205
      $region32: #{basic_block.3} parent=23 // pred_fallthru
        _
    $region24: #{basic_block.3} parent=5 // pred_fallthru
      _
    %p207 = scmp.le.s32.totalorder 1, %s10
    %p208 = scmp.lt.s32.totalorder %s10, 3
    %p209 = pnand %p207, %p208
    %p210 = pneg %p209
    // Predicated region
    $region33: #{basic_block.3} parent=5 // pred_check
      _
    $region34: #{basic_block.3} parent=5 // pred_check_branch
      %212 = sbr.rel (%p209) target = $region36
    $region35: #{basic_block.3} parent=5 // pred_region
      %s213 = ssub.s32 %s10, 1
      %p214 = scmp.lt.s32.totalorder %s19, 1
      %s215 = scalar_select %p214, %s19, 1
      %s216 = smul.addr %s215, 54
      %s217 = smul.addr %s216, 4
      %s218 = scalar_lea.vmem %s0, %s217
      %p219 = pneg %p48
      %p220 = pneg %p45
      %p221 = scmp.lt.s32.totalorder %s20, 0
      %s222 = scalar_select %p221, %s20, 0
      %s223 = smul.addr %s222, 4
      %s224 = scalar_lea.vmem %s1, %s223
      %p225 = pneg %p74
      %p226 = pneg %p71
      %p227 = scmp.lt.s32.totalorder %s20, 0
      %s228 = scalar_select %p227, %s20, 0
      %s229 = scalar_lea.vmem %s2, %s228
      %p230 = pneg %p100
      %p231 = pneg %p97
      %p232 = scmp.lt.s32.totalorder %s19, 1
      %s233 = scalar_select %p232, %s19, 1
      %p234 = scmp.lt.s32.totalorder %s20, 0
      %s235 = scalar_select %p234, %s20, 0
      %s236 = smul.addr %s233, 54
      %s237 = sadd.s32 %s235, %s236
      %s238 = smul.addr %s237, 4
      %s239 = scalar_lea.vmem %s3, %s238
      %p240 = pneg %p128
      %p241 = pneg %p125
      %p242 = pneg %p156
      %p243 = pneg %p153
      %p244 = scmp.lt.s32.totalorder %s19, 1
      %s245 = scalar_select %p244, %s19, 1
      %p246 = scmp.lt.s32.totalorder %s20, 0
      %s247 = scalar_select %p246, %s20, 0
      %s248 = smul.addr %s245, 32
      %s249 = sadd.s32 %s247, %s248
      %s250 = smul.addr %s249, 4
      %s251 = scalar_lea.vmem %s4, %s250
      %p252 = scmp.lt.s32.totalorder %s19, 1
      %s253 = scalar_select %p252, %s19, 1
      %s254 = smul.addr %s253, 54
      %s255 = smul.addr %s254, 4
      %s256 = scalar_lea.vmem %s0, %s255
      %p257 = scmp.lt.s32.totalorder %s20, 0
      %s258 = scalar_select %p257, %s20, 0
      %s259 = smul.addr %s258, 4
      %s260 = scalar_lea.vmem %s1, %s259
      %p261 = scmp.lt.s32.totalorder %s20, 0
      %s262 = scalar_select %p261, %s20, 0
      %s263 = scalar_lea.vmem %s2, %s262
      %p264 = scmp.lt.s32.totalorder %s19, 1
      %s265 = scalar_select %p264, %s19, 1
      %p266 = scmp.lt.s32.totalorder %s20, 0
      %s267 = scalar_select %p266, %s20, 0
      %s268 = smul.addr %s265, 54
      %s269 = sadd.s32 %s267, %s268
      %s270 = smul.addr %s269, 4
      %s271 = scalar_lea.vmem %s3, %s270
      %p272 = scmp.lt.s32.totalorder %s19, 1
      %s273 = scalar_select %p272, %s19, 1
      %p274 = scmp.lt.s32.totalorder %s20, 0
      %s275 = scalar_select %p274, %s20, 0
      %s276 = smul.addr %s273, 32
      %s277 = sadd.s32 %s275, %s276
      %s278 = smul.addr %s277, 4
      %s279 = scalar_lea.vmem %s4, %s278
      %v281 = vld [vmem:[%s256] sm:$0xf]
      %v282 = vld [vmem:[%s256 + $0x4] sm:$0xf]
      %v283 = vld [vmem:[%s256 + $0xc] sm:$0xf]
      %v284 = vld [vmem:[%s256 + $0x10] sm:$0xf]
      %v285 = vld [vmem:[%s256 + $0x18] sm:$0xf]
      %v286 = vld [vmem:[%s256 + $0x1c] sm:$0xf]
      %v287 = vld [vmem:[%s256 + $0x24] sm:$0xf]
      %v288 = vld [vmem:[%s256 + $0x28] sm:$0xf]
      %v289 = vld [vmem:[%s256 + $0x30] sm:$0xf]
      %v290 = vld [vmem:[%s256 + $0x34] sm:$0xf]
      %v291 = vld [vmem:[%s256 + $0x3c] sm:$0xf]
      %v292 = vld [vmem:[%s256 + $0x40] sm:$0xf]
      %v293 = vld [vmem:[%s256 + $0x48] sm:$0xf]
      %v294 = vld [vmem:[%s256 + $0x4c] sm:$0xf]
      %v295 = vld [vmem:[%s256 + $0x54] sm:$0xf]
      %v296 = vld [vmem:[%s256 + $0x58] sm:$0xf]
      %v297 = vld [vmem:[%s256 + $0x60] sm:$0xf]
      %v298 = vld [vmem:[%s256 + $0x64] sm:$0xf]
      %v299 = vld [vmem:[%s256 + $0x6c] sm:$0xf]
      %v300 = vld [vmem:[%s256 + $0x70] sm:$0xf]
      %v301 = vld [vmem:[%s256 + $0x78] sm:$0xf]
      %v302 = vld [vmem:[%s256 + $0x7c] sm:$0xf]
      %v303 = vld [vmem:[%s256 + $0x84] sm:$0xf]
      %v304 = vld [vmem:[%s256 + $0x88] sm:$0xf]
      %v305 = vld [vmem:[%s256 + $0x90] sm:$0xf]
      %v306 = vld [vmem:[%s256 + $0x94] sm:$0xf]
      %v307 = vld [vmem:[%s256 + $0x9c] sm:$0xf]
      %v308 = vld [vmem:[%s256 + $0xa0] sm:$0xf]
      %v309 = vld [vmem:[%s256 + $0xa8] sm:$0xf]
      %v310 = vld [vmem:[%s256 + $0xac] sm:$0xf]
      %v311 = vld [vmem:[%s256 + $0xb4] sm:$0xf]
      %v312 = vld [vmem:[%s256 + $0xb8] sm:$0xf]
      %v313 = vld [vmem:[%s260] sm:$0xf]
      %v314 = vld [vmem:[%s260 + $0x4] sm:$0xf]
      %v315 = vld [vmem:[%s260 + $0x8] sm:$0xf]
      %v316 = vld [vmem:[%s260 + $0xc] sm:$0xf]
      %v317 = vld [vmem:[%s260 + $0x10] sm:$0xf]
      %v318 = vld [vmem:[%s260 + $0x14] sm:$0xf]
      %v319 = vld [vmem:[%s260 + $0x18] sm:$0xf]
      %v320 = vld [vmem:[%s260 + $0x1c] sm:$0xf]
      %v321 = vld [vmem:[%s260 + $0x20] sm:$0xf]
      %v322 = vld [vmem:[%s260 + $0x24] sm:$0xf]
      %v323 = vld [vmem:[%s260 + $0x28] sm:$0xf]
      %v324 = vld [vmem:[%s260 + $0x2c] sm:$0xf]
      %v325 = vld [vmem:[%s260 + $0x30] sm:$0xf]
      %v326 = vld [vmem:[%s260 + $0x34] sm:$0xf]
      %v327 = vld [vmem:[%s260 + $0x38] sm:$0xf]
      %v328 = vld [vmem:[%s260 + $0x3c] sm:$0xf]
      %v329 = vld [vmem:[%s256 + $0x8] sm:$0x1]
      %v330 = vld [vmem:[%s256 + $0x14] sm:$0x1]
      %v331 = vld [vmem:[%s256 + $0x20] sm:$0x1]
      %v332 = vld [vmem:[%s256 + $0x2c] sm:$0x1]
      %v333 = vld [vmem:[%s256 + $0x38] sm:$0x1]
      %v334 = vld [vmem:[%s256 + $0x44] sm:$0x1]
      %v335 = vld [vmem:[%s256 + $0x50] sm:$0x1]
      %v336 = vld [vmem:[%s256 + $0x5c] sm:$0x1]
      %v337 = vld [vmem:[%s256 + $0x68] sm:$0x1]
      %v338 = vld [vmem:[%s256 + $0x74] sm:$0x1]
      %v339 = vld [vmem:[%s256 + $0x80] sm:$0x1]
      %v340 = vld [vmem:[%s256 + $0x8c] sm:$0x1]
      %v341 = vld [vmem:[%s256 + $0x98] sm:$0x1]
      %v342 = vld [vmem:[%s256 + $0xa4] sm:$0x1]
      %v343 = vld [vmem:[%s256 + $0xb0] sm:$0x1]
      %v344 = vld [vmem:[%s256 + $0xbc] sm:$0x1]
      %vm345 = vsmask.f32 3328
      %vm346 = vsmask.f32 7440
      %vm347 = vmor %vm345, %vm346
      %v349 = vshrl.u32 %v281, 16
      %v351 = vrot.slane %v349, 4
      %v352 = vshll.u32 %v281, 16
      %v354 = vrot.slane %v352, 5
      %v355 = vor.u32 %v351, %v354
      %v356 = vrot.slane %v355, 4
      %v358 = vshll.u32 %v282, 16
      %v360 = vrot.slane %v358, 5
      %v361 = vsel %vm347, %v356, %v360
      %v362 = vshrl.u32 %v282, 16
      %v364 = vrot.slane %v362, 4
      %v365 = vor.u32 %v364, %v360
      %v366 = vrot.slane %v365, 4
      %v368 = vshll.u32 %v329, 16
      %v370 = vrot.slane %v368, 5
      %v371 = vsel %vm347, %v366, %v370
      %v373 = vshrl.u32 %v283, 16
      %v375 = vrot.slane %v373, 4
      %v376 = vshll.u32 %v283, 16
      %v378 = vrot.slane %v376, 5
      %v379 = vor.u32 %v375, %v378
      %v380 = vrot.slane %v379, 4
      %v382 = vshll.u32 %v284, 16
      %v384 = vrot.slane %v382, 5
      %v385 = vsel %vm347, %v380, %v384
      %v386 = vshrl.u32 %v284, 16
      %v388 = vrot.slane %v386, 4
      %v389 = vor.u32 %v388, %v384
      %v390 = vrot.slane %v389, 4
      %v392 = vshll.u32 %v330, 16
      %v394 = vrot.slane %v392, 5
      %v395 = vsel %vm347, %v390, %v394
      %v397 = vshrl.u32 %v285, 16
      %v399 = vrot.slane %v397, 4
      %v400 = vshll.u32 %v285, 16
      %v402 = vrot.slane %v400, 5
      %v403 = vor.u32 %v399, %v402
      %v404 = vrot.slane %v403, 4
      %v406 = vshll.u32 %v286, 16
      %v408 = vrot.slane %v406, 5
      %v409 = vsel %vm347, %v404, %v408
      %v410 = vshrl.u32 %v286, 16
      %v412 = vrot.slane %v410, 4
      %v413 = vor.u32 %v412, %v408
      %v414 = vrot.slane %v413, 4
      %v416 = vshll.u32 %v331, 16
      %v418 = vrot.slane %v416, 5
      %v419 = vsel %vm347, %v414, %v418
      %v421 = vshrl.u32 %v287, 16
      %v423 = vrot.slane %v421, 4
      %v424 = vshll.u32 %v287, 16
      %v426 = vrot.slane %v424, 5
      %v427 = vor.u32 %v423, %v426
      %v428 = vrot.slane %v427, 4
      %v430 = vshll.u32 %v288, 16
      %v432 = vrot.slane %v430, 5
      %v433 = vsel %vm347, %v428, %v432
      %v434 = vshrl.u32 %v288, 16
      %v436 = vrot.slane %v434, 4
      %v437 = vor.u32 %v436, %v432
      %v438 = vrot.slane %v437, 4
      %v440 = vshll.u32 %v332, 16
      %v442 = vrot.slane %v440, 5
      %v443 = vsel %vm347, %v438, %v442
      %v445 = vshrl.u32 %v289, 16
      %v447 = vrot.slane %v445, 4
      %v448 = vshll.u32 %v289, 16
      %v450 = vrot.slane %v448, 5
      %v451 = vor.u32 %v447, %v450
      %v452 = vrot.slane %v451, 4
      %v454 = vshll.u32 %v290, 16
      %v456 = vrot.slane %v454, 5
      %v457 = vsel %vm347, %v452, %v456
      %v458 = vshrl.u32 %v290, 16
      %v460 = vrot.slane %v458, 4
      %v461 = vor.u32 %v460, %v456
      %v462 = vrot.slane %v461, 4
      %v464 = vshll.u32 %v333, 16
      %v466 = vrot.slane %v464, 5
      %v467 = vsel %vm347, %v462, %v466
      %v469 = vshrl.u32 %v291, 16
      %v471 = vrot.slane %v469, 4
      %v472 = vshll.u32 %v291, 16
      %v474 = vrot.slane %v472, 5
      %v475 = vor.u32 %v471, %v474
      %v476 = vrot.slane %v475, 4
      %v478 = vshll.u32 %v292, 16
      %v480 = vrot.slane %v478, 5
      %v481 = vsel %vm347, %v476, %v480
      %v482 = vshrl.u32 %v292, 16
      %v484 = vrot.slane %v482, 4
      %v485 = vor.u32 %v484, %v480
      %v486 = vrot.slane %v485, 4
      %v488 = vshll.u32 %v334, 16
      %v490 = vrot.slane %v488, 5
      %v491 = vsel %vm347, %v486, %v490
      %v493 = vshrl.u32 %v293, 16
      %v495 = vrot.slane %v493, 4
      %v496 = vshll.u32 %v293, 16
      %v498 = vrot.slane %v496, 5
      %v499 = vor.u32 %v495, %v498
      %v500 = vrot.slane %v499, 4
      %v502 = vshll.u32 %v294, 16
      %v504 = vrot.slane %v502, 5
      %v505 = vsel %vm347, %v500, %v504
      %v506 = vshrl.u32 %v294, 16
      %v508 = vrot.slane %v506, 4
      %v509 = vor.u32 %v508, %v504
      %v510 = vrot.slane %v509, 4
      %v512 = vshll.u32 %v335, 16
      %v514 = vrot.slane %v512, 5
      %v515 = vsel %vm347, %v510, %v514
      %v517 = vshrl.u32 %v295, 16
      %v519 = vrot.slane %v517, 4
      %v520 = vshll.u32 %v295, 16
      %v522 = vrot.slane %v520, 5
      %v523 = vor.u32 %v519, %v522
      %v524 = vrot.slane %v523, 4
      %v526 = vshll.u32 %v296, 16
      %v528 = vrot.slane %v526, 5
      %v529 = vsel %vm347, %v524, %v528
      %v530 = vshrl.u32 %v296, 16
      %v532 = vrot.slane %v530, 4
      %v533 = vor.u32 %v532, %v528
      %v534 = vrot.slane %v533, 4
      %v536 = vshll.u32 %v336, 16
      %v538 = vrot.slane %v536, 5
      %v539 = vsel %vm347, %v534, %v538
      %v541 = vshrl.u32 %v297, 16
      %v543 = vrot.slane %v541, 4
      %v544 = vshll.u32 %v297, 16
      %v546 = vrot.slane %v544, 5
      %v547 = vor.u32 %v543, %v546
      %v548 = vrot.slane %v547, 4
      %v550 = vshll.u32 %v298, 16
      %v552 = vrot.slane %v550, 5
      %v553 = vsel %vm347, %v548, %v552
      %v554 = vshrl.u32 %v298, 16
      %v556 = vrot.slane %v554, 4
      %v557 = vor.u32 %v556, %v552
      %v558 = vrot.slane %v557, 4
      %v560 = vshll.u32 %v337, 16
      %v562 = vrot.slane %v560, 5
      %v563 = vsel %vm347, %v558, %v562
      %v565 = vshrl.u32 %v299, 16
      %v567 = vrot.slane %v565, 4
      %v568 = vshll.u32 %v299, 16
      %v570 = vrot.slane %v568, 5
      %v571 = vor.u32 %v567, %v570
      %v572 = vrot.slane %v571, 4
      %v574 = vshll.u32 %v300, 16
      %v576 = vrot.slane %v574, 5
      %v577 = vsel %vm347, %v572, %v576
      %v578 = vshrl.u32 %v300, 16
      %v580 = vrot.slane %v578, 4
      %v581 = vor.u32 %v580, %v576
      %v582 = vrot.slane %v581, 4
      %v584 = vshll.u32 %v338, 16
      %v586 = vrot.slane %v584, 5
      %v587 = vsel %vm347, %v582, %v586
      %v589 = vshrl.u32 %v301, 16
      %v591 = vrot.slane %v589, 4
      %v592 = vshll.u32 %v301, 16
      %v594 = vrot.slane %v592, 5
      %v595 = vor.u32 %v591, %v594
      %v596 = vrot.slane %v595, 4
      %v598 = vshll.u32 %v302, 16
      %v600 = vrot.slane %v598, 5
      %v601 = vsel %vm347, %v596, %v600
      %v602 = vshrl.u32 %v302, 16
      %v604 = vrot.slane %v602, 4
      %v605 = vor.u32 %v604, %v600
      %v606 = vrot.slane %v605, 4
      %v608 = vshll.u32 %v339, 16
      %v610 = vrot.slane %v608, 5
      %v611 = vsel %vm347, %v606, %v610
      %v613 = vshrl.u32 %v303, 16
      %v615 = vrot.slane %v613, 4
      %v616 = vshll.u32 %v303, 16
      %v618 = vrot.slane %v616, 5
      %v619 = vor.u32 %v615, %v618
      %v620 = vrot.slane %v619, 4
      %v622 = vshll.u32 %v304, 16
      %v624 = vrot.slane %v622, 5
      %v625 = vsel %vm347, %v620, %v624
      %v626 = vshrl.u32 %v304, 16
      %v628 = vrot.slane %v626, 4
      %v629 = vor.u32 %v628, %v624
      %v630 = vrot.slane %v629, 4
      %v632 = vshll.u32 %v340, 16
      %v634 = vrot.slane %v632, 5
      %v635 = vsel %vm347, %v630, %v634
      %v637 = vshrl.u32 %v305, 16
      %v639 = vrot.slane %v637, 4
      %v640 = vshll.u32 %v305, 16
      %v642 = vrot.slane %v640, 5
      %v643 = vor.u32 %v639, %v642
      %v644 = vrot.slane %v643, 4
      %v646 = vshll.u32 %v306, 16
      %v648 = vrot.slane %v646, 5
      %v649 = vsel %vm347, %v644, %v648
      %v650 = vshrl.u32 %v306, 16
      %v652 = vrot.slane %v650, 4
      %v653 = vor.u32 %v652, %v648
      %v654 = vrot.slane %v653, 4
      %v656 = vshll.u32 %v341, 16
      %v658 = vrot.slane %v656, 5
      %v659 = vsel %vm347, %v654, %v658
      %v661 = vshrl.u32 %v307, 16
      %v663 = vrot.slane %v661, 4
      %v664 = vshll.u32 %v307, 16
      %v666 = vrot.slane %v664, 5
      %v667 = vor.u32 %v663, %v666
      %v668 = vrot.slane %v667, 4
      %v670 = vshll.u32 %v308, 16
      %v672 = vrot.slane %v670, 5
      %v673 = vsel %vm347, %v668, %v672
      %v674 = vshrl.u32 %v308, 16
      %v676 = vrot.slane %v674, 4
      %v677 = vor.u32 %v676, %v672
      %v678 = vrot.slane %v677, 4
      %v680 = vshll.u32 %v342, 16
      %v682 = vrot.slane %v680, 5
      %v683 = vsel %vm347, %v678, %v682
      %v685 = vshrl.u32 %v309, 16
      %v687 = vrot.slane %v685, 4
      %v688 = vshll.u32 %v309, 16
      %v690 = vrot.slane %v688, 5
      %v691 = vor.u32 %v687, %v690
      %v692 = vrot.slane %v691, 4
      %v694 = vshll.u32 %v310, 16
      %v696 = vrot.slane %v694, 5
      %v697 = vsel %vm347, %v692, %v696
      %v698 = vshrl.u32 %v310, 16
      %v700 = vrot.slane %v698, 4
      %v701 = vor.u32 %v700, %v696
      %v702 = vrot.slane %v701, 4
      %v704 = vshll.u32 %v343, 16
      %v706 = vrot.slane %v704, 5
      %v707 = vsel %vm347, %v702, %v706
      %v709 = vshrl.u32 %v311, 16
      %v711 = vrot.slane %v709, 4
      %v712 = vshll.u32 %v311, 16
      %v714 = vrot.slane %v712, 5
      %v715 = vor.u32 %v711, %v714
      %v716 = vrot.slane %v715, 4
      %v718 = vshll.u32 %v312, 16
      %v720 = vrot.slane %v718, 5
      %v721 = vsel %vm347, %v716, %v720
      %v722 = vshrl.u32 %v312, 16
      %v724 = vrot.slane %v722, 4
      %v725 = vor.u32 %v724, %v720
      %v726 = vrot.slane %v725, 4
      %v728 = vshll.u32 %v344, 16
      %v730 = vrot.slane %v728, 5
      %v731 = vsel %vm347, %v726, %v730
      %s732 = scalar_lea.vmem %s260, 64
      %v733 = vld [vmem:[%s732] sm:$0xf]
      %v734 = vld [vmem:[%s732 + $0x4] sm:$0xf]
      %v735 = vld [vmem:[%s732 + $0x8] sm:$0xf]
      %v736 = vld [vmem:[%s732 + $0xc] sm:$0xf]
      %v737 = vld [vmem:[%s732 + $0x10] sm:$0xf]
      %v738 = vld [vmem:[%s732 + $0x14] sm:$0xf]
      %v739 = vld [vmem:[%s732 + $0x18] sm:$0xf]
      %v740 = vld [vmem:[%s732 + $0x1c] sm:$0xf]
      %v741 = vld [vmem:[%s732 + $0x20] sm:$0xf]
      %v742 = vld [vmem:[%s732 + $0x24] sm:$0xf]
      %v743 = vld [vmem:[%s732 + $0x28] sm:$0xf]
      %v744 = vld [vmem:[%s732 + $0x2c] sm:$0xf]
      %v745 = vld [vmem:[%s732 + $0x30] sm:$0xf]
      %v746 = vld [vmem:[%s732 + $0x34] sm:$0xf]
      %v747 = vld [vmem:[%s732 + $0x38] sm:$0xf]
      %v748 = vld [vmem:[%s732 + $0x3c] sm:$0xf]
      %v749 = vunpack.c.l.b16 %v361
      %v750 = vunpack.c.l.b16 %v371
      %v751 = vunpack.c.l.b16 %v385
      %v752 = vunpack.c.l.b16 %v395
      %v753 = vunpack.c.l.b16 %v409
      %v754 = vunpack.c.l.b16 %v419
      %v755 = vunpack.c.l.b16 %v433
      %v756 = vunpack.c.l.b16 %v443
      %v757 = vunpack.c.l.b16 %v457
      %v758 = vunpack.c.l.b16 %v467
      %v759 = vunpack.c.l.b16 %v481
      %v760 = vunpack.c.l.b16 %v491
      %v761 = vunpack.c.l.b16 %v505
      %v762 = vunpack.c.l.b16 %v515
      %v763 = vunpack.c.l.b16 %v529
      %v764 = vunpack.c.l.b16 %v539
      %v765 = vunpack.c.l.b16 %v553
      %v766 = vunpack.c.l.b16 %v563
      %v767 = vunpack.c.l.b16 %v577
      %v768 = vunpack.c.l.b16 %v587
      %v769 = vunpack.c.l.b16 %v601
      %v770 = vunpack.c.l.b16 %v611
      %v771 = vunpack.c.l.b16 %v625
      %v772 = vunpack.c.l.b16 %v635
      %v773 = vunpack.c.l.b16 %v649
      %v774 = vunpack.c.l.b16 %v659
      %v775 = vunpack.c.l.b16 %v673
      %v776 = vunpack.c.l.b16 %v683
      %v777 = vunpack.c.l.b16 %v697
      %v778 = vunpack.c.l.b16 %v707
      %v779 = vunpack.c.l.b16 %v721
      %v780 = vunpack.c.l.b16 %v731
      %v781 = vpack.c.b16 %v750, %v749
      %v782 = vpack.c.b16 %v752, %v751
      %v783 = vpack.c.b16 %v754, %v753
      %v784 = vpack.c.b16 %v756, %v755
      %v785 = vpack.c.b16 %v758, %v757
      %v786 = vpack.c.b16 %v760, %v759
      %v787 = vpack.c.b16 %v762, %v761
      %v788 = vpack.c.b16 %v764, %v763
      %v789 = vpack.c.b16 %v766, %v765
      %v790 = vpack.c.b16 %v768, %v767
      %v791 = vpack.c.b16 %v770, %v769
      %v792 = vpack.c.b16 %v772, %v771
      %v793 = vpack.c.b16 %v774, %v773
      %v794 = vpack.c.b16 %v776, %v775
      %v795 = vpack.c.b16 %v778, %v777
      %v796 = vpack.c.b16 %v780, %v779
      %v829 = vunpack.c.l.b16 %v733
      %v830 = vunpack.c.l.b16 %v734
      %v831 = vunpack.c.l.b16 %v735
      %v832 = vunpack.c.l.b16 %v736
      %v833 = vunpack.c.l.b16 %v737
      %v834 = vunpack.c.l.b16 %v738
      %v835 = vunpack.c.l.b16 %v739
      %v836 = vunpack.c.l.b16 %v740
      %v837 = vunpack.c.l.b16 %v741
      %v838 = vunpack.c.l.b16 %v742
      %v839 = vunpack.c.l.b16 %v743
      %v840 = vunpack.c.l.b16 %v744
      %v841 = vunpack.c.l.b16 %v745
      %v842 = vunpack.c.l.b16 %v746
      %v843 = vunpack.c.l.b16 %v747
      %v844 = vunpack.c.l.b16 %v748
      %v845 = vpack.c.b16 %v830, %v829
      %v846 = vpack.c.b16 %v832, %v831
      %v847 = vpack.c.b16 %v834, %v833
      %v848 = vpack.c.b16 %v836, %v835
      %v849 = vpack.c.b16 %v838, %v837
      %v850 = vpack.c.b16 %v840, %v839
      %v851 = vpack.c.b16 %v842, %v841
      %v852 = vpack.c.b16 %v844, %v843
      %861 = vmatprep.subr.bf16.mxu0 0
      %862 = vmatpush1.bf16.msra.mxu0 %v845
      %863 = vmatprep.subr.bf16.mxu0 0
      %864 = vmatpush1.bf16.msra.mxu0 %v846
      %865 = vmatprep.subr.bf16.mxu0 0
      %866 = vmatpush1.bf16.msra.mxu0 %v847
      %867 = vmatprep.subr.bf16.mxu0 0
      %868 = vmatpush1.bf16.msra.mxu0 %v848
      %869 = vmatprep.subr.bf16.mxu0 0
      %870 = vmatpush1.bf16.msra.mxu0 %v849
      %871 = vmatprep.subr.bf16.mxu0 0
      %872 = vmatpush1.bf16.msra.mxu0 %v850
      %873 = vmatprep.subr.bf16.mxu0 0
      %874 = vmatpush1.bf16.msra.mxu0 %v851
      %875 = vmatprep.subr.bf16.mxu0 0
      %876 = vmatpush1.bf16.msra.mxu0 %v852
      %877 = vmatprep.subr.bf16.mxu0 0
      %878 = vmatpush1.bf16.msra.mxu0 0
      %879 = vmatprep.subr.bf16.mxu0 0
      %880 = vmatpush1.bf16.msra.mxu0 0
      %881 = vmatprep.subr.bf16.mxu0 0
      %882 = vmatpush1.bf16.msra.mxu0 0
      %883 = vmatprep.subr.bf16.mxu0 0
      %884 = vmatpush1.bf16.msra.mxu0 0
      %885 = vmatprep.subr.bf16.mxu0 0
      %886 = vmatpush1.bf16.msra.mxu0 0
      %887 = vmatprep.subr.bf16.mxu0 0
      %888 = vmatpush1.bf16.msra.mxu0 0
      %889 = vmatprep.subr.bf16.mxu0 0
      %890 = vmatpush1.bf16.msra.mxu0 0
      %891 = vmatprep.subr.bf16.mxu0 0
      %892 = vmatpush1.bf16.msra.mxu0 0
      %893 = vmatprep.mubr.bf16.mxu0 0
      %894 = vmatmul.mubr.bf16.gmra.mrb[0].mxu0 %v781
      %v895 = vpop.f32.mrb[0].mxu0
      %v896 = vadd.f32 0.0, %v895
      %v897 = vpop.f32.mrb[0].mxu0
      %v898 = vpop.f32.mrb[0].mxu0
      %v899 = vadd.f32 0.0, %v898
      %v900 = vpop.f32.mrb[0].mxu0
      %901 = vmatprep.mubr.bf16.mxu0 0
      %902 = vmatmul.mubr.bf16.gmra.mrb[0].mxu0 %v782
      %v903 = vpop.f32.mrb[0].mxu0
      %v904 = vadd.f32 0.0, %v903
      %v905 = vpop.f32.mrb[0].mxu0
      %v906 = vpop.f32.mrb[0].mxu0
      %v907 = vadd.f32 0.0, %v906
      %v908 = vpop.f32.mrb[0].mxu0
      %909 = vmatprep.mubr.bf16.mxu0 0
      %910 = vmatmul.mubr.bf16.gmra.mrb[0].mxu0 %v783
      %v911 = vpop.f32.mrb[0].mxu0
      %v912 = vadd.f32 0.0, %v911
      %v913 = vpop.f32.mrb[0].mxu0
      %v914 = vpop.f32.mrb[0].mxu0
      %v915 = vadd.f32 0.0, %v914
      %v916 = vpop.f32.mrb[0].mxu0
      %917 = vmatprep.mubr.bf16.mxu0 0
      %918 = vmatmul.mubr.bf16.gmra.mrb[0].mxu0 %v784
      %v919 = vpop.f32.mrb[0].mxu0
      %v920 = vadd.f32 0.0, %v919
      %v921 = vpop.f32.mrb[0].mxu0
      %v922 = vpop.f32.mrb[0].mxu0
      %v923 = vadd.f32 0.0, %v922
      %v924 = vpop.f32.mrb[0].mxu0
      %925 = vmatprep.mubr.bf16.mxu0 0
      %926 = vmatmul.mubr.bf16.gmra.mrb[0].mxu0 %v785
      %v927 = vpop.f32.mrb[0].mxu0
      %v928 = vadd.f32 0.0, %v927
      %v929 = vpop.f32.mrb[0].mxu0
      %v930 = vpop.f32.mrb[0].mxu0
      %v931 = vadd.f32 0.0, %v930
      %v932 = vpop.f32.mrb[0].mxu0
      %933 = vmatprep.mubr.bf16.mxu0 0
      %934 = vmatmul.mubr.bf16.gmra.mrb[0].mxu0 %v786
      %v935 = vpop.f32.mrb[0].mxu0
      %v936 = vadd.f32 0.0, %v935
      %v937 = vpop.f32.mrb[0].mxu0
      %v938 = vpop.f32.mrb[0].mxu0
      %v939 = vadd.f32 0.0, %v938
      %v940 = vpop.f32.mrb[0].mxu0
      %941 = vmatprep.mubr.bf16.mxu0 0
      %942 = vmatmul.mubr.bf16.gmra.mrb[0].mxu0 %v787
      %v943 = vpop.f32.mrb[0].mxu0
      %v944 = vadd.f32 0.0, %v943
      %v945 = vpop.f32.mrb[0].mxu0
      %v946 = vpop.f32.mrb[0].mxu0
      %v947 = vadd.f32 0.0, %v946
      %v948 = vpop.f32.mrb[0].mxu0
      %949 = vmatprep.mubr.bf16.mxu0 0
      %950 = vmatmul.mubr.bf16.gmra.mrb[0].mxu0 %v788
      %v951 = vpop.f32.mrb[0].mxu0
      %v952 = vadd.f32 0.0, %v951
      %v953 = vpop.f32.mrb[0].mxu0
      %v954 = vpop.f32.mrb[0].mxu0
      %v955 = vadd.f32 0.0, %v954
      %v956 = vpop.f32.mrb[0].mxu0
      %957 = vmatprep.mubr.bf16.mxu0 0
      %958 = vmatmul.mubr.bf16.gmra.mrb[0].mxu0 %v789
      %v959 = vpop.f32.mrb[0].mxu0
      %v960 = vadd.f32 0.0, %v959
      %v961 = vpop.f32.mrb[0].mxu0
      %v962 = vpop.f32.mrb[0].mxu0
      %v963 = vadd.f32 0.0, %v962
      %v964 = vpop.f32.mrb[0].mxu0
      %965 = vmatprep.mubr.bf16.mxu0 0
      %966 = vmatmul.mubr.bf16.gmra.mrb[0].mxu0 %v790
      %v967 = vpop.f32.mrb[0].mxu0
      %v968 = vadd.f32 0.0, %v967
      %v969 = vpop.f32.mrb[0].mxu0
      %v970 = vpop.f32.mrb[0].mxu0
      %v971 = vadd.f32 0.0, %v970
      %v972 = vpop.f32.mrb[0].mxu0
      %973 = vmatprep.mubr.bf16.mxu0 0
      %974 = vmatmul.mubr.bf16.gmra.mrb[0].mxu0 %v791
      %v975 = vpop.f32.mrb[0].mxu0
      %v976 = vadd.f32 0.0, %v975
      %v977 = vpop.f32.mrb[0].mxu0
      %v978 = vpop.f32.mrb[0].mxu0
      %v979 = vadd.f32 0.0, %v978
      %v980 = vpop.f32.mrb[0].mxu0
      %981 = vmatprep.mubr.bf16.mxu0 0
      %982 = vmatmul.mubr.bf16.gmra.mrb[0].mxu0 %v792
      %v983 = vpop.f32.mrb[0].mxu0
      %v984 = vadd.f32 0.0, %v983
      %v985 = vpop.f32.mrb[0].mxu0
      %v986 = vpop.f32.mrb[0].mxu0
      %v987 = vadd.f32 0.0, %v986
      %v988 = vpop.f32.mrb[0].mxu0
      %989 = vmatprep.mubr.bf16.mxu0 0
      %990 = vmatmul.mubr.bf16.gmra.mrb[0].mxu0 %v793
      %v991 = vpop.f32.mrb[0].mxu0
      %v992 = vadd.f32 0.0, %v991
      %v993 = vpop.f32.mrb[0].mxu0
      %v994 = vpop.f32.mrb[0].mxu0
      %v995 = vadd.f32 0.0, %v994
      %v996 = vpop.f32.mrb[0].mxu0
      %997 = vmatprep.mubr.bf16.mxu0 0
      %998 = vmatmul.mubr.bf16.gmra.mrb[0].mxu0 %v794
      %v999 = vpop.f32.mrb[0].mxu0
      %v1000 = vadd.f32 0.0, %v999
      %v1001 = vpop.f32.mrb[0].mxu0
      %v1002 = vpop.f32.mrb[0].mxu0
      %v1003 = vadd.f32 0.0, %v1002
      %v1004 = vpop.f32.mrb[0].mxu0
      %1005 = vmatprep.mubr.bf16.mxu0 0
      %1006 = vmatmul.mubr.bf16.gmra.mrb[0].mxu0 %v795
      %v1007 = vpop.f32.mrb[0].mxu0
      %v1008 = vadd.f32 0.0, %v1007
      %v1009 = vpop.f32.mrb[0].mxu0
      %v1010 = vpop.f32.mrb[0].mxu0
      %v1011 = vadd.f32 0.0, %v1010
      %v1012 = vpop.f32.mrb[0].mxu0
      %1013 = vmatprep.mubr.bf16.mxu0 0
      %1014 = vmatmul.mubr.bf16.gmra.mrb[0].mxu0 %v796
      %v1015 = vpop.f32.mrb[0].mxu0
      %v1016 = vadd.f32 0.0, %v1015
      %v1017 = vpop.f32.mrb[0].mxu0
      %v1018 = vpop.f32.mrb[0].mxu0
      %v1019 = vadd.f32 0.0, %v1018
      %v1020 = vpop.f32.mrb[0].mxu0
      %1021 = vdwg.mxu0
      %v1054 = vunpack.c.l.b16 %v281
      %v1055 = vunpack.c.l.b16 %v282
      %v1056 = vunpack.c.l.b16 %v283
      %v1057 = vunpack.c.l.b16 %v284
      %v1058 = vunpack.c.l.b16 %v285
      %v1059 = vunpack.c.l.b16 %v286
      %v1060 = vunpack.c.l.b16 %v287
      %v1061 = vunpack.c.l.b16 %v288
      %v1062 = vunpack.c.l.b16 %v289
      %v1063 = vunpack.c.l.b16 %v290
      %v1064 = vunpack.c.l.b16 %v291
      %v1065 = vunpack.c.l.b16 %v292
      %v1066 = vunpack.c.l.b16 %v293
      %v1067 = vunpack.c.l.b16 %v294
      %v1068 = vunpack.c.l.b16 %v295
      %v1069 = vunpack.c.l.b16 %v296
      %v1070 = vunpack.c.l.b16 %v297
      %v1071 = vunpack.c.l.b16 %v298
      %v1072 = vunpack.c.l.b16 %v299
      %v1073 = vunpack.c.l.b16 %v300
      %v1074 = vunpack.c.l.b16 %v301
      %v1075 = vunpack.c.l.b16 %v302
      %v1076 = vunpack.c.l.b16 %v303
      %v1077 = vunpack.c.l.b16 %v304
      %v1078 = vunpack.c.l.b16 %v305
      %v1079 = vunpack.c.l.b16 %v306
      %v1080 = vunpack.c.l.b16 %v307
      %v1081 = vunpack.c.l.b16 %v308
      %v1082 = vunpack.c.l.b16 %v309
      %v1083 = vunpack.c.l.b16 %v310
      %v1084 = vunpack.c.l.b16 %v311
      %v1085 = vunpack.c.l.b16 %v312
      %v1086 = vpack.c.b16 %v1055, %v1054
      %v1087 = vpack.c.b16 %v1057, %v1056
      %v1088 = vpack.c.b16 %v1059, %v1058
      %v1089 = vpack.c.b16 %v1061, %v1060
      %v1090 = vpack.c.b16 %v1063, %v1062
      %v1091 = vpack.c.b16 %v1065, %v1064
      %v1092 = vpack.c.b16 %v1067, %v1066
      %v1093 = vpack.c.b16 %v1069, %v1068
      %v1094 = vpack.c.b16 %v1071, %v1070
      %v1095 = vpack.c.b16 %v1073, %v1072
      %v1096 = vpack.c.b16 %v1075, %v1074
      %v1097 = vpack.c.b16 %v1077, %v1076
      %v1098 = vpack.c.b16 %v1079, %v1078
      %v1099 = vpack.c.b16 %v1081, %v1080
      %v1100 = vpack.c.b16 %v1083, %v1082
      %v1101 = vpack.c.b16 %v1085, %v1084
      %v1134 = vunpack.c.l.b16 %v313
      %v1135 = vunpack.c.l.b16 %v314
      %v1136 = vunpack.c.l.b16 %v315
      %v1137 = vunpack.c.l.b16 %v316
      %v1138 = vunpack.c.l.b16 %v317
      %v1139 = vunpack.c.l.b16 %v318
      %v1140 = vunpack.c.l.b16 %v319
      %v1141 = vunpack.c.l.b16 %v320
      %v1142 = vunpack.c.l.b16 %v321
      %v1143 = vunpack.c.l.b16 %v322
      %v1144 = vunpack.c.l.b16 %v323
      %v1145 = vunpack.c.l.b16 %v324
      %v1146 = vunpack.c.l.b16 %v325
      %v1147 = vunpack.c.l.b16 %v326
      %v1148 = vunpack.c.l.b16 %v327
      %v1149 = vunpack.c.l.b16 %v328
      %v1150 = vpack.c.b16 %v1135, %v1134
      %v1151 = vpack.c.b16 %v1137, %v1136
      %v1152 = vpack.c.b16 %v1139, %v1138
      %v1153 = vpack.c.b16 %v1141, %v1140
      %v1154 = vpack.c.b16 %v1143, %v1142
      %v1155 = vpack.c.b16 %v1145, %v1144
      %v1156 = vpack.c.b16 %v1147, %v1146
      %v1157 = vpack.c.b16 %v1149, %v1148
      %1166 = vmatprep.subr.bf16.mxu0 0
      %1167 = vmatpush1.bf16.msra.mxu0 %v1150
      %1168 = vmatprep.subr.bf16.mxu0 0
      %1169 = vmatpush1.bf16.msra.mxu0 %v1151
      %1170 = vmatprep.subr.bf16.mxu0 0
      %1171 = vmatpush1.bf16.msra.mxu0 %v1152
      %1172 = vmatprep.subr.bf16.mxu0 0
      %1173 = vmatpush1.bf16.msra.mxu0 %v1153
      %1174 = vmatprep.subr.bf16.mxu0 0
      %1175 = vmatpush1.bf16.msra.mxu0 %v1154
      %1176 = vmatprep.subr.bf16.mxu0 0
      %1177 = vmatpush1.bf16.msra.mxu0 %v1155
      %1178 = vmatprep.subr.bf16.mxu0 0
      %1179 = vmatpush1.bf16.msra.mxu0 %v1156
      %1180 = vmatprep.subr.bf16.mxu0 0
      %1181 = vmatpush1.bf16.msra.mxu0 %v1157
      %1182 = vmatprep.subr.bf16.mxu0 0
      %1183 = vmatpush1.bf16.msra.mxu0 0
      %1184 = vmatprep.subr.bf16.mxu0 0
      %1185 = vmatpush1.bf16.msra.mxu0 0
      %1186 = vmatprep.subr.bf16.mxu0 0
      %1187 = vmatpush1.bf16.msra.mxu0 0
      %1188 = vmatprep.subr.bf16.mxu0 0
      %1189 = vmatpush1.bf16.msra.mxu0 0
      %1190 = vmatprep.subr.bf16.mxu0 0
      %1191 = vmatpush1.bf16.msra.mxu0 0
      %1192 = vmatprep.subr.bf16.mxu0 0
      %1193 = vmatpush1.bf16.msra.mxu0 0
      %1194 = vmatprep.subr.bf16.mxu0 0
      %1195 = vmatpush1.bf16.msra.mxu0 0
      %1196 = vmatprep.subr.bf16.mxu0 0
      %1197 = vmatpush1.bf16.msra.mxu0 0
      %1198 = vmatprep.mubr.bf16.mxu0 0
      %1199 = vmatmul.mubr.bf16.gmra.mrb[0].mxu0 %v1086
      %v1200 = vpop.f32.mrb[0].mxu0
      %v1201 = vadd.f32 %v896, %v1200
      %v1202 = vpop.f32.mrb[0].mxu0
      %v1203 = vpop.f32.mrb[0].mxu0
      %v1204 = vadd.f32 %v899, %v1203
      %v1205 = vpop.f32.mrb[0].mxu0
      %1206 = vmatprep.mubr.bf16.mxu0 0
      %1207 = vmatmul.mubr.bf16.gmra.mrb[0].mxu0 %v1087
      %v1208 = vpop.f32.mrb[0].mxu0
      %v1209 = vadd.f32 %v904, %v1208
      %v1210 = vpop.f32.mrb[0].mxu0
      %v1211 = vpop.f32.mrb[0].mxu0
      %v1212 = vadd.f32 %v907, %v1211
      %v1213 = vpop.f32.mrb[0].mxu0
      %1214 = vmatprep.mubr.bf16.mxu0 0
      %1215 = vmatmul.mubr.bf16.gmra.mrb[0].mxu0 %v1088
      %v1216 = vpop.f32.mrb[0].mxu0
      %v1217 = vadd.f32 %v912, %v1216
      %v1218 = vpop.f32.mrb[0].mxu0
      %v1219 = vpop.f32.mrb[0].mxu0
      %v1220 = vadd.f32 %v915, %v1219
      %v1221 = vpop.f32.mrb[0].mxu0
      %1222 = vmatprep.mubr.bf16.mxu0 0
      %1223 = vmatmul.mubr.bf16.gmra.mrb[0].mxu0 %v1089
      %v1224 = vpop.f32.mrb[0].mxu0
      %v1225 = vadd.f32 %v920, %v1224
      %v1226 = vpop.f32.mrb[0].mxu0
      %v1227 = vpop.f32.mrb[0].mxu0
      %v1228 = vadd.f32 %v923, %v1227
      %v1229 = vpop.f32.mrb[0].mxu0
      %1230 = vmatprep.mubr.bf16.mxu0 0
      %1231 = vmatmul.mubr.bf16.gmra.mrb[0].mxu0 %v1090
      %v1232 = vpop.f32.mrb[0].mxu0
      %v1233 = vadd.f32 %v928, %v1232
      %v1234 = vpop.f32.mrb[0].mxu0
      %v1235 = vpop.f32.mrb[0].mxu0
      %v1236 = vadd.f32 %v931, %v1235
      %v1237 = vpop.f32.mrb[0].mxu0
      %1238 = vmatprep.mubr.bf16.mxu0 0
      %1239 = vmatmul.mubr.bf16.gmra.mrb[0].mxu0 %v1091
      %v1240 = vpop.f32.mrb[0].mxu0
      %v1241 = vadd.f32 %v936, %v1240
      %v1242 = vpop.f32.mrb[0].mxu0
      %v1243 = vpop.f32.mrb[0].mxu0
      %v1244 = vadd.f32 %v939, %v1243
      %v1245 = vpop.f32.mrb[0].mxu0
      %1246 = vmatprep.mubr.bf16.mxu0 0
      %1247 = vmatmul.mubr.bf16.gmra.mrb[0].mxu0 %v1092
      %v1248 = vpop.f32.mrb[0].mxu0
      %v1249 = vadd.f32 %v944, %v1248
      %v1250 = vpop.f32.mrb[0].mxu0
      %v1251 = vpop.f32.mrb[0].mxu0
      %v1252 = vadd.f32 %v947, %v1251
      %v1253 = vpop.f32.mrb[0].mxu0
      %1254 = vmatprep.mubr.bf16.mxu0 0
      %1255 = vmatmul.mubr.bf16.gmra.mrb[0].mxu0 %v1093
      %v1256 = vpop.f32.mrb[0].mxu0
      %v1257 = vadd.f32 %v952, %v1256
      %v1258 = vpop.f32.mrb[0].mxu0
      %v1259 = vpop.f32.mrb[0].mxu0
      %v1260 = vadd.f32 %v955, %v1259
      %v1261 = vpop.f32.mrb[0].mxu0
      %1262 = vmatprep.mubr.bf16.mxu0 0
      %1263 = vmatmul.mubr.bf16.gmra.mrb[0].mxu0 %v1094
      %v1264 = vpop.f32.mrb[0].mxu0
      %v1265 = vadd.f32 %v960, %v1264
      %v1266 = vpop.f32.mrb[0].mxu0
      %v1267 = vpop.f32.mrb[0].mxu0
      %v1268 = vadd.f32 %v963, %v1267
      %v1269 = vpop.f32.mrb[0].mxu0
      %1270 = vmatprep.mubr.bf16.mxu0 0
      %1271 = vmatmul.mubr.bf16.gmra.mrb[0].mxu0 %v1095
      %v1272 = vpop.f32.mrb[0].mxu0
      %v1273 = vadd.f32 %v968, %v1272
      %v1274 = vpop.f32.mrb[0].mxu0
      %v1275 = vpop.f32.mrb[0].mxu0
      %v1276 = vadd.f32 %v971, %v1275
      %v1277 = vpop.f32.mrb[0].mxu0
      %1278 = vmatprep.mubr.bf16.mxu0 0
      %1279 = vmatmul.mubr.bf16.gmra.mrb[0].mxu0 %v1096
      %v1280 = vpop.f32.mrb[0].mxu0
      %v1281 = vadd.f32 %v976, %v1280
      %v1282 = vpop.f32.mrb[0].mxu0
      %v1283 = vpop.f32.mrb[0].mxu0
      %v1284 = vadd.f32 %v979, %v1283
      %v1285 = vpop.f32.mrb[0].mxu0
      %1286 = vmatprep.mubr.bf16.mxu0 0
      %1287 = vmatmul.mubr.bf16.gmra.mrb[0].mxu0 %v1097
      %v1288 = vpop.f32.mrb[0].mxu0
      %v1289 = vadd.f32 %v984, %v1288
      %v1290 = vpop.f32.mrb[0].mxu0
      %v1291 = vpop.f32.mrb[0].mxu0
      %v1292 = vadd.f32 %v987, %v1291
      %v1293 = vpop.f32.mrb[0].mxu0
      %1294 = vmatprep.mubr.bf16.mxu0 0
      %1295 = vmatmul.mubr.bf16.gmra.mrb[0].mxu0 %v1098
      %v1296 = vpop.f32.mrb[0].mxu0
      %v1297 = vadd.f32 %v992, %v1296
      %v1298 = vpop.f32.mrb[0].mxu0
      %v1299 = vpop.f32.mrb[0].mxu0
      %v1300 = vadd.f32 %v995, %v1299
      %v1301 = vpop.f32.mrb[0].mxu0
      %1302 = vmatprep.mubr.bf16.mxu0 0
      %1303 = vmatmul.mubr.bf16.gmra.mrb[0].mxu0 %v1099
      %v1304 = vpop.f32.mrb[0].mxu0
      %v1305 = vadd.f32 %v1000, %v1304
      %v1306 = vpop.f32.mrb[0].mxu0
      %v1307 = vpop.f32.mrb[0].mxu0
      %v1308 = vadd.f32 %v1003, %v1307
      %v1309 = vpop.f32.mrb[0].mxu0
      %1310 = vmatprep.mubr.bf16.mxu0 0
      %1311 = vmatmul.mubr.bf16.gmra.mrb[0].mxu0 %v1100
      %v1312 = vpop.f32.mrb[0].mxu0
      %v1313 = vadd.f32 %v1008, %v1312
      %v1314 = vpop.f32.mrb[0].mxu0
      %v1315 = vpop.f32.mrb[0].mxu0
      %v1316 = vadd.f32 %v1011, %v1315
      %v1317 = vpop.f32.mrb[0].mxu0
      %1318 = vmatprep.mubr.bf16.mxu0 0
      %1319 = vmatmul.mubr.bf16.gmra.mrb[0].mxu0 %v1101
      %v1320 = vpop.f32.mrb[0].mxu0
      %v1321 = vadd.f32 %v1016, %v1320
      %v1322 = vpop.f32.mrb[0].mxu0
      %v1323 = vpop.f32.mrb[0].mxu0
      %v1324 = vadd.f32 %v1019, %v1323
      %v1325 = vpop.f32.mrb[0].mxu0
      %1326 = vdwg.mxu0
      %v1327 = vld [vmem:[%s256] sm:$0xe]
      %v1328 = vld [vmem:[%s256 + $0xc] sm:$0xe]
      %v1329 = vld [vmem:[%s256 + $0x18] sm:$0xe]
      %v1330 = vld [vmem:[%s256 + $0x24] sm:$0xe]
      %v1331 = vld [vmem:[%s256 + $0x30] sm:$0xe]
      %v1332 = vld [vmem:[%s256 + $0x3c] sm:$0xe]
      %v1333 = vld [vmem:[%s256 + $0x48] sm:$0xe]
      %v1334 = vld [vmem:[%s256 + $0x54] sm:$0xe]
      %v1335 = vld [vmem:[%s256 + $0x60] sm:$0xe]
      %v1336 = vld [vmem:[%s256 + $0x6c] sm:$0xe]
      %v1337 = vld [vmem:[%s256 + $0x78] sm:$0xe]
      %v1338 = vld [vmem:[%s256 + $0x84] sm:$0xe]
      %v1339 = vld [vmem:[%s256 + $0x90] sm:$0xe]
      %v1340 = vld [vmem:[%s256 + $0x9c] sm:$0xe]
      %v1341 = vld [vmem:[%s256 + $0xa8] sm:$0xe]
      %v1342 = vld [vmem:[%s256 + $0xb4] sm:$0xe]
      %vm1375 = vcmask 1042432
      %vm1376 = vcmask 1046532
      %vm1377 = vmor %vm1375, %vm1376
      %v1378 = vrot.slane %v1327, 5
      %v1379 = vrot.slane %v1378, 4
      %v1380 = vrot.slane %v282, 5
      %v1381 = vsel %vm1377, %v1379, %v1380
      %v1382 = vrot.slane %v1380, 4
      %v1383 = vrot.slane %v329, 5
      %v1384 = vsel %vm1377, %v1382, %v1383
      %v1385 = vrot.slane %v1328, 5
      %v1386 = vrot.slane %v1385, 4
      %v1387 = vrot.slane %v284, 5
      %v1388 = vsel %vm1377, %v1386, %v1387
      %v1389 = vrot.slane %v1387, 4
      %v1390 = vrot.slane %v330, 5
      %v1391 = vsel %vm1377, %v1389, %v1390
      %v1392 = vrot.slane %v1329, 5
      %v1393 = vrot.slane %v1392, 4
      %v1394 = vrot.slane %v286, 5
      %v1395 = vsel %vm1377, %v1393, %v1394
      %v1396 = vrot.slane %v1394, 4
      %v1397 = vrot.slane %v331, 5
      %v1398 = vsel %vm1377, %v1396, %v1397
      %v1399 = vrot.slane %v1330, 5
      %v1400 = vrot.slane %v1399, 4
      %v1401 = vrot.slane %v288, 5
      %v1402 = vsel %vm1377, %v1400, %v1401
      %v1403 = vrot.slane %v1401, 4
      %v1404 = vrot.slane %v332, 5
      %v1405 = vsel %vm1377, %v1403, %v1404
      %v1406 = vrot.slane %v1331, 5
      %v1407 = vrot.slane %v1406, 4
      %v1408 = vrot.slane %v290, 5
      %v1409 = vsel %vm1377, %v1407, %v1408
      %v1410 = vrot.slane %v1408, 4
      %v1411 = vrot.slane %v333, 5
      %v1412 = vsel %vm1377, %v1410, %v1411
      %v1413 = vrot.slane %v1332, 5
      %v1414 = vrot.slane %v1413, 4
      %v1415 = vrot.slane %v292, 5
      %v1416 = vsel %vm1377, %v1414, %v1415
      %v1417 = vrot.slane %v1415, 4
      %v1418 = vrot.slane %v334, 5
      %v1419 = vsel %vm1377, %v1417, %v1418
      %v1420 = vrot.slane %v1333, 5
      %v1421 = vrot.slane %v1420, 4
      %v1422 = vrot.slane %v294, 5
      %v1423 = vsel %vm1377, %v1421, %v1422
      %v1424 = vrot.slane %v1422, 4
      %v1425 = vrot.slane %v335, 5
      %v1426 = vsel %vm1377, %v1424, %v1425
      %v1427 = vrot.slane %v1334, 5
      %v1428 = vrot.slane %v1427, 4
      %v1429 = vrot.slane %v296, 5
      %v1430 = vsel %vm1377, %v1428, %v1429
      %v1431 = vrot.slane %v1429, 4
      %v1432 = vrot.slane %v336, 5
      %v1433 = vsel %vm1377, %v1431, %v1432
      %v1434 = vrot.slane %v1335, 5
      %v1435 = vrot.slane %v1434, 4
      %v1436 = vrot.slane %v298, 5
      %v1437 = vsel %vm1377, %v1435, %v1436
      %v1438 = vrot.slane %v1436, 4
      %v1439 = vrot.slane %v337, 5
      %v1440 = vsel %vm1377, %v1438, %v1439
      %v1441 = vrot.slane %v1336, 5
      %v1442 = vrot.slane %v1441, 4
      %v1443 = vrot.slane %v300, 5
      %v1444 = vsel %vm1377, %v1442, %v1443
      %v1445 = vrot.slane %v1443, 4
      %v1446 = vrot.slane %v338, 5
      %v1447 = vsel %vm1377, %v1445, %v1446
      %v1448 = vrot.slane %v1337, 5
      %v1449 = vrot.slane %v1448, 4
      %v1450 = vrot.slane %v302, 5
      %v1451 = vsel %vm1377, %v1449, %v1450
      %v1452 = vrot.slane %v1450, 4
      %v1453 = vrot.slane %v339, 5
      %v1454 = vsel %vm1377, %v1452, %v1453
      %v1455 = vrot.slane %v1338, 5
      %v1456 = vrot.slane %v1455, 4
      %v1457 = vrot.slane %v304, 5
      %v1458 = vsel %vm1377, %v1456, %v1457
      %v1459 = vrot.slane %v1457, 4
      %v1460 = vrot.slane %v340, 5
      %v1461 = vsel %vm1377, %v1459, %v1460
      %v1462 = vrot.slane %v1339, 5
      %v1463 = vrot.slane %v1462, 4
      %v1464 = vrot.slane %v306, 5
      %v1465 = vsel %vm1377, %v1463, %v1464
      %v1466 = vrot.slane %v1464, 4
      %v1467 = vrot.slane %v341, 5
      %v1468 = vsel %vm1377, %v1466, %v1467
      %v1469 = vrot.slane %v1340, 5
      %v1470 = vrot.slane %v1469, 4
      %v1471 = vrot.slane %v308, 5
      %v1472 = vsel %vm1377, %v1470, %v1471
      %v1473 = vrot.slane %v1471, 4
      %v1474 = vrot.slane %v342, 5
      %v1475 = vsel %vm1377, %v1473, %v1474
      %v1476 = vrot.slane %v1341, 5
      %v1477 = vrot.slane %v1476, 4
      %v1478 = vrot.slane %v310, 5
      %v1479 = vsel %vm1377, %v1477, %v1478
      %v1480 = vrot.slane %v1478, 4
      %v1481 = vrot.slane %v343, 5
      %v1482 = vsel %vm1377, %v1480, %v1481
      %v1483 = vrot.slane %v1342, 5
      %v1484 = vrot.slane %v1483, 4
      %v1485 = vrot.slane %v312, 5
      %v1486 = vsel %vm1377, %v1484, %v1485
      %v1487 = vrot.slane %v1485, 4
      %v1488 = vrot.slane %v344, 5
      %v1489 = vsel %vm1377, %v1487, %v1488
      %s1490 = scalar_lea.vmem %s260, 128
      %v1491 = vld [vmem:[%s1490] sm:$0xf]
      %v1492 = vld [vmem:[%s1490 + $0x4] sm:$0xf]
      %v1493 = vld [vmem:[%s1490 + $0x8] sm:$0xf]
      %v1494 = vld [vmem:[%s1490 + $0xc] sm:$0xf]
      %v1495 = vld [vmem:[%s1490 + $0x10] sm:$0xf]
      %v1496 = vld [vmem:[%s1490 + $0x14] sm:$0xf]
      %v1497 = vld [vmem:[%s1490 + $0x18] sm:$0xf]
      %v1498 = vld [vmem:[%s1490 + $0x1c] sm:$0xf]
      %v1499 = vld [vmem:[%s1490 + $0x20] sm:$0xf]
      %v1500 = vld [vmem:[%s1490 + $0x24] sm:$0xf]
      %v1501 = vld [vmem:[%s1490 + $0x28] sm:$0xf]
      %v1502 = vld [vmem:[%s1490 + $0x2c] sm:$0xf]
      %v1503 = vld [vmem:[%s1490 + $0x30] sm:$0xf]
      %v1504 = vld [vmem:[%s1490 + $0x34] sm:$0xf]
      %v1505 = vld [vmem:[%s1490 + $0x38] sm:$0xf]
      %v1506 = vld [vmem:[%s1490 + $0x3c] sm:$0xf]
      %v1507 = vunpack.c.l.b16 %v1381
      %v1508 = vunpack.c.l.b16 %v1384
      %v1509 = vunpack.c.l.b16 %v1388
      %v1510 = vunpack.c.l.b16 %v1391
      %v1511 = vunpack.c.l.b16 %v1395
      %v1512 = vunpack.c.l.b16 %v1398
      %v1513 = vunpack.c.l.b16 %v1402
      %v1514 = vunpack.c.l.b16 %v1405
      %v1515 = vunpack.c.l.b16 %v1409
      %v1516 = vunpack.c.l.b16 %v1412
      %v1517 = vunpack.c.l.b16 %v1416
      %v1518 = vunpack.c.l.b16 %v1419
      %v1519 = vunpack.c.l.b16 %v1423
      %v1520 = vunpack.c.l.b16 %v1426
      %v1521 = vunpack.c.l.b16 %v1430
      %v1522 = vunpack.c.l.b16 %v1433
      %v1523 = vunpack.c.l.b16 %v1437
      %v1524 = vunpack.c.l.b16 %v1440
      %v1525 = vunpack.c.l.b16 %v1444
      %v1526 = vunpack.c.l.b16 %v1447
      %v1527 = vunpack.c.l.b16 %v1451
      %v1528 = vunpack.c.l.b16 %v1454
      %v1529 = vunpack.c.l.b16 %v1458
      %v1530 = vunpack.c.l.b16 %v1461
      %v1531 = vunpack.c.l.b16 %v1465
      %v1532 = vunpack.c.l.b16 %v1468
      %v1533 = vunpack.c.l.b16 %v1472
      %v1534 = vunpack.c.l.b16 %v1475
      %v1535 = vunpack.c.l.b16 %v1479
      %v1536 = vunpack.c.l.b16 %v1482
      %v1537 = vunpack.c.l.b16 %v1486
      %v1538 = vunpack.c.l.b16 %v1489
      %v1539 = vpack.c.b16 %v1508, %v1507
      %v1540 = vpack.c.b16 %v1510, %v1509
      %v1541 = vpack.c.b16 %v1512, %v1511
      %v1542 = vpack.c.b16 %v1514, %v1513
      %v1543 = vpack.c.b16 %v1516, %v1515
      %v1544 = vpack.c.b16 %v1518, %v1517
      %v1545 = vpack.c.b16 %v1520, %v1519
      %v1546 = vpack.c.b16 %v1522, %v1521
      %v1547 = vpack.c.b16 %v1524, %v1523
      %v1548 = vpack.c.b16 %v1526, %v1525
      %v1549 = vpack.c.b16 %v1528, %v1527
      %v1550 = vpack.c.b16 %v1530, %v1529
      %v1551 = vpack.c.b16 %v1532, %v1531
      %v1552 = vpack.c.b16 %v1534, %v1533
      %v1553 = vpack.c.b16 %v1536, %v1535
      %v1554 = vpack.c.b16 %v1538, %v1537
      %v1587 = vunpack.c.l.b16 %v1491
      %v1588 = vunpack.c.l.b16 %v1492
      %v1589 = vunpack.c.l.b16 %v1493
      %v1590 = vunpack.c.l.b16 %v1494
      %v1591 = vunpack.c.l.b16 %v1495
      %v1592 = vunpack.c.l.b16 %v1496
      %v1593 = vunpack.c.l.b16 %v1497
      %v1594 = vunpack.c.l.b16 %v1498
      %v1595 = vunpack.c.l.b16 %v1499
      %v1596 = vunpack.c.l.b16 %v1500
      %v1597 = vunpack.c.l.b16 %v1501
      %v1598 = vunpack.c.l.b16 %v1502
      %v1599 = vunpack.c.l.b16 %v1503
      %v1600 = vunpack.c.l.b16 %v1504
      %v1601 = vunpack.c.l.b16 %v1505
      %v1602 = vunpack.c.l.b16 %v1506
      %v1603 = vpack.c.b16 %v1588, %v1587
      %v1604 = vpack.c.b16 %v1590, %v1589
      %v1605 = vpack.c.b16 %v1592, %v1591
      %v1606 = vpack.c.b16 %v1594, %v1593
      %v1607 = vpack.c.b16 %v1596, %v1595
      %v1608 = vpack.c.b16 %v1598, %v1597
      %v1609 = vpack.c.b16 %v1600, %v1599
      %v1610 = vpack.c.b16 %v1602, %v1601
      %1619 = vmatprep.subr.bf16.mxu0 0
      %1620 = vmatpush1.bf16.msra.mxu0 %v1603
      %1621 = vmatprep.subr.bf16.mxu0 0
      %1622 = vmatpush1.bf16.msra.mxu0 %v1604
      %1623 = vmatprep.subr.bf16.mxu0 0
      %1624 = vmatpush1.bf16.msra.mxu0 %v1605
      %1625 = vmatprep.subr.bf16.mxu0 0
      %1626 = vmatpush1.bf16.msra.mxu0 %v1606
      %1627 = vmatprep.subr.bf16.mxu0 0
      %1628 = vmatpush1.bf16.msra.mxu0 %v1607
      %1629 = vmatprep.subr.bf16.mxu0 0
      %1630 = vmatpush1.bf16.msra.mxu0 %v1608
      %1631 = vmatprep.subr.bf16.mxu0 0
      %1632 = vmatpush1.bf16.msra.mxu0 %v1609
      %1633 = vmatprep.subr.bf16.mxu0 0
      %1634 = vmatpush1.bf16.msra.mxu0 %v1610
      %1635 = vmatprep.subr.bf16.mxu0 0
      %1636 = vmatpush1.bf16.msra.mxu0 0
      %1637 = vmatprep.subr.bf16.mxu0 0
      %1638 = vmatpush1.bf16.msra.mxu0 0
      %1639 = vmatprep.subr.bf16.mxu0 0
      %1640 = vmatpush1.bf16.msra.mxu0 0
      %1641 = vmatprep.subr.bf16.mxu0 0
      %1642 = vmatpush1.bf16.msra.mxu0 0
      %1643 = vmatprep.subr.bf16.mxu0 0
      %1644 = vmatpush1.bf16.msra.mxu0 0
      %1645 = vmatprep.subr.bf16.mxu0 0
      %1646 = vmatpush1.bf16.msra.mxu0 0
      %1647 = vmatprep.subr.bf16.mxu0 0
      %1648 = vmatpush1.bf16.msra.mxu0 0
      %1649 = vmatprep.subr.bf16.mxu0 0
      %1650 = vmatpush1.bf16.msra.mxu0 0
      %1651 = vmatprep.mubr.bf16.mxu0 0
      %1652 = vmatmul.mubr.bf16.gmra.mrb[0].mxu0 %v1539
      %v1653 = vpop.f32.mrb[0].mxu0
      %v1654 = vadd.f32 0.0, %v1653
      %v1655 = vpop.f32.mrb[0].mxu0
      %v1656 = vpop.f32.mrb[0].mxu0
      %v1657 = vadd.f32 0.0, %v1656
      %v1658 = vpop.f32.mrb[0].mxu0
      %1659 = vmatprep.mubr.bf16.mxu0 0
      %1660 = vmatmul.mubr.bf16.gmra.mrb[0].mxu0 %v1540
      %v1661 = vpop.f32.mrb[0].mxu0
      %v1662 = vadd.f32 0.0, %v1661
      %v1663 = vpop.f32.mrb[0].mxu0
      %v1664 = vpop.f32.mrb[0].mxu0
      %v1665 = vadd.f32 0.0, %v1664
      %v1666 = vpop.f32.mrb[0].mxu0
      %1667 = vmatprep.mubr.bf16.mxu0 0
      %1668 = vmatmul.mubr.bf16.gmra.mrb[0].mxu0 %v1541
      %v1669 = vpop.f32.mrb[0].mxu0
      %v1670 = vadd.f32 0.0, %v1669
      %v1671 = vpop.f32.mrb[0].mxu0
      %v1672 = vpop.f32.mrb[0].mxu0
      %v1673 = vadd.f32 0.0, %v1672
      %v1674 = vpop.f32.mrb[0].mxu0
      %1675 = vmatprep.mubr.bf16.mxu0 0
      %1676 = vmatmul.mubr.bf16.gmra.mrb[0].mxu0 %v1542
      %v1677 = vpop.f32.mrb[0].mxu0
      %v1678 = vadd.f32 0.0, %v1677
      %v1679 = vpop.f32.mrb[0].mxu0
      %v1680 = vpop.f32.mrb[0].mxu0
      %v1681 = vadd.f32 0.0, %v1680
      %v1682 = vpop.f32.mrb[0].mxu0
      %1683 = vmatprep.mubr.bf16.mxu0 0
      %1684 = vmatmul.mubr.bf16.gmra.mrb[0].mxu0 %v1543
      %v1685 = vpop.f32.mrb[0].mxu0
      %v1686 = vadd.f32 0.0, %v1685
      %v1687 = vpop.f32.mrb[0].mxu0
      %v1688 = vpop.f32.mrb[0].mxu0
      %v1689 = vadd.f32 0.0, %v1688
      %v1690 = vpop.f32.mrb[0].mxu0
      %1691 = vmatprep.mubr.bf16.mxu0 0
      %1692 = vmatmul.mubr.bf16.gmra.mrb[0].mxu0 %v1544
      %v1693 = vpop.f32.mrb[0].mxu0
      %v1694 = vadd.f32 0.0, %v1693
      %v1695 = vpop.f32.mrb[0].mxu0
      %v1696 = vpop.f32.mrb[0].mxu0
      %v1697 = vadd.f32 0.0, %v1696
      %v1698 = vpop.f32.mrb[0].mxu0
      %1699 = vmatprep.mubr.bf16.mxu0 0
      %1700 = vmatmul.mubr.bf16.gmra.mrb[0].mxu0 %v1545
      %v1701 = vpop.f32.mrb[0].mxu0
      %v1702 = vadd.f32 0.0, %v1701
      %v1703 = vpop.f32.mrb[0].mxu0
      %v1704 = vpop.f32.mrb[0].mxu0
      %v1705 = vadd.f32 0.0, %v1704
      %v1706 = vpop.f32.mrb[0].mxu0
      %1707 = vmatprep.mubr.bf16.mxu0 0
      %1708 = vmatmul.mubr.bf16.gmra.mrb[0].mxu0 %v1546
      %v1709 = vpop.f32.mrb[0].mxu0
      %v1710 = vadd.f32 0.0, %v1709
      %v1711 = vpop.f32.mrb[0].mxu0
      %v1712 = vpop.f32.mrb[0].mxu0
      %v1713 = vadd.f32 0.0, %v1712
      %v1714 = vpop.f32.mrb[0].mxu0
      %1715 = vmatprep.mubr.bf16.mxu0 0
      %1716 = vmatmul.mubr.bf16.gmra.mrb[0].mxu0 %v1547
      %v1717 = vpop.f32.mrb[0].mxu0
      %v1718 = vadd.f32 0.0, %v1717
      %v1719 = vpop.f32.mrb[0].mxu0
      %v1720 = vpop.f32.mrb[0].mxu0
      %v1721 = vadd.f32 0.0, %v1720
      %v1722 = vpop.f32.mrb[0].mxu0
      %1723 = vmatprep.mubr.bf16.mxu0 0
      %1724 = vmatmul.mubr.bf16.gmra.mrb[0].mxu0 %v1548
      %v1725 = vpop.f32.mrb[0].mxu0
      %v1726 = vadd.f32 0.0, %v1725
      %v1727 = vpop.f32.mrb[0].mxu0
      %v1728 = vpop.f32.mrb[0].mxu0
      %v1729 = vadd.f32 0.0, %v1728
      %v1730 = vpop.f32.mrb[0].mxu0
      %1731 = vmatprep.mubr.bf16.mxu0 0
      %1732 = vmatmul.mubr.bf16.gmra.mrb[0].mxu0 %v1549
      %v1733 = vpop.f32.mrb[0].mxu0
      %v1734 = vadd.f32 0.0, %v1733
      %v1735 = vpop.f32.mrb[0].mxu0
      %v1736 = vpop.f32.mrb[0].mxu0
      %v1737 = vadd.f32 0.0, %v1736
      %v1738 = vpop.f32.mrb[0].mxu0
      %1739 = vmatprep.mubr.bf16.mxu0 0
      %1740 = vmatmul.mubr.bf16.gmra.mrb[0].mxu0 %v1550
      %v1741 = vpop.f32.mrb[0].mxu0
      %v1742 = vadd.f32 0.0, %v1741
      %v1743 = vpop.f32.mrb[0].mxu0
      %v1744 = vpop.f32.mrb[0].mxu0
      %v1745 = vadd.f32 0.0, %v1744
      %v1746 = vpop.f32.mrb[0].mxu0
      %1747 = vmatprep.mubr.bf16.mxu0 0
      %1748 = vmatmul.mubr.bf16.gmra.mrb[0].mxu0 %v1551
      %v1749 = vpop.f32.mrb[0].mxu0
      %v1750 = vadd.f32 0.0, %v1749
      %v1751 = vpop.f32.mrb[0].mxu0
      %v1752 = vpop.f32.mrb[0].mxu0
      %v1753 = vadd.f32 0.0, %v1752
      %v1754 = vpop.f32.mrb[0].mxu0
      %1755 = vmatprep.mubr.bf16.mxu0 0
      %1756 = vmatmul.mubr.bf16.gmra.mrb[0].mxu0 %v1552
      %v1757 = vpop.f32.mrb[0].mxu0
      %v1758 = vadd.f32 0.0, %v1757
      %v1759 = vpop.f32.mrb[0].mxu0
      %v1760 = vpop.f32.mrb[0].mxu0
      %v1761 = vadd.f32 0.0, %v1760
      %v1762 = vpop.f32.mrb[0].mxu0
      %1763 = vmatprep.mubr.bf16.mxu0 0
      %1764 = vmatmul.mubr.bf16.gmra.mrb[0].mxu0 %v1553
      %v1765 = vpop.f32.mrb[0].mxu0
      %v1766 = vadd.f32 0.0, %v1765
      %v1767 = vpop.f32.mrb[0].mxu0
      %v1768 = vpop.f32.mrb[0].mxu0
      %v1769 = vadd.f32 0.0, %v1768
      %v1770 = vpop.f32.mrb[0].mxu0
      %1771 = vmatprep.mubr.bf16.mxu0 0
      %1772 = vmatmul.mubr.bf16.gmra.mrb[0].mxu0 %v1554
      %v1773 = vpop.f32.mrb[0].mxu0
      %v1774 = vadd.f32 0.0, %v1773
      %v1775 = vpop.f32.mrb[0].mxu0
      %v1776 = vpop.f32.mrb[0].mxu0
      %v1777 = vadd.f32 0.0, %v1776
      %v1778 = vpop.f32.mrb[0].mxu0
      %1779 = vdwg.mxu0
      %v1780 = vadd.f32 %v1201, %v1654
      %v1781 = vadd.f32 %v1204, %v1657
      %v1782 = vadd.f32 %v1209, %v1662
      %v1783 = vadd.f32 %v1212, %v1665
      %v1784 = vadd.f32 %v1217, %v1670
      %v1785 = vadd.f32 %v1220, %v1673
      %v1786 = vadd.f32 %v1225, %v1678
      %v1787 = vadd.f32 %v1228, %v1681
      %v1788 = vadd.f32 %v1233, %v1686
      %v1789 = vadd.f32 %v1236, %v1689
      %v1790 = vadd.f32 %v1241, %v1694
      %v1791 = vadd.f32 %v1244, %v1697
      %v1792 = vadd.f32 %v1249, %v1702
      %v1793 = vadd.f32 %v1252, %v1705
      %v1794 = vadd.f32 %v1257, %v1710
      %v1795 = vadd.f32 %v1260, %v1713
      %v1796 = vadd.f32 %v1265, %v1718
      %v1797 = vadd.f32 %v1268, %v1721
      %v1798 = vadd.f32 %v1273, %v1726
      %v1799 = vadd.f32 %v1276, %v1729
      %v1800 = vadd.f32 %v1281, %v1734
      %v1801 = vadd.f32 %v1284, %v1737
      %v1802 = vadd.f32 %v1289, %v1742
      %v1803 = vadd.f32 %v1292, %v1745
      %v1804 = vadd.f32 %v1297, %v1750
      %v1805 = vadd.f32 %v1300, %v1753
      %v1806 = vadd.f32 %v1305, %v1758
      %v1807 = vadd.f32 %v1308, %v1761
      %v1808 = vadd.f32 %v1313, %v1766
      %v1809 = vadd.f32 %v1316, %v1769
      %v1810 = vadd.f32 %v1321, %v1774
      %v1811 = vadd.f32 %v1324, %v1777
      %s1812 = scalar_lea.vmem %s256, 12
      %v1813 = vld [vmem:[%s1812] sm:$0xf]
      %v1814 = vld [vmem:[%s1812 + $0x4] sm:$0xf]
      %v1815 = vld [vmem:[%s1812 + $0xc] sm:$0xf]
      %v1816 = vld [vmem:[%s1812 + $0x10] sm:$0xf]
      %v1817 = vld [vmem:[%s1812 + $0x18] sm:$0xf]
      %v1818 = vld [vmem:[%s1812 + $0x1c] sm:$0xf]
      %v1819 = vld [vmem:[%s1812 + $0x24] sm:$0xf]
      %v1820 = vld [vmem:[%s1812 + $0x28] sm:$0xf]
      %v1821 = vld [vmem:[%s1812 + $0x30] sm:$0xf]
      %v1822 = vld [vmem:[%s1812 + $0x34] sm:$0xf]
      %v1823 = vld [vmem:[%s1812 + $0x3c] sm:$0xf]
      %v1824 = vld [vmem:[%s1812 + $0x40] sm:$0xf]
      %v1825 = vld [vmem:[%s1812 + $0x48] sm:$0xf]
      %v1826 = vld [vmem:[%s1812 + $0x4c] sm:$0xf]
      %v1827 = vld [vmem:[%s1812 + $0x54] sm:$0xf]
      %v1828 = vld [vmem:[%s1812 + $0x58] sm:$0xf]
      %v1829 = vld [vmem:[%s1812 + $0x60] sm:$0xf]
      %v1830 = vld [vmem:[%s1812 + $0x64] sm:$0xf]
      %v1831 = vld [vmem:[%s1812 + $0x6c] sm:$0xf]
      %v1832 = vld [vmem:[%s1812 + $0x70] sm:$0xf]
      %v1833 = vld [vmem:[%s1812 + $0x78] sm:$0xf]
      %v1834 = vld [vmem:[%s1812 + $0x7c] sm:$0xf]
      %v1835 = vld [vmem:[%s1812 + $0x84] sm:$0xf]
      %v1836 = vld [vmem:[%s1812 + $0x88] sm:$0xf]
      %v1837 = vld [vmem:[%s1812 + $0x90] sm:$0xf]
      %v1838 = vld [vmem:[%s1812 + $0x94] sm:$0xf]
      %v1839 = vld [vmem:[%s1812 + $0x9c] sm:$0xf]
      %v1840 = vld [vmem:[%s1812 + $0xa0] sm:$0xf]
      %v1841 = vld [vmem:[%s1812 + $0xa8] sm:$0xf]
      %v1842 = vld [vmem:[%s1812 + $0xac] sm:$0xf]
      %v1843 = vld [vmem:[%s1812 + $0xb4] sm:$0xf]
      %v1844 = vld [vmem:[%s1812 + $0xb8] sm:$0xf]
      %s1845 = scalar_lea.vmem %s260, 192
      %v1846 = vld [vmem:[%s1845] sm:$0xf]
      %v1847 = vld [vmem:[%s1845 + $0x4] sm:$0xf]
      %v1848 = vld [vmem:[%s1845 + $0x8] sm:$0xf]
      %v1849 = vld [vmem:[%s1845 + $0xc] sm:$0xf]
      %v1850 = vld [vmem:[%s1845 + $0x10] sm:$0xf]
      %v1851 = vld [vmem:[%s1845 + $0x14] sm:$0xf]
      %v1852 = vld [vmem:[%s1845 + $0x18] sm:$0xf]
      %v1853 = vld [vmem:[%s1845 + $0x1c] sm:$0xf]
      %v1854 = vld [vmem:[%s1845 + $0x20] sm:$0xf]
      %v1855 = vld [vmem:[%s1845 + $0x24] sm:$0xf]
      %v1856 = vld [vmem:[%s1845 + $0x28] sm:$0xf]
      %v1857 = vld [vmem:[%s1845 + $0x2c] sm:$0xf]
      %v1858 = vld [vmem:[%s1845 + $0x30] sm:$0xf]
      %v1859 = vld [vmem:[%s1845 + $0x34] sm:$0xf]
      %v1860 = vld [vmem:[%s1845 + $0x38] sm:$0xf]
      %v1861 = vld [vmem:[%s1845 + $0x3c] sm:$0xf]
      %v1894 = vunpack.c.l.b16 %v1813
      %v1895 = vunpack.c.l.b16 %v1814
      %v1896 = vunpack.c.l.b16 %v1815
      %v1897 = vunpack.c.l.b16 %v1816
      %v1898 = vunpack.c.l.b16 %v1817
      %v1899 = vunpack.c.l.b16 %v1818
      %v1900 = vunpack.c.l.b16 %v1819
      %v1901 = vunpack.c.l.b16 %v1820
      %v1902 = vunpack.c.l.b16 %v1821
      %v1903 = vunpack.c.l.b16 %v1822
      %v1904 = vunpack.c.l.b16 %v1823
      %v1905 = vunpack.c.l.b16 %v1824
      %v1906 = vunpack.c.l.b16 %v1825
      %v1907 = vunpack.c.l.b16 %v1826
      %v1908 = vunpack.c.l.b16 %v1827
      %v1909 = vunpack.c.l.b16 %v1828
      %v1910 = vunpack.c.l.b16 %v1829
      %v1911 = vunpack.c.l.b16 %v1830
      %v1912 = vunpack.c.l.b16 %v1831
      %v1913 = vunpack.c.l.b16 %v1832
      %v1914 = vunpack.c.l.b16 %v1833
      %v1915 = vunpack.c.l.b16 %v1834
      %v1916 = vunpack.c.l.b16 %v1835
      %v1917 = vunpack.c.l.b16 %v1836
      %v1918 = vunpack.c.l.b16 %v1837
      %v1919 = vunpack.c.l.b16 %v1838
      %v1920 = vunpack.c.l.b16 %v1839
      %v1921 = vunpack.c.l.b16 %v1840
      %v1922 = vunpack.c.l.b16 %v1841
      %v1923 = vunpack.c.l.b16 %v1842
      %v1924 = vunpack.c.l.b16 %v1843
      %v1925 = vunpack.c.l.b16 %v1844
      %v1926 = vpack.c.b16 %v1895, %v1894
      %v1927 = vpack.c.b16 %v1897, %v1896
      %v1928 = vpack.c.b16 %v1899, %v1898
      %v1929 = vpack.c.b16 %v1901, %v1900
      %v1930 = vpack.c.b16 %v1903, %v1902
      %v1931 = vpack.c.b16 %v1905, %v1904
      %v1932 = vpack.c.b16 %v1907, %v1906
      %v1933 = vpack.c.b16 %v1909, %v1908
      %v1934 = vpack.c.b16 %v1911, %v1910
      %v1935 = vpack.c.b16 %v1913, %v1912
      %v1936 = vpack.c.b16 %v1915, %v1914
      %v1937 = vpack.c.b16 %v1917, %v1916
      %v1938 = vpack.c.b16 %v1919, %v1918
      %v1939 = vpack.c.b16 %v1921, %v1920
      %v1940 = vpack.c.b16 %v1923, %v1922
      %v1941 = vpack.c.b16 %v1925, %v1924
      %v1974 = vunpack.c.l.b16 %v1846
      %v1975 = vunpack.c.l.b16 %v1847
      %v1976 = vunpack.c.l.b16 %v1848
      %v1977 = vunpack.c.l.b16 %v1849
      %v1978 = vunpack.c.l.b16 %v1850
      %v1979 = vunpack.c.l.b16 %v1851
      %v1980 = vunpack.c.l.b16 %v1852
      %v1981 = vunpack.c.l.b16 %v1853
      %v1982 = vunpack.c.l.b16 %v1854
      %v1983 = vunpack.c.l.b16 %v1855
      %v1984 = vunpack.c.l.b16 %v1856
      %v1985 = vunpack.c.l.b16 %v1857
      %v1986 = vunpack.c.l.b16 %v1858
      %v1987 = vunpack.c.l.b16 %v1859
      %v1988 = vunpack.c.l.b16 %v1860
      %v1989 = vunpack.c.l.b16 %v1861
      %v1990 = vpack.c.b16 %v1975, %v1974
      %v1991 = vpack.c.b16 %v1977, %v1976
      %v1992 = vpack.c.b16 %v1979, %v1978
      %v1993 = vpack.c.b16 %v1981, %v1980
      %v1994 = vpack.c.b16 %v1983, %v1982
      %v1995 = vpack.c.b16 %v1985, %v1984
      %v1996 = vpack.c.b16 %v1987, %v1986
      %v1997 = vpack.c.b16 %v1989, %v1988
      %2006 = vmatprep.subr.bf16.mxu0 0
      %2007 = vmatpush1.bf16.msra.mxu0 %v1990
      %2008 = vmatprep.subr.bf16.mxu0 0
      %2009 = vmatpush1.bf16.msra.mxu0 %v1991
      %2010 = vmatprep.subr.bf16.mxu0 0
      %2011 = vmatpush1.bf16.msra.mxu0 %v1992
      %2012 = vmatprep.subr.bf16.mxu0 0
      %2013 = vmatpush1.bf16.msra.mxu0 %v1993
      %2014 = vmatprep.subr.bf16.mxu0 0
      %2015 = vmatpush1.bf16.msra.mxu0 %v1994
      %2016 = vmatprep.subr.bf16.mxu0 0
      %2017 = vmatpush1.bf16.msra.mxu0 %v1995
      %2018 = vmatprep.subr.bf16.mxu0 0
      %2019 = vmatpush1.bf16.msra.mxu0 %v1996
      %2020 = vmatprep.subr.bf16.mxu0 0
      %2021 = vmatpush1.bf16.msra.mxu0 %v1997
      %2022 = vmatprep.subr.bf16.mxu0 0
      %2023 = vmatpush1.bf16.msra.mxu0 0
      %2024 = vmatprep.subr.bf16.mxu0 0
      %2025 = vmatpush1.bf16.msra.mxu0 0
      %2026 = vmatprep.subr.bf16.mxu0 0
      %2027 = vmatpush1.bf16.msra.mxu0 0
      %2028 = vmatprep.subr.bf16.mxu0 0
      %2029 = vmatpush1.bf16.msra.mxu0 0
      %2030 = vmatprep.subr.bf16.mxu0 0
      %2031 = vmatpush1.bf16.msra.mxu0 0
      %2032 = vmatprep.subr.bf16.mxu0 0
      %2033 = vmatpush1.bf16.msra.mxu0 0
      %2034 = vmatprep.subr.bf16.mxu0 0
      %2035 = vmatpush1.bf16.msra.mxu0 0
      %2036 = vmatprep.subr.bf16.mxu0 0
      %2037 = vmatpush1.bf16.msra.mxu0 0
      %2038 = vmatprep.mubr.bf16.mxu0 0
      %2039 = vmatmul.mubr.bf16.gmra.mrb[0].mxu0 %v1926
      %v2040 = vpop.f32.mrb[0].mxu0
      %v2041 = vadd.f32 0.0, %v2040
      %v2042 = vpop.f32.mrb[0].mxu0
      %v2043 = vpop.f32.mrb[0].mxu0
      %v2044 = vadd.f32 0.0, %v2043
      %v2045 = vpop.f32.mrb[0].mxu0
      %2046 = vmatprep.mubr.bf16.mxu0 0
      %2047 = vmatmul.mubr.bf16.gmra.mrb[0].mxu0 %v1927
      %v2048 = vpop.f32.mrb[0].mxu0
      %v2049 = vadd.f32 0.0, %v2048
      %v2050 = vpop.f32.mrb[0].mxu0
      %v2051 = vpop.f32.mrb[0].mxu0
      %v2052 = vadd.f32 0.0, %v2051
      %v2053 = vpop.f32.mrb[0].mxu0
      %2054 = vmatprep.mubr.bf16.mxu0 0
      %2055 = vmatmul.mubr.bf16.gmra.mrb[0].mxu0 %v1928
      %v2056 = vpop.f32.mrb[0].mxu0
      %v2057 = vadd.f32 0.0, %v2056
      %v2058 = vpop.f32.mrb[0].mxu0
      %v2059 = vpop.f32.mrb[0].mxu0
      %v2060 = vadd.f32 0.0, %v2059
      %v2061 = vpop.f32.mrb[0].mxu0
      %2062 = vmatprep.mubr.bf16.mxu0 0
      %2063 = vmatmul.mubr.bf16.gmra.mrb[0].mxu0 %v1929
      %v2064 = vpop.f32.mrb[0].mxu0
      %v2065 = vadd.f32 0.0, %v2064
      %v2066 = vpop.f32.mrb[0].mxu0
      %v2067 = vpop.f32.mrb[0].mxu0
      %v2068 = vadd.f32 0.0, %v2067
      %v2069 = vpop.f32.mrb[0].mxu0
      %2070 = vmatprep.mubr.bf16.mxu0 0
      %2071 = vmatmul.mubr.bf16.gmra.mrb[0].mxu0 %v1930
      %v2072 = vpop.f32.mrb[0].mxu0
      %v2073 = vadd.f32 0.0, %v2072
      %v2074 = vpop.f32.mrb[0].mxu0
      %v2075 = vpop.f32.mrb[0].mxu0
      %v2076 = vadd.f32 0.0, %v2075
      %v2077 = vpop.f32.mrb[0].mxu0
      %2078 = vmatprep.mubr.bf16.mxu0 0
      %2079 = vmatmul.mubr.bf16.gmra.mrb[0].mxu0 %v1931
      %v2080 = vpop.f32.mrb[0].mxu0
      %v2081 = vadd.f32 0.0, %v2080
      %v2082 = vpop.f32.mrb[0].mxu0
      %v2083 = vpop.f32.mrb[0].mxu0
      %v2084 = vadd.f32 0.0, %v2083
      %v2085 = vpop.f32.mrb[0].mxu0
      %2086 = vmatprep.mubr.bf16.mxu0 0
      %2087 = vmatmul.mubr.bf16.gmra.mrb[0].mxu0 %v1932
      %v2088 = vpop.f32.mrb[0].mxu0
      %v2089 = vadd.f32 0.0, %v2088
      %v2090 = vpop.f32.mrb[0].mxu0
      %v2091 = vpop.f32.mrb[0].mxu0
      %v2092 = vadd.f32 0.0, %v2091
      %v2093 = vpop.f32.mrb[0].mxu0
      %2094 = vmatprep.mubr.bf16.mxu0 0
      %2095 = vmatmul.mubr.bf16.gmra.mrb[0].mxu0 %v1933
      %v2096 = vpop.f32.mrb[0].mxu0
      %v2097 = vadd.f32 0.0, %v2096
      %v2098 = vpop.f32.mrb[0].mxu0
      %v2099 = vpop.f32.mrb[0].mxu0
      %v2100 = vadd.f32 0.0, %v2099
      %v2101 = vpop.f32.mrb[0].mxu0
      %2102 = vmatprep.mubr.bf16.mxu0 0
      %2103 = vmatmul.mubr.bf16.gmra.mrb[0].mxu0 %v1934
      %v2104 = vpop.f32.mrb[0].mxu0
      %v2105 = vadd.f32 0.0, %v2104
      %v2106 = vpop.f32.mrb[0].mxu0
      %v2107 = vpop.f32.mrb[0].mxu0
      %v2108 = vadd.f32 0.0, %v2107
      %v2109 = vpop.f32.mrb[0].mxu0
      %2110 = vmatprep.mubr.bf16.mxu0 0
      %2111 = vmatmul.mubr.bf16.gmra.mrb[0].mxu0 %v1935
      %v2112 = vpop.f32.mrb[0].mxu0
      %v2113 = vadd.f32 0.0, %v2112
      %v2114 = vpop.f32.mrb[0].mxu0
      %v2115 = vpop.f32.mrb[0].mxu0
      %v2116 = vadd.f32 0.0, %v2115
      %v2117 = vpop.f32.mrb[0].mxu0
      %2118 = vmatprep.mubr.bf16.mxu0 0
      %2119 = vmatmul.mubr.bf16.gmra.mrb[0].mxu0 %v1936
      %v2120 = vpop.f32.mrb[0].mxu0
      %v2121 = vadd.f32 0.0, %v2120
      %v2122 = vpop.f32.mrb[0].mxu0
      %v2123 = vpop.f32.mrb[0].mxu0
      %v2124 = vadd.f32 0.0, %v2123
      %v2125 = vpop.f32.mrb[0].mxu0
      %2126 = vmatprep.mubr.bf16.mxu0 0
      %2127 = vmatmul.mubr.bf16.gmra.mrb[0].mxu0 %v1937
      %v2128 = vpop.f32.mrb[0].mxu0
      %v2129 = vadd.f32 0.0, %v2128
      %v2130 = vpop.f32.mrb[0].mxu0
      %v2131 = vpop.f32.mrb[0].mxu0
      %v2132 = vadd.f32 0.0, %v2131
      %v2133 = vpop.f32.mrb[0].mxu0
      %2134 = vmatprep.mubr.bf16.mxu0 0
      %2135 = vmatmul.mubr.bf16.gmra.mrb[0].mxu0 %v1938
      %v2136 = vpop.f32.mrb[0].mxu0
      %v2137 = vadd.f32 0.0, %v2136
      %v2138 = vpop.f32.mrb[0].mxu0
      %v2139 = vpop.f32.mrb[0].mxu0
      %v2140 = vadd.f32 0.0, %v2139
      %v2141 = vpop.f32.mrb[0].mxu0
      %2142 = vmatprep.mubr.bf16.mxu0 0
      %2143 = vmatmul.mubr.bf16.gmra.mrb[0].mxu0 %v1939
      %v2144 = vpop.f32.mrb[0].mxu0
      %v2145 = vadd.f32 0.0, %v2144
      %v2146 = vpop.f32.mrb[0].mxu0
      %v2147 = vpop.f32.mrb[0].mxu0
      %v2148 = vadd.f32 0.0, %v2147
      %v2149 = vpop.f32.mrb[0].mxu0
      %2150 = vmatprep.mubr.bf16.mxu0 0
      %2151 = vmatmul.mubr.bf16.gmra.mrb[0].mxu0 %v1940
      %v2152 = vpop.f32.mrb[0].mxu0
      %v2153 = vadd.f32 0.0, %v2152
      %v2154 = vpop.f32.mrb[0].mxu0
      %v2155 = vpop.f32.mrb[0].mxu0
      %v2156 = vadd.f32 0.0, %v2155
      %v2157 = vpop.f32.mrb[0].mxu0
      %2158 = vmatprep.mubr.bf16.mxu0 0
      %2159 = vmatmul.mubr.bf16.gmra.mrb[0].mxu0 %v1941
      %v2160 = vpop.f32.mrb[0].mxu0
      %v2161 = vadd.f32 0.0, %v2160
      %v2162 = vpop.f32.mrb[0].mxu0
      %v2163 = vpop.f32.mrb[0].mxu0
      %v2164 = vadd.f32 0.0, %v2163
      %v2165 = vpop.f32.mrb[0].mxu0
      %2166 = vdwg.mxu0
      %v2167 = vadd.f32 %v1780, %v2041
      %v2168 = vadd.f32 %v1781, %v2044
      %v2169 = vadd.f32 %v1782, %v2049
      %v2170 = vadd.f32 %v1783, %v2052
      %v2171 = vadd.f32 %v1784, %v2057
      %v2172 = vadd.f32 %v1785, %v2060
      %v2173 = vadd.f32 %v1786, %v2065
      %v2174 = vadd.f32 %v1787, %v2068
      %v2175 = vadd.f32 %v1788, %v2073
      %v2176 = vadd.f32 %v1789, %v2076
      %v2177 = vadd.f32 %v1790, %v2081
      %v2178 = vadd.f32 %v1791, %v2084
      %v2179 = vadd.f32 %v1792, %v2089
      %v2180 = vadd.f32 %v1793, %v2092
      %v2181 = vadd.f32 %v1794, %v2097
      %v2182 = vadd.f32 %v1795, %v2100
      %v2183 = vadd.f32 %v1796, %v2105
      %v2184 = vadd.f32 %v1797, %v2108
      %v2185 = vadd.f32 %v1798, %v2113
      %v2186 = vadd.f32 %v1799, %v2116
      %v2187 = vadd.f32 %v1800, %v2121
      %v2188 = vadd.f32 %v1801, %v2124
      %v2189 = vadd.f32 %v1802, %v2129
      %v2190 = vadd.f32 %v1803, %v2132
      %v2191 = vadd.f32 %v1804, %v2137
      %v2192 = vadd.f32 %v1805, %v2140
      %v2193 = vadd.f32 %v1806, %v2145
      %v2194 = vadd.f32 %v1807, %v2148
      %v2195 = vadd.f32 %v1808, %v2153
      %v2196 = vadd.f32 %v1809, %v2156
      %v2197 = vadd.f32 %v1810, %v2161
      %v2198 = vadd.f32 %v1811, %v2164
      %v2199 = vld [vmem:[%s1812] sm:$0xf]
      %v2200 = vld [vmem:[%s1812 + $0x4] sm:$0xf]
      %v2201 = vld [vmem:[%s1812 + $0x8] sm:$0x1]
      %v2202 = vld [vmem:[%s1812 + $0xc] sm:$0xf]
      %v2203 = vld [vmem:[%s1812 + $0x10] sm:$0xf]
      %v2204 = vld [vmem:[%s1812 + $0x14] sm:$0x1]
      %v2205 = vld [vmem:[%s1812 + $0x18] sm:$0xf]
      %v2206 = vld [vmem:[%s1812 + $0x1c] sm:$0xf]
      %v2207 = vld [vmem:[%s1812 + $0x20] sm:$0x1]
      %v2208 = vld [vmem:[%s1812 + $0x24] sm:$0xf]
      %v2209 = vld [vmem:[%s1812 + $0x28] sm:$0xf]
      %v2210 = vld [vmem:[%s1812 + $0x2c] sm:$0x1]
      %v2211 = vld [vmem:[%s1812 + $0x30] sm:$0xf]
      %v2212 = vld [vmem:[%s1812 + $0x34] sm:$0xf]
      %v2213 = vld [vmem:[%s1812 + $0x38] sm:$0x1]
      %v2214 = vld [vmem:[%s1812 + $0x3c] sm:$0xf]
      %v2215 = vld [vmem:[%s1812 + $0x40] sm:$0xf]
      %v2216 = vld [vmem:[%s1812 + $0x44] sm:$0x1]
      %v2217 = vld [vmem:[%s1812 + $0x48] sm:$0xf]
      %v2218 = vld [vmem:[%s1812 + $0x4c] sm:$0xf]
      %v2219 = vld [vmem:[%s1812 + $0x50] sm:$0x1]
      %v2220 = vld [vmem:[%s1812 + $0x54] sm:$0xf]
      %v2221 = vld [vmem:[%s1812 + $0x58] sm:$0xf]
      %v2222 = vld [vmem:[%s1812 + $0x5c] sm:$0x1]
      %v2223 = vld [vmem:[%s1812 + $0x60] sm:$0xf]
      %v2224 = vld [vmem:[%s1812 + $0x64] sm:$0xf]
      %v2225 = vld [vmem:[%s1812 + $0x68] sm:$0x1]
      %v2226 = vld [vmem:[%s1812 + $0x6c] sm:$0xf]
      %v2227 = vld [vmem:[%s1812 + $0x70] sm:$0xf]
      %v2228 = vld [vmem:[%s1812 + $0x74] sm:$0x1]
      %v2229 = vld [vmem:[%s1812 + $0x78] sm:$0xf]
      %v2230 = vld [vmem:[%s1812 + $0x7c] sm:$0xf]
      %v2231 = vld [vmem:[%s1812 + $0x80] sm:$0x1]
      %v2232 = vld [vmem:[%s1812 + $0x84] sm:$0xf]
      %v2233 = vld [vmem:[%s1812 + $0x88] sm:$0xf]
      %v2234 = vld [vmem:[%s1812 + $0x8c] sm:$0x1]
      %v2235 = vld [vmem:[%s1812 + $0x90] sm:$0xf]
      %v2236 = vld [vmem:[%s1812 + $0x94] sm:$0xf]
      %v2237 = vld [vmem:[%s1812 + $0x98] sm:$0x1]
      %v2238 = vld [vmem:[%s1812 + $0x9c] sm:$0xf]
      %v2239 = vld [vmem:[%s1812 + $0xa0] sm:$0xf]
      %v2240 = vld [vmem:[%s1812 + $0xa4] sm:$0x1]
      %v2241 = vld [vmem:[%s1812 + $0xa8] sm:$0xf]
      %v2242 = vld [vmem:[%s1812 + $0xac] sm:$0xf]
      %v2243 = vld [vmem:[%s1812 + $0xb0] sm:$0x1]
      %v2244 = vld [vmem:[%s1812 + $0xb4] sm:$0xf]
      %v2245 = vld [vmem:[%s1812 + $0xb8] sm:$0xf]
      %v2246 = vld [vmem:[%s1812 + $0xbc] sm:$0x1]
      %v2248 = vshrl.u32 %v2199, 16
      %v2250 = vrot.slane %v2248, 4
      %v2251 = vshll.u32 %v2199, 16
      %v2253 = vrot.slane %v2251, 5
      %v2254 = vor.u32 %v2250, %v2253
      %v2255 = vrot.slane %v2254, 4
      %v2257 = vshll.u32 %v2200, 16
      %v2259 = vrot.slane %v2257, 5
      %v2260 = vsel %vm347, %v2255, %v2259
      %v2261 = vshrl.u32 %v2200, 16
      %v2263 = vrot.slane %v2261, 4
      %v2264 = vor.u32 %v2263, %v2259
      %v2265 = vrot.slane %v2264, 4
      %v2267 = vshll.u32 %v2201, 16
      %v2269 = vrot.slane %v2267, 5
      %v2270 = vsel %vm347, %v2265, %v2269
      %v2272 = vshrl.u32 %v2202, 16
      %v2274 = vrot.slane %v2272, 4
      %v2275 = vshll.u32 %v2202, 16
      %v2277 = vrot.slane %v2275, 5
      %v2278 = vor.u32 %v2274, %v2277
      %v2279 = vrot.slane %v2278, 4
      %v2281 = vshll.u32 %v2203, 16
      %v2283 = vrot.slane %v2281, 5
      %v2284 = vsel %vm347, %v2279, %v2283
      %v2285 = vshrl.u32 %v2203, 16
      %v2287 = vrot.slane %v2285, 4
      %v2288 = vor.u32 %v2287, %v2283
      %v2289 = vrot.slane %v2288, 4
      %v2291 = vshll.u32 %v2204, 16
      %v2293 = vrot.slane %v2291, 5
      %v2294 = vsel %vm347, %v2289, %v2293
      %v2296 = vshrl.u32 %v2205, 16
      %v2298 = vrot.slane %v2296, 4
      %v2299 = vshll.u32 %v2205, 16
      %v2301 = vrot.slane %v2299, 5
      %v2302 = vor.u32 %v2298, %v2301
      %v2303 = vrot.slane %v2302, 4
      %v2305 = vshll.u32 %v2206, 16
      %v2307 = vrot.slane %v2305, 5
      %v2308 = vsel %vm347, %v2303, %v2307
      %v2309 = vshrl.u32 %v2206, 16
      %v2311 = vrot.slane %v2309, 4
      %v2312 = vor.u32 %v2311, %v2307
      %v2313 = vrot.slane %v2312, 4
      %v2315 = vshll.u32 %v2207, 16
      %v2317 = vrot.slane %v2315, 5
      %v2318 = vsel %vm347, %v2313, %v2317
      %v2320 = vshrl.u32 %v2208, 16
      %v2322 = vrot.slane %v2320, 4
      %v2323 = vshll.u32 %v2208, 16
      %v2325 = vrot.slane %v2323, 5
      %v2326 = vor.u32 %v2322, %v2325
      %v2327 = vrot.slane %v2326, 4
      %v2329 = vshll.u32 %v2209, 16
      %v2331 = vrot.slane %v2329, 5
      %v2332 = vsel %vm347, %v2327, %v2331
      %v2333 = vshrl.u32 %v2209, 16
      %v2335 = vrot.slane %v2333, 4
      %v2336 = vor.u32 %v2335, %v2331
      %v2337 = vrot.slane %v2336, 4
      %v2339 = vshll.u32 %v2210, 16
      %v2341 = vrot.slane %v2339, 5
      %v2342 = vsel %vm347, %v2337, %v2341
      %v2344 = vshrl.u32 %v2211, 16
      %v2346 = vrot.slane %v2344, 4
      %v2347 = vshll.u32 %v2211, 16
      %v2349 = vrot.slane %v2347, 5
      %v2350 = vor.u32 %v2346, %v2349
      %v2351 = vrot.slane %v2350, 4
      %v2353 = vshll.u32 %v2212, 16
      %v2355 = vrot.slane %v2353, 5
      %v2356 = vsel %vm347, %v2351, %v2355
      %v2357 = vshrl.u32 %v2212, 16
      %v2359 = vrot.slane %v2357, 4
      %v2360 = vor.u32 %v2359, %v2355
      %v2361 = vrot.slane %v2360, 4
      %v2363 = vshll.u32 %v2213, 16
      %v2365 = vrot.slane %v2363, 5
      %v2366 = vsel %vm347, %v2361, %v2365
      %v2368 = vshrl.u32 %v2214, 16
      %v2370 = vrot.slane %v2368, 4
      %v2371 = vshll.u32 %v2214, 16
      %v2373 = vrot.slane %v2371, 5
      %v2374 = vor.u32 %v2370, %v2373
      %v2375 = vrot.slane %v2374, 4
      %v2377 = vshll.u32 %v2215, 16
      %v2379 = vrot.slane %v2377, 5
      %v2380 = vsel %vm347, %v2375, %v2379
      %v2381 = vshrl.u32 %v2215, 16
      %v2383 = vrot.slane %v2381, 4
      %v2384 = vor.u32 %v2383, %v2379
      %v2385 = vrot.slane %v2384, 4
      %v2387 = vshll.u32 %v2216, 16
      %v2389 = vrot.slane %v2387, 5
      %v2390 = vsel %vm347, %v2385, %v2389
      %v2392 = vshrl.u32 %v2217, 16
      %v2394 = vrot.slane %v2392, 4
      %v2395 = vshll.u32 %v2217, 16
      %v2397 = vrot.slane %v2395, 5
      %v2398 = vor.u32 %v2394, %v2397
      %v2399 = vrot.slane %v2398, 4
      %v2401 = vshll.u32 %v2218, 16
      %v2403 = vrot.slane %v2401, 5
      %v2404 = vsel %vm347, %v2399, %v2403
      %v2405 = vshrl.u32 %v2218, 16
      %v2407 = vrot.slane %v2405, 4
      %v2408 = vor.u32 %v2407, %v2403
      %v2409 = vrot.slane %v2408, 4
      %v2411 = vshll.u32 %v2219, 16
      %v2413 = vrot.slane %v2411, 5
      %v2414 = vsel %vm347, %v2409, %v2413
      %v2416 = vshrl.u32 %v2220, 16
      %v2418 = vrot.slane %v2416, 4
      %v2419 = vshll.u32 %v2220, 16
      %v2421 = vrot.slane %v2419, 5
      %v2422 = vor.u32 %v2418, %v2421
      %v2423 = vrot.slane %v2422, 4
      %v2425 = vshll.u32 %v2221, 16
      %v2427 = vrot.slane %v2425, 5
      %v2428 = vsel %vm347, %v2423, %v2427
      %v2429 = vshrl.u32 %v2221, 16
      %v2431 = vrot.slane %v2429, 4
      %v2432 = vor.u32 %v2431, %v2427
      %v2433 = vrot.slane %v2432, 4
      %v2435 = vshll.u32 %v2222, 16
      %v2437 = vrot.slane %v2435, 5
      %v2438 = vsel %vm347, %v2433, %v2437
      %v2440 = vshrl.u32 %v2223, 16
      %v2442 = vrot.slane %v2440, 4
      %v2443 = vshll.u32 %v2223, 16
      %v2445 = vrot.slane %v2443, 5
      %v2446 = vor.u32 %v2442, %v2445
      %v2447 = vrot.slane %v2446, 4
      %v2449 = vshll.u32 %v2224, 16
      %v2451 = vrot.slane %v2449, 5
      %v2452 = vsel %vm347, %v2447, %v2451
      %v2453 = vshrl.u32 %v2224, 16
      %v2455 = vrot.slane %v2453, 4
      %v2456 = vor.u32 %v2455, %v2451
      %v2457 = vrot.slane %v2456, 4
      %v2459 = vshll.u32 %v2225, 16
      %v2461 = vrot.slane %v2459, 5
      %v2462 = vsel %vm347, %v2457, %v2461
      %v2464 = vshrl.u32 %v2226, 16
      %v2466 = vrot.slane %v2464, 4
      %v2467 = vshll.u32 %v2226, 16
      %v2469 = vrot.slane %v2467, 5
      %v2470 = vor.u32 %v2466, %v2469
      %v2471 = vrot.slane %v2470, 4
      %v2473 = vshll.u32 %v2227, 16
      %v2475 = vrot.slane %v2473, 5
      %v2476 = vsel %vm347, %v2471, %v2475
      %v2477 = vshrl.u32 %v2227, 16
      %v2479 = vrot.slane %v2477, 4
      %v2480 = vor.u32 %v2479, %v2475
      %v2481 = vrot.slane %v2480, 4
      %v2483 = vshll.u32 %v2228, 16
      %v2485 = vrot.slane %v2483, 5
      %v2486 = vsel %vm347, %v2481, %v2485
      %v2488 = vshrl.u32 %v2229, 16
      %v2490 = vrot.slane %v2488, 4
      %v2491 = vshll.u32 %v2229, 16
      %v2493 = vrot.slane %v2491, 5
      %v2494 = vor.u32 %v2490, %v2493
      %v2495 = vrot.slane %v2494, 4
      %v2497 = vshll.u32 %v2230, 16
      %v2499 = vrot.slane %v2497, 5
      %v2500 = vsel %vm347, %v2495, %v2499
      %v2501 = vshrl.u32 %v2230, 16
      %v2503 = vrot.slane %v2501, 4
      %v2504 = vor.u32 %v2503, %v2499
      %v2505 = vrot.slane %v2504, 4
      %v2507 = vshll.u32 %v2231, 16
      %v2509 = vrot.slane %v2507, 5
      %v2510 = vsel %vm347, %v2505, %v2509
      %v2512 = vshrl.u32 %v2232, 16
      %v2514 = vrot.slane %v2512, 4
      %v2515 = vshll.u32 %v2232, 16
      %v2517 = vrot.slane %v2515, 5
      %v2518 = vor.u32 %v2514, %v2517
      %v2519 = vrot.slane %v2518, 4
      %v2521 = vshll.u32 %v2233, 16
      %v2523 = vrot.slane %v2521, 5
      %v2524 = vsel %vm347, %v2519, %v2523
      %v2525 = vshrl.u32 %v2233, 16
      %v2527 = vrot.slane %v2525, 4
      %v2528 = vor.u32 %v2527, %v2523
      %v2529 = vrot.slane %v2528, 4
      %v2531 = vshll.u32 %v2234, 16
      %v2533 = vrot.slane %v2531, 5
      %v2534 = vsel %vm347, %v2529, %v2533
      %v2536 = vshrl.u32 %v2235, 16
      %v2538 = vrot.slane %v2536, 4
      %v2539 = vshll.u32 %v2235, 16
      %v2541 = vrot.slane %v2539, 5
      %v2542 = vor.u32 %v2538, %v2541
      %v2543 = vrot.slane %v2542, 4
      %v2545 = vshll.u32 %v2236, 16
      %v2547 = vrot.slane %v2545, 5
      %v2548 = vsel %vm347, %v2543, %v2547
      %v2549 = vshrl.u32 %v2236, 16
      %v2551 = vrot.slane %v2549, 4
      %v2552 = vor.u32 %v2551, %v2547
      %v2553 = vrot.slane %v2552, 4
      %v2555 = vshll.u32 %v2237, 16
      %v2557 = vrot.slane %v2555, 5
      %v2558 = vsel %vm347, %v2553, %v2557
      %v2560 = vshrl.u32 %v2238, 16
      %v2562 = vrot.slane %v2560, 4
      %v2563 = vshll.u32 %v2238, 16
      %v2565 = vrot.slane %v2563, 5
      %v2566 = vor.u32 %v2562, %v2565
      %v2567 = vrot.slane %v2566, 4
      %v2569 = vshll.u32 %v2239, 16
      %v2571 = vrot.slane %v2569, 5
      %v2572 = vsel %vm347, %v2567, %v2571
      %v2573 = vshrl.u32 %v2239, 16
      %v2575 = vrot.slane %v2573, 4
      %v2576 = vor.u32 %v2575, %v2571
      %v2577 = vrot.slane %v2576, 4
      %v2579 = vshll.u32 %v2240, 16
      %v2581 = vrot.slane %v2579, 5
      %v2582 = vsel %vm347, %v2577, %v2581
      %v2584 = vshrl.u32 %v2241, 16
      %v2586 = vrot.slane %v2584, 4
      %v2587 = vshll.u32 %v2241, 16
      %v2589 = vrot.slane %v2587, 5
      %v2590 = vor.u32 %v2586, %v2589
      %v2591 = vrot.slane %v2590, 4
      %v2593 = vshll.u32 %v2242, 16
      %v2595 = vrot.slane %v2593, 5
      %v2596 = vsel %vm347, %v2591, %v2595
      %v2597 = vshrl.u32 %v2242, 16
      %v2599 = vrot.slane %v2597, 4
      %v2600 = vor.u32 %v2599, %v2595
      %v2601 = vrot.slane %v2600, 4
      %v2603 = vshll.u32 %v2243, 16
      %v2605 = vrot.slane %v2603, 5
      %v2606 = vsel %vm347, %v2601, %v2605
      %v2608 = vshrl.u32 %v2244, 16
      %v2610 = vrot.slane %v2608, 4
      %v2611 = vshll.u32 %v2244, 16
      %v2613 = vrot.slane %v2611, 5
      %v2614 = vor.u32 %v2610, %v2613
      %v2615 = vrot.slane %v2614, 4
      %v2617 = vshll.u32 %v2245, 16
      %v2619 = vrot.slane %v2617, 5
      %v2620 = vsel %vm347, %v2615, %v2619
      %v2621 = vshrl.u32 %v2245, 16
      %v2623 = vrot.slane %v2621, 4
      %v2624 = vor.u32 %v2623, %v2619
      %v2625 = vrot.slane %v2624, 4
      %v2627 = vshll.u32 %v2246, 16
      %v2629 = vrot.slane %v2627, 5
      %v2630 = vsel %vm347, %v2625, %v2629
      %s2631 = scalar_lea.vmem %s260, 256
      %v2632 = vld [vmem:[%s2631] sm:$0xf]
      %v2633 = vld [vmem:[%s2631 + $0x4] sm:$0xf]
      %v2634 = vld [vmem:[%s2631 + $0x8] sm:$0xf]
      %v2635 = vld [vmem:[%s2631 + $0xc] sm:$0xf]
      %v2636 = vld [vmem:[%s2631 + $0x10] sm:$0xf]
      %v2637 = vld [vmem:[%s2631 + $0x14] sm:$0xf]
      %v2638 = vld [vmem:[%s2631 + $0x18] sm:$0xf]
      %v2639 = vld [vmem:[%s2631 + $0x1c] sm:$0xf]
      %v2640 = vld [vmem:[%s2631 + $0x20] sm:$0xf]
      %v2641 = vld [vmem:[%s2631 + $0x24] sm:$0xf]
      %v2642 = vld [vmem:[%s2631 + $0x28] sm:$0xf]
      %v2643 = vld [vmem:[%s2631 + $0x2c] sm:$0xf]
      %v2644 = vld [vmem:[%s2631 + $0x30] sm:$0xf]
      %v2645 = vld [vmem:[%s2631 + $0x34] sm:$0xf]
      %v2646 = vld [vmem:[%s2631 + $0x38] sm:$0xf]
      %v2647 = vld [vmem:[%s2631 + $0x3c] sm:$0xf]
      %v2648 = vunpack.c.l.b16 %v2260
      %v2649 = vunpack.c.l.b16 %v2270
      %v2650 = vunpack.c.l.b16 %v2284
      %v2651 = vunpack.c.l.b16 %v2294
      %v2652 = vunpack.c.l.b16 %v2308
      %v2653 = vunpack.c.l.b16 %v2318
      %v2654 = vunpack.c.l.b16 %v2332
      %v2655 = vunpack.c.l.b16 %v2342
      %v2656 = vunpack.c.l.b16 %v2356
      %v2657 = vunpack.c.l.b16 %v2366
      %v2658 = vunpack.c.l.b16 %v2380
      %v2659 = vunpack.c.l.b16 %v2390
      %v2660 = vunpack.c.l.b16 %v2404
      %v2661 = vunpack.c.l.b16 %v2414
      %v2662 = vunpack.c.l.b16 %v2428
      %v2663 = vunpack.c.l.b16 %v2438
      %v2664 = vunpack.c.l.b16 %v2452
      %v2665 = vunpack.c.l.b16 %v2462
      %v2666 = vunpack.c.l.b16 %v2476
      %v2667 = vunpack.c.l.b16 %v2486
      %v2668 = vunpack.c.l.b16 %v2500
      %v2669 = vunpack.c.l.b16 %v2510
      %v2670 = vunpack.c.l.b16 %v2524
      %v2671 = vunpack.c.l.b16 %v2534
      %v2672 = vunpack.c.l.b16 %v2548
      %v2673 = vunpack.c.l.b16 %v2558
      %v2674 = vunpack.c.l.b16 %v2572
      %v2675 = vunpack.c.l.b16 %v2582
      %v2676 = vunpack.c.l.b16 %v2596
      %v2677 = vunpack.c.l.b16 %v2606
      %v2678 = vunpack.c.l.b16 %v2620
      %v2679 = vunpack.c.l.b16 %v2630
      %v2680 = vpack.c.b16 %v2649, %v2648
      %v2681 = vpack.c.b16 %v2651, %v2650
      %v2682 = vpack.c.b16 %v2653, %v2652
      %v2683 = vpack.c.b16 %v2655, %v2654
      %v2684 = vpack.c.b16 %v2657, %v2656
      %v2685 = vpack.c.b16 %v2659, %v2658
      %v2686 = vpack.c.b16 %v2661, %v2660
      %v2687 = vpack.c.b16 %v2663, %v2662
      %v2688 = vpack.c.b16 %v2665, %v2664
      %v2689 = vpack.c.b16 %v2667, %v2666
      %v2690 = vpack.c.b16 %v2669, %v2668
      %v2691 = vpack.c.b16 %v2671, %v2670
      %v2692 = vpack.c.b16 %v2673, %v2672
      %v2693 = vpack.c.b16 %v2675, %v2674
      %v2694 = vpack.c.b16 %v2677, %v2676
      %v2695 = vpack.c.b16 %v2679, %v2678
      %v2728 = vunpack.c.l.b16 %v2632
      %v2729 = vunpack.c.l.b16 %v2633
      %v2730 = vunpack.c.l.b16 %v2634
      %v2731 = vunpack.c.l.b16 %v2635
      %v2732 = vunpack.c.l.b16 %v2636
      %v2733 = vunpack.c.l.b16 %v2637
      %v2734 = vunpack.c.l.b16 %v2638
      %v2735 = vunpack.c.l.b16 %v2639
      %v2736 = vunpack.c.l.b16 %v2640
      %v2737 = vunpack.c.l.b16 %v2641
      %v2738 = vunpack.c.l.b16 %v2642
      %v2739 = vunpack.c.l.b16 %v2643
      %v2740 = vunpack.c.l.b16 %v2644
      %v2741 = vunpack.c.l.b16 %v2645
      %v2742 = vunpack.c.l.b16 %v2646
      %v2743 = vunpack.c.l.b16 %v2647
      %v2744 = vpack.c.b16 %v2729, %v2728
      %v2745 = vpack.c.b16 %v2731, %v2730
      %v2746 = vpack.c.b16 %v2733, %v2732
      %v2747 = vpack.c.b16 %v2735, %v2734
      %v2748 = vpack.c.b16 %v2737, %v2736
      %v2749 = vpack.c.b16 %v2739, %v2738
      %v2750 = vpack.c.b16 %v2741, %v2740
      %v2751 = vpack.c.b16 %v2743, %v2742
      %2760 = vmatprep.subr.bf16.mxu0 0
      %2761 = vmatpush1.bf16.msra.mxu0 %v2744
      %2762 = vmatprep.subr.bf16.mxu0 0
      %2763 = vmatpush1.bf16.msra.mxu0 %v2745
      %2764 = vmatprep.subr.bf16.mxu0 0
      %2765 = vmatpush1.bf16.msra.mxu0 %v2746
      %2766 = vmatprep.subr.bf16.mxu0 0
      %2767 = vmatpush1.bf16.msra.mxu0 %v2747
      %2768 = vmatprep.subr.bf16.mxu0 0
      %2769 = vmatpush1.bf16.msra.mxu0 %v2748
      %2770 = vmatprep.subr.bf16.mxu0 0
      %2771 = vmatpush1.bf16.msra.mxu0 %v2749
      %2772 = vmatprep.subr.bf16.mxu0 0
      %2773 = vmatpush1.bf16.msra.mxu0 %v2750
      %2774 = vmatprep.subr.bf16.mxu0 0
      %2775 = vmatpush1.bf16.msra.mxu0 %v2751
      %2776 = vmatprep.subr.bf16.mxu0 0
      %2777 = vmatpush1.bf16.msra.mxu0 0
      %2778 = vmatprep.subr.bf16.mxu0 0
      %2779 = vmatpush1.bf16.msra.mxu0 0
      %2780 = vmatprep.subr.bf16.mxu0 0
      %2781 = vmatpush1.bf16.msra.mxu0 0
      %2782 = vmatprep.subr.bf16.mxu0 0
      %2783 = vmatpush1.bf16.msra.mxu0 0
      %2784 = vmatprep.subr.bf16.mxu0 0
      %2785 = vmatpush1.bf16.msra.mxu0 0
      %2786 = vmatprep.subr.bf16.mxu0 0
      %2787 = vmatpush1.bf16.msra.mxu0 0
      %2788 = vmatprep.subr.bf16.mxu0 0
      %2789 = vmatpush1.bf16.msra.mxu0 0
      %2790 = vmatprep.subr.bf16.mxu0 0
      %2791 = vmatpush1.bf16.msra.mxu0 0
      %2792 = vmatprep.mubr.bf16.mxu0 0
      %2793 = vmatmul.mubr.bf16.gmra.mrb[0].mxu0 %v2680
      %v2794 = vpop.f32.mrb[0].mxu0
      %v2795 = vadd.f32 0.0, %v2794
      %v2796 = vpop.f32.mrb[0].mxu0
      %v2797 = vpop.f32.mrb[0].mxu0
      %v2798 = vadd.f32 0.0, %v2797
      %v2799 = vpop.f32.mrb[0].mxu0
      %2800 = vmatprep.mubr.bf16.mxu0 0
      %2801 = vmatmul.mubr.bf16.gmra.mrb[0].mxu0 %v2681
      %v2802 = vpop.f32.mrb[0].mxu0
      %v2803 = vadd.f32 0.0, %v2802
      %v2804 = vpop.f32.mrb[0].mxu0
      %v2805 = vpop.f32.mrb[0].mxu0
      %v2806 = vadd.f32 0.0, %v2805
      %v2807 = vpop.f32.mrb[0].mxu0
      %2808 = vmatprep.mubr.bf16.mxu0 0
      %2809 = vmatmul.mubr.bf16.gmra.mrb[0].mxu0 %v2682
      %v2810 = vpop.f32.mrb[0].mxu0
      %v2811 = vadd.f32 0.0, %v2810
      %v2812 = vpop.f32.mrb[0].mxu0
      %v2813 = vpop.f32.mrb[0].mxu0
      %v2814 = vadd.f32 0.0, %v2813
      %v2815 = vpop.f32.mrb[0].mxu0
      %2816 = vmatprep.mubr.bf16.mxu0 0
      %2817 = vmatmul.mubr.bf16.gmra.mrb[0].mxu0 %v2683
      %v2818 = vpop.f32.mrb[0].mxu0
      %v2819 = vadd.f32 0.0, %v2818
      %v2820 = vpop.f32.mrb[0].mxu0
      %v2821 = vpop.f32.mrb[0].mxu0
      %v2822 = vadd.f32 0.0, %v2821
      %v2823 = vpop.f32.mrb[0].mxu0
      %2824 = vmatprep.mubr.bf16.mxu0 0
      %2825 = vmatmul.mubr.bf16.gmra.mrb[0].mxu0 %v2684
      %v2826 = vpop.f32.mrb[0].mxu0
      %v2827 = vadd.f32 0.0, %v2826
      %v2828 = vpop.f32.mrb[0].mxu0
      %v2829 = vpop.f32.mrb[0].mxu0
      %v2830 = vadd.f32 0.0, %v2829
      %v2831 = vpop.f32.mrb[0].mxu0
      %2832 = vmatprep.mubr.bf16.mxu0 0
      %2833 = vmatmul.mubr.bf16.gmra.mrb[0].mxu0 %v2685
      %v2834 = vpop.f32.mrb[0].mxu0
      %v2835 = vadd.f32 0.0, %v2834
      %v2836 = vpop.f32.mrb[0].mxu0
      %v2837 = vpop.f32.mrb[0].mxu0
      %v2838 = vadd.f32 0.0, %v2837
      %v2839 = vpop.f32.mrb[0].mxu0
      %2840 = vmatprep.mubr.bf16.mxu0 0
      %2841 = vmatmul.mubr.bf16.gmra.mrb[0].mxu0 %v2686
      %v2842 = vpop.f32.mrb[0].mxu0
      %v2843 = vadd.f32 0.0, %v2842
      %v2844 = vpop.f32.mrb[0].mxu0
      %v2845 = vpop.f32.mrb[0].mxu0
      %v2846 = vadd.f32 0.0, %v2845
      %v2847 = vpop.f32.mrb[0].mxu0
      %2848 = vmatprep.mubr.bf16.mxu0 0
      %2849 = vmatmul.mubr.bf16.gmra.mrb[0].mxu0 %v2687
      %v2850 = vpop.f32.mrb[0].mxu0
      %v2851 = vadd.f32 0.0, %v2850
      %v2852 = vpop.f32.mrb[0].mxu0
      %v2853 = vpop.f32.mrb[0].mxu0
      %v2854 = vadd.f32 0.0, %v2853
      %v2855 = vpop.f32.mrb[0].mxu0
      %2856 = vmatprep.mubr.bf16.mxu0 0
      %2857 = vmatmul.mubr.bf16.gmra.mrb[0].mxu0 %v2688
      %v2858 = vpop.f32.mrb[0].mxu0
      %v2859 = vadd.f32 0.0, %v2858
      %v2860 = vpop.f32.mrb[0].mxu0
      %v2861 = vpop.f32.mrb[0].mxu0
      %v2862 = vadd.f32 0.0, %v2861
      %v2863 = vpop.f32.mrb[0].mxu0
      %2864 = vmatprep.mubr.bf16.mxu0 0
      %2865 = vmatmul.mubr.bf16.gmra.mrb[0].mxu0 %v2689
      %v2866 = vpop.f32.mrb[0].mxu0
      %v2867 = vadd.f32 0.0, %v2866
      %v2868 = vpop.f32.mrb[0].mxu0
      %v2869 = vpop.f32.mrb[0].mxu0
      %v2870 = vadd.f32 0.0, %v2869
      %v2871 = vpop.f32.mrb[0].mxu0
      %2872 = vmatprep.mubr.bf16.mxu0 0
      %2873 = vmatmul.mubr.bf16.gmra.mrb[0].mxu0 %v2690
      %v2874 = vpop.f32.mrb[0].mxu0
      %v2875 = vadd.f32 0.0, %v2874
      %v2876 = vpop.f32.mrb[0].mxu0
      %v2877 = vpop.f32.mrb[0].mxu0
      %v2878 = vadd.f32 0.0, %v2877
      %v2879 = vpop.f32.mrb[0].mxu0
      %2880 = vmatprep.mubr.bf16.mxu0 0
      %2881 = vmatmul.mubr.bf16.gmra.mrb[0].mxu0 %v2691
      %v2882 = vpop.f32.mrb[0].mxu0
      %v2883 = vadd.f32 0.0, %v2882
      %v2884 = vpop.f32.mrb[0].mxu0
      %v2885 = vpop.f32.mrb[0].mxu0
      %v2886 = vadd.f32 0.0, %v2885
      %v2887 = vpop.f32.mrb[0].mxu0
      %2888 = vmatprep.mubr.bf16.mxu0 0
      %2889 = vmatmul.mubr.bf16.gmra.mrb[0].mxu0 %v2692
      %v2890 = vpop.f32.mrb[0].mxu0
      %v2891 = vadd.f32 0.0, %v2890
      %v2892 = vpop.f32.mrb[0].mxu0
      %v2893 = vpop.f32.mrb[0].mxu0
      %v2894 = vadd.f32 0.0, %v2893
      %v2895 = vpop.f32.mrb[0].mxu0
      %2896 = vmatprep.mubr.bf16.mxu0 0
      %2897 = vmatmul.mubr.bf16.gmra.mrb[0].mxu0 %v2693
      %v2898 = vpop.f32.mrb[0].mxu0
      %v2899 = vadd.f32 0.0, %v2898
      %v2900 = vpop.f32.mrb[0].mxu0
      %v2901 = vpop.f32.mrb[0].mxu0
      %v2902 = vadd.f32 0.0, %v2901
      %v2903 = vpop.f32.mrb[0].mxu0
      %2904 = vmatprep.mubr.bf16.mxu0 0
      %2905 = vmatmul.mubr.bf16.gmra.mrb[0].mxu0 %v2694
      %v2906 = vpop.f32.mrb[0].mxu0
      %v2907 = vadd.f32 0.0, %v2906
      %v2908 = vpop.f32.mrb[0].mxu0
      %v2909 = vpop.f32.mrb[0].mxu0
      %v2910 = vadd.f32 0.0, %v2909
      %v2911 = vpop.f32.mrb[0].mxu0
      %2912 = vmatprep.mubr.bf16.mxu0 0
      %2913 = vmatmul.mubr.bf16.gmra.mrb[0].mxu0 %v2695
      %v2914 = vpop.f32.mrb[0].mxu0
      %v2915 = vadd.f32 0.0, %v2914
      %v2916 = vpop.f32.mrb[0].mxu0
      %v2917 = vpop.f32.mrb[0].mxu0
      %v2918 = vadd.f32 0.0, %v2917
      %v2919 = vpop.f32.mrb[0].mxu0
      %2920 = vdwg.mxu0
      %v2921 = vadd.f32 %v2167, %v2795
      %v2922 = vadd.f32 %v2168, %v2798
      %v2923 = vadd.f32 %v2169, %v2803
      %v2924 = vadd.f32 %v2170, %v2806
      %v2925 = vadd.f32 %v2171, %v2811
      %v2926 = vadd.f32 %v2172, %v2814
      %v2927 = vadd.f32 %v2173, %v2819
      %v2928 = vadd.f32 %v2174, %v2822
      %v2929 = vadd.f32 %v2175, %v2827
      %v2930 = vadd.f32 %v2176, %v2830
      %v2931 = vadd.f32 %v2177, %v2835
      %v2932 = vadd.f32 %v2178, %v2838
      %v2933 = vadd.f32 %v2179, %v2843
      %v2934 = vadd.f32 %v2180, %v2846
      %v2935 = vadd.f32 %v2181, %v2851
      %v2936 = vadd.f32 %v2182, %v2854
      %v2937 = vadd.f32 %v2183, %v2859
      %v2938 = vadd.f32 %v2184, %v2862
      %v2939 = vadd.f32 %v2185, %v2867
      %v2940 = vadd.f32 %v2186, %v2870
      %v2941 = vadd.f32 %v2187, %v2875
      %v2942 = vadd.f32 %v2188, %v2878
      %v2943 = vadd.f32 %v2189, %v2883
      %v2944 = vadd.f32 %v2190, %v2886
      %v2945 = vadd.f32 %v2191, %v2891
      %v2946 = vadd.f32 %v2192, %v2894
      %v2947 = vadd.f32 %v2193, %v2899
      %v2948 = vadd.f32 %v2194, %v2902
      %v2949 = vadd.f32 %v2195, %v2907
      %v2950 = vadd.f32 %v2196, %v2910
      %v2951 = vadd.f32 %v2197, %v2915
      %v2952 = vadd.f32 %v2198, %v2918
      %v2953 = vld [vmem:[%s1812] sm:$0xe]
      %v2954 = vld [vmem:[%s1812 + $0xc] sm:$0xe]
      %v2955 = vld [vmem:[%s1812 + $0x18] sm:$0xe]
      %v2956 = vld [vmem:[%s1812 + $0x24] sm:$0xe]
      %v2957 = vld [vmem:[%s1812 + $0x30] sm:$0xe]
      %v2958 = vld [vmem:[%s1812 + $0x3c] sm:$0xe]
      %v2959 = vld [vmem:[%s1812 + $0x48] sm:$0xe]
      %v2960 = vld [vmem:[%s1812 + $0x54] sm:$0xe]
      %v2961 = vld [vmem:[%s1812 + $0x60] sm:$0xe]
      %v2962 = vld [vmem:[%s1812 + $0x6c] sm:$0xe]
      %v2963 = vld [vmem:[%s1812 + $0x78] sm:$0xe]
      %v2964 = vld [vmem:[%s1812 + $0x84] sm:$0xe]
      %v2965 = vld [vmem:[%s1812 + $0x90] sm:$0xe]
      %v2966 = vld [vmem:[%s1812 + $0x9c] sm:$0xe]
      %v2967 = vld [vmem:[%s1812 + $0xa8] sm:$0xe]
      %v2968 = vld [vmem:[%s1812 + $0xb4] sm:$0xe]
      %v3017 = vrot.slane %v2953, 5
      %v3018 = vrot.slane %v3017, 4
      %v3019 = vrot.slane %v2200, 5
      %v3020 = vsel %vm1377, %v3018, %v3019
      %v3021 = vrot.slane %v3019, 4
      %v3022 = vrot.slane %v2201, 5
      %v3023 = vsel %vm1377, %v3021, %v3022
      %v3024 = vrot.slane %v2954, 5
      %v3025 = vrot.slane %v3024, 4
      %v3026 = vrot.slane %v2203, 5
      %v3027 = vsel %vm1377, %v3025, %v3026
      %v3028 = vrot.slane %v3026, 4
      %v3029 = vrot.slane %v2204, 5
      %v3030 = vsel %vm1377, %v3028, %v3029
      %v3031 = vrot.slane %v2955, 5
      %v3032 = vrot.slane %v3031, 4
      %v3033 = vrot.slane %v2206, 5
      %v3034 = vsel %vm1377, %v3032, %v3033
      %v3035 = vrot.slane %v3033, 4
      %v3036 = vrot.slane %v2207, 5
      %v3037 = vsel %vm1377, %v3035, %v3036
      %v3038 = vrot.slane %v2956, 5
      %v3039 = vrot.slane %v3038, 4
      %v3040 = vrot.slane %v2209, 5
      %v3041 = vsel %vm1377, %v3039, %v3040
      %v3042 = vrot.slane %v3040, 4
      %v3043 = vrot.slane %v2210, 5
      %v3044 = vsel %vm1377, %v3042, %v3043
      %v3045 = vrot.slane %v2957, 5
      %v3046 = vrot.slane %v3045, 4
      %v3047 = vrot.slane %v2212, 5
      %v3048 = vsel %vm1377, %v3046, %v3047
      %v3049 = vrot.slane %v3047, 4
      %v3050 = vrot.slane %v2213, 5
      %v3051 = vsel %vm1377, %v3049, %v3050
      %v3052 = vrot.slane %v2958, 5
      %v3053 = vrot.slane %v3052, 4
      %v3054 = vrot.slane %v2215, 5
      %v3055 = vsel %vm1377, %v3053, %v3054
      %v3056 = vrot.slane %v3054, 4
      %v3057 = vrot.slane %v2216, 5
      %v3058 = vsel %vm1377, %v3056, %v3057
      %v3059 = vrot.slane %v2959, 5
      %v3060 = vrot.slane %v3059, 4
      %v3061 = vrot.slane %v2218, 5
      %v3062 = vsel %vm1377, %v3060, %v3061
      %v3063 = vrot.slane %v3061, 4
      %v3064 = vrot.slane %v2219, 5
      %v3065 = vsel %vm1377, %v3063, %v3064
      %v3066 = vrot.slane %v2960, 5
      %v3067 = vrot.slane %v3066, 4
      %v3068 = vrot.slane %v2221, 5
      %v3069 = vsel %vm1377, %v3067, %v3068
      %v3070 = vrot.slane %v3068, 4
      %v3071 = vrot.slane %v2222, 5
      %v3072 = vsel %vm1377, %v3070, %v3071
      %v3073 = vrot.slane %v2961, 5
      %v3074 = vrot.slane %v3073, 4
      %v3075 = vrot.slane %v2224, 5
      %v3076 = vsel %vm1377, %v3074, %v3075
      %v3077 = vrot.slane %v3075, 4
      %v3078 = vrot.slane %v2225, 5
      %v3079 = vsel %vm1377, %v3077, %v3078
      %v3080 = vrot.slane %v2962, 5
      %v3081 = vrot.slane %v3080, 4
      %v3082 = vrot.slane %v2227, 5
      %v3083 = vsel %vm1377, %v3081, %v3082
      %v3084 = vrot.slane %v3082, 4
      %v3085 = vrot.slane %v2228, 5
      %v3086 = vsel %vm1377, %v3084, %v3085
      %v3087 = vrot.slane %v2963, 5
      %v3088 = vrot.slane %v3087, 4
      %v3089 = vrot.slane %v2230, 5
      %v3090 = vsel %vm1377, %v3088, %v3089
      %v3091 = vrot.slane %v3089, 4
      %v3092 = vrot.slane %v2231, 5
      %v3093 = vsel %vm1377, %v3091, %v3092
      %v3094 = vrot.slane %v2964, 5
      %v3095 = vrot.slane %v3094, 4
      %v3096 = vrot.slane %v2233, 5
      %v3097 = vsel %vm1377, %v3095, %v3096
      %v3098 = vrot.slane %v3096, 4
      %v3099 = vrot.slane %v2234, 5
      %v3100 = vsel %vm1377, %v3098, %v3099
      %v3101 = vrot.slane %v2965, 5
      %v3102 = vrot.slane %v3101, 4
      %v3103 = vrot.slane %v2236, 5
      %v3104 = vsel %vm1377, %v3102, %v3103
      %v3105 = vrot.slane %v3103, 4
      %v3106 = vrot.slane %v2237, 5
      %v3107 = vsel %vm1377, %v3105, %v3106
      %v3108 = vrot.slane %v2966, 5
      %v3109 = vrot.slane %v3108, 4
      %v3110 = vrot.slane %v2239, 5
      %v3111 = vsel %vm1377, %v3109, %v3110
      %v3112 = vrot.slane %v3110, 4
      %v3113 = vrot.slane %v2240, 5
      %v3114 = vsel %vm1377, %v3112, %v3113
      %v3115 = vrot.slane %v2967, 5
      %v3116 = vrot.slane %v3115, 4
      %v3117 = vrot.slane %v2242, 5
      %v3118 = vsel %vm1377, %v3116, %v3117
      %v3119 = vrot.slane %v3117, 4
      %v3120 = vrot.slane %v2243, 5
      %v3121 = vsel %vm1377, %v3119, %v3120
      %v3122 = vrot.slane %v2968, 5
      %v3123 = vrot.slane %v3122, 4
      %v3124 = vrot.slane %v2245, 5
      %v3125 = vsel %vm1377, %v3123, %v3124
      %v3126 = vrot.slane %v3124, 4
      %v3127 = vrot.slane %v2246, 5
      %v3128 = vsel %vm1377, %v3126, %v3127
      %s3129 = scalar_lea.vmem %s260, 320
      %v3130 = vld [vmem:[%s3129] sm:$0xf]
      %v3131 = vld [vmem:[%s3129 + $0x4] sm:$0xf]
      %v3132 = vld [vmem:[%s3129 + $0x8] sm:$0xf]
      %v3133 = vld [vmem:[%s3129 + $0xc] sm:$0xf]
      %v3134 = vld [vmem:[%s3129 + $0x10] sm:$0xf]
      %v3135 = vld [vmem:[%s3129 + $0x14] sm:$0xf]
      %v3136 = vld [vmem:[%s3129 + $0x18] sm:$0xf]
      %v3137 = vld [vmem:[%s3129 + $0x1c] sm:$0xf]
      %v3138 = vld [vmem:[%s3129 + $0x20] sm:$0xf]
      %v3139 = vld [vmem:[%s3129 + $0x24] sm:$0xf]
      %v3140 = vld [vmem:[%s3129 + $0x28] sm:$0xf]
      %v3141 = vld [vmem:[%s3129 + $0x2c] sm:$0xf]
      %v3142 = vld [vmem:[%s3129 + $0x30] sm:$0xf]
      %v3143 = vld [vmem:[%s3129 + $0x34] sm:$0xf]
      %v3144 = vld [vmem:[%s3129 + $0x38] sm:$0xf]
      %v3145 = vld [vmem:[%s3129 + $0x3c] sm:$0xf]
      %v3146 = vunpack.c.l.b16 %v3020
      %v3147 = vunpack.c.l.b16 %v3023
      %v3148 = vunpack.c.l.b16 %v3027
      %v3149 = vunpack.c.l.b16 %v3030
      %v3150 = vunpack.c.l.b16 %v3034
      %v3151 = vunpack.c.l.b16 %v3037
      %v3152 = vunpack.c.l.b16 %v3041
      %v3153 = vunpack.c.l.b16 %v3044
      %v3154 = vunpack.c.l.b16 %v3048
      %v3155 = vunpack.c.l.b16 %v3051
      %v3156 = vunpack.c.l.b16 %v3055
      %v3157 = vunpack.c.l.b16 %v3058
      %v3158 = vunpack.c.l.b16 %v3062
      %v3159 = vunpack.c.l.b16 %v3065
      %v3160 = vunpack.c.l.b16 %v3069
      %v3161 = vunpack.c.l.b16 %v3072
      %v3162 = vunpack.c.l.b16 %v3076
      %v3163 = vunpack.c.l.b16 %v3079
      %v3164 = vunpack.c.l.b16 %v3083
      %v3165 = vunpack.c.l.b16 %v3086
      %v3166 = vunpack.c.l.b16 %v3090
      %v3167 = vunpack.c.l.b16 %v3093
      %v3168 = vunpack.c.l.b16 %v3097
      %v3169 = vunpack.c.l.b16 %v3100
      %v3170 = vunpack.c.l.b16 %v3104
      %v3171 = vunpack.c.l.b16 %v3107
      %v3172 = vunpack.c.l.b16 %v3111
      %v3173 = vunpack.c.l.b16 %v3114
      %v3174 = vunpack.c.l.b16 %v3118
      %v3175 = vunpack.c.l.b16 %v3121
      %v3176 = vunpack.c.l.b16 %v3125
      %v3177 = vunpack.c.l.b16 %v3128
      %v3178 = vpack.c.b16 %v3147, %v3146
      %v3179 = vpack.c.b16 %v3149, %v3148
      %v3180 = vpack.c.b16 %v3151, %v3150
      %v3181 = vpack.c.b16 %v3153, %v3152
      %v3182 = vpack.c.b16 %v3155, %v3154
      %v3183 = vpack.c.b16 %v3157, %v3156
      %v3184 = vpack.c.b16 %v3159, %v3158
      %v3185 = vpack.c.b16 %v3161, %v3160
      %v3186 = vpack.c.b16 %v3163, %v3162
      %v3187 = vpack.c.b16 %v3165, %v3164
      %v3188 = vpack.c.b16 %v3167, %v3166
      %v3189 = vpack.c.b16 %v3169, %v3168
      %v3190 = vpack.c.b16 %v3171, %v3170
      %v3191 = vpack.c.b16 %v3173, %v3172
      %v3192 = vpack.c.b16 %v3175, %v3174
      %v3193 = vpack.c.b16 %v3177, %v3176
      %v3226 = vunpack.c.l.b16 %v3130
      %v3227 = vunpack.c.l.b16 %v3131
      %v3228 = vunpack.c.l.b16 %v3132
      %v3229 = vunpack.c.l.b16 %v3133
      %v3230 = vunpack.c.l.b16 %v3134
      %v3231 = vunpack.c.l.b16 %v3135
      %v3232 = vunpack.c.l.b16 %v3136
      %v3233 = vunpack.c.l.b16 %v3137
      %v3234 = vunpack.c.l.b16 %v3138
      %v3235 = vunpack.c.l.b16 %v3139
      %v3236 = vunpack.c.l.b16 %v3140
      %v3237 = vunpack.c.l.b16 %v3141
      %v3238 = vunpack.c.l.b16 %v3142
      %v3239 = vunpack.c.l.b16 %v3143
      %v3240 = vunpack.c.l.b16 %v3144
      %v3241 = vunpack.c.l.b16 %v3145
      %v3242 = vpack.c.b16 %v3227, %v3226
      %v3243 = vpack.c.b16 %v3229, %v3228
      %v3244 = vpack.c.b16 %v3231, %v3230
      %v3245 = vpack.c.b16 %v3233, %v3232
      %v3246 = vpack.c.b16 %v3235, %v3234
      %v3247 = vpack.c.b16 %v3237, %v3236
      %v3248 = vpack.c.b16 %v3239, %v3238
      %v3249 = vpack.c.b16 %v3241, %v3240
      %3258 = vmatprep.subr.bf16.mxu0 0
      %3259 = vmatpush1.bf16.msra.mxu0 %v3242
      %3260 = vmatprep.subr.bf16.mxu0 0
      %3261 = vmatpush1.bf16.msra.mxu0 %v3243
      %3262 = vmatprep.subr.bf16.mxu0 0
      %3263 = vmatpush1.bf16.msra.mxu0 %v3244
      %3264 = vmatprep.subr.bf16.mxu0 0
      %3265 = vmatpush1.bf16.msra.mxu0 %v3245
      %3266 = vmatprep.subr.bf16.mxu0 0
      %3267 = vmatpush1.bf16.msra.mxu0 %v3246
      %3268 = vmatprep.subr.bf16.mxu0 0
      %3269 = vmatpush1.bf16.msra.mxu0 %v3247
      %3270 = vmatprep.subr.bf16.mxu0 0
      %3271 = vmatpush1.bf16.msra.mxu0 %v3248
      %3272 = vmatprep.subr.bf16.mxu0 0
      %3273 = vmatpush1.bf16.msra.mxu0 %v3249
      %3274 = vmatprep.subr.bf16.mxu0 0
      %3275 = vmatpush1.bf16.msra.mxu0 0
      %3276 = vmatprep.subr.bf16.mxu0 0
      %3277 = vmatpush1.bf16.msra.mxu0 0
      %3278 = vmatprep.subr.bf16.mxu0 0
      %3279 = vmatpush1.bf16.msra.mxu0 0
      %3280 = vmatprep.subr.bf16.mxu0 0
      %3281 = vmatpush1.bf16.msra.mxu0 0
      %3282 = vmatprep.subr.bf16.mxu0 0
      %3283 = vmatpush1.bf16.msra.mxu0 0
      %3284 = vmatprep.subr.bf16.mxu0 0
      %3285 = vmatpush1.bf16.msra.mxu0 0
      %3286 = vmatprep.subr.bf16.mxu0 0
      %3287 = vmatpush1.bf16.msra.mxu0 0
      %3288 = vmatprep.subr.bf16.mxu0 0
      %3289 = vmatpush1.bf16.msra.mxu0 0
      %3290 = vmatprep.mubr.bf16.mxu0 0
      %3291 = vmatmul.mubr.bf16.gmra.mrb[0].mxu0 %v3178
      %v3292 = vpop.f32.mrb[0].mxu0
      %v3293 = vadd.f32 0.0, %v3292
      %v3294 = vpop.f32.mrb[0].mxu0
      %v3295 = vpop.f32.mrb[0].mxu0
      %v3296 = vadd.f32 0.0, %v3295
      %v3297 = vpop.f32.mrb[0].mxu0
      %3298 = vmatprep.mubr.bf16.mxu0 0
      %3299 = vmatmul.mubr.bf16.gmra.mrb[0].mxu0 %v3179
      %v3300 = vpop.f32.mrb[0].mxu0
      %v3301 = vadd.f32 0.0, %v3300
      %v3302 = vpop.f32.mrb[0].mxu0
      %v3303 = vpop.f32.mrb[0].mxu0
      %v3304 = vadd.f32 0.0, %v3303
      %v3305 = vpop.f32.mrb[0].mxu0
      %3306 = vmatprep.mubr.bf16.mxu0 0
      %3307 = vmatmul.mubr.bf16.gmra.mrb[0].mxu0 %v3180
      %v3308 = vpop.f32.mrb[0].mxu0
      %v3309 = vadd.f32 0.0, %v3308
      %v3310 = vpop.f32.mrb[0].mxu0
      %v3311 = vpop.f32.mrb[0].mxu0
      %v3312 = vadd.f32 0.0, %v3311
      %v3313 = vpop.f32.mrb[0].mxu0
      %3314 = vmatprep.mubr.bf16.mxu0 0
      %3315 = vmatmul.mubr.bf16.gmra.mrb[0].mxu0 %v3181
      %v3316 = vpop.f32.mrb[0].mxu0
      %v3317 = vadd.f32 0.0, %v3316
      %v3318 = vpop.f32.mrb[0].mxu0
      %v3319 = vpop.f32.mrb[0].mxu0
      %v3320 = vadd.f32 0.0, %v3319
      %v3321 = vpop.f32.mrb[0].mxu0
      %3322 = vmatprep.mubr.bf16.mxu0 0
      %3323 = vmatmul.mubr.bf16.gmra.mrb[0].mxu0 %v3182
      %v3324 = vpop.f32.mrb[0].mxu0
      %v3325 = vadd.f32 0.0, %v3324
      %v3326 = vpop.f32.mrb[0].mxu0
      %v3327 = vpop.f32.mrb[0].mxu0
      %v3328 = vadd.f32 0.0, %v3327
      %v3329 = vpop.f32.mrb[0].mxu0
      %3330 = vmatprep.mubr.bf16.mxu0 0
      %3331 = vmatmul.mubr.bf16.gmra.mrb[0].mxu0 %v3183
      %v3332 = vpop.f32.mrb[0].mxu0
      %v3333 = vadd.f32 0.0, %v3332
      %v3334 = vpop.f32.mrb[0].mxu0
      %v3335 = vpop.f32.mrb[0].mxu0
      %v3336 = vadd.f32 0.0, %v3335
      %v3337 = vpop.f32.mrb[0].mxu0
      %3338 = vmatprep.mubr.bf16.mxu0 0
      %3339 = vmatmul.mubr.bf16.gmra.mrb[0].mxu0 %v3184
      %v3340 = vpop.f32.mrb[0].mxu0
      %v3341 = vadd.f32 0.0, %v3340
      %v3342 = vpop.f32.mrb[0].mxu0
      %v3343 = vpop.f32.mrb[0].mxu0
      %v3344 = vadd.f32 0.0, %v3343
      %v3345 = vpop.f32.mrb[0].mxu0
      %3346 = vmatprep.mubr.bf16.mxu0 0
      %3347 = vmatmul.mubr.bf16.gmra.mrb[0].mxu0 %v3185
      %v3348 = vpop.f32.mrb[0].mxu0
      %v3349 = vadd.f32 0.0, %v3348
      %v3350 = vpop.f32.mrb[0].mxu0
      %v3351 = vpop.f32.mrb[0].mxu0
      %v3352 = vadd.f32 0.0, %v3351
      %v3353 = vpop.f32.mrb[0].mxu0
      %3354 = vmatprep.mubr.bf16.mxu0 0
      %3355 = vmatmul.mubr.bf16.gmra.mrb[0].mxu0 %v3186
      %v3356 = vpop.f32.mrb[0].mxu0
      %v3357 = vadd.f32 0.0, %v3356
      %v3358 = vpop.f32.mrb[0].mxu0
      %v3359 = vpop.f32.mrb[0].mxu0
      %v3360 = vadd.f32 0.0, %v3359
      %v3361 = vpop.f32.mrb[0].mxu0
      %3362 = vmatprep.mubr.bf16.mxu0 0
      %3363 = vmatmul.mubr.bf16.gmra.mrb[0].mxu0 %v3187
      %v3364 = vpop.f32.mrb[0].mxu0
      %v3365 = vadd.f32 0.0, %v3364
      %v3366 = vpop.f32.mrb[0].mxu0
      %v3367 = vpop.f32.mrb[0].mxu0
      %v3368 = vadd.f32 0.0, %v3367
      %v3369 = vpop.f32.mrb[0].mxu0
      %3370 = vmatprep.mubr.bf16.mxu0 0
      %3371 = vmatmul.mubr.bf16.gmra.mrb[0].mxu0 %v3188
      %v3372 = vpop.f32.mrb[0].mxu0
      %v3373 = vadd.f32 0.0, %v3372
      %v3374 = vpop.f32.mrb[0].mxu0
      %v3375 = vpop.f32.mrb[0].mxu0
      %v3376 = vadd.f32 0.0, %v3375
      %v3377 = vpop.f32.mrb[0].mxu0
      %3378 = vmatprep.mubr.bf16.mxu0 0
      %3379 = vmatmul.mubr.bf16.gmra.mrb[0].mxu0 %v3189
      %v3380 = vpop.f32.mrb[0].mxu0
      %v3381 = vadd.f32 0.0, %v3380
      %v3382 = vpop.f32.mrb[0].mxu0
      %v3383 = vpop.f32.mrb[0].mxu0
      %v3384 = vadd.f32 0.0, %v3383
      %v3385 = vpop.f32.mrb[0].mxu0
      %3386 = vmatprep.mubr.bf16.mxu0 0
      %3387 = vmatmul.mubr.bf16.gmra.mrb[0].mxu0 %v3190
      %v3388 = vpop.f32.mrb[0].mxu0
      %v3389 = vadd.f32 0.0, %v3388
      %v3390 = vpop.f32.mrb[0].mxu0
      %v3391 = vpop.f32.mrb[0].mxu0
      %v3392 = vadd.f32 0.0, %v3391
      %v3393 = vpop.f32.mrb[0].mxu0
      %3394 = vmatprep.mubr.bf16.mxu0 0
      %3395 = vmatmul.mubr.bf16.gmra.mrb[0].mxu0 %v3191
      %v3396 = vpop.f32.mrb[0].mxu0
      %v3397 = vadd.f32 0.0, %v3396
      %v3398 = vpop.f32.mrb[0].mxu0
      %v3399 = vpop.f32.mrb[0].mxu0
      %v3400 = vadd.f32 0.0, %v3399
      %v3401 = vpop.f32.mrb[0].mxu0
      %3402 = vmatprep.mubr.bf16.mxu0 0
      %3403 = vmatmul.mubr.bf16.gmra.mrb[0].mxu0 %v3192
      %v3404 = vpop.f32.mrb[0].mxu0
      %v3405 = vadd.f32 0.0, %v3404
      %v3406 = vpop.f32.mrb[0].mxu0
      %v3407 = vpop.f32.mrb[0].mxu0
      %v3408 = vadd.f32 0.0, %v3407
      %v3409 = vpop.f32.mrb[0].mxu0
      %3410 = vmatprep.mubr.bf16.mxu0 0
      %3411 = vmatmul.mubr.bf16.gmra.mrb[0].mxu0 %v3193
      %v3412 = vpop.f32.mrb[0].mxu0
      %v3413 = vadd.f32 0.0, %v3412
      %v3414 = vpop.f32.mrb[0].mxu0
      %v3415 = vpop.f32.mrb[0].mxu0
      %v3416 = vadd.f32 0.0, %v3415
      %v3417 = vpop.f32.mrb[0].mxu0
      %3418 = vdwg.mxu0
      %v3419 = vadd.f32 %v2921, %v3293
      %v3420 = vadd.f32 %v2922, %v3296
      %v3421 = vadd.f32 %v2923, %v3301
      %v3422 = vadd.f32 %v2924, %v3304
      %v3423 = vadd.f32 %v2925, %v3309
      %v3424 = vadd.f32 %v2926, %v3312
      %v3425 = vadd.f32 %v2927, %v3317
      %v3426 = vadd.f32 %v2928, %v3320
      %v3427 = vadd.f32 %v2929, %v3325
      %v3428 = vadd.f32 %v2930, %v3328
      %v3429 = vadd.f32 %v2931, %v3333
      %v3430 = vadd.f32 %v2932, %v3336
      %v3431 = vadd.f32 %v2933, %v3341
      %v3432 = vadd.f32 %v2934, %v3344
      %v3433 = vadd.f32 %v2935, %v3349
      %v3434 = vadd.f32 %v2936, %v3352
      %v3435 = vadd.f32 %v2937, %v3357
      %v3436 = vadd.f32 %v2938, %v3360
      %v3437 = vadd.f32 %v2939, %v3365
      %v3438 = vadd.f32 %v2940, %v3368
      %v3439 = vadd.f32 %v2941, %v3373
      %v3440 = vadd.f32 %v2942, %v3376
      %v3441 = vadd.f32 %v2943, %v3381
      %v3442 = vadd.f32 %v2944, %v3384
      %v3443 = vadd.f32 %v2945, %v3389
      %v3444 = vadd.f32 %v2946, %v3392
      %v3445 = vadd.f32 %v2947, %v3397
      %v3446 = vadd.f32 %v2948, %v3400
      %v3447 = vadd.f32 %v2949, %v3405
      %v3448 = vadd.f32 %v2950, %v3408
      %v3449 = vadd.f32 %v2951, %v3413
      %v3450 = vadd.f32 %v2952, %v3416
      %s3451 = scalar_lea.vmem %s256, 24
      %v3452 = vld [vmem:[%s3451] sm:$0xf]
      %v3453 = vld [vmem:[%s3451 + $0x4] sm:$0xf]
      %v3454 = vld [vmem:[%s3451 + $0xc] sm:$0xf]
      %v3455 = vld [vmem:[%s3451 + $0x10] sm:$0xf]
      %v3456 = vld [vmem:[%s3451 + $0x18] sm:$0xf]
      %v3457 = vld [vmem:[%s3451 + $0x1c] sm:$0xf]
      %v3458 = vld [vmem:[%s3451 + $0x24] sm:$0xf]
      %v3459 = vld [vmem:[%s3451 + $0x28] sm:$0xf]
      %v3460 = vld [vmem:[%s3451 + $0x30] sm:$0xf]
      %v3461 = vld [vmem:[%s3451 + $0x34] sm:$0xf]
      %v3462 = vld [vmem:[%s3451 + $0x3c] sm:$0xf]
      %v3463 = vld [vmem:[%s3451 + $0x40] sm:$0xf]
      %v3464 = vld [vmem:[%s3451 + $0x48] sm:$0xf]
      %v3465 = vld [vmem:[%s3451 + $0x4c] sm:$0xf]
      %v3466 = vld [vmem:[%s3451 + $0x54] sm:$0xf]
      %v3467 = vld [vmem:[%s3451 + $0x58] sm:$0xf]
      %v3468 = vld [vmem:[%s3451 + $0x60] sm:$0xf]
      %v3469 = vld [vmem:[%s3451 + $0x64] sm:$0xf]
      %v3470 = vld [vmem:[%s3451 + $0x6c] sm:$0xf]
      %v3471 = vld [vmem:[%s3451 + $0x70] sm:$0xf]
      %v3472 = vld [vmem:[%s3451 + $0x78] sm:$0xf]
      %v3473 = vld [vmem:[%s3451 + $0x7c] sm:$0xf]
      %v3474 = vld [vmem:[%s3451 + $0x84] sm:$0xf]
      %v3475 = vld [vmem:[%s3451 + $0x88] sm:$0xf]
      %v3476 = vld [vmem:[%s3451 + $0x90] sm:$0xf]
      %v3477 = vld [vmem:[%s3451 + $0x94] sm:$0xf]
      %v3478 = vld [vmem:[%s3451 + $0x9c] sm:$0xf]
      %v3479 = vld [vmem:[%s3451 + $0xa0] sm:$0xf]
      %v3480 = vld [vmem:[%s3451 + $0xa8] sm:$0xf]
      %v3481 = vld [vmem:[%s3451 + $0xac] sm:$0xf]
      %v3482 = vld [vmem:[%s3451 + $0xb4] sm:$0xf]
      %v3483 = vld [vmem:[%s3451 + $0xb8] sm:$0xf]
      %s3484 = scalar_lea.vmem %s260, 384
      %v3485 = vld [vmem:[%s3484] sm:$0xf]
      %v3486 = vld [vmem:[%s3484 + $0x4] sm:$0xf]
      %v3487 = vld [vmem:[%s3484 + $0x8] sm:$0xf]
      %v3488 = vld [vmem:[%s3484 + $0xc] sm:$0xf]
      %v3489 = vld [vmem:[%s3484 + $0x10] sm:$0xf]
      %v3490 = vld [vmem:[%s3484 + $0x14] sm:$0xf]
      %v3491 = vld [vmem:[%s3484 + $0x18] sm:$0xf]
      %v3492 = vld [vmem:[%s3484 + $0x1c] sm:$0xf]
      %v3493 = vld [vmem:[%s3484 + $0x20] sm:$0xf]
      %v3494 = vld [vmem:[%s3484 + $0x24] sm:$0xf]
      %v3495 = vld [vmem:[%s3484 + $0x28] sm:$0xf]
      %v3496 = vld [vmem:[%s3484 + $0x2c] sm:$0xf]
      %v3497 = vld [vmem:[%s3484 + $0x30] sm:$0xf]
      %v3498 = vld [vmem:[%s3484 + $0x34] sm:$0xf]
      %v3499 = vld [vmem:[%s3484 + $0x38] sm:$0xf]
      %v3500 = vld [vmem:[%s3484 + $0x3c] sm:$0xf]
      %v3533 = vunpack.c.l.b16 %v3452
      %v3534 = vunpack.c.l.b16 %v3453
      %v3535 = vunpack.c.l.b16 %v3454
      %v3536 = vunpack.c.l.b16 %v3455
      %v3537 = vunpack.c.l.b16 %v3456
      %v3538 = vunpack.c.l.b16 %v3457
      %v3539 = vunpack.c.l.b16 %v3458
      %v3540 = vunpack.c.l.b16 %v3459
      %v3541 = vunpack.c.l.b16 %v3460
      %v3542 = vunpack.c.l.b16 %v3461
      %v3543 = vunpack.c.l.b16 %v3462
      %v3544 = vunpack.c.l.b16 %v3463
      %v3545 = vunpack.c.l.b16 %v3464
      %v3546 = vunpack.c.l.b16 %v3465
      %v3547 = vunpack.c.l.b16 %v3466
      %v3548 = vunpack.c.l.b16 %v3467
      %v3549 = vunpack.c.l.b16 %v3468
      %v3550 = vunpack.c.l.b16 %v3469
      %v3551 = vunpack.c.l.b16 %v3470
      %v3552 = vunpack.c.l.b16 %v3471
      %v3553 = vunpack.c.l.b16 %v3472
      %v3554 = vunpack.c.l.b16 %v3473
      %v3555 = vunpack.c.l.b16 %v3474
      %v3556 = vunpack.c.l.b16 %v3475
      %v3557 = vunpack.c.l.b16 %v3476
      %v3558 = vunpack.c.l.b16 %v3477
      %v3559 = vunpack.c.l.b16 %v3478
      %v3560 = vunpack.c.l.b16 %v3479
      %v3561 = vunpack.c.l.b16 %v3480
      %v3562 = vunpack.c.l.b16 %v3481
      %v3563 = vunpack.c.l.b16 %v3482
      %v3564 = vunpack.c.l.b16 %v3483
      %v3565 = vpack.c.b16 %v3534, %v3533
      %v3566 = vpack.c.b16 %v3536, %v3535
      %v3567 = vpack.c.b16 %v3538, %v3537
      %v3568 = vpack.c.b16 %v3540, %v3539
      %v3569 = vpack.c.b16 %v3542, %v3541
      %v3570 = vpack.c.b16 %v3544, %v3543
      %v3571 = vpack.c.b16 %v3546, %v3545
      %v3572 = vpack.c.b16 %v3548, %v3547
      %v3573 = vpack.c.b16 %v3550, %v3549
      %v3574 = vpack.c.b16 %v3552, %v3551
      %v3575 = vpack.c.b16 %v3554, %v3553
      %v3576 = vpack.c.b16 %v3556, %v3555
      %v3577 = vpack.c.b16 %v3558, %v3557
      %v3578 = vpack.c.b16 %v3560, %v3559
      %v3579 = vpack.c.b16 %v3562, %v3561
      %v3580 = vpack.c.b16 %v3564, %v3563
      %v3613 = vunpack.c.l.b16 %v3485
      %v3614 = vunpack.c.l.b16 %v3486
      %v3615 = vunpack.c.l.b16 %v3487
      %v3616 = vunpack.c.l.b16 %v3488
      %v3617 = vunpack.c.l.b16 %v3489
      %v3618 = vunpack.c.l.b16 %v3490
      %v3619 = vunpack.c.l.b16 %v3491
      %v3620 = vunpack.c.l.b16 %v3492
      %v3621 = vunpack.c.l.b16 %v3493
      %v3622 = vunpack.c.l.b16 %v3494
      %v3623 = vunpack.c.l.b16 %v3495
      %v3624 = vunpack.c.l.b16 %v3496
      %v3625 = vunpack.c.l.b16 %v3497
      %v3626 = vunpack.c.l.b16 %v3498
      %v3627 = vunpack.c.l.b16 %v3499
      %v3628 = vunpack.c.l.b16 %v3500
      %v3629 = vpack.c.b16 %v3614, %v3613
      %v3630 = vpack.c.b16 %v3616, %v3615
      %v3631 = vpack.c.b16 %v3618, %v3617
      %v3632 = vpack.c.b16 %v3620, %v3619
      %v3633 = vpack.c.b16 %v3622, %v3621
      %v3634 = vpack.c.b16 %v3624, %v3623
      %v3635 = vpack.c.b16 %v3626, %v3625
      %v3636 = vpack.c.b16 %v3628, %v3627
      %3645 = vmatprep.subr.bf16.mxu0 0
      %3646 = vmatpush1.bf16.msra.mxu0 %v3629
      %3647 = vmatprep.subr.bf16.mxu0 0
      %3648 = vmatpush1.bf16.msra.mxu0 %v3630
      %3649 = vmatprep.subr.bf16.mxu0 0
      %3650 = vmatpush1.bf16.msra.mxu0 %v3631
      %3651 = vmatprep.subr.bf16.mxu0 0
      %3652 = vmatpush1.bf16.msra.mxu0 %v3632
      %3653 = vmatprep.subr.bf16.mxu0 0
      %3654 = vmatpush1.bf16.msra.mxu0 %v3633
      %3655 = vmatprep.subr.bf16.mxu0 0
      %3656 = vmatpush1.bf16.msra.mxu0 %v3634
      %3657 = vmatprep.subr.bf16.mxu0 0
      %3658 = vmatpush1.bf16.msra.mxu0 %v3635
      %3659 = vmatprep.subr.bf16.mxu0 0
      %3660 = vmatpush1.bf16.msra.mxu0 %v3636
      %3661 = vmatprep.subr.bf16.mxu0 0
      %3662 = vmatpush1.bf16.msra.mxu0 0
      %3663 = vmatprep.subr.bf16.mxu0 0
      %3664 = vmatpush1.bf16.msra.mxu0 0
      %3665 = vmatprep.subr.bf16.mxu0 0
      %3666 = vmatpush1.bf16.msra.mxu0 0
      %3667 = vmatprep.subr.bf16.mxu0 0
      %3668 = vmatpush1.bf16.msra.mxu0 0
      %3669 = vmatprep.subr.bf16.mxu0 0
      %3670 = vmatpush1.bf16.msra.mxu0 0
      %3671 = vmatprep.subr.bf16.mxu0 0
      %3672 = vmatpush1.bf16.msra.mxu0 0
      %3673 = vmatprep.subr.bf16.mxu0 0
      %3674 = vmatpush1.bf16.msra.mxu0 0
      %3675 = vmatprep.subr.bf16.mxu0 0
      %3676 = vmatpush1.bf16.msra.mxu0 0
      %3677 = vmatprep.mubr.bf16.mxu0 0
      %3678 = vmatmul.mubr.bf16.gmra.mrb[0].mxu0 %v3565
      %v3679 = vpop.f32.mrb[0].mxu0
      %v3680 = vadd.f32 0.0, %v3679
      %v3681 = vpop.f32.mrb[0].mxu0
      %v3682 = vpop.f32.mrb[0].mxu0
      %v3683 = vadd.f32 0.0, %v3682
      %v3684 = vpop.f32.mrb[0].mxu0
      %3685 = vmatprep.mubr.bf16.mxu0 0
      %3686 = vmatmul.mubr.bf16.gmra.mrb[0].mxu0 %v3566
      %v3687 = vpop.f32.mrb[0].mxu0
      %v3688 = vadd.f32 0.0, %v3687
      %v3689 = vpop.f32.mrb[0].mxu0
      %v3690 = vpop.f32.mrb[0].mxu0
      %v3691 = vadd.f32 0.0, %v3690
      %v3692 = vpop.f32.mrb[0].mxu0
      %3693 = vmatprep.mubr.bf16.mxu0 0
      %3694 = vmatmul.mubr.bf16.gmra.mrb[0].mxu0 %v3567
      %v3695 = vpop.f32.mrb[0].mxu0
      %v3696 = vadd.f32 0.0, %v3695
      %v3697 = vpop.f32.mrb[0].mxu0
      %v3698 = vpop.f32.mrb[0].mxu0
      %v3699 = vadd.f32 0.0, %v3698
      %v3700 = vpop.f32.mrb[0].mxu0
      %3701 = vmatprep.mubr.bf16.mxu0 0
      %3702 = vmatmul.mubr.bf16.gmra.mrb[0].mxu0 %v3568
      %v3703 = vpop.f32.mrb[0].mxu0
      %v3704 = vadd.f32 0.0, %v3703
      %v3705 = vpop.f32.mrb[0].mxu0
      %v3706 = vpop.f32.mrb[0].mxu0
      %v3707 = vadd.f32 0.0, %v3706
      %v3708 = vpop.f32.mrb[0].mxu0
      %3709 = vmatprep.mubr.bf16.mxu0 0
      %3710 = vmatmul.mubr.bf16.gmra.mrb[0].mxu0 %v3569
      %v3711 = vpop.f32.mrb[0].mxu0
      %v3712 = vadd.f32 0.0, %v3711
      %v3713 = vpop.f32.mrb[0].mxu0
      %v3714 = vpop.f32.mrb[0].mxu0
      %v3715 = vadd.f32 0.0, %v3714
      %v3716 = vpop.f32.mrb[0].mxu0
      %3717 = vmatprep.mubr.bf16.mxu0 0
      %3718 = vmatmul.mubr.bf16.gmra.mrb[0].mxu0 %v3570
      %v3719 = vpop.f32.mrb[0].mxu0
      %v3720 = vadd.f32 0.0, %v3719
      %v3721 = vpop.f32.mrb[0].mxu0
      %v3722 = vpop.f32.mrb[0].mxu0
      %v3723 = vadd.f32 0.0, %v3722
      %v3724 = vpop.f32.mrb[0].mxu0
      %3725 = vmatprep.mubr.bf16.mxu0 0
      %3726 = vmatmul.mubr.bf16.gmra.mrb[0].mxu0 %v3571
      %v3727 = vpop.f32.mrb[0].mxu0
      %v3728 = vadd.f32 0.0, %v3727
      %v3729 = vpop.f32.mrb[0].mxu0
      %v3730 = vpop.f32.mrb[0].mxu0
      %v3731 = vadd.f32 0.0, %v3730
      %v3732 = vpop.f32.mrb[0].mxu0
      %3733 = vmatprep.mubr.bf16.mxu0 0
      %3734 = vmatmul.mubr.bf16.gmra.mrb[0].mxu0 %v3572
      %v3735 = vpop.f32.mrb[0].mxu0
      %v3736 = vadd.f32 0.0, %v3735
      %v3737 = vpop.f32.mrb[0].mxu0
      %v3738 = vpop.f32.mrb[0].mxu0
      %v3739 = vadd.f32 0.0, %v3738
      %v3740 = vpop.f32.mrb[0].mxu0
      %3741 = vmatprep.mubr.bf16.mxu0 0
      %3742 = vmatmul.mubr.bf16.gmra.mrb[0].mxu0 %v3573
      %v3743 = vpop.f32.mrb[0].mxu0
      %v3744 = vadd.f32 0.0, %v3743
      %v3745 = vpop.f32.mrb[0].mxu0
      %v3746 = vpop.f32.mrb[0].mxu0
      %v3747 = vadd.f32 0.0, %v3746
      %v3748 = vpop.f32.mrb[0].mxu0
      %3749 = vmatprep.mubr.bf16.mxu0 0
      %3750 = vmatmul.mubr.bf16.gmra.mrb[0].mxu0 %v3574
      %v3751 = vpop.f32.mrb[0].mxu0
      %v3752 = vadd.f32 0.0, %v3751
      %v3753 = vpop.f32.mrb[0].mxu0
      %v3754 = vpop.f32.mrb[0].mxu0
      %v3755 = vadd.f32 0.0, %v3754
      %v3756 = vpop.f32.mrb[0].mxu0
      %3757 = vmatprep.mubr.bf16.mxu0 0
      %3758 = vmatmul.mubr.bf16.gmra.mrb[0].mxu0 %v3575
      %v3759 = vpop.f32.mrb[0].mxu0
      %v3760 = vadd.f32 0.0, %v3759
      %v3761 = vpop.f32.mrb[0].mxu0
      %v3762 = vpop.f32.mrb[0].mxu0
      %v3763 = vadd.f32 0.0, %v3762
      %v3764 = vpop.f32.mrb[0].mxu0
      %3765 = vmatprep.mubr.bf16.mxu0 0
      %3766 = vmatmul.mubr.bf16.gmra.mrb[0].mxu0 %v3576
      %v3767 = vpop.f32.mrb[0].mxu0
      %v3768 = vadd.f32 0.0, %v3767
      %v3769 = vpop.f32.mrb[0].mxu0
      %v3770 = vpop.f32.mrb[0].mxu0
      %v3771 = vadd.f32 0.0, %v3770
      %v3772 = vpop.f32.mrb[0].mxu0
      %3773 = vmatprep.mubr.bf16.mxu0 0
      %3774 = vmatmul.mubr.bf16.gmra.mrb[0].mxu0 %v3577
      %v3775 = vpop.f32.mrb[0].mxu0
      %v3776 = vadd.f32 0.0, %v3775
      %v3777 = vpop.f32.mrb[0].mxu0
      %v3778 = vpop.f32.mrb[0].mxu0
      %v3779 = vadd.f32 0.0, %v3778
      %v3780 = vpop.f32.mrb[0].mxu0
      %3781 = vmatprep.mubr.bf16.mxu0 0
      %3782 = vmatmul.mubr.bf16.gmra.mrb[0].mxu0 %v3578
      %v3783 = vpop.f32.mrb[0].mxu0
      %v3784 = vadd.f32 0.0, %v3783
      %v3785 = vpop.f32.mrb[0].mxu0
      %v3786 = vpop.f32.mrb[0].mxu0
      %v3787 = vadd.f32 0.0, %v3786
      %v3788 = vpop.f32.mrb[0].mxu0
      %3789 = vmatprep.mubr.bf16.mxu0 0
      %3790 = vmatmul.mubr.bf16.gmra.mrb[0].mxu0 %v3579
      %v3791 = vpop.f32.mrb[0].mxu0
      %v3792 = vadd.f32 0.0, %v3791
      %v3793 = vpop.f32.mrb[0].mxu0
      %v3794 = vpop.f32.mrb[0].mxu0
      %v3795 = vadd.f32 0.0, %v3794
      %v3796 = vpop.f32.mrb[0].mxu0
      %3797 = vmatprep.mubr.bf16.mxu0 0
      %3798 = vmatmul.mubr.bf16.gmra.mrb[0].mxu0 %v3580
      %v3799 = vpop.f32.mrb[0].mxu0
      %v3800 = vadd.f32 0.0, %v3799
      %v3801 = vpop.f32.mrb[0].mxu0
      %v3802 = vpop.f32.mrb[0].mxu0
      %v3803 = vadd.f32 0.0, %v3802
      %v3804 = vpop.f32.mrb[0].mxu0
      %3805 = vdwg.mxu0
      %v3806 = vadd.f32 %v3419, %v3680
      %v3807 = vadd.f32 %v3420, %v3683
      %v3808 = vadd.f32 %v3421, %v3688
      %v3809 = vadd.f32 %v3422, %v3691
      %v3810 = vadd.f32 %v3423, %v3696
      %v3811 = vadd.f32 %v3424, %v3699
      %v3812 = vadd.f32 %v3425, %v3704
      %v3813 = vadd.f32 %v3426, %v3707
      %v3814 = vadd.f32 %v3427, %v3712
      %v3815 = vadd.f32 %v3428, %v3715
      %v3816 = vadd.f32 %v3429, %v3720
      %v3817 = vadd.f32 %v3430, %v3723
      %v3818 = vadd.f32 %v3431, %v3728
      %v3819 = vadd.f32 %v3432, %v3731
      %v3820 = vadd.f32 %v3433, %v3736
      %v3821 = vadd.f32 %v3434, %v3739
      %v3822 = vadd.f32 %v3435, %v3744
      %v3823 = vadd.f32 %v3436, %v3747
      %v3824 = vadd.f32 %v3437, %v3752
      %v3825 = vadd.f32 %v3438, %v3755
      %v3826 = vadd.f32 %v3439, %v3760
      %v3827 = vadd.f32 %v3440, %v3763
      %v3828 = vadd.f32 %v3441, %v3768
      %v3829 = vadd.f32 %v3442, %v3771
      %v3830 = vadd.f32 %v3443, %v3776
      %v3831 = vadd.f32 %v3444, %v3779
      %v3832 = vadd.f32 %v3445, %v3784
      %v3833 = vadd.f32 %v3446, %v3787
      %v3834 = vadd.f32 %v3447, %v3792
      %v3835 = vadd.f32 %v3448, %v3795
      %v3836 = vadd.f32 %v3449, %v3800
      %v3837 = vadd.f32 %v3450, %v3803
      %v3838 = vld [vmem:[%s3451] sm:$0xf]
      %v3839 = vld [vmem:[%s3451 + $0x4] sm:$0xf]
      %v3840 = vld [vmem:[%s3451 + $0x8] sm:$0x1]
      %v3841 = vld [vmem:[%s3451 + $0xc] sm:$0xf]
      %v3842 = vld [vmem:[%s3451 + $0x10] sm:$0xf]
      %v3843 = vld [vmem:[%s3451 + $0x14] sm:$0x1]
      %v3844 = vld [vmem:[%s3451 + $0x18] sm:$0xf]
      %v3845 = vld [vmem:[%s3451 + $0x1c] sm:$0xf]
      %v3846 = vld [vmem:[%s3451 + $0x20] sm:$0x1]
      %v3847 = vld [vmem:[%s3451 + $0x24] sm:$0xf]
      %v3848 = vld [vmem:[%s3451 + $0x28] sm:$0xf]
      %v3849 = vld [vmem:[%s3451 + $0x2c] sm:$0x1]
      %v3850 = vld [vmem:[%s3451 + $0x30] sm:$0xf]
      %v3851 = vld [vmem:[%s3451 + $0x34] sm:$0xf]
      %v3852 = vld [vmem:[%s3451 + $0x38] sm:$0x1]
      %v3853 = vld [vmem:[%s3451 + $0x3c] sm:$0xf]
      %v3854 = vld [vmem:[%s3451 + $0x40] sm:$0xf]
      %v3855 = vld [vmem:[%s3451 + $0x44] sm:$0x1]
      %v3856 = vld [vmem:[%s3451 + $0x48] sm:$0xf]
      %v3857 = vld [vmem:[%s3451 + $0x4c] sm:$0xf]
      %v3858 = vld [vmem:[%s3451 + $0x50] sm:$0x1]
      %v3859 = vld [vmem:[%s3451 + $0x54] sm:$0xf]
      %v3860 = vld [vmem:[%s3451 + $0x58] sm:$0xf]
      %v3861 = vld [vmem:[%s3451 + $0x5c] sm:$0x1]
      %v3862 = vld [vmem:[%s3451 + $0x60] sm:$0xf]
      %v3863 = vld [vmem:[%s3451 + $0x64] sm:$0xf]
      %v3864 = vld [vmem:[%s3451 + $0x68] sm:$0x1]
      %v3865 = vld [vmem:[%s3451 + $0x6c] sm:$0xf]
      %v3866 = vld [vmem:[%s3451 + $0x70] sm:$0xf]
      %v3867 = vld [vmem:[%s3451 + $0x74] sm:$0x1]
      %v3868 = vld [vmem:[%s3451 + $0x78] sm:$0xf]
      %v3869 = vld [vmem:[%s3451 + $0x7c] sm:$0xf]
      %v3870 = vld [vmem:[%s3451 + $0x80] sm:$0x1]
      %v3871 = vld [vmem:[%s3451 + $0x84] sm:$0xf]
      %v3872 = vld [vmem:[%s3451 + $0x88] sm:$0xf]
      %v3873 = vld [vmem:[%s3451 + $0x8c] sm:$0x1]
      %v3874 = vld [vmem:[%s3451 + $0x90] sm:$0xf]
      %v3875 = vld [vmem:[%s3451 + $0x94] sm:$0xf]
      %v3876 = vld [vmem:[%s3451 + $0x98] sm:$0x1]
      %v3877 = vld [vmem:[%s3451 + $0x9c] sm:$0xf]
      %v3878 = vld [vmem:[%s3451 + $0xa0] sm:$0xf]
      %v3879 = vld [vmem:[%s3451 + $0xa4] sm:$0x1]
      %v3880 = vld [vmem:[%s3451 + $0xa8] sm:$0xf]
      %v3881 = vld [vmem:[%s3451 + $0xac] sm:$0xf]
      %v3882 = vld [vmem:[%s3451 + $0xb0] sm:$0x1]
      %v3883 = vld [vmem:[%s3451 + $0xb4] sm:$0xf]
      %v3884 = vld [vmem:[%s3451 + $0xb8] sm:$0xf]
      %v3885 = vld [vmem:[%s3451 + $0xbc] sm:$0x1]
      %v3887 = vshrl.u32 %v3838, 16
      %v3889 = vrot.slane %v3887, 4
      %v3890 = vshll.u32 %v3838, 16
      %v3892 = vrot.slane %v3890, 5
      %v3893 = vor.u32 %v3889, %v3892
      %v3894 = vrot.slane %v3893, 4
      %v3896 = vshll.u32 %v3839, 16
      %v3898 = vrot.slane %v3896, 5
      %v3899 = vsel %vm347, %v3894, %v3898
      %v3900 = vshrl.u32 %v3839, 16
      %v3902 = vrot.slane %v3900, 4
      %v3903 = vor.u32 %v3902, %v3898
      %v3904 = vrot.slane %v3903, 4
      %v3906 = vshll.u32 %v3840, 16
      %v3908 = vrot.slane %v3906, 5
      %v3909 = vsel %vm347, %v3904, %v3908
      %v3911 = vshrl.u32 %v3841, 16
      %v3913 = vrot.slane %v3911, 4
      %v3914 = vshll.u32 %v3841, 16
      %v3916 = vrot.slane %v3914, 5
      %v3917 = vor.u32 %v3913, %v3916
      %v3918 = vrot.slane %v3917, 4
      %v3920 = vshll.u32 %v3842, 16
      %v3922 = vrot.slane %v3920, 5
      %v3923 = vsel %vm347, %v3918, %v3922
      %v3924 = vshrl.u32 %v3842, 16
      %v3926 = vrot.slane %v3924, 4
      %v3927 = vor.u32 %v3926, %v3922
      %v3928 = vrot.slane %v3927, 4
      %v3930 = vshll.u32 %v3843, 16
      %v3932 = vrot.slane %v3930, 5
      %v3933 = vsel %vm347, %v3928, %v3932
      %v3935 = vshrl.u32 %v3844, 16
      %v3937 = vrot.slane %v3935, 4
      %v3938 = vshll.u32 %v3844, 16
      %v3940 = vrot.slane %v3938, 5
      %v3941 = vor.u32 %v3937, %v3940
      %v3942 = vrot.slane %v3941, 4
      %v3944 = vshll.u32 %v3845, 16
      %v3946 = vrot.slane %v3944, 5
      %v3947 = vsel %vm347, %v3942, %v3946
      %v3948 = vshrl.u32 %v3845, 16
      %v3950 = vrot.slane %v3948, 4
      %v3951 = vor.u32 %v3950, %v3946
      %v3952 = vrot.slane %v3951, 4
      %v3954 = vshll.u32 %v3846, 16
      %v3956 = vrot.slane %v3954, 5
      %v3957 = vsel %vm347, %v3952, %v3956
      %v3959 = vshrl.u32 %v3847, 16
      %v3961 = vrot.slane %v3959, 4
      %v3962 = vshll.u32 %v3847, 16
      %v3964 = vrot.slane %v3962, 5
      %v3965 = vor.u32 %v3961, %v3964
      %v3966 = vrot.slane %v3965, 4
      %v3968 = vshll.u32 %v3848, 16
      %v3970 = vrot.slane %v3968, 5
      %v3971 = vsel %vm347, %v3966, %v3970
      %v3972 = vshrl.u32 %v3848, 16
      %v3974 = vrot.slane %v3972, 4
      %v3975 = vor.u32 %v3974, %v3970
      %v3976 = vrot.slane %v3975, 4
      %v3978 = vshll.u32 %v3849, 16
      %v3980 = vrot.slane %v3978, 5
      %v3981 = vsel %vm347, %v3976, %v3980
      %v3983 = vshrl.u32 %v3850, 16
      %v3985 = vrot.slane %v3983, 4
      %v3986 = vshll.u32 %v3850, 16
      %v3988 = vrot.slane %v3986, 5
      %v3989 = vor.u32 %v3985, %v3988
      %v3990 = vrot.slane %v3989, 4
      %v3992 = vshll.u32 %v3851, 16
      %v3994 = vrot.slane %v3992, 5
      %v3995 = vsel %vm347, %v3990, %v3994
      %v3996 = vshrl.u32 %v3851, 16
      %v3998 = vrot.slane %v3996, 4
      %v3999 = vor.u32 %v3998, %v3994
      %v4000 = vrot.slane %v3999, 4
      %v4002 = vshll.u32 %v3852, 16
      %v4004 = vrot.slane %v4002, 5
      %v4005 = vsel %vm347, %v4000, %v4004
      %v4007 = vshrl.u32 %v3853, 16
      %v4009 = vrot.slane %v4007, 4
      %v4010 = vshll.u32 %v3853, 16
      %v4012 = vrot.slane %v4010, 5
      %v4013 = vor.u32 %v4009, %v4012
      %v4014 = vrot.slane %v4013, 4
      %v4016 = vshll.u32 %v3854, 16
      %v4018 = vrot.slane %v4016, 5
      %v4019 = vsel %vm347, %v4014, %v4018
      %v4020 = vshrl.u32 %v3854, 16
      %v4022 = vrot.slane %v4020, 4
      %v4023 = vor.u32 %v4022, %v4018
      %v4024 = vrot.slane %v4023, 4
      %v4026 = vshll.u32 %v3855, 16
      %v4028 = vrot.slane %v4026, 5
      %v4029 = vsel %vm347, %v4024, %v4028
      %v4031 = vshrl.u32 %v3856, 16
      %v4033 = vrot.slane %v4031, 4
      %v4034 = vshll.u32 %v3856, 16
      %v4036 = vrot.slane %v4034, 5
      %v4037 = vor.u32 %v4033, %v4036
      %v4038 = vrot.slane %v4037, 4
      %v4040 = vshll.u32 %v3857, 16
      %v4042 = vrot.slane %v4040, 5
      %v4043 = vsel %vm347, %v4038, %v4042
      %v4044 = vshrl.u32 %v3857, 16
      %v4046 = vrot.slane %v4044, 4
      %v4047 = vor.u32 %v4046, %v4042
      %v4048 = vrot.slane %v4047, 4
      %v4050 = vshll.u32 %v3858, 16
      %v4052 = vrot.slane %v4050, 5
      %v4053 = vsel %vm347, %v4048, %v4052
      %v4055 = vshrl.u32 %v3859, 16
      %v4057 = vrot.slane %v4055, 4
      %v4058 = vshll.u32 %v3859, 16
      %v4060 = vrot.slane %v4058, 5
      %v4061 = vor.u32 %v4057, %v4060
      %v4062 = vrot.slane %v4061, 4
      %v4064 = vshll.u32 %v3860, 16
      %v4066 = vrot.slane %v4064, 5
      %v4067 = vsel %vm347, %v4062, %v4066
      %v4068 = vshrl.u32 %v3860, 16
      %v4070 = vrot.slane %v4068, 4
      %v4071 = vor.u32 %v4070, %v4066
      %v4072 = vrot.slane %v4071, 4
      %v4074 = vshll.u32 %v3861, 16
      %v4076 = vrot.slane %v4074, 5
      %v4077 = vsel %vm347, %v4072, %v4076
      %v4079 = vshrl.u32 %v3862, 16
      %v4081 = vrot.slane %v4079, 4
      %v4082 = vshll.u32 %v3862, 16
      %v4084 = vrot.slane %v4082, 5
      %v4085 = vor.u32 %v4081, %v4084
      %v4086 = vrot.slane %v4085, 4
      %v4088 = vshll.u32 %v3863, 16
      %v4090 = vrot.slane %v4088, 5
      %v4091 = vsel %vm347, %v4086, %v4090
      %v4092 = vshrl.u32 %v3863, 16
      %v4094 = vrot.slane %v4092, 4
      %v4095 = vor.u32 %v4094, %v4090
      %v4096 = vrot.slane %v4095, 4
      %v4098 = vshll.u32 %v3864, 16
      %v4100 = vrot.slane %v4098, 5
      %v4101 = vsel %vm347, %v4096, %v4100
      %v4103 = vshrl.u32 %v3865, 16
      %v4105 = vrot.slane %v4103, 4
      %v4106 = vshll.u32 %v3865, 16
      %v4108 = vrot.slane %v4106, 5
      %v4109 = vor.u32 %v4105, %v4108
      %v4110 = vrot.slane %v4109, 4
      %v4112 = vshll.u32 %v3866, 16
      %v4114 = vrot.slane %v4112, 5
      %v4115 = vsel %vm347, %v4110, %v4114
      %v4116 = vshrl.u32 %v3866, 16
      %v4118 = vrot.slane %v4116, 4
      %v4119 = vor.u32 %v4118, %v4114
      %v4120 = vrot.slane %v4119, 4
      %v4122 = vshll.u32 %v3867, 16
      %v4124 = vrot.slane %v4122, 5
      %v4125 = vsel %vm347, %v4120, %v4124
      %v4127 = vshrl.u32 %v3868, 16
      %v4129 = vrot.slane %v4127, 4
      %v4130 = vshll.u32 %v3868, 16
      %v4132 = vrot.slane %v4130, 5
      %v4133 = vor.u32 %v4129, %v4132
      %v4134 = vrot.slane %v4133, 4
      %v4136 = vshll.u32 %v3869, 16
      %v4138 = vrot.slane %v4136, 5
      %v4139 = vsel %vm347, %v4134, %v4138
      %v4140 = vshrl.u32 %v3869, 16
      %v4142 = vrot.slane %v4140, 4
      %v4143 = vor.u32 %v4142, %v4138
      %v4144 = vrot.slane %v4143, 4
      %v4146 = vshll.u32 %v3870, 16
      %v4148 = vrot.slane %v4146, 5
      %v4149 = vsel %vm347, %v4144, %v4148
      %v4151 = vshrl.u32 %v3871, 16
      %v4153 = vrot.slane %v4151, 4
      %v4154 = vshll.u32 %v3871, 16
      %v4156 = vrot.slane %v4154, 5
      %v4157 = vor.u32 %v4153, %v4156
      %v4158 = vrot.slane %v4157, 4
      %v4160 = vshll.u32 %v3872, 16
      %v4162 = vrot.slane %v4160, 5
      %v4163 = vsel %vm347, %v4158, %v4162
      %v4164 = vshrl.u32 %v3872, 16
      %v4166 = vrot.slane %v4164, 4
      %v4167 = vor.u32 %v4166, %v4162
      %v4168 = vrot.slane %v4167, 4
      %v4170 = vshll.u32 %v3873, 16
      %v4172 = vrot.slane %v4170, 5
      %v4173 = vsel %vm347, %v4168, %v4172
      %v4175 = vshrl.u32 %v3874, 16
      %v4177 = vrot.slane %v4175, 4
      %v4178 = vshll.u32 %v3874, 16
      %v4180 = vrot.slane %v4178, 5
      %v4181 = vor.u32 %v4177, %v4180
      %v4182 = vrot.slane %v4181, 4
      %v4184 = vshll.u32 %v3875, 16
      %v4186 = vrot.slane %v4184, 5
      %v4187 = vsel %vm347, %v4182, %v4186
      %v4188 = vshrl.u32 %v3875, 16
      %v4190 = vrot.slane %v4188, 4
      %v4191 = vor.u32 %v4190, %v4186
      %v4192 = vrot.slane %v4191, 4
      %v4194 = vshll.u32 %v3876, 16
      %v4196 = vrot.slane %v4194, 5
      %v4197 = vsel %vm347, %v4192, %v4196
      %v4199 = vshrl.u32 %v3877, 16
      %v4201 = vrot.slane %v4199, 4
      %v4202 = vshll.u32 %v3877, 16
      %v4204 = vrot.slane %v4202, 5
      %v4205 = vor.u32 %v4201, %v4204
      %v4206 = vrot.slane %v4205, 4
      %v4208 = vshll.u32 %v3878, 16
      %v4210 = vrot.slane %v4208, 5
      %v4211 = vsel %vm347, %v4206, %v4210
      %v4212 = vshrl.u32 %v3878, 16
      %v4214 = vrot.slane %v4212, 4
      %v4215 = vor.u32 %v4214, %v4210
      %v4216 = vrot.slane %v4215, 4
      %v4218 = vshll.u32 %v3879, 16
      %v4220 = vrot.slane %v4218, 5
      %v4221 = vsel %vm347, %v4216, %v4220
      %v4223 = vshrl.u32 %v3880, 16
      %v4225 = vrot.slane %v4223, 4
      %v4226 = vshll.u32 %v3880, 16
      %v4228 = vrot.slane %v4226, 5
      %v4229 = vor.u32 %v4225, %v4228
      %v4230 = vrot.slane %v4229, 4
      %v4232 = vshll.u32 %v3881, 16
      %v4234 = vrot.slane %v4232, 5
      %v4235 = vsel %vm347, %v4230, %v4234
      %v4236 = vshrl.u32 %v3881, 16
      %v4238 = vrot.slane %v4236, 4
      %v4239 = vor.u32 %v4238, %v4234
      %v4240 = vrot.slane %v4239, 4
      %v4242 = vshll.u32 %v3882, 16
      %v4244 = vrot.slane %v4242, 5
      %v4245 = vsel %vm347, %v4240, %v4244
      %v4247 = vshrl.u32 %v3883, 16
      %v4249 = vrot.slane %v4247, 4
      %v4250 = vshll.u32 %v3883, 16
      %v4252 = vrot.slane %v4250, 5
      %v4253 = vor.u32 %v4249, %v4252
      %v4254 = vrot.slane %v4253, 4
      %v4256 = vshll.u32 %v3884, 16
      %v4258 = vrot.slane %v4256, 5
      %v4259 = vsel %vm347, %v4254, %v4258
      %v4260 = vshrl.u32 %v3884, 16
      %v4262 = vrot.slane %v4260, 4
      %v4263 = vor.u32 %v4262, %v4258
      %v4264 = vrot.slane %v4263, 4
      %v4266 = vshll.u32 %v3885, 16
      %v4268 = vrot.slane %v4266, 5
      %v4269 = vsel %vm347, %v4264, %v4268
      %s4270 = scalar_lea.vmem %s260, 448
      %v4271 = vld [vmem:[%s4270] sm:$0xf]
      %v4272 = vld [vmem:[%s4270 + $0x4] sm:$0xf]
      %v4273 = vld [vmem:[%s4270 + $0x8] sm:$0xf]
      %v4274 = vld [vmem:[%s4270 + $0xc] sm:$0xf]
      %v4275 = vld [vmem:[%s4270 + $0x10] sm:$0xf]
      %v4276 = vld [vmem:[%s4270 + $0x14] sm:$0xf]
      %v4277 = vld [vmem:[%s4270 + $0x18] sm:$0xf]
      %v4278 = vld [vmem:[%s4270 + $0x1c] sm:$0xf]
      %v4279 = vld [vmem:[%s4270 + $0x20] sm:$0xf]
      %v4280 = vld [vmem:[%s4270 + $0x24] sm:$0xf]
      %v4281 = vld [vmem:[%s4270 + $0x28] sm:$0xf]
      %v4282 = vld [vmem:[%s4270 + $0x2c] sm:$0xf]
      %v4283 = vld [vmem:[%s4270 + $0x30] sm:$0xf]
      %v4284 = vld [vmem:[%s4270 + $0x34] sm:$0xf]
      %v4285 = vld [vmem:[%s4270 + $0x38] sm:$0xf]
      %v4286 = vld [vmem:[%s4270 + $0x3c] sm:$0xf]
      %v4287 = vunpack.c.l.b16 %v3899
      %v4288 = vunpack.c.l.b16 %v3909
      %v4289 = vunpack.c.l.b16 %v3923
      %v4290 = vunpack.c.l.b16 %v3933
      %v4291 = vunpack.c.l.b16 %v3947
      %v4292 = vunpack.c.l.b16 %v3957
      %v4293 = vunpack.c.l.b16 %v3971
      %v4294 = vunpack.c.l.b16 %v3981
      %v4295 = vunpack.c.l.b16 %v3995
      %v4296 = vunpack.c.l.b16 %v4005
      %v4297 = vunpack.c.l.b16 %v4019
      %v4298 = vunpack.c.l.b16 %v4029
      %v4299 = vunpack.c.l.b16 %v4043
      %v4300 = vunpack.c.l.b16 %v4053
      %v4301 = vunpack.c.l.b16 %v4067
      %v4302 = vunpack.c.l.b16 %v4077
      %v4303 = vunpack.c.l.b16 %v4091
      %v4304 = vunpack.c.l.b16 %v4101
      %v4305 = vunpack.c.l.b16 %v4115
      %v4306 = vunpack.c.l.b16 %v4125
      %v4307 = vunpack.c.l.b16 %v4139
      %v4308 = vunpack.c.l.b16 %v4149
      %v4309 = vunpack.c.l.b16 %v4163
      %v4310 = vunpack.c.l.b16 %v4173
      %v4311 = vunpack.c.l.b16 %v4187
      %v4312 = vunpack.c.l.b16 %v4197
      %v4313 = vunpack.c.l.b16 %v4211
      %v4314 = vunpack.c.l.b16 %v4221
      %v4315 = vunpack.c.l.b16 %v4235
      %v4316 = vunpack.c.l.b16 %v4245
      %v4317 = vunpack.c.l.b16 %v4259
      %v4318 = vunpack.c.l.b16 %v4269
      %v4319 = vpack.c.b16 %v4288, %v4287
      %v4320 = vpack.c.b16 %v4290, %v4289
      %v4321 = vpack.c.b16 %v4292, %v4291
      %v4322 = vpack.c.b16 %v4294, %v4293
      %v4323 = vpack.c.b16 %v4296, %v4295
      %v4324 = vpack.c.b16 %v4298, %v4297
      %v4325 = vpack.c.b16 %v4300, %v4299
      %v4326 = vpack.c.b16 %v4302, %v4301
      %v4327 = vpack.c.b16 %v4304, %v4303
      %v4328 = vpack.c.b16 %v4306, %v4305
      %v4329 = vpack.c.b16 %v4308, %v4307
      %v4330 = vpack.c.b16 %v4310, %v4309
      %v4331 = vpack.c.b16 %v4312, %v4311
      %v4332 = vpack.c.b16 %v4314, %v4313
      %v4333 = vpack.c.b16 %v4316, %v4315
      %v4334 = vpack.c.b16 %v4318, %v4317
      %v4367 = vunpack.c.l.b16 %v4271
      %v4368 = vunpack.c.l.b16 %v4272
      %v4369 = vunpack.c.l.b16 %v4273
      %v4370 = vunpack.c.l.b16 %v4274
      %v4371 = vunpack.c.l.b16 %v4275
      %v4372 = vunpack.c.l.b16 %v4276
      %v4373 = vunpack.c.l.b16 %v4277
      %v4374 = vunpack.c.l.b16 %v4278
      %v4375 = vunpack.c.l.b16 %v4279
      %v4376 = vunpack.c.l.b16 %v4280
      %v4377 = vunpack.c.l.b16 %v4281
      %v4378 = vunpack.c.l.b16 %v4282
      %v4379 = vunpack.c.l.b16 %v4283
      %v4380 = vunpack.c.l.b16 %v4284
      %v4381 = vunpack.c.l.b16 %v4285
      %v4382 = vunpack.c.l.b16 %v4286
      %v4383 = vpack.c.b16 %v4368, %v4367
      %v4384 = vpack.c.b16 %v4370, %v4369
      %v4385 = vpack.c.b16 %v4372, %v4371
      %v4386 = vpack.c.b16 %v4374, %v4373
      %v4387 = vpack.c.b16 %v4376, %v4375
      %v4388 = vpack.c.b16 %v4378, %v4377
      %v4389 = vpack.c.b16 %v4380, %v4379
      %v4390 = vpack.c.b16 %v4382, %v4381
      %4399 = vmatprep.subr.bf16.mxu0 0
      %4400 = vmatpush1.bf16.msra.mxu0 %v4383
      %4401 = vmatprep.subr.bf16.mxu0 0
      %4402 = vmatpush1.bf16.msra.mxu0 %v4384
      %4403 = vmatprep.subr.bf16.mxu0 0
      %4404 = vmatpush1.bf16.msra.mxu0 %v4385
      %4405 = vmatprep.subr.bf16.mxu0 0
      %4406 = vmatpush1.bf16.msra.mxu0 %v4386
      %4407 = vmatprep.subr.bf16.mxu0 0
      %4408 = vmatpush1.bf16.msra.mxu0 %v4387
      %4409 = vmatprep.subr.bf16.mxu0 0
      %4410 = vmatpush1.bf16.msra.mxu0 %v4388
      %4411 = vmatprep.subr.bf16.mxu0 0
      %4412 = vmatpush1.bf16.msra.mxu0 %v4389
      %4413 = vmatprep.subr.bf16.mxu0 0
      %4414 = vmatpush1.bf16.msra.mxu0 %v4390
      %4415 = vmatprep.subr.bf16.mxu0 0
      %4416 = vmatpush1.bf16.msra.mxu0 0
      %4417 = vmatprep.subr.bf16.mxu0 0
      %4418 = vmatpush1.bf16.msra.mxu0 0
      %4419 = vmatprep.subr.bf16.mxu0 0
      %4420 = vmatpush1.bf16.msra.mxu0 0
      %4421 = vmatprep.subr.bf16.mxu0 0
      %4422 = vmatpush1.bf16.msra.mxu0 0
      %4423 = vmatprep.subr.bf16.mxu0 0
      %4424 = vmatpush1.bf16.msra.mxu0 0
      %4425 = vmatprep.subr.bf16.mxu0 0
      %4426 = vmatpush1.bf16.msra.mxu0 0
      %4427 = vmatprep.subr.bf16.mxu0 0
      %4428 = vmatpush1.bf16.msra.mxu0 0
      %4429 = vmatprep.subr.bf16.mxu0 0
      %4430 = vmatpush1.bf16.msra.mxu0 0
      %4431 = vmatprep.mubr.bf16.mxu0 0
      %4432 = vmatmul.mubr.bf16.gmra.mrb[0].mxu0 %v4319
      %v4433 = vpop.f32.mrb[0].mxu0
      %v4434 = vadd.f32 0.0, %v4433
      %v4435 = vpop.f32.mrb[0].mxu0
      %v4436 = vpop.f32.mrb[0].mxu0
      %v4437 = vadd.f32 0.0, %v4436
      %v4438 = vpop.f32.mrb[0].mxu0
      %4439 = vmatprep.mubr.bf16.mxu0 0
      %4440 = vmatmul.mubr.bf16.gmra.mrb[0].mxu0 %v4320
      %v4441 = vpop.f32.mrb[0].mxu0
      %v4442 = vadd.f32 0.0, %v4441
      %v4443 = vpop.f32.mrb[0].mxu0
      %v4444 = vpop.f32.mrb[0].mxu0
      %v4445 = vadd.f32 0.0, %v4444
      %v4446 = vpop.f32.mrb[0].mxu0
      %4447 = vmatprep.mubr.bf16.mxu0 0
      %4448 = vmatmul.mubr.bf16.gmra.mrb[0].mxu0 %v4321
      %v4449 = vpop.f32.mrb[0].mxu0
      %v4450 = vadd.f32 0.0, %v4449
      %v4451 = vpop.f32.mrb[0].mxu0
      %v4452 = vpop.f32.mrb[0].mxu0
      %v4453 = vadd.f32 0.0, %v4452
      %v4454 = vpop.f32.mrb[0].mxu0
      %4455 = vmatprep.mubr.bf16.mxu0 0
      %4456 = vmatmul.mubr.bf16.gmra.mrb[0].mxu0 %v4322
      %v4457 = vpop.f32.mrb[0].mxu0
      %v4458 = vadd.f32 0.0, %v4457
      %v4459 = vpop.f32.mrb[0].mxu0
      %v4460 = vpop.f32.mrb[0].mxu0
      %v4461 = vadd.f32 0.0, %v4460
      %v4462 = vpop.f32.mrb[0].mxu0
      %4463 = vmatprep.mubr.bf16.mxu0 0
      %4464 = vmatmul.mubr.bf16.gmra.mrb[0].mxu0 %v4323
      %v4465 = vpop.f32.mrb[0].mxu0
      %v4466 = vadd.f32 0.0, %v4465
      %v4467 = vpop.f32.mrb[0].mxu0
      %v4468 = vpop.f32.mrb[0].mxu0
      %v4469 = vadd.f32 0.0, %v4468
      %v4470 = vpop.f32.mrb[0].mxu0
      %4471 = vmatprep.mubr.bf16.mxu0 0
      %4472 = vmatmul.mubr.bf16.gmra.mrb[0].mxu0 %v4324
      %v4473 = vpop.f32.mrb[0].mxu0
      %v4474 = vadd.f32 0.0, %v4473
      %v4475 = vpop.f32.mrb[0].mxu0
      %v4476 = vpop.f32.mrb[0].mxu0
      %v4477 = vadd.f32 0.0, %v4476
      %v4478 = vpop.f32.mrb[0].mxu0
      %4479 = vmatprep.mubr.bf16.mxu0 0
      %4480 = vmatmul.mubr.bf16.gmra.mrb[0].mxu0 %v4325
      %v4481 = vpop.f32.mrb[0].mxu0
      %v4482 = vadd.f32 0.0, %v4481
      %v4483 = vpop.f32.mrb[0].mxu0
      %v4484 = vpop.f32.mrb[0].mxu0
      %v4485 = vadd.f32 0.0, %v4484
      %v4486 = vpop.f32.mrb[0].mxu0
      %4487 = vmatprep.mubr.bf16.mxu0 0
      %4488 = vmatmul.mubr.bf16.gmra.mrb[0].mxu0 %v4326
      %v4489 = vpop.f32.mrb[0].mxu0
      %v4490 = vadd.f32 0.0, %v4489
      %v4491 = vpop.f32.mrb[0].mxu0
      %v4492 = vpop.f32.mrb[0].mxu0
      %v4493 = vadd.f32 0.0, %v4492
      %v4494 = vpop.f32.mrb[0].mxu0
      %4495 = vmatprep.mubr.bf16.mxu0 0
      %4496 = vmatmul.mubr.bf16.gmra.mrb[0].mxu0 %v4327
      %v4497 = vpop.f32.mrb[0].mxu0
      %v4498 = vadd.f32 0.0, %v4497
      %v4499 = vpop.f32.mrb[0].mxu0
      %v4500 = vpop.f32.mrb[0].mxu0
      %v4501 = vadd.f32 0.0, %v4500
      %v4502 = vpop.f32.mrb[0].mxu0
      %4503 = vmatprep.mubr.bf16.mxu0 0
      %4504 = vmatmul.mubr.bf16.gmra.mrb[0].mxu0 %v4328
      %v4505 = vpop.f32.mrb[0].mxu0
      %v4506 = vadd.f32 0.0, %v4505
      %v4507 = vpop.f32.mrb[0].mxu0
      %v4508 = vpop.f32.mrb[0].mxu0
      %v4509 = vadd.f32 0.0, %v4508
      %v4510 = vpop.f32.mrb[0].mxu0
      %4511 = vmatprep.mubr.bf16.mxu0 0
      %4512 = vmatmul.mubr.bf16.gmra.mrb[0].mxu0 %v4329
      %v4513 = vpop.f32.mrb[0].mxu0
      %v4514 = vadd.f32 0.0, %v4513
      %v4515 = vpop.f32.mrb[0].mxu0
      %v4516 = vpop.f32.mrb[0].mxu0
      %v4517 = vadd.f32 0.0, %v4516
      %v4518 = vpop.f32.mrb[0].mxu0
      %4519 = vmatprep.mubr.bf16.mxu0 0
      %4520 = vmatmul.mubr.bf16.gmra.mrb[0].mxu0 %v4330
      %v4521 = vpop.f32.mrb[0].mxu0
      %v4522 = vadd.f32 0.0, %v4521
      %v4523 = vpop.f32.mrb[0].mxu0
      %v4524 = vpop.f32.mrb[0].mxu0
      %v4525 = vadd.f32 0.0, %v4524
      %v4526 = vpop.f32.mrb[0].mxu0
      %4527 = vmatprep.mubr.bf16.mxu0 0
      %4528 = vmatmul.mubr.bf16.gmra.mrb[0].mxu0 %v4331
      %v4529 = vpop.f32.mrb[0].mxu0
      %v4530 = vadd.f32 0.0, %v4529
      %v4531 = vpop.f32.mrb[0].mxu0
      %v4532 = vpop.f32.mrb[0].mxu0
      %v4533 = vadd.f32 0.0, %v4532
      %v4534 = vpop.f32.mrb[0].mxu0
      %4535 = vmatprep.mubr.bf16.mxu0 0
      %4536 = vmatmul.mubr.bf16.gmra.mrb[0].mxu0 %v4332
      %v4537 = vpop.f32.mrb[0].mxu0
      %v4538 = vadd.f32 0.0, %v4537
      %v4539 = vpop.f32.mrb[0].mxu0
      %v4540 = vpop.f32.mrb[0].mxu0
      %v4541 = vadd.f32 0.0, %v4540
      %v4542 = vpop.f32.mrb[0].mxu0
      %4543 = vmatprep.mubr.bf16.mxu0 0
      %4544 = vmatmul.mubr.bf16.gmra.mrb[0].mxu0 %v4333
      %v4545 = vpop.f32.mrb[0].mxu0
      %v4546 = vadd.f32 0.0, %v4545
      %v4547 = vpop.f32.mrb[0].mxu0
      %v4548 = vpop.f32.mrb[0].mxu0
      %v4549 = vadd.f32 0.0, %v4548
      %v4550 = vpop.f32.mrb[0].mxu0
      %4551 = vmatprep.mubr.bf16.mxu0 0
      %4552 = vmatmul.mubr.bf16.gmra.mrb[0].mxu0 %v4334
      %v4553 = vpop.f32.mrb[0].mxu0
      %v4554 = vadd.f32 0.0, %v4553
      %v4555 = vpop.f32.mrb[0].mxu0
      %v4556 = vpop.f32.mrb[0].mxu0
      %v4557 = vadd.f32 0.0, %v4556
      %v4558 = vpop.f32.mrb[0].mxu0
      %4559 = vdwg.mxu0
      %v4560 = vadd.f32 %v3806, %v4434
      %v4561 = vadd.f32 %v3807, %v4437
      %v4562 = vadd.f32 %v3808, %v4442
      %v4563 = vadd.f32 %v3809, %v4445
      %v4564 = vadd.f32 %v3810, %v4450
      %v4565 = vadd.f32 %v3811, %v4453
      %v4566 = vadd.f32 %v3812, %v4458
      %v4567 = vadd.f32 %v3813, %v4461
      %v4568 = vadd.f32 %v3814, %v4466
      %v4569 = vadd.f32 %v3815, %v4469
      %v4570 = vadd.f32 %v3816, %v4474
      %v4571 = vadd.f32 %v3817, %v4477
      %v4572 = vadd.f32 %v3818, %v4482
      %v4573 = vadd.f32 %v3819, %v4485
      %v4574 = vadd.f32 %v3820, %v4490
      %v4575 = vadd.f32 %v3821, %v4493
      %v4576 = vadd.f32 %v3822, %v4498
      %v4577 = vadd.f32 %v3823, %v4501
      %v4578 = vadd.f32 %v3824, %v4506
      %v4579 = vadd.f32 %v3825, %v4509
      %v4580 = vadd.f32 %v3826, %v4514
      %v4581 = vadd.f32 %v3827, %v4517
      %v4582 = vadd.f32 %v3828, %v4522
      %v4583 = vadd.f32 %v3829, %v4525
      %v4584 = vadd.f32 %v3830, %v4530
      %v4585 = vadd.f32 %v3831, %v4533
      %v4586 = vadd.f32 %v3832, %v4538
      %v4587 = vadd.f32 %v3833, %v4541
      %v4588 = vadd.f32 %v3834, %v4546
      %v4589 = vadd.f32 %v3835, %v4549
      %v4590 = vadd.f32 %v3836, %v4554
      %v4591 = vadd.f32 %v3837, %v4557
      %v4592 = vld [vmem:[%s3451] sm:$0xe]
      %v4593 = vld [vmem:[%s3451 + $0xc] sm:$0xe]
      %v4594 = vld [vmem:[%s3451 + $0x18] sm:$0xe]
      %v4595 = vld [vmem:[%s3451 + $0x24] sm:$0xe]
      %v4596 = vld [vmem:[%s3451 + $0x30] sm:$0xe]
      %v4597 = vld [vmem:[%s3451 + $0x3c] sm:$0xe]
      %v4598 = vld [vmem:[%s3451 + $0x48] sm:$0xe]
      %v4599 = vld [vmem:[%s3451 + $0x54] sm:$0xe]
      %v4600 = vld [vmem:[%s3451 + $0x60] sm:$0xe]
      %v4601 = vld [vmem:[%s3451 + $0x6c] sm:$0xe]
      %v4602 = vld [vmem:[%s3451 + $0x78] sm:$0xe]
      %v4603 = vld [vmem:[%s3451 + $0x84] sm:$0xe]
      %v4604 = vld [vmem:[%s3451 + $0x90] sm:$0xe]
      %v4605 = vld [vmem:[%s3451 + $0x9c] sm:$0xe]
      %v4606 = vld [vmem:[%s3451 + $0xa8] sm:$0xe]
      %v4607 = vld [vmem:[%s3451 + $0xb4] sm:$0xe]
      %v4656 = vrot.slane %v4592, 5
      %v4657 = vrot.slane %v4656, 4
      %v4658 = vrot.slane %v3839, 5
      %v4659 = vsel %vm1377, %v4657, %v4658
      %v4660 = vrot.slane %v4658, 4
      %v4661 = vrot.slane %v3840, 5
      %v4662 = vsel %vm1377, %v4660, %v4661
      %v4663 = vrot.slane %v4593, 5
      %v4664 = vrot.slane %v4663, 4
      %v4665 = vrot.slane %v3842, 5
      %v4666 = vsel %vm1377, %v4664, %v4665
      %v4667 = vrot.slane %v4665, 4
      %v4668 = vrot.slane %v3843, 5
      %v4669 = vsel %vm1377, %v4667, %v4668
      %v4670 = vrot.slane %v4594, 5
      %v4671 = vrot.slane %v4670, 4
      %v4672 = vrot.slane %v3845, 5
      %v4673 = vsel %vm1377, %v4671, %v4672
      %v4674 = vrot.slane %v4672, 4
      %v4675 = vrot.slane %v3846, 5
      %v4676 = vsel %vm1377, %v4674, %v4675
      %v4677 = vrot.slane %v4595, 5
      %v4678 = vrot.slane %v4677, 4
      %v4679 = vrot.slane %v3848, 5
      %v4680 = vsel %vm1377, %v4678, %v4679
      %v4681 = vrot.slane %v4679, 4
      %v4682 = vrot.slane %v3849, 5
      %v4683 = vsel %vm1377, %v4681, %v4682
      %v4684 = vrot.slane %v4596, 5
      %v4685 = vrot.slane %v4684, 4
      %v4686 = vrot.slane %v3851, 5
      %v4687 = vsel %vm1377, %v4685, %v4686
      %v4688 = vrot.slane %v4686, 4
      %v4689 = vrot.slane %v3852, 5
      %v4690 = vsel %vm1377, %v4688, %v4689
      %v4691 = vrot.slane %v4597, 5
      %v4692 = vrot.slane %v4691, 4
      %v4693 = vrot.slane %v3854, 5
      %v4694 = vsel %vm1377, %v4692, %v4693
      %v4695 = vrot.slane %v4693, 4
      %v4696 = vrot.slane %v3855, 5
      %v4697 = vsel %vm1377, %v4695, %v4696
      %v4698 = vrot.slane %v4598, 5
      %v4699 = vrot.slane %v4698, 4
      %v4700 = vrot.slane %v3857, 5
      %v4701 = vsel %vm1377, %v4699, %v4700
      %v4702 = vrot.slane %v4700, 4
      %v4703 = vrot.slane %v3858, 5
      %v4704 = vsel %vm1377, %v4702, %v4703
      %v4705 = vrot.slane %v4599, 5
      %v4706 = vrot.slane %v4705, 4
      %v4707 = vrot.slane %v3860, 5
      %v4708 = vsel %vm1377, %v4706, %v4707
      %v4709 = vrot.slane %v4707, 4
      %v4710 = vrot.slane %v3861, 5
      %v4711 = vsel %vm1377, %v4709, %v4710
      %v4712 = vrot.slane %v4600, 5
      %v4713 = vrot.slane %v4712, 4
      %v4714 = vrot.slane %v3863, 5
      %v4715 = vsel %vm1377, %v4713, %v4714
      %v4716 = vrot.slane %v4714, 4
      %v4717 = vrot.slane %v3864, 5
      %v4718 = vsel %vm1377, %v4716, %v4717
      %v4719 = vrot.slane %v4601, 5
      %v4720 = vrot.slane %v4719, 4
      %v4721 = vrot.slane %v3866, 5
      %v4722 = vsel %vm1377, %v4720, %v4721
      %v4723 = vrot.slane %v4721, 4
      %v4724 = vrot.slane %v3867, 5
      %v4725 = vsel %vm1377, %v4723, %v4724
      %v4726 = vrot.slane %v4602, 5
      %v4727 = vrot.slane %v4726, 4
      %v4728 = vrot.slane %v3869, 5
      %v4729 = vsel %vm1377, %v4727, %v4728
      %v4730 = vrot.slane %v4728, 4
      %v4731 = vrot.slane %v3870, 5
      %v4732 = vsel %vm1377, %v4730, %v4731
      %v4733 = vrot.slane %v4603, 5
      %v4734 = vrot.slane %v4733, 4
      %v4735 = vrot.slane %v3872, 5
      %v4736 = vsel %vm1377, %v4734, %v4735
      %v4737 = vrot.slane %v4735, 4
      %v4738 = vrot.slane %v3873, 5
      %v4739 = vsel %vm1377, %v4737, %v4738
      %v4740 = vrot.slane %v4604, 5
      %v4741 = vrot.slane %v4740, 4
      %v4742 = vrot.slane %v3875, 5
      %v4743 = vsel %vm1377, %v4741, %v4742
      %v4744 = vrot.slane %v4742, 4
      %v4745 = vrot.slane %v3876, 5
      %v4746 = vsel %vm1377, %v4744, %v4745
      %v4747 = vrot.slane %v4605, 5
      %v4748 = vrot.slane %v4747, 4
      %v4749 = vrot.slane %v3878, 5
      %v4750 = vsel %vm1377, %v4748, %v4749
      %v4751 = vrot.slane %v4749, 4
      %v4752 = vrot.slane %v3879, 5
      %v4753 = vsel %vm1377, %v4751, %v4752
      %v4754 = vrot.slane %v4606, 5
      %v4755 = vrot.slane %v4754, 4
      %v4756 = vrot.slane %v3881, 5
      %v4757 = vsel %vm1377, %v4755, %v4756
      %v4758 = vrot.slane %v4756, 4
      %v4759 = vrot.slane %v3882, 5
      %v4760 = vsel %vm1377, %v4758, %v4759
      %v4761 = vrot.slane %v4607, 5
      %v4762 = vrot.slane %v4761, 4
      %v4763 = vrot.slane %v3884, 5
      %v4764 = vsel %vm1377, %v4762, %v4763
      %v4765 = vrot.slane %v4763, 4
      %v4766 = vrot.slane %v3885, 5
      %v4767 = vsel %vm1377, %v4765, %v4766
      %s4768 = scalar_lea.vmem %s260, 512
      %v4769 = vld [vmem:[%s4768] sm:$0xf]
      %v4770 = vld [vmem:[%s4768 + $0x4] sm:$0xf]
      %v4771 = vld [vmem:[%s4768 + $0x8] sm:$0xf]
      %v4772 = vld [vmem:[%s4768 + $0xc] sm:$0xf]
      %v4773 = vld [vmem:[%s4768 + $0x10] sm:$0xf]
      %v4774 = vld [vmem:[%s4768 + $0x14] sm:$0xf]
      %v4775 = vld [vmem:[%s4768 + $0x18] sm:$0xf]
      %v4776 = vld [vmem:[%s4768 + $0x1c] sm:$0xf]
      %v4777 = vld [vmem:[%s4768 + $0x20] sm:$0xf]
      %v4778 = vld [vmem:[%s4768 + $0x24] sm:$0xf]
      %v4779 = vld [vmem:[%s4768 + $0x28] sm:$0xf]
      %v4780 = vld [vmem:[%s4768 + $0x2c] sm:$0xf]
      %v4781 = vld [vmem:[%s4768 + $0x30] sm:$0xf]
      %v4782 = vld [vmem:[%s4768 + $0x34] sm:$0xf]
      %v4783 = vld [vmem:[%s4768 + $0x38] sm:$0xf]
      %v4784 = vld [vmem:[%s4768 + $0x3c] sm:$0xf]
      %v4785 = vunpack.c.l.b16 %v4659
      %v4786 = vunpack.c.l.b16 %v4662
      %v4787 = vunpack.c.l.b16 %v4666
      %v4788 = vunpack.c.l.b16 %v4669
      %v4789 = vunpack.c.l.b16 %v4673
      %v4790 = vunpack.c.l.b16 %v4676
      %v4791 = vunpack.c.l.b16 %v4680
      %v4792 = vunpack.c.l.b16 %v4683
      %v4793 = vunpack.c.l.b16 %v4687
      %v4794 = vunpack.c.l.b16 %v4690
      %v4795 = vunpack.c.l.b16 %v4694
      %v4796 = vunpack.c.l.b16 %v4697
      %v4797 = vunpack.c.l.b16 %v4701
      %v4798 = vunpack.c.l.b16 %v4704
      %v4799 = vunpack.c.l.b16 %v4708
      %v4800 = vunpack.c.l.b16 %v4711
      %v4801 = vunpack.c.l.b16 %v4715
      %v4802 = vunpack.c.l.b16 %v4718
      %v4803 = vunpack.c.l.b16 %v4722
      %v4804 = vunpack.c.l.b16 %v4725
      %v4805 = vunpack.c.l.b16 %v4729
      %v4806 = vunpack.c.l.b16 %v4732
      %v4807 = vunpack.c.l.b16 %v4736
      %v4808 = vunpack.c.l.b16 %v4739
      %v4809 = vunpack.c.l.b16 %v4743
      %v4810 = vunpack.c.l.b16 %v4746
      %v4811 = vunpack.c.l.b16 %v4750
      %v4812 = vunpack.c.l.b16 %v4753
      %v4813 = vunpack.c.l.b16 %v4757
      %v4814 = vunpack.c.l.b16 %v4760
      %v4815 = vunpack.c.l.b16 %v4764
      %v4816 = vunpack.c.l.b16 %v4767
      %v4817 = vpack.c.b16 %v4786, %v4785
      %v4818 = vpack.c.b16 %v4788, %v4787
      %v4819 = vpack.c.b16 %v4790, %v4789
      %v4820 = vpack.c.b16 %v4792, %v4791
      %v4821 = vpack.c.b16 %v4794, %v4793
      %v4822 = vpack.c.b16 %v4796, %v4795
      %v4823 = vpack.c.b16 %v4798, %v4797
      %v4824 = vpack.c.b16 %v4800, %v4799
      %v4825 = vpack.c.b16 %v4802, %v4801
      %v4826 = vpack.c.b16 %v4804, %v4803
      %v4827 = vpack.c.b16 %v4806, %v4805
      %v4828 = vpack.c.b16 %v4808, %v4807
      %v4829 = vpack.c.b16 %v4810, %v4809
      %v4830 = vpack.c.b16 %v4812, %v4811
      %v4831 = vpack.c.b16 %v4814, %v4813
      %v4832 = vpack.c.b16 %v4816, %v4815
      %v4865 = vunpack.c.l.b16 %v4769
      %v4866 = vunpack.c.l.b16 %v4770
      %v4867 = vunpack.c.l.b16 %v4771
      %v4868 = vunpack.c.l.b16 %v4772
      %v4869 = vunpack.c.l.b16 %v4773
      %v4870 = vunpack.c.l.b16 %v4774
      %v4871 = vunpack.c.l.b16 %v4775
      %v4872 = vunpack.c.l.b16 %v4776
      %v4873 = vunpack.c.l.b16 %v4777
      %v4874 = vunpack.c.l.b16 %v4778
      %v4875 = vunpack.c.l.b16 %v4779
      %v4876 = vunpack.c.l.b16 %v4780
      %v4877 = vunpack.c.l.b16 %v4781
      %v4878 = vunpack.c.l.b16 %v4782
      %v4879 = vunpack.c.l.b16 %v4783
      %v4880 = vunpack.c.l.b16 %v4784
      %v4881 = vpack.c.b16 %v4866, %v4865
      %v4882 = vpack.c.b16 %v4868, %v4867
      %v4883 = vpack.c.b16 %v4870, %v4869
      %v4884 = vpack.c.b16 %v4872, %v4871
      %v4885 = vpack.c.b16 %v4874, %v4873
      %v4886 = vpack.c.b16 %v4876, %v4875
      %v4887 = vpack.c.b16 %v4878, %v4877
      %v4888 = vpack.c.b16 %v4880, %v4879
      %4897 = vmatprep.subr.bf16.mxu0 0
      %4898 = vmatpush1.bf16.msra.mxu0 %v4881
      %4899 = vmatprep.subr.bf16.mxu0 0
      %4900 = vmatpush1.bf16.msra.mxu0 %v4882
      %4901 = vmatprep.subr.bf16.mxu0 0
      %4902 = vmatpush1.bf16.msra.mxu0 %v4883
      %4903 = vmatprep.subr.bf16.mxu0 0
      %4904 = vmatpush1.bf16.msra.mxu0 %v4884
      %4905 = vmatprep.subr.bf16.mxu0 0
      %4906 = vmatpush1.bf16.msra.mxu0 %v4885
      %4907 = vmatprep.subr.bf16.mxu0 0
      %4908 = vmatpush1.bf16.msra.mxu0 %v4886
      %4909 = vmatprep.subr.bf16.mxu0 0
      %4910 = vmatpush1.bf16.msra.mxu0 %v4887
      %4911 = vmatprep.subr.bf16.mxu0 0
      %4912 = vmatpush1.bf16.msra.mxu0 %v4888
      %4913 = vmatprep.subr.bf16.mxu0 0
      %4914 = vmatpush1.bf16.msra.mxu0 0
      %4915 = vmatprep.subr.bf16.mxu0 0
      %4916 = vmatpush1.bf16.msra.mxu0 0
      %4917 = vmatprep.subr.bf16.mxu0 0
      %4918 = vmatpush1.bf16.msra.mxu0 0
      %4919 = vmatprep.subr.bf16.mxu0 0
      %4920 = vmatpush1.bf16.msra.mxu0 0
      %4921 = vmatprep.subr.bf16.mxu0 0
      %4922 = vmatpush1.bf16.msra.mxu0 0
      %4923 = vmatprep.subr.bf16.mxu0 0
      %4924 = vmatpush1.bf16.msra.mxu0 0
      %4925 = vmatprep.subr.bf16.mxu0 0
      %4926 = vmatpush1.bf16.msra.mxu0 0
      %4927 = vmatprep.subr.bf16.mxu0 0
      %4928 = vmatpush1.bf16.msra.mxu0 0
      %4929 = vmatprep.mubr.bf16.mxu0 0
      %4930 = vmatmul.mubr.bf16.gmra.mrb[0].mxu0 %v4817
      %v4931 = vpop.f32.mrb[0].mxu0
      %v4932 = vadd.f32 0.0, %v4931
      %v4933 = vpop.f32.mrb[0].mxu0
      %v4934 = vpop.f32.mrb[0].mxu0
      %v4935 = vadd.f32 0.0, %v4934
      %v4936 = vpop.f32.mrb[0].mxu0
      %4937 = vmatprep.mubr.bf16.mxu0 0
      %4938 = vmatmul.mubr.bf16.gmra.mrb[0].mxu0 %v4818
      %v4939 = vpop.f32.mrb[0].mxu0
      %v4940 = vadd.f32 0.0, %v4939
      %v4941 = vpop.f32.mrb[0].mxu0
      %v4942 = vpop.f32.mrb[0].mxu0
      %v4943 = vadd.f32 0.0, %v4942
      %v4944 = vpop.f32.mrb[0].mxu0
      %4945 = vmatprep.mubr.bf16.mxu0 0
      %4946 = vmatmul.mubr.bf16.gmra.mrb[0].mxu0 %v4819
      %v4947 = vpop.f32.mrb[0].mxu0
      %v4948 = vadd.f32 0.0, %v4947
      %v4949 = vpop.f32.mrb[0].mxu0
      %v4950 = vpop.f32.mrb[0].mxu0
      %v4951 = vadd.f32 0.0, %v4950
      %v4952 = vpop.f32.mrb[0].mxu0
      %4953 = vmatprep.mubr.bf16.mxu0 0
      %4954 = vmatmul.mubr.bf16.gmra.mrb[0].mxu0 %v4820
      %v4955 = vpop.f32.mrb[0].mxu0
      %v4956 = vadd.f32 0.0, %v4955
      %v4957 = vpop.f32.mrb[0].mxu0
      %v4958 = vpop.f32.mrb[0].mxu0
      %v4959 = vadd.f32 0.0, %v4958
      %v4960 = vpop.f32.mrb[0].mxu0
      %4961 = vmatprep.mubr.bf16.mxu0 0
      %4962 = vmatmul.mubr.bf16.gmra.mrb[0].mxu0 %v4821
      %v4963 = vpop.f32.mrb[0].mxu0
      %v4964 = vadd.f32 0.0, %v4963
      %v4965 = vpop.f32.mrb[0].mxu0
      %v4966 = vpop.f32.mrb[0].mxu0
      %v4967 = vadd.f32 0.0, %v4966
      %v4968 = vpop.f32.mrb[0].mxu0
      %4969 = vmatprep.mubr.bf16.mxu0 0
      %4970 = vmatmul.mubr.bf16.gmra.mrb[0].mxu0 %v4822
      %v4971 = vpop.f32.mrb[0].mxu0
      %v4972 = vadd.f32 0.0, %v4971
      %v4973 = vpop.f32.mrb[0].mxu0
      %v4974 = vpop.f32.mrb[0].mxu0
      %v4975 = vadd.f32 0.0, %v4974
      %v4976 = vpop.f32.mrb[0].mxu0
      %4977 = vmatprep.mubr.bf16.mxu0 0
      %4978 = vmatmul.mubr.bf16.gmra.mrb[0].mxu0 %v4823
      %v4979 = vpop.f32.mrb[0].mxu0
      %v4980 = vadd.f32 0.0, %v4979
      %v4981 = vpop.f32.mrb[0].mxu0
      %v4982 = vpop.f32.mrb[0].mxu0
      %v4983 = vadd.f32 0.0, %v4982
      %v4984 = vpop.f32.mrb[0].mxu0
      %4985 = vmatprep.mubr.bf16.mxu0 0
      %4986 = vmatmul.mubr.bf16.gmra.mrb[0].mxu0 %v4824
      %v4987 = vpop.f32.mrb[0].mxu0
      %v4988 = vadd.f32 0.0, %v4987
      %v4989 = vpop.f32.mrb[0].mxu0
      %v4990 = vpop.f32.mrb[0].mxu0
      %v4991 = vadd.f32 0.0, %v4990
      %v4992 = vpop.f32.mrb[0].mxu0
      %4993 = vmatprep.mubr.bf16.mxu0 0
      %4994 = vmatmul.mubr.bf16.gmra.mrb[0].mxu0 %v4825
      %v4995 = vpop.f32.mrb[0].mxu0
      %v4996 = vadd.f32 0.0, %v4995
      %v4997 = vpop.f32.mrb[0].mxu0
      %v4998 = vpop.f32.mrb[0].mxu0
      %v4999 = vadd.f32 0.0, %v4998
      %v5000 = vpop.f32.mrb[0].mxu0
      %5001 = vmatprep.mubr.bf16.mxu0 0
      %5002 = vmatmul.mubr.bf16.gmra.mrb[0].mxu0 %v4826
      %v5003 = vpop.f32.mrb[0].mxu0
      %v5004 = vadd.f32 0.0, %v5003
      %v5005 = vpop.f32.mrb[0].mxu0
      %v5006 = vpop.f32.mrb[0].mxu0
      %v5007 = vadd.f32 0.0, %v5006
      %v5008 = vpop.f32.mrb[0].mxu0
      %5009 = vmatprep.mubr.bf16.mxu0 0
      %5010 = vmatmul.mubr.bf16.gmra.mrb[0].mxu0 %v4827
      %v5011 = vpop.f32.mrb[0].mxu0
      %v5012 = vadd.f32 0.0, %v5011
      %v5013 = vpop.f32.mrb[0].mxu0
      %v5014 = vpop.f32.mrb[0].mxu0
      %v5015 = vadd.f32 0.0, %v5014
      %v5016 = vpop.f32.mrb[0].mxu0
      %5017 = vmatprep.mubr.bf16.mxu0 0
      %5018 = vmatmul.mubr.bf16.gmra.mrb[0].mxu0 %v4828
      %v5019 = vpop.f32.mrb[0].mxu0
      %v5020 = vadd.f32 0.0, %v5019
      %v5021 = vpop.f32.mrb[0].mxu0
      %v5022 = vpop.f32.mrb[0].mxu0
      %v5023 = vadd.f32 0.0, %v5022
      %v5024 = vpop.f32.mrb[0].mxu0
      %5025 = vmatprep.mubr.bf16.mxu0 0
      %5026 = vmatmul.mubr.bf16.gmra.mrb[0].mxu0 %v4829
      %v5027 = vpop.f32.mrb[0].mxu0
      %v5028 = vadd.f32 0.0, %v5027
      %v5029 = vpop.f32.mrb[0].mxu0
      %v5030 = vpop.f32.mrb[0].mxu0
      %v5031 = vadd.f32 0.0, %v5030
      %v5032 = vpop.f32.mrb[0].mxu0
      %5033 = vmatprep.mubr.bf16.mxu0 0
      %5034 = vmatmul.mubr.bf16.gmra.mrb[0].mxu0 %v4830
      %v5035 = vpop.f32.mrb[0].mxu0
      %v5036 = vadd.f32 0.0, %v5035
      %v5037 = vpop.f32.mrb[0].mxu0
      %v5038 = vpop.f32.mrb[0].mxu0
      %v5039 = vadd.f32 0.0, %v5038
      %v5040 = vpop.f32.mrb[0].mxu0
      %5041 = vmatprep.mubr.bf16.mxu0 0
      %5042 = vmatmul.mubr.bf16.gmra.mrb[0].mxu0 %v4831
      %v5043 = vpop.f32.mrb[0].mxu0
      %v5044 = vadd.f32 0.0, %v5043
      %v5045 = vpop.f32.mrb[0].mxu0
      %v5046 = vpop.f32.mrb[0].mxu0
      %v5047 = vadd.f32 0.0, %v5046
      %v5048 = vpop.f32.mrb[0].mxu0
      %5049 = vmatprep.mubr.bf16.mxu0 0
      %5050 = vmatmul.mubr.bf16.gmra.mrb[0].mxu0 %v4832
      %v5051 = vpop.f32.mrb[0].mxu0
      %v5052 = vadd.f32 0.0, %v5051
      %v5053 = vpop.f32.mrb[0].mxu0
      %v5054 = vpop.f32.mrb[0].mxu0
      %v5055 = vadd.f32 0.0, %v5054
      %v5056 = vpop.f32.mrb[0].mxu0
      %5057 = vdwg.mxu0
      %v5058 = vadd.f32 %v4560, %v4932
      %v5059 = vadd.f32 %v4561, %v4935
      %v5060 = vadd.f32 %v4562, %v4940
      %v5061 = vadd.f32 %v4563, %v4943
      %v5062 = vadd.f32 %v4564, %v4948
      %v5063 = vadd.f32 %v4565, %v4951
      %v5064 = vadd.f32 %v4566, %v4956
      %v5065 = vadd.f32 %v4567, %v4959
      %v5066 = vadd.f32 %v4568, %v4964
      %v5067 = vadd.f32 %v4569, %v4967
      %v5068 = vadd.f32 %v4570, %v4972
      %v5069 = vadd.f32 %v4571, %v4975
      %v5070 = vadd.f32 %v4572, %v4980
      %v5071 = vadd.f32 %v4573, %v4983
      %v5072 = vadd.f32 %v4574, %v4988
      %v5073 = vadd.f32 %v4575, %v4991
      %v5074 = vadd.f32 %v4576, %v4996
      %v5075 = vadd.f32 %v4577, %v4999
      %v5076 = vadd.f32 %v4578, %v5004
      %v5077 = vadd.f32 %v4579, %v5007
      %v5078 = vadd.f32 %v4580, %v5012
      %v5079 = vadd.f32 %v4581, %v5015
      %v5080 = vadd.f32 %v4582, %v5020
      %v5081 = vadd.f32 %v4583, %v5023
      %v5082 = vadd.f32 %v4584, %v5028
      %v5083 = vadd.f32 %v4585, %v5031
      %v5084 = vadd.f32 %v4586, %v5036
      %v5085 = vadd.f32 %v4587, %v5039
      %v5086 = vadd.f32 %v4588, %v5044
      %v5087 = vadd.f32 %v4589, %v5047
      %v5088 = vadd.f32 %v4590, %v5052
      %v5089 = vadd.f32 %v4591, %v5055
      %s5090 = scalar_lea.vmem %s271, 12
      %v5091 = vld [vmem:[%s5090] sm:$0xf]
      %v5092 = vld [vmem:[%s5090 + $0x4] sm:$0xf]
      %v5093 = vld [vmem:[%s5090 + $0x8] sm:$0x1]
      %v5094 = vld [vmem:[%s5090 + $0xc] sm:$0xf]
      %v5095 = vld [vmem:[%s5090 + $0x10] sm:$0xf]
      %v5096 = vld [vmem:[%s5090 + $0x14] sm:$0x1]
      %v5097 = vld [vmem:[%s5090 + $0x18] sm:$0xf]
      %v5098 = vld [vmem:[%s5090 + $0x1c] sm:$0xf]
      %v5099 = vld [vmem:[%s5090 + $0x20] sm:$0x1]
      %v5100 = vld [vmem:[%s5090 + $0x24] sm:$0xf]
      %v5101 = vld [vmem:[%s5090 + $0x28] sm:$0xf]
      %v5102 = vld [vmem:[%s5090 + $0x2c] sm:$0x1]
      %v5103 = vld [vmem:[%s5090 + $0x30] sm:$0xf]
      %v5104 = vld [vmem:[%s5090 + $0x34] sm:$0xf]
      %v5105 = vld [vmem:[%s5090 + $0x38] sm:$0x1]
      %v5106 = vld [vmem:[%s5090 + $0x3c] sm:$0xf]
      %v5107 = vld [vmem:[%s5090 + $0x40] sm:$0xf]
      %v5108 = vld [vmem:[%s5090 + $0x44] sm:$0x1]
      %v5109 = vld [vmem:[%s5090 + $0x48] sm:$0xf]
      %v5110 = vld [vmem:[%s5090 + $0x4c] sm:$0xf]
      %v5111 = vld [vmem:[%s5090 + $0x50] sm:$0x1]
      %v5112 = vld [vmem:[%s5090 + $0x54] sm:$0xf]
      %v5113 = vld [vmem:[%s5090 + $0x58] sm:$0xf]
      %v5114 = vld [vmem:[%s5090 + $0x5c] sm:$0x1]
      %v5115 = vld [vmem:[%s5090 + $0x60] sm:$0xf]
      %v5116 = vld [vmem:[%s5090 + $0x64] sm:$0xf]
      %v5117 = vld [vmem:[%s5090 + $0x68] sm:$0x1]
      %v5118 = vld [vmem:[%s5090 + $0x6c] sm:$0xf]
      %v5119 = vld [vmem:[%s5090 + $0x70] sm:$0xf]
      %v5120 = vld [vmem:[%s5090 + $0x74] sm:$0x1]
      %v5121 = vld [vmem:[%s5090 + $0x78] sm:$0xf]
      %v5122 = vld [vmem:[%s5090 + $0x7c] sm:$0xf]
      %v5123 = vld [vmem:[%s5090 + $0x80] sm:$0x1]
      %v5124 = vld [vmem:[%s5090 + $0x84] sm:$0xf]
      %v5125 = vld [vmem:[%s5090 + $0x88] sm:$0xf]
      %v5126 = vld [vmem:[%s5090 + $0x8c] sm:$0x1]
      %v5127 = vld [vmem:[%s5090 + $0x90] sm:$0xf]
      %v5128 = vld [vmem:[%s5090 + $0x94] sm:$0xf]
      %v5129 = vld [vmem:[%s5090 + $0x98] sm:$0x1]
      %v5130 = vld [vmem:[%s5090 + $0x9c] sm:$0xf]
      %v5131 = vld [vmem:[%s5090 + $0xa0] sm:$0xf]
      %v5132 = vld [vmem:[%s5090 + $0xa4] sm:$0x1]
      %v5133 = vld [vmem:[%s5090 + $0xa8] sm:$0xf]
      %v5134 = vld [vmem:[%s5090 + $0xac] sm:$0xf]
      %v5135 = vld [vmem:[%s5090 + $0xb0] sm:$0x1]
      %v5136 = vld [vmem:[%s5090 + $0xb4] sm:$0xf]
      %v5137 = vld [vmem:[%s5090 + $0xb8] sm:$0xf]
      %v5138 = vld [vmem:[%s5090 + $0xbc] sm:$0x1]
      %v5140 = vshrl.u32 %v5091, 16
      %v5142 = vrot.slane %v5140, 4
      %v5143 = vshll.u32 %v5091, 16
      %v5145 = vrot.slane %v5143, 5
      %v5146 = vor.u32 %v5142, %v5145
      %v5147 = vrot.slane %v5146, 4
      %v5149 = vshll.u32 %v5092, 16
      %v5151 = vrot.slane %v5149, 5
      %v5152 = vsel %vm347, %v5147, %v5151
      %v5153 = vshrl.u32 %v5092, 16
      %v5155 = vrot.slane %v5153, 4
      %v5156 = vor.u32 %v5155, %v5151
      %v5157 = vrot.slane %v5156, 4
      %v5159 = vshll.u32 %v5093, 16
      %v5161 = vrot.slane %v5159, 5
      %v5162 = vsel %vm347, %v5157, %v5161
      %v5164 = vshrl.u32 %v5094, 16
      %v5166 = vrot.slane %v5164, 4
      %v5167 = vshll.u32 %v5094, 16
      %v5169 = vrot.slane %v5167, 5
      %v5170 = vor.u32 %v5166, %v5169
      %v5171 = vrot.slane %v5170, 4
      %v5173 = vshll.u32 %v5095, 16
      %v5175 = vrot.slane %v5173, 5
      %v5176 = vsel %vm347, %v5171, %v5175
      %v5177 = vshrl.u32 %v5095, 16
      %v5179 = vrot.slane %v5177, 4
      %v5180 = vor.u32 %v5179, %v5175
      %v5181 = vrot.slane %v5180, 4
      %v5183 = vshll.u32 %v5096, 16
      %v5185 = vrot.slane %v5183, 5
      %v5186 = vsel %vm347, %v5181, %v5185
      %v5188 = vshrl.u32 %v5097, 16
      %v5190 = vrot.slane %v5188, 4
      %v5191 = vshll.u32 %v5097, 16
      %v5193 = vrot.slane %v5191, 5
      %v5194 = vor.u32 %v5190, %v5193
      %v5195 = vrot.slane %v5194, 4
      %v5197 = vshll.u32 %v5098, 16
      %v5199 = vrot.slane %v5197, 5
      %v5200 = vsel %vm347, %v5195, %v5199
      %v5201 = vshrl.u32 %v5098, 16
      %v5203 = vrot.slane %v5201, 4
      %v5204 = vor.u32 %v5203, %v5199
      %v5205 = vrot.slane %v5204, 4
      %v5207 = vshll.u32 %v5099, 16
      %v5209 = vrot.slane %v5207, 5
      %v5210 = vsel %vm347, %v5205, %v5209
      %v5212 = vshrl.u32 %v5100, 16
      %v5214 = vrot.slane %v5212, 4
      %v5215 = vshll.u32 %v5100, 16
      %v5217 = vrot.slane %v5215, 5
      %v5218 = vor.u32 %v5214, %v5217
      %v5219 = vrot.slane %v5218, 4
      %v5221 = vshll.u32 %v5101, 16
      %v5223 = vrot.slane %v5221, 5
      %v5224 = vsel %vm347, %v5219, %v5223
      %v5225 = vshrl.u32 %v5101, 16
      %v5227 = vrot.slane %v5225, 4
      %v5228 = vor.u32 %v5227, %v5223
      %v5229 = vrot.slane %v5228, 4
      %v5231 = vshll.u32 %v5102, 16
      %v5233 = vrot.slane %v5231, 5
      %v5234 = vsel %vm347, %v5229, %v5233
      %v5236 = vshrl.u32 %v5103, 16
      %v5238 = vrot.slane %v5236, 4
      %v5239 = vshll.u32 %v5103, 16
      %v5241 = vrot.slane %v5239, 5
      %v5242 = vor.u32 %v5238, %v5241
      %v5243 = vrot.slane %v5242, 4
      %v5245 = vshll.u32 %v5104, 16
      %v5247 = vrot.slane %v5245, 5
      %v5248 = vsel %vm347, %v5243, %v5247
      %v5249 = vshrl.u32 %v5104, 16
      %v5251 = vrot.slane %v5249, 4
      %v5252 = vor.u32 %v5251, %v5247
      %v5253 = vrot.slane %v5252, 4
      %v5255 = vshll.u32 %v5105, 16
      %v5257 = vrot.slane %v5255, 5
      %v5258 = vsel %vm347, %v5253, %v5257
      %v5260 = vshrl.u32 %v5106, 16
      %v5262 = vrot.slane %v5260, 4
      %v5263 = vshll.u32 %v5106, 16
      %v5265 = vrot.slane %v5263, 5
      %v5266 = vor.u32 %v5262, %v5265
      %v5267 = vrot.slane %v5266, 4
      %v5269 = vshll.u32 %v5107, 16
      %v5271 = vrot.slane %v5269, 5
      %v5272 = vsel %vm347, %v5267, %v5271
      %v5273 = vshrl.u32 %v5107, 16
      %v5275 = vrot.slane %v5273, 4
      %v5276 = vor.u32 %v5275, %v5271
      %v5277 = vrot.slane %v5276, 4
      %v5279 = vshll.u32 %v5108, 16
      %v5281 = vrot.slane %v5279, 5
      %v5282 = vsel %vm347, %v5277, %v5281
      %v5284 = vshrl.u32 %v5109, 16
      %v5286 = vrot.slane %v5284, 4
      %v5287 = vshll.u32 %v5109, 16
      %v5289 = vrot.slane %v5287, 5
      %v5290 = vor.u32 %v5286, %v5289
      %v5291 = vrot.slane %v5290, 4
      %v5293 = vshll.u32 %v5110, 16
      %v5295 = vrot.slane %v5293, 5
      %v5296 = vsel %vm347, %v5291, %v5295
      %v5297 = vshrl.u32 %v5110, 16
      %v5299 = vrot.slane %v5297, 4
      %v5300 = vor.u32 %v5299, %v5295
      %v5301 = vrot.slane %v5300, 4
      %v5303 = vshll.u32 %v5111, 16
      %v5305 = vrot.slane %v5303, 5
      %v5306 = vsel %vm347, %v5301, %v5305
      %v5308 = vshrl.u32 %v5112, 16
      %v5310 = vrot.slane %v5308, 4
      %v5311 = vshll.u32 %v5112, 16
      %v5313 = vrot.slane %v5311, 5
      %v5314 = vor.u32 %v5310, %v5313
      %v5315 = vrot.slane %v5314, 4
      %v5317 = vshll.u32 %v5113, 16
      %v5319 = vrot.slane %v5317, 5
      %v5320 = vsel %vm347, %v5315, %v5319
      %v5321 = vshrl.u32 %v5113, 16
      %v5323 = vrot.slane %v5321, 4
      %v5324 = vor.u32 %v5323, %v5319
      %v5325 = vrot.slane %v5324, 4
      %v5327 = vshll.u32 %v5114, 16
      %v5329 = vrot.slane %v5327, 5
      %v5330 = vsel %vm347, %v5325, %v5329
      %v5332 = vshrl.u32 %v5115, 16
      %v5334 = vrot.slane %v5332, 4
      %v5335 = vshll.u32 %v5115, 16
      %v5337 = vrot.slane %v5335, 5
      %v5338 = vor.u32 %v5334, %v5337
      %v5339 = vrot.slane %v5338, 4
      %v5341 = vshll.u32 %v5116, 16
      %v5343 = vrot.slane %v5341, 5
      %v5344 = vsel %vm347, %v5339, %v5343
      %v5345 = vshrl.u32 %v5116, 16
      %v5347 = vrot.slane %v5345, 4
      %v5348 = vor.u32 %v5347, %v5343
      %v5349 = vrot.slane %v5348, 4
      %v5351 = vshll.u32 %v5117, 16
      %v5353 = vrot.slane %v5351, 5
      %v5354 = vsel %vm347, %v5349, %v5353
      %v5356 = vshrl.u32 %v5118, 16
      %v5358 = vrot.slane %v5356, 4
      %v5359 = vshll.u32 %v5118, 16
      %v5361 = vrot.slane %v5359, 5
      %v5362 = vor.u32 %v5358, %v5361
      %v5363 = vrot.slane %v5362, 4
      %v5365 = vshll.u32 %v5119, 16
      %v5367 = vrot.slane %v5365, 5
      %v5368 = vsel %vm347, %v5363, %v5367
      %v5369 = vshrl.u32 %v5119, 16
      %v5371 = vrot.slane %v5369, 4
      %v5372 = vor.u32 %v5371, %v5367
      %v5373 = vrot.slane %v5372, 4
      %v5375 = vshll.u32 %v5120, 16
      %v5377 = vrot.slane %v5375, 5
      %v5378 = vsel %vm347, %v5373, %v5377
      %v5380 = vshrl.u32 %v5121, 16
      %v5382 = vrot.slane %v5380, 4
      %v5383 = vshll.u32 %v5121, 16
      %v5385 = vrot.slane %v5383, 5
      %v5386 = vor.u32 %v5382, %v5385
      %v5387 = vrot.slane %v5386, 4
      %v5389 = vshll.u32 %v5122, 16
      %v5391 = vrot.slane %v5389, 5
      %v5392 = vsel %vm347, %v5387, %v5391
      %v5393 = vshrl.u32 %v5122, 16
      %v5395 = vrot.slane %v5393, 4
      %v5396 = vor.u32 %v5395, %v5391
      %v5397 = vrot.slane %v5396, 4
      %v5399 = vshll.u32 %v5123, 16
      %v5401 = vrot.slane %v5399, 5
      %v5402 = vsel %vm347, %v5397, %v5401
      %v5404 = vshrl.u32 %v5124, 16
      %v5406 = vrot.slane %v5404, 4
      %v5407 = vshll.u32 %v5124, 16
      %v5409 = vrot.slane %v5407, 5
      %v5410 = vor.u32 %v5406, %v5409
      %v5411 = vrot.slane %v5410, 4
      %v5413 = vshll.u32 %v5125, 16
      %v5415 = vrot.slane %v5413, 5
      %v5416 = vsel %vm347, %v5411, %v5415
      %v5417 = vshrl.u32 %v5125, 16
      %v5419 = vrot.slane %v5417, 4
      %v5420 = vor.u32 %v5419, %v5415
      %v5421 = vrot.slane %v5420, 4
      %v5423 = vshll.u32 %v5126, 16
      %v5425 = vrot.slane %v5423, 5
      %v5426 = vsel %vm347, %v5421, %v5425
      %v5428 = vshrl.u32 %v5127, 16
      %v5430 = vrot.slane %v5428, 4
      %v5431 = vshll.u32 %v5127, 16
      %v5433 = vrot.slane %v5431, 5
      %v5434 = vor.u32 %v5430, %v5433
      %v5435 = vrot.slane %v5434, 4
      %v5437 = vshll.u32 %v5128, 16
      %v5439 = vrot.slane %v5437, 5
      %v5440 = vsel %vm347, %v5435, %v5439
      %v5441 = vshrl.u32 %v5128, 16
      %v5443 = vrot.slane %v5441, 4
      %v5444 = vor.u32 %v5443, %v5439
      %v5445 = vrot.slane %v5444, 4
      %v5447 = vshll.u32 %v5129, 16
      %v5449 = vrot.slane %v5447, 5
      %v5450 = vsel %vm347, %v5445, %v5449
      %v5452 = vshrl.u32 %v5130, 16
      %v5454 = vrot.slane %v5452, 4
      %v5455 = vshll.u32 %v5130, 16
      %v5457 = vrot.slane %v5455, 5
      %v5458 = vor.u32 %v5454, %v5457
      %v5459 = vrot.slane %v5458, 4
      %v5461 = vshll.u32 %v5131, 16
      %v5463 = vrot.slane %v5461, 5
      %v5464 = vsel %vm347, %v5459, %v5463
      %v5465 = vshrl.u32 %v5131, 16
      %v5467 = vrot.slane %v5465, 4
      %v5468 = vor.u32 %v5467, %v5463
      %v5469 = vrot.slane %v5468, 4
      %v5471 = vshll.u32 %v5132, 16
      %v5473 = vrot.slane %v5471, 5
      %v5474 = vsel %vm347, %v5469, %v5473
      %v5476 = vshrl.u32 %v5133, 16
      %v5478 = vrot.slane %v5476, 4
      %v5479 = vshll.u32 %v5133, 16
      %v5481 = vrot.slane %v5479, 5
      %v5482 = vor.u32 %v5478, %v5481
      %v5483 = vrot.slane %v5482, 4
      %v5485 = vshll.u32 %v5134, 16
      %v5487 = vrot.slane %v5485, 5
      %v5488 = vsel %vm347, %v5483, %v5487
      %v5489 = vshrl.u32 %v5134, 16
      %v5491 = vrot.slane %v5489, 4
      %v5492 = vor.u32 %v5491, %v5487
      %v5493 = vrot.slane %v5492, 4
      %v5495 = vshll.u32 %v5135, 16
      %v5497 = vrot.slane %v5495, 5
      %v5498 = vsel %vm347, %v5493, %v5497
      %v5500 = vshrl.u32 %v5136, 16
      %v5502 = vrot.slane %v5500, 4
      %v5503 = vshll.u32 %v5136, 16
      %v5505 = vrot.slane %v5503, 5
      %v5506 = vor.u32 %v5502, %v5505
      %v5507 = vrot.slane %v5506, 4
      %v5509 = vshll.u32 %v5137, 16
      %v5511 = vrot.slane %v5509, 5
      %v5512 = vsel %vm347, %v5507, %v5511
      %v5513 = vshrl.u32 %v5137, 16
      %v5515 = vrot.slane %v5513, 4
      %v5516 = vor.u32 %v5515, %v5511
      %v5517 = vrot.slane %v5516, 4
      %v5519 = vshll.u32 %v5138, 16
      %v5521 = vrot.slane %v5519, 5
      %v5522 = vsel %vm347, %v5517, %v5521
      %v5555 = vunpack.c.l.bf16 %v5152
      %v5556 = vunpack.c.l.bf16 %v5162
      %v5557 = vunpack.c.l.bf16 %v5176
      %v5558 = vunpack.c.l.bf16 %v5186
      %v5559 = vunpack.c.l.bf16 %v5200
      %v5560 = vunpack.c.l.bf16 %v5210
      %v5561 = vunpack.c.l.bf16 %v5224
      %v5562 = vunpack.c.l.bf16 %v5234
      %v5563 = vunpack.c.l.bf16 %v5248
      %v5564 = vunpack.c.l.bf16 %v5258
      %v5565 = vunpack.c.l.bf16 %v5272
      %v5566 = vunpack.c.l.bf16 %v5282
      %v5567 = vunpack.c.l.bf16 %v5296
      %v5568 = vunpack.c.l.bf16 %v5306
      %v5569 = vunpack.c.l.bf16 %v5320
      %v5570 = vunpack.c.l.bf16 %v5330
      %v5571 = vunpack.c.l.bf16 %v5344
      %v5572 = vunpack.c.l.bf16 %v5354
      %v5573 = vunpack.c.l.bf16 %v5368
      %v5574 = vunpack.c.l.bf16 %v5378
      %v5575 = vunpack.c.l.bf16 %v5392
      %v5576 = vunpack.c.l.bf16 %v5402
      %v5577 = vunpack.c.l.bf16 %v5416
      %v5578 = vunpack.c.l.bf16 %v5426
      %v5579 = vunpack.c.l.bf16 %v5440
      %v5580 = vunpack.c.l.bf16 %v5450
      %v5581 = vunpack.c.l.bf16 %v5464
      %v5582 = vunpack.c.l.bf16 %v5474
      %v5583 = vunpack.c.l.bf16 %v5488
      %v5584 = vunpack.c.l.bf16 %v5498
      %v5585 = vunpack.c.l.bf16 %v5512
      %v5586 = vunpack.c.l.bf16 %v5522
      %v5587 = vld [vmem:[%s263] sm:$0x1]
      %v5589 = vlaneseq
      %v5590 = vshrl.u32 %v5589, 7
      %v5591 = vsub.s32 0, %v5590
      %v5592 = vrot.slane %v5587, %v5591
      %v5594 = vadd.f32 %v5058, %v5592
      %v5595 = vadd.f32 %v5059, %v5592
      %v5596 = vadd.f32 %v5060, %v5592
      %v5597 = vadd.f32 %v5061, %v5592
      %v5598 = vadd.f32 %v5062, %v5592
      %v5599 = vadd.f32 %v5063, %v5592
      %v5600 = vadd.f32 %v5064, %v5592
      %v5601 = vadd.f32 %v5065, %v5592
      %v5602 = vadd.f32 %v5066, %v5592
      %v5603 = vadd.f32 %v5067, %v5592
      %v5604 = vadd.f32 %v5068, %v5592
      %v5605 = vadd.f32 %v5069, %v5592
      %v5606 = vadd.f32 %v5070, %v5592
      %v5607 = vadd.f32 %v5071, %v5592
      %v5608 = vadd.f32 %v5072, %v5592
      %v5609 = vadd.f32 %v5073, %v5592
      %v5610 = vadd.f32 %v5074, %v5592
      %v5611 = vadd.f32 %v5075, %v5592
      %v5612 = vadd.f32 %v5076, %v5592
      %v5613 = vadd.f32 %v5077, %v5592
      %v5614 = vadd.f32 %v5078, %v5592
      %v5615 = vadd.f32 %v5079, %v5592
      %v5616 = vadd.f32 %v5080, %v5592
      %v5617 = vadd.f32 %v5081, %v5592
      %v5618 = vadd.f32 %v5082, %v5592
      %v5619 = vadd.f32 %v5083, %v5592
      %v5620 = vadd.f32 %v5084, %v5592
      %v5621 = vadd.f32 %v5085, %v5592
      %v5622 = vadd.f32 %v5086, %v5592
      %v5623 = vadd.f32 %v5087, %v5592
      %v5624 = vadd.f32 %v5088, %v5592
      %v5625 = vadd.f32 %v5089, %v5592
      %v5626 = vadd.f32 %v5594, %v5555
      %v5627 = vadd.f32 %v5595, %v5556
      %v5628 = vadd.f32 %v5596, %v5557
      %v5629 = vadd.f32 %v5597, %v5558
      %v5630 = vadd.f32 %v5598, %v5559
      %v5631 = vadd.f32 %v5599, %v5560
      %v5632 = vadd.f32 %v5600, %v5561
      %v5633 = vadd.f32 %v5601, %v5562
      %v5634 = vadd.f32 %v5602, %v5563
      %v5635 = vadd.f32 %v5603, %v5564
      %v5636 = vadd.f32 %v5604, %v5565
      %v5637 = vadd.f32 %v5605, %v5566
      %v5638 = vadd.f32 %v5606, %v5567
      %v5639 = vadd.f32 %v5607, %v5568
      %v5640 = vadd.f32 %v5608, %v5569
      %v5641 = vadd.f32 %v5609, %v5570
      %v5642 = vadd.f32 %v5610, %v5571
      %v5643 = vadd.f32 %v5611, %v5572
      %v5644 = vadd.f32 %v5612, %v5573
      %v5645 = vadd.f32 %v5613, %v5574
      %v5646 = vadd.f32 %v5614, %v5575
      %v5647 = vadd.f32 %v5615, %v5576
      %v5648 = vadd.f32 %v5616, %v5577
      %v5649 = vadd.f32 %v5617, %v5578
      %v5650 = vadd.f32 %v5618, %v5579
      %v5651 = vadd.f32 %v5619, %v5580
      %v5652 = vadd.f32 %v5620, %v5581
      %v5653 = vadd.f32 %v5621, %v5582
      %v5654 = vadd.f32 %v5622, %v5583
      %v5655 = vadd.f32 %v5623, %v5584
      %v5656 = vadd.f32 %v5624, %v5585
      %v5657 = vadd.f32 %v5625, %v5586
      %v5658 = vmax.f32 %v5626, 0.0
      %v5659 = vmax.f32 %v5627, 0.0
      %v5660 = vmax.f32 %v5628, 0.0
      %v5661 = vmax.f32 %v5629, 0.0
      %v5662 = vmax.f32 %v5630, 0.0
      %v5663 = vmax.f32 %v5631, 0.0
      %v5664 = vmax.f32 %v5632, 0.0
      %v5665 = vmax.f32 %v5633, 0.0
      %v5666 = vmax.f32 %v5634, 0.0
      %v5667 = vmax.f32 %v5635, 0.0
      %v5668 = vmax.f32 %v5636, 0.0
      %v5669 = vmax.f32 %v5637, 0.0
      %v5670 = vmax.f32 %v5638, 0.0
      %v5671 = vmax.f32 %v5639, 0.0
      %v5672 = vmax.f32 %v5640, 0.0
      %v5673 = vmax.f32 %v5641, 0.0
      %v5674 = vmax.f32 %v5642, 0.0
      %v5675 = vmax.f32 %v5643, 0.0
      %v5676 = vmax.f32 %v5644, 0.0
      %v5677 = vmax.f32 %v5645, 0.0
      %v5678 = vmax.f32 %v5646, 0.0
      %v5679 = vmax.f32 %v5647, 0.0
      %v5680 = vmax.f32 %v5648, 0.0
      %v5681 = vmax.f32 %v5649, 0.0
      %v5682 = vmax.f32 %v5650, 0.0
      %v5683 = vmax.f32 %v5651, 0.0
      %v5684 = vmax.f32 %v5652, 0.0
      %v5685 = vmax.f32 %v5653, 0.0
      %v5686 = vmax.f32 %v5654, 0.0
      %v5687 = vmax.f32 %v5655, 0.0
      %v5688 = vmax.f32 %v5656, 0.0
      %v5689 = vmax.f32 %v5657, 0.0
      %v5690 = vpack.c.bf16 %v5659, %v5658
      %v5691 = vpack.c.bf16 %v5661, %v5660
      %v5692 = vpack.c.bf16 %v5663, %v5662
      %v5693 = vpack.c.bf16 %v5665, %v5664
      %v5694 = vpack.c.bf16 %v5667, %v5666
      %v5695 = vpack.c.bf16 %v5669, %v5668
      %v5696 = vpack.c.bf16 %v5671, %v5670
      %v5697 = vpack.c.bf16 %v5673, %v5672
      %v5698 = vpack.c.bf16 %v5675, %v5674
      %v5699 = vpack.c.bf16 %v5677, %v5676
      %v5700 = vpack.c.bf16 %v5679, %v5678
      %v5701 = vpack.c.bf16 %v5681, %v5680
      %v5702 = vpack.c.bf16 %v5683, %v5682
      %v5703 = vpack.c.bf16 %v5685, %v5684
      %v5704 = vpack.c.bf16 %v5687, %v5686
      %v5705 = vpack.c.bf16 %v5689, %v5688
      %v5722 = vunpack.c.l.b16 %v5690
      %v5723 = vunpack.c.h.b16 %v5690
      %v5724 = vunpack.c.l.b16 %v5691
      %v5725 = vunpack.c.h.b16 %v5691
      %v5726 = vunpack.c.l.b16 %v5692
      %v5727 = vunpack.c.h.b16 %v5692
      %v5728 = vunpack.c.l.b16 %v5693
      %v5729 = vunpack.c.h.b16 %v5693
      %v5730 = vunpack.c.l.b16 %v5694
      %v5731 = vunpack.c.h.b16 %v5694
      %v5732 = vunpack.c.l.b16 %v5695
      %v5733 = vunpack.c.h.b16 %v5695
      %v5734 = vunpack.c.l.b16 %v5696
      %v5735 = vunpack.c.h.b16 %v5696
      %v5736 = vunpack.c.l.b16 %v5697
      %v5737 = vunpack.c.h.b16 %v5697
      %v5738 = vunpack.c.l.b16 %v5698
      %v5739 = vunpack.c.h.b16 %v5698
      %v5740 = vunpack.c.l.b16 %v5699
      %v5741 = vunpack.c.h.b16 %v5699
      %v5742 = vunpack.c.l.b16 %v5700
      %v5743 = vunpack.c.h.b16 %v5700
      %v5744 = vunpack.c.l.b16 %v5701
      %v5745 = vunpack.c.h.b16 %v5701
      %v5746 = vunpack.c.l.b16 %v5702
      %v5747 = vunpack.c.h.b16 %v5702
      %v5748 = vunpack.c.l.b16 %v5703
      %v5749 = vunpack.c.h.b16 %v5703
      %v5750 = vunpack.c.l.b16 %v5704
      %v5751 = vunpack.c.h.b16 %v5704
      %v5752 = vunpack.c.l.b16 %v5705
      %v5753 = vunpack.c.h.b16 %v5705
      %v5754 = vpack.c.b16 %v5722, %v5722
      %v5755 = vpack.c.b16 %v5723, %v5723
      %v5756 = vpack.c.b16 %v5724, %v5724
      %v5757 = vpack.c.b16 %v5725, %v5725
      %v5758 = vpack.c.b16 %v5726, %v5726
      %v5759 = vpack.c.b16 %v5727, %v5727
      %v5760 = vpack.c.b16 %v5728, %v5728
      %v5761 = vpack.c.b16 %v5729, %v5729
      %v5762 = vpack.c.b16 %v5730, %v5730
      %v5763 = vpack.c.b16 %v5731, %v5731
      %v5764 = vpack.c.b16 %v5732, %v5732
      %v5765 = vpack.c.b16 %v5733, %v5733
      %v5766 = vpack.c.b16 %v5734, %v5734
      %v5767 = vpack.c.b16 %v5735, %v5735
      %v5768 = vpack.c.b16 %v5736, %v5736
      %v5769 = vpack.c.b16 %v5737, %v5737
      %v5770 = vpack.c.b16 %v5738, %v5738
      %v5771 = vpack.c.b16 %v5739, %v5739
      %v5772 = vpack.c.b16 %v5740, %v5740
      %v5773 = vpack.c.b16 %v5741, %v5741
      %v5774 = vpack.c.b16 %v5742, %v5742
      %v5775 = vpack.c.b16 %v5743, %v5743
      %v5776 = vpack.c.b16 %v5744, %v5744
      %v5777 = vpack.c.b16 %v5745, %v5745
      %v5778 = vpack.c.b16 %v5746, %v5746
      %v5779 = vpack.c.b16 %v5747, %v5747
      %v5780 = vpack.c.b16 %v5748, %v5748
      %v5781 = vpack.c.b16 %v5749, %v5749
      %v5782 = vpack.c.b16 %v5750, %v5750
      %v5783 = vpack.c.b16 %v5751, %v5751
      %v5784 = vpack.c.b16 %v5752, %v5752
      %v5785 = vpack.c.b16 %v5753, %v5753
      %5818 = vst [vmem:[%s279] sm:$0xf] %v5754
      %5819 = vst [vmem:[%s279 + $0x4] sm:$0xf] %v5755
      %5820 = vst [vmem:[%s279 + $0x8] sm:$0xf] %v5756
      %5821 = vst [vmem:[%s279 + $0xc] sm:$0xf] %v5757
      %5822 = vst [vmem:[%s279 + $0x10] sm:$0xf] %v5758
      %5823 = vst [vmem:[%s279 + $0x14] sm:$0xf] %v5759
      %5824 = vst [vmem:[%s279 + $0x18] sm:$0xf] %v5760
      %5825 = vst [vmem:[%s279 + $0x1c] sm:$0xf] %v5761
      %5826 = vst [vmem:[%s279 + $0x20] sm:$0xf] %v5762
      %5827 = vst [vmem:[%s279 + $0x24] sm:$0xf] %v5763
      %5828 = vst [vmem:[%s279 + $0x28] sm:$0xf] %v5764
      %5829 = vst [vmem:[%s279 + $0x2c] sm:$0xf] %v5765
      %5830 = vst [vmem:[%s279 + $0x30] sm:$0xf] %v5766
      %5831 = vst [vmem:[%s279 + $0x34] sm:$0xf] %v5767
      %5832 = vst [vmem:[%s279 + $0x38] sm:$0xf] %v5768
      %5833 = vst [vmem:[%s279 + $0x3c] sm:$0xf] %v5769
      %5834 = vst [vmem:[%s279 + $0x40] sm:$0xf] %v5770
      %5835 = vst [vmem:[%s279 + $0x44] sm:$0xf] %v5771
      %5836 = vst [vmem:[%s279 + $0x48] sm:$0xf] %v5772
      %5837 = vst [vmem:[%s279 + $0x4c] sm:$0xf] %v5773
      %5838 = vst [vmem:[%s279 + $0x50] sm:$0xf] %v5774
      %5839 = vst [vmem:[%s279 + $0x54] sm:$0xf] %v5775
      %5840 = vst [vmem:[%s279 + $0x58] sm:$0xf] %v5776
      %5841 = vst [vmem:[%s279 + $0x5c] sm:$0xf] %v5777
      %5842 = vst [vmem:[%s279 + $0x60] sm:$0xf] %v5778
      %5843 = vst [vmem:[%s279 + $0x64] sm:$0xf] %v5779
      %5844 = vst [vmem:[%s279 + $0x68] sm:$0xf] %v5780
      %5845 = vst [vmem:[%s279 + $0x6c] sm:$0xf] %v5781
      %5846 = vst [vmem:[%s279 + $0x70] sm:$0xf] %v5782
      %5847 = vst [vmem:[%s279 + $0x74] sm:$0xf] %v5783
      %5848 = vst [vmem:[%s279 + $0x78] sm:$0xf] %v5784
      %5849 = vst [vmem:[%s279 + $0x7c] sm:$0xf] %v5785
      %p5850 = scmp.lt.s32.totalorder %s19, 1
      %s5851 = scalar_select %p5850, %s19, 1
      %p5852 = scmp.lt.s32.totalorder %s20, 0
      %s5853 = scalar_select %p5852, %s20, 0
      %s5854 = smul.addr %s5851, 32
      %s5855 = sadd.s32 %s5853, %s5854
      %s5856 = smul.addr %s5855, 4
      %s5857 = scalar_lea.vmem %s4, %s5856
      // Predicated region
      $region37: #{basic_block.3} parent=35 // pred_check
        %p5858 = pneg %p153
      $region38: #{basic_block.3} parent=35 // pred_check_branch
        %5860 = sbr.rel (%p5858) target = $region40
      $region39: #{basic_block.3} parent=35 // pred_region
        _
      $region40: #{basic_block.3} parent=35 // pred_fallthru
        _
    $region36: #{basic_block.3} parent=5 // pred_fallthru
      _
    %p5861 = scmp.le.s32.totalorder 2, %s10
    // Predicated region
    $region41: #{basic_block.3} parent=5 // pred_check
      %p5862 = pneg %p5861
    $region42: #{basic_block.3} parent=5 // pred_check_branch
      %5864 = sbr.rel (%p5862) target = $region44
    $region43: #{basic_block.3} parent=5 // pred_region
      %s5865 = ssub.s32 %s10, 2
      // Predicated region
      $region45: #{basic_block.3} parent=43 // pred_check
        %p5866 = pneg %p159
      $region46: #{basic_block.3} parent=43 // pred_check_branch
        %5868 = sbr.rel (%p5866) target = $region48
      $region47: #{basic_block.3} parent=43 // pred_region
        %p5869 = scmp.lt.s32.totalorder %s21, 1
        %s5870 = scalar_select %p5869, %s21, 1
        %p5871 = scmp.lt.s32.totalorder %s22, 0
        %s5872 = scalar_select %p5871, %s22, 0
        %s5873 = smul.addr %s5870, 32
        %s5874 = sadd.s32 %s5872, %s5873
        %s5875 = smul.addr %s5874, 4
        %s5876 = scalar_lea.vmem %s4, %s5875
      $region48: #{basic_block.3} parent=43 // pred_fallthru
        _
    $region44: #{basic_block.3} parent=5 // pred_fallthru
      _
  $region6: #{basic_block.3} parent=0 // loop_footer
    %s14 = sadd.s32 1, %s10
  $region7: #{basic_block.3} parent=0 // loop_footer_branch
    %9 = sbr.rel target = $region3
  $region8: #{basic_block.3} parent=0 // loop_exit
    _

// kernel: basic_block.2
$region0: #{basic_block.2}
  #allocation0 [shape = 'u32[]', space=smem, size = 0x4, offset = 0x4, fixed_abs, tag = 'smem constant byte address 0x4 - core index']
  #allocation1 [shape = 'u32[144,128]{1,0:T(1,128)}', space=vmem, size = 0x12000, scoped, tag = 'internal scratch']
  %s0 = inlined_call_operand.vmem [shape: bf16[2,18,18,128], index: 0, kind: input, shape index: {}]
  %s1 = inlined_call_operand.vmem [shape: bf16[9,128,128], index: 1, kind: input, shape index: {}]
  %s2 = inlined_call_operand.vmem [shape: f32[1,128], index: 2, kind: input, shape index: {}]
  %s3 = inlined_call_operand.vmem [shape: bf16[2,18,18,128], index: 3, kind: output, shape index: {}]
  %s4 = sld [smem:[#allocation0]]
  $region45: #{basic_block.2} parent=0
    _
  %s6 = ssub.s32 1, %s4
  %s7 = scalar_select 0, %s6, %s4
  loop: start=0, step=1, limit=4
  $region2: #{basic_block.2} parent=0 // loop_pre_header
    _
  $region3: #{basic_block.2} parent=0 // loop_header
    %s9 = sphi 0, %s13
    %p10 = scmp.ge.s32.totalorder %s9, 4
    %s16 = sphi 0, %s28
    %s17 = sphi 0, %s24
    %s18 = sphi 0, %s16
    %s19 = sphi 0, %s17
    %s20 = sphi 0, %s18
    %s21 = sphi 0, %s19
    %s31 = sphi 0, %s33
    %s34 = sphi 0, %s31
    %s35 = sphi 0, %s34
    %s51 = sphi 0, %s35
    %s57 = sphi 0, %s59
    %s60 = sphi 0, %s57
    %s61 = sphi 0, %s60
    %s77 = sphi 0, %s61
    %s83 = sphi 0, %s85
    %s86 = sphi 0, %s83
    %s87 = sphi 0, %s86
    %s103 = sphi 0, %s87
    %s111 = sphi 0, %s113
    %s114 = sphi 0, %s111
    %s115 = sphi 0, %s114
    %s131 = sphi 0, %s115
  $region4: #{basic_block.2} parent=0 // loop_header_branch
    %12 = sbr.rel (%p10) target = $region8
  $region5: #{basic_block.2} parent=0 // loop_body
    %s14 = ssub.s32 %s9, 1
    %s15 = ssub.s32 %s9, 2
    %s22 = sadd.s32 1, %s17
    %p23 = scmp.ge.s32.totalorder %s22, 1
    %s24 = scalar_select %p23, 0, %s22
    %s25 = sadd.s32 1, %s16
    %s26 = scalar_select %p23, %s25, %s16
    %p27 = scmp.ge.s32.totalorder %s26, 2
    %s28 = scalar_select %p27, 0, %s26
    %s29 = ssub.s32 %s16, %s28
    %p30 = scmp.eq.s32.totalorder %s29, 0
    %s32 = sadd.s32 %s31, 1
    %s33 = scalar_select %p30, %s31, %s32
    %p36 = pneg %p30
    %p37 = scmp.eq.s32.totalorder %s9, 1
    %p38 = por %p36, %p37
    %p39 = scmp.ne.s32.totalorder %s31, %s34
    %p40 = scmp.eq.s32.totalorder %s9, 0
    %p41 = por %p39, %p40
    %p42 = scmp.ne.s32.totalorder %s31, %s34
    %p43 = scmp.eq.s32.totalorder %s14, 1
    %p44 = por %p42, %p43
    %p45 = scmp.ne.s32.totalorder %s34, %s35
    %p46 = scmp.eq.s32.totalorder %s14, 0
    %p47 = por %p45, %p46
    %p48 = scmp.ne.s32.totalorder %s34, %s35
    %p49 = scmp.eq.s32.totalorder %s15, 1
    %p50 = por %p48, %p49
    %p52 = scmp.ne.s32.totalorder %s35, %s51
    %p53 = scmp.eq.s32.totalorder %s15, 0
    %p54 = por %p52, %p53
    %s55 = ssub.s32 %s17, %s24
    %p56 = scmp.eq.s32.totalorder %s55, 0
    %s58 = sadd.s32 %s57, 1
    %s59 = scalar_select %p56, %s57, %s58
    %p62 = pneg %p56
    %p63 = scmp.eq.s32.totalorder %s9, 1
    %p64 = por %p62, %p63
    %p65 = scmp.ne.s32.totalorder %s57, %s60
    %p66 = scmp.eq.s32.totalorder %s9, 0
    %p67 = por %p65, %p66
    %p68 = scmp.ne.s32.totalorder %s57, %s60
    %p69 = scmp.eq.s32.totalorder %s14, 1
    %p70 = por %p68, %p69
    %p71 = scmp.ne.s32.totalorder %s60, %s61
    %p72 = scmp.eq.s32.totalorder %s14, 0
    %p73 = por %p71, %p72
    %p74 = scmp.ne.s32.totalorder %s60, %s61
    %p75 = scmp.eq.s32.totalorder %s15, 1
    %p76 = por %p74, %p75
    %p78 = scmp.ne.s32.totalorder %s61, %s77
    %p79 = scmp.eq.s32.totalorder %s15, 0
    %p80 = por %p78, %p79
    %s81 = ssub.s32 %s17, %s24
    %p82 = scmp.eq.s32.totalorder %s81, 0
    %s84 = sadd.s32 %s83, 1
    %s85 = scalar_select %p82, %s83, %s84
    %p88 = pneg %p82
    %p89 = scmp.eq.s32.totalorder %s9, 1
    %p90 = por %p88, %p89
    %p91 = scmp.ne.s32.totalorder %s83, %s86
    %p92 = scmp.eq.s32.totalorder %s9, 0
    %p93 = por %p91, %p92
    %p94 = scmp.ne.s32.totalorder %s83, %s86
    %p95 = scmp.eq.s32.totalorder %s14, 1
    %p96 = por %p94, %p95
    %p97 = scmp.ne.s32.totalorder %s86, %s87
    %p98 = scmp.eq.s32.totalorder %s14, 0
    %p99 = por %p97, %p98
    %p100 = scmp.ne.s32.totalorder %s86, %s87
    %p101 = scmp.eq.s32.totalorder %s15, 1
    %p102 = por %p100, %p101
    %p104 = scmp.ne.s32.totalorder %s87, %s103
    %p105 = scmp.eq.s32.totalorder %s15, 0
    %p106 = por %p104, %p105
    %s107 = ssub.s32 %s16, %s28
    %s108 = ssub.s32 %s17, %s24
    %s109 = sor.u32 %s107, %s108
    %p110 = scmp.eq.s32.totalorder %s109, 0
    %s112 = sadd.s32 %s111, 1
    %s113 = scalar_select %p110, %s111, %s112
    %p116 = pneg %p110
    %p117 = scmp.eq.s32.totalorder %s9, 1
    %p118 = por %p116, %p117
    %p119 = scmp.ne.s32.totalorder %s111, %s114
    %p120 = scmp.eq.s32.totalorder %s9, 0
    %p121 = por %p119, %p120
    %p122 = scmp.ne.s32.totalorder %s111, %s114
    %p123 = scmp.eq.s32.totalorder %s14, 1
    %p124 = por %p122, %p123
    %p125 = scmp.ne.s32.totalorder %s114, %s115
    %p126 = scmp.eq.s32.totalorder %s14, 0
    %p127 = por %p125, %p126
    %p128 = scmp.ne.s32.totalorder %s114, %s115
    %p129 = scmp.eq.s32.totalorder %s15, 1
    %p130 = por %p128, %p129
    %p132 = scmp.ne.s32.totalorder %s115, %s131
    %p133 = scmp.eq.s32.totalorder %s15, 0
    %p134 = por %p132, %p133
    %p135 = scmp.le.s32.totalorder 1, %s9
    %p136 = scmp.lt.s32.totalorder %s9, 3
    %p137 = pnand %p135, %p136
    %p138 = pneg %p137
    // Predicated region
    $region9: #{basic_block.2} parent=5 // pred_check
      _
    $region10: #{basic_block.2} parent=5 // pred_check_branch
      %140 = sbr.rel (%p137) target = $region12
    $region11: #{basic_block.2} parent=5 // pred_region
      %s141 = ssub.s32 %s9, 1
      // Predicated region
      $region13: #{basic_block.2} parent=11 // pred_check
        %p142 = pneg %p73
      $region14: #{basic_block.2} parent=11 // pred_check_branch
        %144 = sbr.rel (%p142) target = $region16
      $region15: #{basic_block.2} parent=11 // pred_region
        %p145 = scmp.lt.s32.totalorder %s19, 0
        %s146 = scalar_select %p145, %s19, 0
        %s147 = smul.addr %s146, 4
        %s148 = scalar_lea.vmem %s1, %s147
      $region16: #{basic_block.2} parent=11 // pred_fallthru
        _
      // Predicated region
      $region17: #{basic_block.2} parent=11 // pred_check
        %p149 = pneg %p99
      $region18: #{basic_block.2} parent=11 // pred_check_branch
        %151 = sbr.rel (%p149) target = $region20
      $region19: #{basic_block.2} parent=11 // pred_region
        %p152 = scmp.lt.s32.totalorder %s19, 0
        %s153 = scalar_select %p152, %s19, 0
        %s154 = scalar_lea.vmem %s2, %s153
      $region20: #{basic_block.2} parent=11 // pred_fallthru
        _
    $region12: #{basic_block.2} parent=5 // pred_fallthru
      _
    %p155 = scmp.lt.s32.totalorder %s9, 2
    // Predicated region
    $region21: #{basic_block.2} parent=5 // pred_check
      %p156 = pneg %p155
    $region22: #{basic_block.2} parent=5 // pred_check_branch
      %158 = sbr.rel (%p156) target = $region24
    $region23: #{basic_block.2} parent=5 // pred_region
      // Predicated region
      $region25: #{basic_block.2} parent=23 // pred_check
        %p159 = pneg %p41
      $region26: #{basic_block.2} parent=23 // pred_check_branch
        %161 = sbr.rel (%p159) target = $region28
      $region27: #{basic_block.2} parent=23 // pred_region
        %p162 = scmp.lt.s32.totalorder %s16, 1
        %s163 = scalar_select %p162, %s16, 1
        %s164 = smul.addr %s163, 54
        %s165 = smul.addr %s164, 4
        %s166 = scalar_lea.vmem %s0, %s165
      $region28: #{basic_block.2} parent=23 // pred_fallthru
        _
    $region24: #{basic_block.2} parent=5 // pred_fallthru
      _
    %p167 = scmp.le.s32.totalorder 1, %s9
    %p168 = scmp.lt.s32.totalorder %s9, 3
    %p169 = pnand %p167, %p168
    %p170 = pneg %p169
    // Predicated region
    $region29: #{basic_block.2} parent=5 // pred_check
      _
    $region30: #{basic_block.2} parent=5 // pred_check_branch
      %172 = sbr.rel (%p169) target = $region32
    $region31: #{basic_block.2} parent=5 // pred_region
      %s173 = ssub.s32 %s9, 1
      %p174 = scmp.lt.s32.totalorder %s18, 1
      %s175 = scalar_select %p174, %s18, 1
      %s176 = smul.addr %s175, 54
      %s177 = smul.addr %s176, 4
      %s178 = scalar_lea.vmem %s0, %s177
      %p179 = pneg %p47
      %p180 = pneg %p44
      %p181 = scmp.lt.s32.totalorder %s19, 0
      %s182 = scalar_select %p181, %s19, 0
      %s183 = smul.addr %s182, 4
      %s184 = scalar_lea.vmem %s1, %s183
      %p185 = pneg %p73
      %p186 = pneg %p70
      %p187 = scmp.lt.s32.totalorder %s19, 0
      %s188 = scalar_select %p187, %s19, 0
      %s189 = scalar_lea.vmem %s2, %s188
      %p190 = pneg %p99
      %p191 = pneg %p96
      %p192 = pneg %p127
      %p193 = pneg %p124
      %p194 = scmp.lt.s32.totalorder %s18, 1
      %s195 = scalar_select %p194, %s18, 1
      %p196 = scmp.lt.s32.totalorder %s19, 0
      %s197 = scalar_select %p196, %s19, 0
      %s198 = smul.addr %s195, 54
      %s199 = sadd.s32 %s197, %s198
      %s200 = smul.addr %s199, 4
      %s201 = scalar_lea.vmem %s3, %s200
      %p202 = scmp.lt.s32.totalorder %s18, 1
      %s203 = scalar_select %p202, %s18, 1
      %s204 = smul.addr %s203, 54
      %s205 = smul.addr %s204, 4
      %s206 = scalar_lea.vmem %s0, %s205
      %p207 = scmp.lt.s32.totalorder %s19, 0
      %s208 = scalar_select %p207, %s19, 0
      %s209 = smul.addr %s208, 4
      %s210 = scalar_lea.vmem %s1, %s209
      %p211 = scmp.lt.s32.totalorder %s19, 0
      %s212 = scalar_select %p211, %s19, 0
      %s213 = scalar_lea.vmem %s2, %s212
      %p214 = scmp.lt.s32.totalorder %s18, 1
      %s215 = scalar_select %p214, %s18, 1
      %p216 = scmp.lt.s32.totalorder %s19, 0
      %s217 = scalar_select %p216, %s19, 0
      %s218 = smul.addr %s215, 54
      %s219 = sadd.s32 %s217, %s218
      %s220 = smul.addr %s219, 4
      %s221 = scalar_lea.vmem %s3, %s220
      %223 = vst [vmem:[%s221] sm:$0xf] 0
      %224 = vst [vmem:[%s221 + $0x4] sm:$0xf] 0
      %225 = vst [vmem:[%s221 + $0x8] sm:$0x1] 0
      %226 = vst [vmem:[%s221 + $0xc] sm:$0xf] 0
      %227 = vst [vmem:[%s221 + $0x10] sm:$0xf] 0
      %228 = vst [vmem:[%s221 + $0x14] sm:$0x1] 0
      %229 = vst [vmem:[%s221 + $0x18] sm:$0xf] 0
      %230 = vst [vmem:[%s221 + $0x1c] sm:$0xf] 0
      %231 = vst [vmem:[%s221 + $0x20] sm:$0x1] 0
      %232 = vst [vmem:[%s221 + $0x24] sm:$0xf] 0
      %233 = vst [vmem:[%s221 + $0x28] sm:$0xf] 0
      %234 = vst [vmem:[%s221 + $0x2c] sm:$0x1] 0
      %235 = vst [vmem:[%s221 + $0x30] sm:$0xf] 0
      %236 = vst [vmem:[%s221 + $0x34] sm:$0xf] 0
      %237 = vst [vmem:[%s221 + $0x38] sm:$0x1] 0
      %238 = vst [vmem:[%s221 + $0x3c] sm:$0xf] 0
      %239 = vst [vmem:[%s221 + $0x40] sm:$0xf] 0
      %240 = vst [vmem:[%s221 + $0x44] sm:$0x1] 0
      %241 = vst [vmem:[%s221 + $0x48] sm:$0xf] 0
      %242 = vst [vmem:[%s221 + $0x4c] sm:$0xf] 0
      %243 = vst [vmem:[%s221 + $0x50] sm:$0x1] 0
      %244 = vst [vmem:[%s221 + $0x54] sm:$0xf] 0
      %245 = vst [vmem:[%s221 + $0x58] sm:$0xf] 0
      %246 = vst [vmem:[%s221 + $0x5c] sm:$0x1] 0
      %247 = vst [vmem:[%s221 + $0x60] sm:$0xf] 0
      %248 = vst [vmem:[%s221 + $0x64] sm:$0xf] 0
      %249 = vst [vmem:[%s221 + $0x68] sm:$0x1] 0
      %250 = vst [vmem:[%s221 + $0x6c] sm:$0xf] 0
      %251 = vst [vmem:[%s221 + $0x70] sm:$0xf] 0
      %252 = vst [vmem:[%s221 + $0x74] sm:$0x1] 0
      %253 = vst [vmem:[%s221 + $0x78] sm:$0xf] 0
      %254 = vst [vmem:[%s221 + $0x7c] sm:$0xf] 0
      %255 = vst [vmem:[%s221 + $0x80] sm:$0x1] 0
      %256 = vst [vmem:[%s221 + $0x84] sm:$0xf] 0
      %257 = vst [vmem:[%s221 + $0x88] sm:$0xf] 0
      %258 = vst [vmem:[%s221 + $0x8c] sm:$0x1] 0
      %259 = vst [vmem:[%s221 + $0x90] sm:$0xf] 0
      %260 = vst [vmem:[%s221 + $0x94] sm:$0xf] 0
      %261 = vst [vmem:[%s221 + $0x98] sm:$0x1] 0
      %262 = vst [vmem:[%s221 + $0x9c] sm:$0xf] 0
      %263 = vst [vmem:[%s221 + $0xa0] sm:$0xf] 0
      %264 = vst [vmem:[%s221 + $0xa4] sm:$0x1] 0
      %265 = vst [vmem:[%s221 + $0xa8] sm:$0xf] 0
      %266 = vst [vmem:[%s221 + $0xac] sm:$0xf] 0
      %267 = vst [vmem:[%s221 + $0xb0] sm:$0x1] 0
      %268 = vst [vmem:[%s221 + $0xb4] sm:$0xf] 0
      %269 = vst [vmem:[%s221 + $0xb8] sm:$0xf] 0
      %270 = vst [vmem:[%s221 + $0xbc] sm:$0x1] 0
      %271 = vst [vmem:[%s221 + $0xc0] sm:$0xf] 0
      %272 = vst [vmem:[%s221 + $0xc4] sm:$0xf] 0
      %273 = vst [vmem:[%s221 + $0xc8] sm:$0x1] 0
      %274 = vst [vmem:[%s221 + $0xcc] sm:$0xf] 0
      %275 = vst [vmem:[%s221 + $0xd0] sm:$0xf] 0
      %276 = vst [vmem:[%s221 + $0xd4] sm:$0x1] 0
      %v277 = vld [vmem:[%s206] sm:$0xf]
      %v278 = vld [vmem:[%s206 + $0x4] sm:$0xf]
      %v279 = vld [vmem:[%s206 + $0xc] sm:$0xf]
      %v280 = vld [vmem:[%s206 + $0x10] sm:$0xf]
      %v281 = vld [vmem:[%s206 + $0x18] sm:$0xf]
      %v282 = vld [vmem:[%s206 + $0x1c] sm:$0xf]
      %v283 = vld [vmem:[%s206 + $0x24] sm:$0xf]
      %v284 = vld [vmem:[%s206 + $0x28] sm:$0xf]
      %v285 = vld [vmem:[%s206 + $0x30] sm:$0xf]
      %v286 = vld [vmem:[%s206 + $0x34] sm:$0xf]
      %v287 = vld [vmem:[%s206 + $0x3c] sm:$0xf]
      %v288 = vld [vmem:[%s206 + $0x40] sm:$0xf]
      %v289 = vld [vmem:[%s206 + $0x48] sm:$0xf]
      %v290 = vld [vmem:[%s206 + $0x4c] sm:$0xf]
      %v291 = vld [vmem:[%s206 + $0x54] sm:$0xf]
      %v292 = vld [vmem:[%s206 + $0x58] sm:$0xf]
      %v293 = vld [vmem:[%s206 + $0x60] sm:$0xf]
      %v294 = vld [vmem:[%s206 + $0x64] sm:$0xf]
      %v295 = vld [vmem:[%s206 + $0x6c] sm:$0xf]
      %v296 = vld [vmem:[%s206 + $0x70] sm:$0xf]
      %v297 = vld [vmem:[%s206 + $0x78] sm:$0xf]
      %v298 = vld [vmem:[%s206 + $0x7c] sm:$0xf]
      %v299 = vld [vmem:[%s206 + $0x84] sm:$0xf]
      %v300 = vld [vmem:[%s206 + $0x88] sm:$0xf]
      %v301 = vld [vmem:[%s206 + $0x90] sm:$0xf]
      %v302 = vld [vmem:[%s206 + $0x94] sm:$0xf]
      %v303 = vld [vmem:[%s206 + $0x9c] sm:$0xf]
      %v304 = vld [vmem:[%s206 + $0xa0] sm:$0xf]
      %v305 = vld [vmem:[%s206 + $0xa8] sm:$0xf]
      %v306 = vld [vmem:[%s206 + $0xac] sm:$0xf]
      %v307 = vld [vmem:[%s206 + $0xb4] sm:$0xf]
      %v308 = vld [vmem:[%s206 + $0xb8] sm:$0xf]
      %v309 = vld [vmem:[%s210] sm:$0xf]
      %v310 = vld [vmem:[%s210 + $0x4] sm:$0xf]
      %v311 = vld [vmem:[%s210 + $0x8] sm:$0xf]
      %v312 = vld [vmem:[%s210 + $0xc] sm:$0xf]
      %v313 = vld [vmem:[%s210 + $0x10] sm:$0xf]
      %v314 = vld [vmem:[%s210 + $0x14] sm:$0xf]
      %v315 = vld [vmem:[%s210 + $0x18] sm:$0xf]
      %v316 = vld [vmem:[%s210 + $0x1c] sm:$0xf]
      %v317 = vld [vmem:[%s210 + $0x20] sm:$0xf]
      %v318 = vld [vmem:[%s210 + $0x24] sm:$0xf]
      %v319 = vld [vmem:[%s210 + $0x28] sm:$0xf]
      %v320 = vld [vmem:[%s210 + $0x2c] sm:$0xf]
      %v321 = vld [vmem:[%s210 + $0x30] sm:$0xf]
      %v322 = vld [vmem:[%s210 + $0x34] sm:$0xf]
      %v323 = vld [vmem:[%s210 + $0x38] sm:$0xf]
      %v324 = vld [vmem:[%s210 + $0x3c] sm:$0xf]
      %v325 = vld [vmem:[%s206 + $0x8] sm:$0x1]
      %v326 = vld [vmem:[%s206 + $0x14] sm:$0x1]
      %v327 = vld [vmem:[%s206 + $0x20] sm:$0x1]
      %v328 = vld [vmem:[%s206 + $0x2c] sm:$0x1]
      %v329 = vld [vmem:[%s206 + $0x38] sm:$0x1]
      %v330 = vld [vmem:[%s206 + $0x44] sm:$0x1]
      %v331 = vld [vmem:[%s206 + $0x50] sm:$0x1]
      %v332 = vld [vmem:[%s206 + $0x5c] sm:$0x1]
      %v333 = vld [vmem:[%s206 + $0x68] sm:$0x1]
      %v334 = vld [vmem:[%s206 + $0x74] sm:$0x1]
      %v335 = vld [vmem:[%s206 + $0x80] sm:$0x1]
      %v336 = vld [vmem:[%s206 + $0x8c] sm:$0x1]
      %v337 = vld [vmem:[%s206 + $0x98] sm:$0x1]
      %v338 = vld [vmem:[%s206 + $0xa4] sm:$0x1]
      %v339 = vld [vmem:[%s206 + $0xb0] sm:$0x1]
      %v340 = vld [vmem:[%s206 + $0xbc] sm:$0x1]
      %vm341 = vsmask.f32 3328
      %vm342 = vsmask.f32 7440
      %vm343 = vmor %vm341, %vm342
      %v345 = vshrl.u32 %v277, 16
      %v347 = vrot.slane %v345, 4
      %v348 = vshll.u32 %v277, 16
      %v350 = vrot.slane %v348, 5
      %v351 = vor.u32 %v347, %v350
      %v352 = vrot.slane %v351, 4
      %v354 = vshll.u32 %v278, 16
      %v356 = vrot.slane %v354, 5
      %v357 = vsel %vm343, %v352, %v356
      %v358 = vshrl.u32 %v278, 16
      %v360 = vrot.slane %v358, 4
      %v361 = vor.u32 %v360, %v356
      %v362 = vrot.slane %v361, 4
      %v364 = vshll.u32 %v325, 16
      %v366 = vrot.slane %v364, 5
      %v367 = vsel %vm343, %v362, %v366
      %v369 = vshrl.u32 %v279, 16
      %v371 = vrot.slane %v369, 4
      %v372 = vshll.u32 %v279, 16
      %v374 = vrot.slane %v372, 5
      %v375 = vor.u32 %v371, %v374
      %v376 = vrot.slane %v375, 4
      %v378 = vshll.u32 %v280, 16
      %v380 = vrot.slane %v378, 5
      %v381 = vsel %vm343, %v376, %v380
      %v382 = vshrl.u32 %v280, 16
      %v384 = vrot.slane %v382, 4
      %v385 = vor.u32 %v384, %v380
      %v386 = vrot.slane %v385, 4
      %v388 = vshll.u32 %v326, 16
      %v390 = vrot.slane %v388, 5
      %v391 = vsel %vm343, %v386, %v390
      %v393 = vshrl.u32 %v281, 16
      %v395 = vrot.slane %v393, 4
      %v396 = vshll.u32 %v281, 16
      %v398 = vrot.slane %v396, 5
      %v399 = vor.u32 %v395, %v398
      %v400 = vrot.slane %v399, 4
      %v402 = vshll.u32 %v282, 16
      %v404 = vrot.slane %v402, 5
      %v405 = vsel %vm343, %v400, %v404
      %v406 = vshrl.u32 %v282, 16
      %v408 = vrot.slane %v406, 4
      %v409 = vor.u32 %v408, %v404
      %v410 = vrot.slane %v409, 4
      %v412 = vshll.u32 %v327, 16
      %v414 = vrot.slane %v412, 5
      %v415 = vsel %vm343, %v410, %v414
      %v417 = vshrl.u32 %v283, 16
      %v419 = vrot.slane %v417, 4
      %v420 = vshll.u32 %v283, 16
      %v422 = vrot.slane %v420, 5
      %v423 = vor.u32 %v419, %v422
      %v424 = vrot.slane %v423, 4
      %v426 = vshll.u32 %v284, 16
      %v428 = vrot.slane %v426, 5
      %v429 = vsel %vm343, %v424, %v428
      %v430 = vshrl.u32 %v284, 16
      %v432 = vrot.slane %v430, 4
      %v433 = vor.u32 %v432, %v428
      %v434 = vrot.slane %v433, 4
      %v436 = vshll.u32 %v328, 16
      %v438 = vrot.slane %v436, 5
      %v439 = vsel %vm343, %v434, %v438
      %v441 = vshrl.u32 %v285, 16
      %v443 = vrot.slane %v441, 4
      %v444 = vshll.u32 %v285, 16
      %v446 = vrot.slane %v444, 5
      %v447 = vor.u32 %v443, %v446
      %v448 = vrot.slane %v447, 4
      %v450 = vshll.u32 %v286, 16
      %v452 = vrot.slane %v450, 5
      %v453 = vsel %vm343, %v448, %v452
      %v454 = vshrl.u32 %v286, 16
      %v456 = vrot.slane %v454, 4
      %v457 = vor.u32 %v456, %v452
      %v458 = vrot.slane %v457, 4
      %v460 = vshll.u32 %v329, 16
      %v462 = vrot.slane %v460, 5
      %v463 = vsel %vm343, %v458, %v462
      %v465 = vshrl.u32 %v287, 16
      %v467 = vrot.slane %v465, 4
      %v468 = vshll.u32 %v287, 16
      %v470 = vrot.slane %v468, 5
      %v471 = vor.u32 %v467, %v470
      %v472 = vrot.slane %v471, 4
      %v474 = vshll.u32 %v288, 16
      %v476 = vrot.slane %v474, 5
      %v477 = vsel %vm343, %v472, %v476
      %v478 = vshrl.u32 %v288, 16
      %v480 = vrot.slane %v478, 4
      %v481 = vor.u32 %v480, %v476
      %v482 = vrot.slane %v481, 4
      %v484 = vshll.u32 %v330, 16
      %v486 = vrot.slane %v484, 5
      %v487 = vsel %vm343, %v482, %v486
      %v489 = vshrl.u32 %v289, 16
      %v491 = vrot.slane %v489, 4
      %v492 = vshll.u32 %v289, 16
      %v494 = vrot.slane %v492, 5
      %v495 = vor.u32 %v491, %v494
      %v496 = vrot.slane %v495, 4
      %v498 = vshll.u32 %v290, 16
      %v500 = vrot.slane %v498, 5
      %v501 = vsel %vm343, %v496, %v500
      %v502 = vshrl.u32 %v290, 16
      %v504 = vrot.slane %v502, 4
      %v505 = vor.u32 %v504, %v500
      %v506 = vrot.slane %v505, 4
      %v508 = vshll.u32 %v331, 16
      %v510 = vrot.slane %v508, 5
      %v511 = vsel %vm343, %v506, %v510
      %v513 = vshrl.u32 %v291, 16
      %v515 = vrot.slane %v513, 4
      %v516 = vshll.u32 %v291, 16
      %v518 = vrot.slane %v516, 5
      %v519 = vor.u32 %v515, %v518
      %v520 = vrot.slane %v519, 4
      %v522 = vshll.u32 %v292, 16
      %v524 = vrot.slane %v522, 5
      %v525 = vsel %vm343, %v520, %v524
      %v526 = vshrl.u32 %v292, 16
      %v528 = vrot.slane %v526, 4
      %v529 = vor.u32 %v528, %v524
      %v530 = vrot.slane %v529, 4
      %v532 = vshll.u32 %v332, 16
      %v534 = vrot.slane %v532, 5
      %v535 = vsel %vm343, %v530, %v534
      %v537 = vshrl.u32 %v293, 16
      %v539 = vrot.slane %v537, 4
      %v540 = vshll.u32 %v293, 16
      %v542 = vrot.slane %v540, 5
      %v543 = vor.u32 %v539, %v542
      %v544 = vrot.slane %v543, 4
      %v546 = vshll.u32 %v294, 16
      %v548 = vrot.slane %v546, 5
      %v549 = vsel %vm343, %v544, %v548
      %v550 = vshrl.u32 %v294, 16
      %v552 = vrot.slane %v550, 4
      %v553 = vor.u32 %v552, %v548
      %v554 = vrot.slane %v553, 4
      %v556 = vshll.u32 %v333, 16
      %v558 = vrot.slane %v556, 5
      %v559 = vsel %vm343, %v554, %v558
      %v561 = vshrl.u32 %v295, 16
      %v563 = vrot.slane %v561, 4
      %v564 = vshll.u32 %v295, 16
      %v566 = vrot.slane %v564, 5
      %v567 = vor.u32 %v563, %v566
      %v568 = vrot.slane %v567, 4
      %v570 = vshll.u32 %v296, 16
      %v572 = vrot.slane %v570, 5
      %v573 = vsel %vm343, %v568, %v572
      %v574 = vshrl.u32 %v296, 16
      %v576 = vrot.slane %v574, 4
      %v577 = vor.u32 %v576, %v572
      %v578 = vrot.slane %v577, 4
      %v580 = vshll.u32 %v334, 16
      %v582 = vrot.slane %v580, 5
      %v583 = vsel %vm343, %v578, %v582
      %v585 = vshrl.u32 %v297, 16
      %v587 = vrot.slane %v585, 4
      %v588 = vshll.u32 %v297, 16
      %v590 = vrot.slane %v588, 5
      %v591 = vor.u32 %v587, %v590
      %v592 = vrot.slane %v591, 4
      %v594 = vshll.u32 %v298, 16
      %v596 = vrot.slane %v594, 5
      %v597 = vsel %vm343, %v592, %v596
      %v598 = vshrl.u32 %v298, 16
      %v600 = vrot.slane %v598, 4
      %v601 = vor.u32 %v600, %v596
      %v602 = vrot.slane %v601, 4
      %v604 = vshll.u32 %v335, 16
      %v606 = vrot.slane %v604, 5
      %v607 = vsel %vm343, %v602, %v606
      %v609 = vshrl.u32 %v299, 16
      %v611 = vrot.slane %v609, 4
      %v612 = vshll.u32 %v299, 16
      %v614 = vrot.slane %v612, 5
      %v615 = vor.u32 %v611, %v614
      %v616 = vrot.slane %v615, 4
      %v618 = vshll.u32 %v300, 16
      %v620 = vrot.slane %v618, 5
      %v621 = vsel %vm343, %v616, %v620
      %v622 = vshrl.u32 %v300, 16
      %v624 = vrot.slane %v622, 4
      %v625 = vor.u32 %v624, %v620
      %v626 = vrot.slane %v625, 4
      %v628 = vshll.u32 %v336, 16
      %v630 = vrot.slane %v628, 5
      %v631 = vsel %vm343, %v626, %v630
      %v633 = vshrl.u32 %v301, 16
      %v635 = vrot.slane %v633, 4
      %v636 = vshll.u32 %v301, 16
      %v638 = vrot.slane %v636, 5
      %v639 = vor.u32 %v635, %v638
      %v640 = vrot.slane %v639, 4
      %v642 = vshll.u32 %v302, 16
      %v644 = vrot.slane %v642, 5
      %v645 = vsel %vm343, %v640, %v644
      %v646 = vshrl.u32 %v302, 16
      %v648 = vrot.slane %v646, 4
      %v649 = vor.u32 %v648, %v644
      %v650 = vrot.slane %v649, 4
      %v652 = vshll.u32 %v337, 16
      %v654 = vrot.slane %v652, 5
      %v655 = vsel %vm343, %v650, %v654
      %v657 = vshrl.u32 %v303, 16
      %v659 = vrot.slane %v657, 4
      %v660 = vshll.u32 %v303, 16
      %v662 = vrot.slane %v660, 5
      %v663 = vor.u32 %v659, %v662
      %v664 = vrot.slane %v663, 4
      %v666 = vshll.u32 %v304, 16
      %v668 = vrot.slane %v666, 5
      %v669 = vsel %vm343, %v664, %v668
      %v670 = vshrl.u32 %v304, 16
      %v672 = vrot.slane %v670, 4
      %v673 = vor.u32 %v672, %v668
      %v674 = vrot.slane %v673, 4
      %v676 = vshll.u32 %v338, 16
      %v678 = vrot.slane %v676, 5
      %v679 = vsel %vm343, %v674, %v678
      %v681 = vshrl.u32 %v305, 16
      %v683 = vrot.slane %v681, 4
      %v684 = vshll.u32 %v305, 16
      %v686 = vrot.slane %v684, 5
      %v687 = vor.u32 %v683, %v686
      %v688 = vrot.slane %v687, 4
      %v690 = vshll.u32 %v306, 16
      %v692 = vrot.slane %v690, 5
      %v693 = vsel %vm343, %v688, %v692
      %v694 = vshrl.u32 %v306, 16
      %v696 = vrot.slane %v694, 4
      %v697 = vor.u32 %v696, %v692
      %v698 = vrot.slane %v697, 4
      %v700 = vshll.u32 %v339, 16
      %v702 = vrot.slane %v700, 5
      %v703 = vsel %vm343, %v698, %v702
      %v705 = vshrl.u32 %v307, 16
      %v707 = vrot.slane %v705, 4
      %v708 = vshll.u32 %v307, 16
      %v710 = vrot.slane %v708, 5
      %v711 = vor.u32 %v707, %v710
      %v712 = vrot.slane %v711, 4
      %v714 = vshll.u32 %v308, 16
      %v716 = vrot.slane %v714, 5
      %v717 = vsel %vm343, %v712, %v716
      %v718 = vshrl.u32 %v308, 16
      %v720 = vrot.slane %v718, 4
      %v721 = vor.u32 %v720, %v716
      %v722 = vrot.slane %v721, 4
      %v724 = vshll.u32 %v340, 16
      %v726 = vrot.slane %v724, 5
      %v727 = vsel %vm343, %v722, %v726
      %s728 = scalar_lea.vmem %s210, 64
      %v729 = vld [vmem:[%s728] sm:$0xf]
      %v730 = vld [vmem:[%s728 + $0x4] sm:$0xf]
      %v731 = vld [vmem:[%s728 + $0x8] sm:$0xf]
      %v732 = vld [vmem:[%s728 + $0xc] sm:$0xf]
      %v733 = vld [vmem:[%s728 + $0x10] sm:$0xf]
      %v734 = vld [vmem:[%s728 + $0x14] sm:$0xf]
      %v735 = vld [vmem:[%s728 + $0x18] sm:$0xf]
      %v736 = vld [vmem:[%s728 + $0x1c] sm:$0xf]
      %v737 = vld [vmem:[%s728 + $0x20] sm:$0xf]
      %v738 = vld [vmem:[%s728 + $0x24] sm:$0xf]
      %v739 = vld [vmem:[%s728 + $0x28] sm:$0xf]
      %v740 = vld [vmem:[%s728 + $0x2c] sm:$0xf]
      %v741 = vld [vmem:[%s728 + $0x30] sm:$0xf]
      %v742 = vld [vmem:[%s728 + $0x34] sm:$0xf]
      %v743 = vld [vmem:[%s728 + $0x38] sm:$0xf]
      %v744 = vld [vmem:[%s728 + $0x3c] sm:$0xf]
      %v745 = vunpack.c.l.b16 %v357
      %v746 = vunpack.c.l.b16 %v367
      %v747 = vunpack.c.l.b16 %v381
      %v748 = vunpack.c.l.b16 %v391
      %v749 = vunpack.c.l.b16 %v405
      %v750 = vunpack.c.l.b16 %v415
      %v751 = vunpack.c.l.b16 %v429
      %v752 = vunpack.c.l.b16 %v439
      %v753 = vunpack.c.l.b16 %v453
      %v754 = vunpack.c.l.b16 %v463
      %v755 = vunpack.c.l.b16 %v477
      %v756 = vunpack.c.l.b16 %v487
      %v757 = vunpack.c.l.b16 %v501
      %v758 = vunpack.c.l.b16 %v511
      %v759 = vunpack.c.l.b16 %v525
      %v760 = vunpack.c.l.b16 %v535
      %v761 = vunpack.c.l.b16 %v549
      %v762 = vunpack.c.l.b16 %v559
      %v763 = vunpack.c.l.b16 %v573
      %v764 = vunpack.c.l.b16 %v583
      %v765 = vunpack.c.l.b16 %v597
      %v766 = vunpack.c.l.b16 %v607
      %v767 = vunpack.c.l.b16 %v621
      %v768 = vunpack.c.l.b16 %v631
      %v769 = vunpack.c.l.b16 %v645
      %v770 = vunpack.c.l.b16 %v655
      %v771 = vunpack.c.l.b16 %v669
      %v772 = vunpack.c.l.b16 %v679
      %v773 = vunpack.c.l.b16 %v693
      %v774 = vunpack.c.l.b16 %v703
      %v775 = vunpack.c.l.b16 %v717
      %v776 = vunpack.c.l.b16 %v727
      %v777 = vpack.c.b16 %v746, %v745
      %v778 = vpack.c.b16 %v748, %v747
      %v779 = vpack.c.b16 %v750, %v749
      %v780 = vpack.c.b16 %v752, %v751
      %v781 = vpack.c.b16 %v754, %v753
      %v782 = vpack.c.b16 %v756, %v755
      %v783 = vpack.c.b16 %v758, %v757
      %v784 = vpack.c.b16 %v760, %v759
      %v785 = vpack.c.b16 %v762, %v761
      %v786 = vpack.c.b16 %v764, %v763
      %v787 = vpack.c.b16 %v766, %v765
      %v788 = vpack.c.b16 %v768, %v767
      %v789 = vpack.c.b16 %v770, %v769
      %v790 = vpack.c.b16 %v772, %v771
      %v791 = vpack.c.b16 %v774, %v773
      %v792 = vpack.c.b16 %v776, %v775
      %v825 = vunpack.c.l.b16 %v729
      %v826 = vunpack.c.l.b16 %v730
      %v827 = vunpack.c.l.b16 %v731
      %v828 = vunpack.c.l.b16 %v732
      %v829 = vunpack.c.l.b16 %v733
      %v830 = vunpack.c.l.b16 %v734
      %v831 = vunpack.c.l.b16 %v735
      %v832 = vunpack.c.l.b16 %v736
      %v833 = vunpack.c.l.b16 %v737
      %v834 = vunpack.c.l.b16 %v738
      %v835 = vunpack.c.l.b16 %v739
      %v836 = vunpack.c.l.b16 %v740
      %v837 = vunpack.c.l.b16 %v741
      %v838 = vunpack.c.l.b16 %v742
      %v839 = vunpack.c.l.b16 %v743
      %v840 = vunpack.c.l.b16 %v744
      %v841 = vpack.c.b16 %v826, %v825
      %v842 = vpack.c.b16 %v828, %v827
      %v843 = vpack.c.b16 %v830, %v829
      %v844 = vpack.c.b16 %v832, %v831
      %v845 = vpack.c.b16 %v834, %v833
      %v846 = vpack.c.b16 %v836, %v835
      %v847 = vpack.c.b16 %v838, %v837
      %v848 = vpack.c.b16 %v840, %v839
      %857 = vmatprep.subr.bf16.mxu0 0
      %858 = vmatpush1.bf16.msra.mxu0 %v841
      %859 = vmatprep.subr.bf16.mxu0 0
      %860 = vmatpush1.bf16.msra.mxu0 %v842
      %861 = vmatprep.subr.bf16.mxu0 0
      %862 = vmatpush1.bf16.msra.mxu0 %v843
      %863 = vmatprep.subr.bf16.mxu0 0
      %864 = vmatpush1.bf16.msra.mxu0 %v844
      %865 = vmatprep.subr.bf16.mxu0 0
      %866 = vmatpush1.bf16.msra.mxu0 %v845
      %867 = vmatprep.subr.bf16.mxu0 0
      %868 = vmatpush1.bf16.msra.mxu0 %v846
      %869 = vmatprep.subr.bf16.mxu0 0
      %870 = vmatpush1.bf16.msra.mxu0 %v847
      %871 = vmatprep.subr.bf16.mxu0 0
      %872 = vmatpush1.bf16.msra.mxu0 %v848
      %873 = vmatprep.subr.bf16.mxu0 0
      %874 = vmatpush1.bf16.msra.mxu0 0
      %875 = vmatprep.subr.bf16.mxu0 0
      %876 = vmatpush1.bf16.msra.mxu0 0
      %877 = vmatprep.subr.bf16.mxu0 0
      %878 = vmatpush1.bf16.msra.mxu0 0
      %879 = vmatprep.subr.bf16.mxu0 0
      %880 = vmatpush1.bf16.msra.mxu0 0
      %881 = vmatprep.subr.bf16.mxu0 0
      %882 = vmatpush1.bf16.msra.mxu0 0
      %883 = vmatprep.subr.bf16.mxu0 0
      %884 = vmatpush1.bf16.msra.mxu0 0
      %885 = vmatprep.subr.bf16.mxu0 0
      %886 = vmatpush1.bf16.msra.mxu0 0
      %887 = vmatprep.subr.bf16.mxu0 0
      %888 = vmatpush1.bf16.msra.mxu0 0
      %889 = vmatprep.mubr.bf16.mxu0 0
      %890 = vmatmul.mubr.bf16.gmra.mrb[0].mxu0 %v777
      %v891 = vpop.f32.mrb[0].mxu0
      %v892 = vadd.f32 0.0, %v891
      %v893 = vpop.f32.mrb[0].mxu0
      %v894 = vpop.f32.mrb[0].mxu0
      %v895 = vadd.f32 0.0, %v894
      %v896 = vpop.f32.mrb[0].mxu0
      %897 = vmatprep.mubr.bf16.mxu0 0
      %898 = vmatmul.mubr.bf16.gmra.mrb[0].mxu0 %v778
      %v899 = vpop.f32.mrb[0].mxu0
      %v900 = vadd.f32 0.0, %v899
      %v901 = vpop.f32.mrb[0].mxu0
      %v902 = vpop.f32.mrb[0].mxu0
      %v903 = vadd.f32 0.0, %v902
      %v904 = vpop.f32.mrb[0].mxu0
      %905 = vmatprep.mubr.bf16.mxu0 0
      %906 = vmatmul.mubr.bf16.gmra.mrb[0].mxu0 %v779
      %v907 = vpop.f32.mrb[0].mxu0
      %v908 = vadd.f32 0.0, %v907
      %v909 = vpop.f32.mrb[0].mxu0
      %v910 = vpop.f32.mrb[0].mxu0
      %v911 = vadd.f32 0.0, %v910
      %v912 = vpop.f32.mrb[0].mxu0
      %913 = vmatprep.mubr.bf16.mxu0 0
      %914 = vmatmul.mubr.bf16.gmra.mrb[0].mxu0 %v780
      %v915 = vpop.f32.mrb[0].mxu0
      %v916 = vadd.f32 0.0, %v915
      %v917 = vpop.f32.mrb[0].mxu0
      %v918 = vpop.f32.mrb[0].mxu0
      %v919 = vadd.f32 0.0, %v918
      %v920 = vpop.f32.mrb[0].mxu0
      %921 = vmatprep.mubr.bf16.mxu0 0
      %922 = vmatmul.mubr.bf16.gmra.mrb[0].mxu0 %v781
      %v923 = vpop.f32.mrb[0].mxu0
      %v924 = vadd.f32 0.0, %v923
      %v925 = vpop.f32.mrb[0].mxu0
      %v926 = vpop.f32.mrb[0].mxu0
      %v927 = vadd.f32 0.0, %v926
      %v928 = vpop.f32.mrb[0].mxu0
      %929 = vmatprep.mubr.bf16.mxu0 0
      %930 = vmatmul.mubr.bf16.gmra.mrb[0].mxu0 %v782
      %v931 = vpop.f32.mrb[0].mxu0
      %v932 = vadd.f32 0.0, %v931
      %v933 = vpop.f32.mrb[0].mxu0
      %v934 = vpop.f32.mrb[0].mxu0
      %v935 = vadd.f32 0.0, %v934
      %v936 = vpop.f32.mrb[0].mxu0
      %937 = vmatprep.mubr.bf16.mxu0 0
      %938 = vmatmul.mubr.bf16.gmra.mrb[0].mxu0 %v783
      %v939 = vpop.f32.mrb[0].mxu0
      %v940 = vadd.f32 0.0, %v939
      %v941 = vpop.f32.mrb[0].mxu0
      %v942 = vpop.f32.mrb[0].mxu0
      %v943 = vadd.f32 0.0, %v942
      %v944 = vpop.f32.mrb[0].mxu0
      %945 = vmatprep.mubr.bf16.mxu0 0
      %946 = vmatmul.mubr.bf16.gmra.mrb[0].mxu0 %v784
      %v947 = vpop.f32.mrb[0].mxu0
      %v948 = vadd.f32 0.0, %v947
      %v949 = vpop.f32.mrb[0].mxu0
      %v950 = vpop.f32.mrb[0].mxu0
      %v951 = vadd.f32 0.0, %v950
      %v952 = vpop.f32.mrb[0].mxu0
      %953 = vmatprep.mubr.bf16.mxu0 0
      %954 = vmatmul.mubr.bf16.gmra.mrb[0].mxu0 %v785
      %v955 = vpop.f32.mrb[0].mxu0
      %v956 = vadd.f32 0.0, %v955
      %v957 = vpop.f32.mrb[0].mxu0
      %v958 = vpop.f32.mrb[0].mxu0
      %v959 = vadd.f32 0.0, %v958
      %v960 = vpop.f32.mrb[0].mxu0
      %961 = vmatprep.mubr.bf16.mxu0 0
      %962 = vmatmul.mubr.bf16.gmra.mrb[0].mxu0 %v786
      %v963 = vpop.f32.mrb[0].mxu0
      %v964 = vadd.f32 0.0, %v963
      %v965 = vpop.f32.mrb[0].mxu0
      %v966 = vpop.f32.mrb[0].mxu0
      %v967 = vadd.f32 0.0, %v966
      %v968 = vpop.f32.mrb[0].mxu0
      %969 = vmatprep.mubr.bf16.mxu0 0
      %970 = vmatmul.mubr.bf16.gmra.mrb[0].mxu0 %v787
      %v971 = vpop.f32.mrb[0].mxu0
      %v972 = vadd.f32 0.0, %v971
      %v973 = vpop.f32.mrb[0].mxu0
      %v974 = vpop.f32.mrb[0].mxu0
      %v975 = vadd.f32 0.0, %v974
      %v976 = vpop.f32.mrb[0].mxu0
      %977 = vmatprep.mubr.bf16.mxu0 0
      %978 = vmatmul.mubr.bf16.gmra.mrb[0].mxu0 %v788
      %v979 = vpop.f32.mrb[0].mxu0
      %v980 = vadd.f32 0.0, %v979
      %v981 = vpop.f32.mrb[0].mxu0
      %v982 = vpop.f32.mrb[0].mxu0
      %v983 = vadd.f32 0.0, %v982
      %v984 = vpop.f32.mrb[0].mxu0
      %985 = vmatprep.mubr.bf16.mxu0 0
      %986 = vmatmul.mubr.bf16.gmra.mrb[0].mxu0 %v789
      %v987 = vpop.f32.mrb[0].mxu0
      %v988 = vadd.f32 0.0, %v987
      %v989 = vpop.f32.mrb[0].mxu0
      %v990 = vpop.f32.mrb[0].mxu0
      %v991 = vadd.f32 0.0, %v990
      %v992 = vpop.f32.mrb[0].mxu0
      %993 = vmatprep.mubr.bf16.mxu0 0
      %994 = vmatmul.mubr.bf16.gmra.mrb[0].mxu0 %v790
      %v995 = vpop.f32.mrb[0].mxu0
      %v996 = vadd.f32 0.0, %v995
      %v997 = vpop.f32.mrb[0].mxu0
      %v998 = vpop.f32.mrb[0].mxu0
      %v999 = vadd.f32 0.0, %v998
      %v1000 = vpop.f32.mrb[0].mxu0
      %1001 = vmatprep.mubr.bf16.mxu0 0
      %1002 = vmatmul.mubr.bf16.gmra.mrb[0].mxu0 %v791
      %v1003 = vpop.f32.mrb[0].mxu0
      %v1004 = vadd.f32 0.0, %v1003
      %v1005 = vpop.f32.mrb[0].mxu0
      %v1006 = vpop.f32.mrb[0].mxu0
      %v1007 = vadd.f32 0.0, %v1006
      %v1008 = vpop.f32.mrb[0].mxu0
      %1009 = vmatprep.mubr.bf16.mxu0 0
      %1010 = vmatmul.mubr.bf16.gmra.mrb[0].mxu0 %v792
      %v1011 = vpop.f32.mrb[0].mxu0
      %v1012 = vadd.f32 0.0, %v1011
      %v1013 = vpop.f32.mrb[0].mxu0
      %v1014 = vpop.f32.mrb[0].mxu0
      %v1015 = vadd.f32 0.0, %v1014
      %v1016 = vpop.f32.mrb[0].mxu0
      %1017 = vdwg.mxu0
      %v1050 = vunpack.c.l.b16 %v277
      %v1051 = vunpack.c.l.b16 %v278
      %v1052 = vunpack.c.l.b16 %v279
      %v1053 = vunpack.c.l.b16 %v280
      %v1054 = vunpack.c.l.b16 %v281
      %v1055 = vunpack.c.l.b16 %v282
      %v1056 = vunpack.c.l.b16 %v283
      %v1057 = vunpack.c.l.b16 %v284
      %v1058 = vunpack.c.l.b16 %v285
      %v1059 = vunpack.c.l.b16 %v286
      %v1060 = vunpack.c.l.b16 %v287
      %v1061 = vunpack.c.l.b16 %v288
      %v1062 = vunpack.c.l.b16 %v289
      %v1063 = vunpack.c.l.b16 %v290
      %v1064 = vunpack.c.l.b16 %v291
      %v1065 = vunpack.c.l.b16 %v292
      %v1066 = vunpack.c.l.b16 %v293
      %v1067 = vunpack.c.l.b16 %v294
      %v1068 = vunpack.c.l.b16 %v295
      %v1069 = vunpack.c.l.b16 %v296
      %v1070 = vunpack.c.l.b16 %v297
      %v1071 = vunpack.c.l.b16 %v298
      %v1072 = vunpack.c.l.b16 %v299
      %v1073 = vunpack.c.l.b16 %v300
      %v1074 = vunpack.c.l.b16 %v301
      %v1075 = vunpack.c.l.b16 %v302
      %v1076 = vunpack.c.l.b16 %v303
      %v1077 = vunpack.c.l.b16 %v304
      %v1078 = vunpack.c.l.b16 %v305
      %v1079 = vunpack.c.l.b16 %v306
      %v1080 = vunpack.c.l.b16 %v307
      %v1081 = vunpack.c.l.b16 %v308
      %v1082 = vpack.c.b16 %v1051, %v1050
      %v1083 = vpack.c.b16 %v1053, %v1052
      %v1084 = vpack.c.b16 %v1055, %v1054
      %v1085 = vpack.c.b16 %v1057, %v1056
      %v1086 = vpack.c.b16 %v1059, %v1058
      %v1087 = vpack.c.b16 %v1061, %v1060
      %v1088 = vpack.c.b16 %v1063, %v1062
      %v1089 = vpack.c.b16 %v1065, %v1064
      %v1090 = vpack.c.b16 %v1067, %v1066
      %v1091 = vpack.c.b16 %v1069, %v1068
      %v1092 = vpack.c.b16 %v1071, %v1070
      %v1093 = vpack.c.b16 %v1073, %v1072
      %v1094 = vpack.c.b16 %v1075, %v1074
      %v1095 = vpack.c.b16 %v1077, %v1076
      %v1096 = vpack.c.b16 %v1079, %v1078
      %v1097 = vpack.c.b16 %v1081, %v1080
      %v1130 = vunpack.c.l.b16 %v309
      %v1131 = vunpack.c.l.b16 %v310
      %v1132 = vunpack.c.l.b16 %v311
      %v1133 = vunpack.c.l.b16 %v312
      %v1134 = vunpack.c.l.b16 %v313
      %v1135 = vunpack.c.l.b16 %v314
      %v1136 = vunpack.c.l.b16 %v315
      %v1137 = vunpack.c.l.b16 %v316
      %v1138 = vunpack.c.l.b16 %v317
      %v1139 = vunpack.c.l.b16 %v318
      %v1140 = vunpack.c.l.b16 %v319
      %v1141 = vunpack.c.l.b16 %v320
      %v1142 = vunpack.c.l.b16 %v321
      %v1143 = vunpack.c.l.b16 %v322
      %v1144 = vunpack.c.l.b16 %v323
      %v1145 = vunpack.c.l.b16 %v324
      %v1146 = vpack.c.b16 %v1131, %v1130
      %v1147 = vpack.c.b16 %v1133, %v1132
      %v1148 = vpack.c.b16 %v1135, %v1134
      %v1149 = vpack.c.b16 %v1137, %v1136
      %v1150 = vpack.c.b16 %v1139, %v1138
      %v1151 = vpack.c.b16 %v1141, %v1140
      %v1152 = vpack.c.b16 %v1143, %v1142
      %v1153 = vpack.c.b16 %v1145, %v1144
      %1162 = vmatprep.subr.bf16.mxu0 0
      %1163 = vmatpush1.bf16.msra.mxu0 %v1146
      %1164 = vmatprep.subr.bf16.mxu0 0
      %1165 = vmatpush1.bf16.msra.mxu0 %v1147
      %1166 = vmatprep.subr.bf16.mxu0 0
      %1167 = vmatpush1.bf16.msra.mxu0 %v1148
      %1168 = vmatprep.subr.bf16.mxu0 0
      %1169 = vmatpush1.bf16.msra.mxu0 %v1149
      %1170 = vmatprep.subr.bf16.mxu0 0
      %1171 = vmatpush1.bf16.msra.mxu0 %v1150
      %1172 = vmatprep.subr.bf16.mxu0 0
      %1173 = vmatpush1.bf16.msra.mxu0 %v1151
      %1174 = vmatprep.subr.bf16.mxu0 0
      %1175 = vmatpush1.bf16.msra.mxu0 %v1152
      %1176 = vmatprep.subr.bf16.mxu0 0
      %1177 = vmatpush1.bf16.msra.mxu0 %v1153
      %1178 = vmatprep.subr.bf16.mxu0 0
      %1179 = vmatpush1.bf16.msra.mxu0 0
      %1180 = vmatprep.subr.bf16.mxu0 0
      %1181 = vmatpush1.bf16.msra.mxu0 0
      %1182 = vmatprep.subr.bf16.mxu0 0
      %1183 = vmatpush1.bf16.msra.mxu0 0
      %1184 = vmatprep.subr.bf16.mxu0 0
      %1185 = vmatpush1.bf16.msra.mxu0 0
      %1186 = vmatprep.subr.bf16.mxu0 0
      %1187 = vmatpush1.bf16.msra.mxu0 0
      %1188 = vmatprep.subr.bf16.mxu0 0
      %1189 = vmatpush1.bf16.msra.mxu0 0
      %1190 = vmatprep.subr.bf16.mxu0 0
      %1191 = vmatpush1.bf16.msra.mxu0 0
      %1192 = vmatprep.subr.bf16.mxu0 0
      %1193 = vmatpush1.bf16.msra.mxu0 0
      %1194 = vmatprep.mubr.bf16.mxu0 0
      %1195 = vmatmul.mubr.bf16.gmra.mrb[0].mxu0 %v1082
      %v1196 = vpop.f32.mrb[0].mxu0
      %v1197 = vadd.f32 %v892, %v1196
      %v1198 = vpop.f32.mrb[0].mxu0
      %v1199 = vpop.f32.mrb[0].mxu0
      %v1200 = vadd.f32 %v895, %v1199
      %v1201 = vpop.f32.mrb[0].mxu0
      %1202 = vmatprep.mubr.bf16.mxu0 0
      %1203 = vmatmul.mubr.bf16.gmra.mrb[0].mxu0 %v1083
      %v1204 = vpop.f32.mrb[0].mxu0
      %v1205 = vadd.f32 %v900, %v1204
      %v1206 = vpop.f32.mrb[0].mxu0
      %v1207 = vpop.f32.mrb[0].mxu0
      %v1208 = vadd.f32 %v903, %v1207
      %v1209 = vpop.f32.mrb[0].mxu0
      %1210 = vmatprep.mubr.bf16.mxu0 0
      %1211 = vmatmul.mubr.bf16.gmra.mrb[0].mxu0 %v1084
      %v1212 = vpop.f32.mrb[0].mxu0
      %v1213 = vadd.f32 %v908, %v1212
      %v1214 = vpop.f32.mrb[0].mxu0
      %v1215 = vpop.f32.mrb[0].mxu0
      %v1216 = vadd.f32 %v911, %v1215
      %v1217 = vpop.f32.mrb[0].mxu0
      %1218 = vmatprep.mubr.bf16.mxu0 0
      %1219 = vmatmul.mubr.bf16.gmra.mrb[0].mxu0 %v1085
      %v1220 = vpop.f32.mrb[0].mxu0
      %v1221 = vadd.f32 %v916, %v1220
      %v1222 = vpop.f32.mrb[0].mxu0
      %v1223 = vpop.f32.mrb[0].mxu0
      %v1224 = vadd.f32 %v919, %v1223
      %v1225 = vpop.f32.mrb[0].mxu0
      %1226 = vmatprep.mubr.bf16.mxu0 0
      %1227 = vmatmul.mubr.bf16.gmra.mrb[0].mxu0 %v1086
      %v1228 = vpop.f32.mrb[0].mxu0
      %v1229 = vadd.f32 %v924, %v1228
      %v1230 = vpop.f32.mrb[0].mxu0
      %v1231 = vpop.f32.mrb[0].mxu0
      %v1232 = vadd.f32 %v927, %v1231
      %v1233 = vpop.f32.mrb[0].mxu0
      %1234 = vmatprep.mubr.bf16.mxu0 0
      %1235 = vmatmul.mubr.bf16.gmra.mrb[0].mxu0 %v1087
      %v1236 = vpop.f32.mrb[0].mxu0
      %v1237 = vadd.f32 %v932, %v1236
      %v1238 = vpop.f32.mrb[0].mxu0
      %v1239 = vpop.f32.mrb[0].mxu0
      %v1240 = vadd.f32 %v935, %v1239
      %v1241 = vpop.f32.mrb[0].mxu0
      %1242 = vmatprep.mubr.bf16.mxu0 0
      %1243 = vmatmul.mubr.bf16.gmra.mrb[0].mxu0 %v1088
      %v1244 = vpop.f32.mrb[0].mxu0
      %v1245 = vadd.f32 %v940, %v1244
      %v1246 = vpop.f32.mrb[0].mxu0
      %v1247 = vpop.f32.mrb[0].mxu0
      %v1248 = vadd.f32 %v943, %v1247
      %v1249 = vpop.f32.mrb[0].mxu0
      %1250 = vmatprep.mubr.bf16.mxu0 0
      %1251 = vmatmul.mubr.bf16.gmra.mrb[0].mxu0 %v1089
      %v1252 = vpop.f32.mrb[0].mxu0
      %v1253 = vadd.f32 %v948, %v1252
      %v1254 = vpop.f32.mrb[0].mxu0
      %v1255 = vpop.f32.mrb[0].mxu0
      %v1256 = vadd.f32 %v951, %v1255
      %v1257 = vpop.f32.mrb[0].mxu0
      %1258 = vmatprep.mubr.bf16.mxu0 0
      %1259 = vmatmul.mubr.bf16.gmra.mrb[0].mxu0 %v1090
      %v1260 = vpop.f32.mrb[0].mxu0
      %v1261 = vadd.f32 %v956, %v1260
      %v1262 = vpop.f32.mrb[0].mxu0
      %v1263 = vpop.f32.mrb[0].mxu0
      %v1264 = vadd.f32 %v959, %v1263
      %v1265 = vpop.f32.mrb[0].mxu0
      %1266 = vmatprep.mubr.bf16.mxu0 0
      %1267 = vmatmul.mubr.bf16.gmra.mrb[0].mxu0 %v1091
      %v1268 = vpop.f32.mrb[0].mxu0
      %v1269 = vadd.f32 %v964, %v1268
      %v1270 = vpop.f32.mrb[0].mxu0
      %v1271 = vpop.f32.mrb[0].mxu0
      %v1272 = vadd.f32 %v967, %v1271
      %v1273 = vpop.f32.mrb[0].mxu0
      %1274 = vmatprep.mubr.bf16.mxu0 0
      %1275 = vmatmul.mubr.bf16.gmra.mrb[0].mxu0 %v1092
      %v1276 = vpop.f32.mrb[0].mxu0
      %v1277 = vadd.f32 %v972, %v1276
      %v1278 = vpop.f32.mrb[0].mxu0
      %v1279 = vpop.f32.mrb[0].mxu0
      %v1280 = vadd.f32 %v975, %v1279
      %v1281 = vpop.f32.mrb[0].mxu0
      %1282 = vmatprep.mubr.bf16.mxu0 0
      %1283 = vmatmul.mubr.bf16.gmra.mrb[0].mxu0 %v1093
      %v1284 = vpop.f32.mrb[0].mxu0
      %v1285 = vadd.f32 %v980, %v1284
      %v1286 = vpop.f32.mrb[0].mxu0
      %v1287 = vpop.f32.mrb[0].mxu0
      %v1288 = vadd.f32 %v983, %v1287
      %v1289 = vpop.f32.mrb[0].mxu0
      %1290 = vmatprep.mubr.bf16.mxu0 0
      %1291 = vmatmul.mubr.bf16.gmra.mrb[0].mxu0 %v1094
      %v1292 = vpop.f32.mrb[0].mxu0
      %v1293 = vadd.f32 %v988, %v1292
      %v1294 = vpop.f32.mrb[0].mxu0
      %v1295 = vpop.f32.mrb[0].mxu0
      %v1296 = vadd.f32 %v991, %v1295
      %v1297 = vpop.f32.mrb[0].mxu0
      %1298 = vmatprep.mubr.bf16.mxu0 0
      %1299 = vmatmul.mubr.bf16.gmra.mrb[0].mxu0 %v1095
      %v1300 = vpop.f32.mrb[0].mxu0
      %v1301 = vadd.f32 %v996, %v1300
      %v1302 = vpop.f32.mrb[0].mxu0
      %v1303 = vpop.f32.mrb[0].mxu0
      %v1304 = vadd.f32 %v999, %v1303
      %v1305 = vpop.f32.mrb[0].mxu0
      %1306 = vmatprep.mubr.bf16.mxu0 0
      %1307 = vmatmul.mubr.bf16.gmra.mrb[0].mxu0 %v1096
      %v1308 = vpop.f32.mrb[0].mxu0
      %v1309 = vadd.f32 %v1004, %v1308
      %v1310 = vpop.f32.mrb[0].mxu0
      %v1311 = vpop.f32.mrb[0].mxu0
      %v1312 = vadd.f32 %v1007, %v1311
      %v1313 = vpop.f32.mrb[0].mxu0
      %1314 = vmatprep.mubr.bf16.mxu0 0
      %1315 = vmatmul.mubr.bf16.gmra.mrb[0].mxu0 %v1097
      %v1316 = vpop.f32.mrb[0].mxu0
      %v1317 = vadd.f32 %v1012, %v1316
      %v1318 = vpop.f32.mrb[0].mxu0
      %v1319 = vpop.f32.mrb[0].mxu0
      %v1320 = vadd.f32 %v1015, %v1319
      %v1321 = vpop.f32.mrb[0].mxu0
      %1322 = vdwg.mxu0
      %v1323 = vld [vmem:[%s206] sm:$0xe]
      %v1324 = vld [vmem:[%s206 + $0xc] sm:$0xe]
      %v1325 = vld [vmem:[%s206 + $0x18] sm:$0xe]
      %v1326 = vld [vmem:[%s206 + $0x24] sm:$0xe]
      %v1327 = vld [vmem:[%s206 + $0x30] sm:$0xe]
      %v1328 = vld [vmem:[%s206 + $0x3c] sm:$0xe]
      %v1329 = vld [vmem:[%s206 + $0x48] sm:$0xe]
      %v1330 = vld [vmem:[%s206 + $0x54] sm:$0xe]
      %v1331 = vld [vmem:[%s206 + $0x60] sm:$0xe]
      %v1332 = vld [vmem:[%s206 + $0x6c] sm:$0xe]
      %v1333 = vld [vmem:[%s206 + $0x78] sm:$0xe]
      %v1334 = vld [vmem:[%s206 + $0x84] sm:$0xe]
      %v1335 = vld [vmem:[%s206 + $0x90] sm:$0xe]
      %v1336 = vld [vmem:[%s206 + $0x9c] sm:$0xe]
      %v1337 = vld [vmem:[%s206 + $0xa8] sm:$0xe]
      %v1338 = vld [vmem:[%s206 + $0xb4] sm:$0xe]
      %vm1371 = vcmask 1042432
      %vm1372 = vcmask 1046532
      %vm1373 = vmor %vm1371, %vm1372
      %v1374 = vrot.slane %v1323, 5
      %v1375 = vrot.slane %v1374, 4
      %v1376 = vrot.slane %v278, 5
      %v1377 = vsel %vm1373, %v1375, %v1376
      %v1378 = vrot.slane %v1376, 4
      %v1379 = vrot.slane %v325, 5
      %v1380 = vsel %vm1373, %v1378, %v1379
      %v1381 = vrot.slane %v1324, 5
      %v1382 = vrot.slane %v1381, 4
      %v1383 = vrot.slane %v280, 5
      %v1384 = vsel %vm1373, %v1382, %v1383
      %v1385 = vrot.slane %v1383, 4
      %v1386 = vrot.slane %v326, 5
      %v1387 = vsel %vm1373, %v1385, %v1386
      %v1388 = vrot.slane %v1325, 5
      %v1389 = vrot.slane %v1388, 4
      %v1390 = vrot.slane %v282, 5
      %v1391 = vsel %vm1373, %v1389, %v1390
      %v1392 = vrot.slane %v1390, 4
      %v1393 = vrot.slane %v327, 5
      %v1394 = vsel %vm1373, %v1392, %v1393
      %v1395 = vrot.slane %v1326, 5
      %v1396 = vrot.slane %v1395, 4
      %v1397 = vrot.slane %v284, 5
      %v1398 = vsel %vm1373, %v1396, %v1397
      %v1399 = vrot.slane %v1397, 4
      %v1400 = vrot.slane %v328, 5
      %v1401 = vsel %vm1373, %v1399, %v1400
      %v1402 = vrot.slane %v1327, 5
      %v1403 = vrot.slane %v1402, 4
      %v1404 = vrot.slane %v286, 5
      %v1405 = vsel %vm1373, %v1403, %v1404
      %v1406 = vrot.slane %v1404, 4
      %v1407 = vrot.slane %v329, 5
      %v1408 = vsel %vm1373, %v1406, %v1407
      %v1409 = vrot.slane %v1328, 5
      %v1410 = vrot.slane %v1409, 4
      %v1411 = vrot.slane %v288, 5
      %v1412 = vsel %vm1373, %v1410, %v1411
      %v1413 = vrot.slane %v1411, 4
      %v1414 = vrot.slane %v330, 5
      %v1415 = vsel %vm1373, %v1413, %v1414
      %v1416 = vrot.slane %v1329, 5
      %v1417 = vrot.slane %v1416, 4
      %v1418 = vrot.slane %v290, 5
      %v1419 = vsel %vm1373, %v1417, %v1418
      %v1420 = vrot.slane %v1418, 4
      %v1421 = vrot.slane %v331, 5
      %v1422 = vsel %vm1373, %v1420, %v1421
      %v1423 = vrot.slane %v1330, 5
      %v1424 = vrot.slane %v1423, 4
      %v1425 = vrot.slane %v292, 5
      %v1426 = vsel %vm1373, %v1424, %v1425
      %v1427 = vrot.slane %v1425, 4
      %v1428 = vrot.slane %v332, 5
      %v1429 = vsel %vm1373, %v1427, %v1428
      %v1430 = vrot.slane %v1331, 5
      %v1431 = vrot.slane %v1430, 4
      %v1432 = vrot.slane %v294, 5
      %v1433 = vsel %vm1373, %v1431, %v1432
      %v1434 = vrot.slane %v1432, 4
      %v1435 = vrot.slane %v333, 5
      %v1436 = vsel %vm1373, %v1434, %v1435
      %v1437 = vrot.slane %v1332, 5
      %v1438 = vrot.slane %v1437, 4
      %v1439 = vrot.slane %v296, 5
      %v1440 = vsel %vm1373, %v1438, %v1439
      %v1441 = vrot.slane %v1439, 4
      %v1442 = vrot.slane %v334, 5
      %v1443 = vsel %vm1373, %v1441, %v1442
      %v1444 = vrot.slane %v1333, 5
      %v1445 = vrot.slane %v1444, 4
      %v1446 = vrot.slane %v298, 5
      %v1447 = vsel %vm1373, %v1445, %v1446
      %v1448 = vrot.slane %v1446, 4
      %v1449 = vrot.slane %v335, 5
      %v1450 = vsel %vm1373, %v1448, %v1449
      %v1451 = vrot.slane %v1334, 5
      %v1452 = vrot.slane %v1451, 4
      %v1453 = vrot.slane %v300, 5
      %v1454 = vsel %vm1373, %v1452, %v1453
      %v1455 = vrot.slane %v1453, 4
      %v1456 = vrot.slane %v336, 5
      %v1457 = vsel %vm1373, %v1455, %v1456
      %v1458 = vrot.slane %v1335, 5
      %v1459 = vrot.slane %v1458, 4
      %v1460 = vrot.slane %v302, 5
      %v1461 = vsel %vm1373, %v1459, %v1460
      %v1462 = vrot.slane %v1460, 4
      %v1463 = vrot.slane %v337, 5
      %v1464 = vsel %vm1373, %v1462, %v1463
      %v1465 = vrot.slane %v1336, 5
      %v1466 = vrot.slane %v1465, 4
      %v1467 = vrot.slane %v304, 5
      %v1468 = vsel %vm1373, %v1466, %v1467
      %v1469 = vrot.slane %v1467, 4
      %v1470 = vrot.slane %v338, 5
      %v1471 = vsel %vm1373, %v1469, %v1470
      %v1472 = vrot.slane %v1337, 5
      %v1473 = vrot.slane %v1472, 4
      %v1474 = vrot.slane %v306, 5
      %v1475 = vsel %vm1373, %v1473, %v1474
      %v1476 = vrot.slane %v1474, 4
      %v1477 = vrot.slane %v339, 5
      %v1478 = vsel %vm1373, %v1476, %v1477
      %v1479 = vrot.slane %v1338, 5
      %v1480 = vrot.slane %v1479, 4
      %v1481 = vrot.slane %v308, 5
      %v1482 = vsel %vm1373, %v1480, %v1481
      %v1483 = vrot.slane %v1481, 4
      %v1484 = vrot.slane %v340, 5
      %v1485 = vsel %vm1373, %v1483, %v1484
      %s1486 = scalar_lea.vmem %s210, 128
      %v1487 = vld [vmem:[%s1486] sm:$0xf]
      %v1488 = vld [vmem:[%s1486 + $0x4] sm:$0xf]
      %v1489 = vld [vmem:[%s1486 + $0x8] sm:$0xf]
      %v1490 = vld [vmem:[%s1486 + $0xc] sm:$0xf]
      %v1491 = vld [vmem:[%s1486 + $0x10] sm:$0xf]
      %v1492 = vld [vmem:[%s1486 + $0x14] sm:$0xf]
      %v1493 = vld [vmem:[%s1486 + $0x18] sm:$0xf]
      %v1494 = vld [vmem:[%s1486 + $0x1c] sm:$0xf]
      %v1495 = vld [vmem:[%s1486 + $0x20] sm:$0xf]
      %v1496 = vld [vmem:[%s1486 + $0x24] sm:$0xf]
      %v1497 = vld [vmem:[%s1486 + $0x28] sm:$0xf]
      %v1498 = vld [vmem:[%s1486 + $0x2c] sm:$0xf]
      %v1499 = vld [vmem:[%s1486 + $0x30] sm:$0xf]
      %v1500 = vld [vmem:[%s1486 + $0x34] sm:$0xf]
      %v1501 = vld [vmem:[%s1486 + $0x38] sm:$0xf]
      %v1502 = vld [vmem:[%s1486 + $0x3c] sm:$0xf]
      %v1503 = vunpack.c.l.b16 %v1377
      %v1504 = vunpack.c.l.b16 %v1380
      %v1505 = vunpack.c.l.b16 %v1384
      %v1506 = vunpack.c.l.b16 %v1387
      %v1507 = vunpack.c.l.b16 %v1391
      %v1508 = vunpack.c.l.b16 %v1394
      %v1509 = vunpack.c.l.b16 %v1398
      %v1510 = vunpack.c.l.b16 %v1401
      %v1511 = vunpack.c.l.b16 %v1405
      %v1512 = vunpack.c.l.b16 %v1408
      %v1513 = vunpack.c.l.b16 %v1412
      %v1514 = vunpack.c.l.b16 %v1415
      %v1515 = vunpack.c.l.b16 %v1419
      %v1516 = vunpack.c.l.b16 %v1422
      %v1517 = vunpack.c.l.b16 %v1426
      %v1518 = vunpack.c.l.b16 %v1429
      %v1519 = vunpack.c.l.b16 %v1433
      %v1520 = vunpack.c.l.b16 %v1436
      %v1521 = vunpack.c.l.b16 %v1440
      %v1522 = vunpack.c.l.b16 %v1443
      %v1523 = vunpack.c.l.b16 %v1447
      %v1524 = vunpack.c.l.b16 %v1450
      %v1525 = vunpack.c.l.b16 %v1454
      %v1526 = vunpack.c.l.b16 %v1457
      %v1527 = vunpack.c.l.b16 %v1461
      %v1528 = vunpack.c.l.b16 %v1464
      %v1529 = vunpack.c.l.b16 %v1468
      %v1530 = vunpack.c.l.b16 %v1471
      %v1531 = vunpack.c.l.b16 %v1475
      %v1532 = vunpack.c.l.b16 %v1478
      %v1533 = vunpack.c.l.b16 %v1482
      %v1534 = vunpack.c.l.b16 %v1485
      %v1535 = vpack.c.b16 %v1504, %v1503
      %v1536 = vpack.c.b16 %v1506, %v1505
      %v1537 = vpack.c.b16 %v1508, %v1507
      %v1538 = vpack.c.b16 %v1510, %v1509
      %v1539 = vpack.c.b16 %v1512, %v1511
      %v1540 = vpack.c.b16 %v1514, %v1513
      %v1541 = vpack.c.b16 %v1516, %v1515
      %v1542 = vpack.c.b16 %v1518, %v1517
      %v1543 = vpack.c.b16 %v1520, %v1519
      %v1544 = vpack.c.b16 %v1522, %v1521
      %v1545 = vpack.c.b16 %v1524, %v1523
      %v1546 = vpack.c.b16 %v1526, %v1525
      %v1547 = vpack.c.b16 %v1528, %v1527
      %v1548 = vpack.c.b16 %v1530, %v1529
      %v1549 = vpack.c.b16 %v1532, %v1531
      %v1550 = vpack.c.b16 %v1534, %v1533
      %v1583 = vunpack.c.l.b16 %v1487
      %v1584 = vunpack.c.l.b16 %v1488
      %v1585 = vunpack.c.l.b16 %v1489
      %v1586 = vunpack.c.l.b16 %v1490
      %v1587 = vunpack.c.l.b16 %v1491
      %v1588 = vunpack.c.l.b16 %v1492
      %v1589 = vunpack.c.l.b16 %v1493
      %v1590 = vunpack.c.l.b16 %v1494
      %v1591 = vunpack.c.l.b16 %v1495
      %v1592 = vunpack.c.l.b16 %v1496
      %v1593 = vunpack.c.l.b16 %v1497
      %v1594 = vunpack.c.l.b16 %v1498
      %v1595 = vunpack.c.l.b16 %v1499
      %v1596 = vunpack.c.l.b16 %v1500
      %v1597 = vunpack.c.l.b16 %v1501
      %v1598 = vunpack.c.l.b16 %v1502
      %v1599 = vpack.c.b16 %v1584, %v1583
      %v1600 = vpack.c.b16 %v1586, %v1585
      %v1601 = vpack.c.b16 %v1588, %v1587
      %v1602 = vpack.c.b16 %v1590, %v1589
      %v1603 = vpack.c.b16 %v1592, %v1591
      %v1604 = vpack.c.b16 %v1594, %v1593
      %v1605 = vpack.c.b16 %v1596, %v1595
      %v1606 = vpack.c.b16 %v1598, %v1597
      %1615 = vmatprep.subr.bf16.mxu0 0
      %1616 = vmatpush1.bf16.msra.mxu0 %v1599
      %1617 = vmatprep.subr.bf16.mxu0 0
      %1618 = vmatpush1.bf16.msra.mxu0 %v1600
      %1619 = vmatprep.subr.bf16.mxu0 0
      %1620 = vmatpush1.bf16.msra.mxu0 %v1601
      %1621 = vmatprep.subr.bf16.mxu0 0
      %1622 = vmatpush1.bf16.msra.mxu0 %v1602
      %1623 = vmatprep.subr.bf16.mxu0 0
      %1624 = vmatpush1.bf16.msra.mxu0 %v1603
      %1625 = vmatprep.subr.bf16.mxu0 0
      %1626 = vmatpush1.bf16.msra.mxu0 %v1604
      %1627 = vmatprep.subr.bf16.mxu0 0
      %1628 = vmatpush1.bf16.msra.mxu0 %v1605
      %1629 = vmatprep.subr.bf16.mxu0 0
      %1630 = vmatpush1.bf16.msra.mxu0 %v1606
      %1631 = vmatprep.subr.bf16.mxu0 0
      %1632 = vmatpush1.bf16.msra.mxu0 0
      %1633 = vmatprep.subr.bf16.mxu0 0
      %1634 = vmatpush1.bf16.msra.mxu0 0
      %1635 = vmatprep.subr.bf16.mxu0 0
      %1636 = vmatpush1.bf16.msra.mxu0 0
      %1637 = vmatprep.subr.bf16.mxu0 0
      %1638 = vmatpush1.bf16.msra.mxu0 0
      %1639 = vmatprep.subr.bf16.mxu0 0
      %1640 = vmatpush1.bf16.msra.mxu0 0
      %1641 = vmatprep.subr.bf16.mxu0 0
      %1642 = vmatpush1.bf16.msra.mxu0 0
      %1643 = vmatprep.subr.bf16.mxu0 0
      %1644 = vmatpush1.bf16.msra.mxu0 0
      %1645 = vmatprep.subr.bf16.mxu0 0
      %1646 = vmatpush1.bf16.msra.mxu0 0
      %1647 = vmatprep.mubr.bf16.mxu0 0
      %1648 = vmatmul.mubr.bf16.gmra.mrb[0].mxu0 %v1535
      %v1649 = vpop.f32.mrb[0].mxu0
      %v1650 = vadd.f32 0.0, %v1649
      %v1651 = vpop.f32.mrb[0].mxu0
      %v1652 = vpop.f32.mrb[0].mxu0
      %v1653 = vadd.f32 0.0, %v1652
      %v1654 = vpop.f32.mrb[0].mxu0
      %1655 = vmatprep.mubr.bf16.mxu0 0
      %1656 = vmatmul.mubr.bf16.gmra.mrb[0].mxu0 %v1536
      %v1657 = vpop.f32.mrb[0].mxu0
      %v1658 = vadd.f32 0.0, %v1657
      %v1659 = vpop.f32.mrb[0].mxu0
      %v1660 = vpop.f32.mrb[0].mxu0
      %v1661 = vadd.f32 0.0, %v1660
      %v1662 = vpop.f32.mrb[0].mxu0
      %1663 = vmatprep.mubr.bf16.mxu0 0
      %1664 = vmatmul.mubr.bf16.gmra.mrb[0].mxu0 %v1537
      %v1665 = vpop.f32.mrb[0].mxu0
      %v1666 = vadd.f32 0.0, %v1665
      %v1667 = vpop.f32.mrb[0].mxu0
      %v1668 = vpop.f32.mrb[0].mxu0
      %v1669 = vadd.f32 0.0, %v1668
      %v1670 = vpop.f32.mrb[0].mxu0
      %1671 = vmatprep.mubr.bf16.mxu0 0
      %1672 = vmatmul.mubr.bf16.gmra.mrb[0].mxu0 %v1538
      %v1673 = vpop.f32.mrb[0].mxu0
      %v1674 = vadd.f32 0.0, %v1673
      %v1675 = vpop.f32.mrb[0].mxu0
      %v1676 = vpop.f32.mrb[0].mxu0
      %v1677 = vadd.f32 0.0, %v1676
      %v1678 = vpop.f32.mrb[0].mxu0
      %1679 = vmatprep.mubr.bf16.mxu0 0
      %1680 = vmatmul.mubr.bf16.gmra.mrb[0].mxu0 %v1539
      %v1681 = vpop.f32.mrb[0].mxu0
      %v1682 = vadd.f32 0.0, %v1681
      %v1683 = vpop.f32.mrb[0].mxu0
      %v1684 = vpop.f32.mrb[0].mxu0
      %v1685 = vadd.f32 0.0, %v1684
      %v1686 = vpop.f32.mrb[0].mxu0
      %1687 = vmatprep.mubr.bf16.mxu0 0
      %1688 = vmatmul.mubr.bf16.gmra.mrb[0].mxu0 %v1540
      %v1689 = vpop.f32.mrb[0].mxu0
      %v1690 = vadd.f32 0.0, %v1689
      %v1691 = vpop.f32.mrb[0].mxu0
      %v1692 = vpop.f32.mrb[0].mxu0
      %v1693 = vadd.f32 0.0, %v1692
      %v1694 = vpop.f32.mrb[0].mxu0
      %1695 = vmatprep.mubr.bf16.mxu0 0
      %1696 = vmatmul.mubr.bf16.gmra.mrb[0].mxu0 %v1541
      %v1697 = vpop.f32.mrb[0].mxu0
      %v1698 = vadd.f32 0.0, %v1697
      %v1699 = vpop.f32.mrb[0].mxu0
      %v1700 = vpop.f32.mrb[0].mxu0
      %v1701 = vadd.f32 0.0, %v1700
      %v1702 = vpop.f32.mrb[0].mxu0
      %1703 = vmatprep.mubr.bf16.mxu0 0
      %1704 = vmatmul.mubr.bf16.gmra.mrb[0].mxu0 %v1542
      %v1705 = vpop.f32.mrb[0].mxu0
      %v1706 = vadd.f32 0.0, %v1705
      %v1707 = vpop.f32.mrb[0].mxu0
      %v1708 = vpop.f32.mrb[0].mxu0
      %v1709 = vadd.f32 0.0, %v1708
      %v1710 = vpop.f32.mrb[0].mxu0
      %1711 = vmatprep.mubr.bf16.mxu0 0
      %1712 = vmatmul.mubr.bf16.gmra.mrb[0].mxu0 %v1543
      %v1713 = vpop.f32.mrb[0].mxu0
      %v1714 = vadd.f32 0.0, %v1713
      %v1715 = vpop.f32.mrb[0].mxu0
      %v1716 = vpop.f32.mrb[0].mxu0
      %v1717 = vadd.f32 0.0, %v1716
      %v1718 = vpop.f32.mrb[0].mxu0
      %1719 = vmatprep.mubr.bf16.mxu0 0
      %1720 = vmatmul.mubr.bf16.gmra.mrb[0].mxu0 %v1544
      %v1721 = vpop.f32.mrb[0].mxu0
      %v1722 = vadd.f32 0.0, %v1721
      %v1723 = vpop.f32.mrb[0].mxu0
      %v1724 = vpop.f32.mrb[0].mxu0
      %v1725 = vadd.f32 0.0, %v1724
      %v1726 = vpop.f32.mrb[0].mxu0
      %1727 = vmatprep.mubr.bf16.mxu0 0
      %1728 = vmatmul.mubr.bf16.gmra.mrb[0].mxu0 %v1545
      %v1729 = vpop.f32.mrb[0].mxu0
      %v1730 = vadd.f32 0.0, %v1729
      %v1731 = vpop.f32.mrb[0].mxu0
      %v1732 = vpop.f32.mrb[0].mxu0
      %v1733 = vadd.f32 0.0, %v1732
      %v1734 = vpop.f32.mrb[0].mxu0
      %1735 = vmatprep.mubr.bf16.mxu0 0
      %1736 = vmatmul.mubr.bf16.gmra.mrb[0].mxu0 %v1546
      %v1737 = vpop.f32.mrb[0].mxu0
      %v1738 = vadd.f32 0.0, %v1737
      %v1739 = vpop.f32.mrb[0].mxu0
      %v1740 = vpop.f32.mrb[0].mxu0
      %v1741 = vadd.f32 0.0, %v1740
      %v1742 = vpop.f32.mrb[0].mxu0
      %1743 = vmatprep.mubr.bf16.mxu0 0
      %1744 = vmatmul.mubr.bf16.gmra.mrb[0].mxu0 %v1547
      %v1745 = vpop.f32.mrb[0].mxu0
      %v1746 = vadd.f32 0.0, %v1745
      %v1747 = vpop.f32.mrb[0].mxu0
      %v1748 = vpop.f32.mrb[0].mxu0
      %v1749 = vadd.f32 0.0, %v1748
      %v1750 = vpop.f32.mrb[0].mxu0
      %1751 = vmatprep.mubr.bf16.mxu0 0
      %1752 = vmatmul.mubr.bf16.gmra.mrb[0].mxu0 %v1548
      %v1753 = vpop.f32.mrb[0].mxu0
      %v1754 = vadd.f32 0.0, %v1753
      %v1755 = vpop.f32.mrb[0].mxu0
      %v1756 = vpop.f32.mrb[0].mxu0
      %v1757 = vadd.f32 0.0, %v1756
      %v1758 = vpop.f32.mrb[0].mxu0
      %1759 = vmatprep.mubr.bf16.mxu0 0
      %1760 = vmatmul.mubr.bf16.gmra.mrb[0].mxu0 %v1549
      %v1761 = vpop.f32.mrb[0].mxu0
      %v1762 = vadd.f32 0.0, %v1761
      %v1763 = vpop.f32.mrb[0].mxu0
      %v1764 = vpop.f32.mrb[0].mxu0
      %v1765 = vadd.f32 0.0, %v1764
      %v1766 = vpop.f32.mrb[0].mxu0
      %1767 = vmatprep.mubr.bf16.mxu0 0
      %1768 = vmatmul.mubr.bf16.gmra.mrb[0].mxu0 %v1550
      %v1769 = vpop.f32.mrb[0].mxu0
      %v1770 = vadd.f32 0.0, %v1769
      %v1771 = vpop.f32.mrb[0].mxu0
      %v1772 = vpop.f32.mrb[0].mxu0
      %v1773 = vadd.f32 0.0, %v1772
      %v1774 = vpop.f32.mrb[0].mxu0
      %1775 = vdwg.mxu0
      %v1776 = vadd.f32 %v1197, %v1650
      %v1777 = vadd.f32 %v1200, %v1653
      %v1778 = vadd.f32 %v1205, %v1658
      %v1779 = vadd.f32 %v1208, %v1661
      %v1780 = vadd.f32 %v1213, %v1666
      %v1781 = vadd.f32 %v1216, %v1669
      %v1782 = vadd.f32 %v1221, %v1674
      %v1783 = vadd.f32 %v1224, %v1677
      %v1784 = vadd.f32 %v1229, %v1682
      %v1785 = vadd.f32 %v1232, %v1685
      %v1786 = vadd.f32 %v1237, %v1690
      %v1787 = vadd.f32 %v1240, %v1693
      %v1788 = vadd.f32 %v1245, %v1698
      %v1789 = vadd.f32 %v1248, %v1701
      %v1790 = vadd.f32 %v1253, %v1706
      %v1791 = vadd.f32 %v1256, %v1709
      %v1792 = vadd.f32 %v1261, %v1714
      %v1793 = vadd.f32 %v1264, %v1717
      %v1794 = vadd.f32 %v1269, %v1722
      %v1795 = vadd.f32 %v1272, %v1725
      %v1796 = vadd.f32 %v1277, %v1730
      %v1797 = vadd.f32 %v1280, %v1733
      %v1798 = vadd.f32 %v1285, %v1738
      %v1799 = vadd.f32 %v1288, %v1741
      %v1800 = vadd.f32 %v1293, %v1746
      %v1801 = vadd.f32 %v1296, %v1749
      %v1802 = vadd.f32 %v1301, %v1754
      %v1803 = vadd.f32 %v1304, %v1757
      %v1804 = vadd.f32 %v1309, %v1762
      %v1805 = vadd.f32 %v1312, %v1765
      %v1806 = vadd.f32 %v1317, %v1770
      %v1807 = vadd.f32 %v1320, %v1773
      %s1808 = scalar_lea.vmem %s206, 12
      %v1809 = vld [vmem:[%s1808] sm:$0xf]
      %v1810 = vld [vmem:[%s1808 + $0x4] sm:$0xf]
      %v1811 = vld [vmem:[%s1808 + $0xc] sm:$0xf]
      %v1812 = vld [vmem:[%s1808 + $0x10] sm:$0xf]
      %v1813 = vld [vmem:[%s1808 + $0x18] sm:$0xf]
      %v1814 = vld [vmem:[%s1808 + $0x1c] sm:$0xf]
      %v1815 = vld [vmem:[%s1808 + $0x24] sm:$0xf]
      %v1816 = vld [vmem:[%s1808 + $0x28] sm:$0xf]
      %v1817 = vld [vmem:[%s1808 + $0x30] sm:$0xf]
      %v1818 = vld [vmem:[%s1808 + $0x34] sm:$0xf]
      %v1819 = vld [vmem:[%s1808 + $0x3c] sm:$0xf]
      %v1820 = vld [vmem:[%s1808 + $0x40] sm:$0xf]
      %v1821 = vld [vmem:[%s1808 + $0x48] sm:$0xf]
      %v1822 = vld [vmem:[%s1808 + $0x4c] sm:$0xf]
      %v1823 = vld [vmem:[%s1808 + $0x54] sm:$0xf]
      %v1824 = vld [vmem:[%s1808 + $0x58] sm:$0xf]
      %v1825 = vld [vmem:[%s1808 + $0x60] sm:$0xf]
      %v1826 = vld [vmem:[%s1808 + $0x64] sm:$0xf]
      %v1827 = vld [vmem:[%s1808 + $0x6c] sm:$0xf]
      %v1828 = vld [vmem:[%s1808 + $0x70] sm:$0xf]
      %v1829 = vld [vmem:[%s1808 + $0x78] sm:$0xf]
      %v1830 = vld [vmem:[%s1808 + $0x7c] sm:$0xf]
      %v1831 = vld [vmem:[%s1808 + $0x84] sm:$0xf]
      %v1832 = vld [vmem:[%s1808 + $0x88] sm:$0xf]
      %v1833 = vld [vmem:[%s1808 + $0x90] sm:$0xf]
      %v1834 = vld [vmem:[%s1808 + $0x94] sm:$0xf]
      %v1835 = vld [vmem:[%s1808 + $0x9c] sm:$0xf]
      %v1836 = vld [vmem:[%s1808 + $0xa0] sm:$0xf]
      %v1837 = vld [vmem:[%s1808 + $0xa8] sm:$0xf]
      %v1838 = vld [vmem:[%s1808 + $0xac] sm:$0xf]
      %v1839 = vld [vmem:[%s1808 + $0xb4] sm:$0xf]
      %v1840 = vld [vmem:[%s1808 + $0xb8] sm:$0xf]
      %s1841 = scalar_lea.vmem %s210, 192
      %v1842 = vld [vmem:[%s1841] sm:$0xf]
      %v1843 = vld [vmem:[%s1841 + $0x4] sm:$0xf]
      %v1844 = vld [vmem:[%s1841 + $0x8] sm:$0xf]
      %v1845 = vld [vmem:[%s1841 + $0xc] sm:$0xf]
      %v1846 = vld [vmem:[%s1841 + $0x10] sm:$0xf]
      %v1847 = vld [vmem:[%s1841 + $0x14] sm:$0xf]
      %v1848 = vld [vmem:[%s1841 + $0x18] sm:$0xf]
      %v1849 = vld [vmem:[%s1841 + $0x1c] sm:$0xf]
      %v1850 = vld [vmem:[%s1841 + $0x20] sm:$0xf]
      %v1851 = vld [vmem:[%s1841 + $0x24] sm:$0xf]
      %v1852 = vld [vmem:[%s1841 + $0x28] sm:$0xf]
      %v1853 = vld [vmem:[%s1841 + $0x2c] sm:$0xf]
      %v1854 = vld [vmem:[%s1841 + $0x30] sm:$0xf]
      %v1855 = vld [vmem:[%s1841 + $0x34] sm:$0xf]
      %v1856 = vld [vmem:[%s1841 + $0x38] sm:$0xf]
      %v1857 = vld [vmem:[%s1841 + $0x3c] sm:$0xf]
      %v1890 = vunpack.c.l.b16 %v1809
      %v1891 = vunpack.c.l.b16 %v1810
      %v1892 = vunpack.c.l.b16 %v1811
      %v1893 = vunpack.c.l.b16 %v1812
      %v1894 = vunpack.c.l.b16 %v1813
      %v1895 = vunpack.c.l.b16 %v1814
      %v1896 = vunpack.c.l.b16 %v1815
      %v1897 = vunpack.c.l.b16 %v1816
      %v1898 = vunpack.c.l.b16 %v1817
      %v1899 = vunpack.c.l.b16 %v1818
      %v1900 = vunpack.c.l.b16 %v1819
      %v1901 = vunpack.c.l.b16 %v1820
      %v1902 = vunpack.c.l.b16 %v1821
      %v1903 = vunpack.c.l.b16 %v1822
      %v1904 = vunpack.c.l.b16 %v1823
      %v1905 = vunpack.c.l.b16 %v1824
      %v1906 = vunpack.c.l.b16 %v1825
      %v1907 = vunpack.c.l.b16 %v1826
      %v1908 = vunpack.c.l.b16 %v1827
      %v1909 = vunpack.c.l.b16 %v1828
      %v1910 = vunpack.c.l.b16 %v1829
      %v1911 = vunpack.c.l.b16 %v1830
      %v1912 = vunpack.c.l.b16 %v1831
      %v1913 = vunpack.c.l.b16 %v1832
      %v1914 = vunpack.c.l.b16 %v1833
      %v1915 = vunpack.c.l.b16 %v1834
      %v1916 = vunpack.c.l.b16 %v1835
      %v1917 = vunpack.c.l.b16 %v1836
      %v1918 = vunpack.c.l.b16 %v1837
      %v1919 = vunpack.c.l.b16 %v1838
      %v1920 = vunpack.c.l.b16 %v1839
      %v1921 = vunpack.c.l.b16 %v1840
      %v1922 = vpack.c.b16 %v1891, %v1890
      %v1923 = vpack.c.b16 %v1893, %v1892
      %v1924 = vpack.c.b16 %v1895, %v1894
      %v1925 = vpack.c.b16 %v1897, %v1896
      %v1926 = vpack.c.b16 %v1899, %v1898
      %v1927 = vpack.c.b16 %v1901, %v1900
      %v1928 = vpack.c.b16 %v1903, %v1902
      %v1929 = vpack.c.b16 %v1905, %v1904
      %v1930 = vpack.c.b16 %v1907, %v1906
      %v1931 = vpack.c.b16 %v1909, %v1908
      %v1932 = vpack.c.b16 %v1911, %v1910
      %v1933 = vpack.c.b16 %v1913, %v1912
      %v1934 = vpack.c.b16 %v1915, %v1914
      %v1935 = vpack.c.b16 %v1917, %v1916
      %v1936 = vpack.c.b16 %v1919, %v1918
      %v1937 = vpack.c.b16 %v1921, %v1920
      %v1970 = vunpack.c.l.b16 %v1842
      %v1971 = vunpack.c.l.b16 %v1843
      %v1972 = vunpack.c.l.b16 %v1844
      %v1973 = vunpack.c.l.b16 %v1845
      %v1974 = vunpack.c.l.b16 %v1846
      %v1975 = vunpack.c.l.b16 %v1847
      %v1976 = vunpack.c.l.b16 %v1848
      %v1977 = vunpack.c.l.b16 %v1849
      %v1978 = vunpack.c.l.b16 %v1850
      %v1979 = vunpack.c.l.b16 %v1851
      %v1980 = vunpack.c.l.b16 %v1852
      %v1981 = vunpack.c.l.b16 %v1853
      %v1982 = vunpack.c.l.b16 %v1854
      %v1983 = vunpack.c.l.b16 %v1855
      %v1984 = vunpack.c.l.b16 %v1856
      %v1985 = vunpack.c.l.b16 %v1857
      %v1986 = vpack.c.b16 %v1971, %v1970
      %v1987 = vpack.c.b16 %v1973, %v1972
      %v1988 = vpack.c.b16 %v1975, %v1974
      %v1989 = vpack.c.b16 %v1977, %v1976
      %v1990 = vpack.c.b16 %v1979, %v1978
      %v1991 = vpack.c.b16 %v1981, %v1980
      %v1992 = vpack.c.b16 %v1983, %v1982
      %v1993 = vpack.c.b16 %v1985, %v1984
      %2002 = vmatprep.subr.bf16.mxu0 0
      %2003 = vmatpush1.bf16.msra.mxu0 %v1986
      %2004 = vmatprep.subr.bf16.mxu0 0
      %2005 = vmatpush1.bf16.msra.mxu0 %v1987
      %2006 = vmatprep.subr.bf16.mxu0 0
      %2007 = vmatpush1.bf16.msra.mxu0 %v1988
      %2008 = vmatprep.subr.bf16.mxu0 0
      %2009 = vmatpush1.bf16.msra.mxu0 %v1989
      %2010 = vmatprep.subr.bf16.mxu0 0
      %2011 = vmatpush1.bf16.msra.mxu0 %v1990
      %2012 = vmatprep.subr.bf16.mxu0 0
      %2013 = vmatpush1.bf16.msra.mxu0 %v1991
      %2014 = vmatprep.subr.bf16.mxu0 0
      %2015 = vmatpush1.bf16.msra.mxu0 %v1992
      %2016 = vmatprep.subr.bf16.mxu0 0
      %2017 = vmatpush1.bf16.msra.mxu0 %v1993
      %2018 = vmatprep.subr.bf16.mxu0 0
      %2019 = vmatpush1.bf16.msra.mxu0 0
      %2020 = vmatprep.subr.bf16.mxu0 0
      %2021 = vmatpush1.bf16.msra.mxu0 0
      %2022 = vmatprep.subr.bf16.mxu0 0
      %2023 = vmatpush1.bf16.msra.mxu0 0
      %2024 = vmatprep.subr.bf16.mxu0 0
      %2025 = vmatpush1.bf16.msra.mxu0 0
      %2026 = vmatprep.subr.bf16.mxu0 0
      %2027 = vmatpush1.bf16.msra.mxu0 0
      %2028 = vmatprep.subr.bf16.mxu0 0
      %2029 = vmatpush1.bf16.msra.mxu0 0
      %2030 = vmatprep.subr.bf16.mxu0 0
      %2031 = vmatpush1.bf16.msra.mxu0 0
      %2032 = vmatprep.subr.bf16.mxu0 0
      %2033 = vmatpush1.bf16.msra.mxu0 0
      %2034 = vmatprep.mubr.bf16.mxu0 0
      %2035 = vmatmul.mubr.bf16.gmra.mrb[0].mxu0 %v1922
      %v2036 = vpop.f32.mrb[0].mxu0
      %v2037 = vadd.f32 0.0, %v2036
      %v2038 = vpop.f32.mrb[0].mxu0
      %v2039 = vpop.f32.mrb[0].mxu0
      %v2040 = vadd.f32 0.0, %v2039
      %v2041 = vpop.f32.mrb[0].mxu0
      %2042 = vmatprep.mubr.bf16.mxu0 0
      %2043 = vmatmul.mubr.bf16.gmra.mrb[0].mxu0 %v1923
      %v2044 = vpop.f32.mrb[0].mxu0
      %v2045 = vadd.f32 0.0, %v2044
      %v2046 = vpop.f32.mrb[0].mxu0
      %v2047 = vpop.f32.mrb[0].mxu0
      %v2048 = vadd.f32 0.0, %v2047
      %v2049 = vpop.f32.mrb[0].mxu0
      %2050 = vmatprep.mubr.bf16.mxu0 0
      %2051 = vmatmul.mubr.bf16.gmra.mrb[0].mxu0 %v1924
      %v2052 = vpop.f32.mrb[0].mxu0
      %v2053 = vadd.f32 0.0, %v2052
      %v2054 = vpop.f32.mrb[0].mxu0
      %v2055 = vpop.f32.mrb[0].mxu0
      %v2056 = vadd.f32 0.0, %v2055
      %v2057 = vpop.f32.mrb[0].mxu0
      %2058 = vmatprep.mubr.bf16.mxu0 0
      %2059 = vmatmul.mubr.bf16.gmra.mrb[0].mxu0 %v1925
      %v2060 = vpop.f32.mrb[0].mxu0
      %v2061 = vadd.f32 0.0, %v2060
      %v2062 = vpop.f32.mrb[0].mxu0
      %v2063 = vpop.f32.mrb[0].mxu0
      %v2064 = vadd.f32 0.0, %v2063
      %v2065 = vpop.f32.mrb[0].mxu0
      %2066 = vmatprep.mubr.bf16.mxu0 0
      %2067 = vmatmul.mubr.bf16.gmra.mrb[0].mxu0 %v1926
      %v2068 = vpop.f32.mrb[0].mxu0
      %v2069 = vadd.f32 0.0, %v2068
      %v2070 = vpop.f32.mrb[0].mxu0
      %v2071 = vpop.f32.mrb[0].mxu0
      %v2072 = vadd.f32 0.0, %v2071
      %v2073 = vpop.f32.mrb[0].mxu0
      %2074 = vmatprep.mubr.bf16.mxu0 0
      %2075 = vmatmul.mubr.bf16.gmra.mrb[0].mxu0 %v1927
      %v2076 = vpop.f32.mrb[0].mxu0
      %v2077 = vadd.f32 0.0, %v2076
      %v2078 = vpop.f32.mrb[0].mxu0
      %v2079 = vpop.f32.mrb[0].mxu0
      %v2080 = vadd.f32 0.0, %v2079
      %v2081 = vpop.f32.mrb[0].mxu0
      %2082 = vmatprep.mubr.bf16.mxu0 0
      %2083 = vmatmul.mubr.bf16.gmra.mrb[0].mxu0 %v1928
      %v2084 = vpop.f32.mrb[0].mxu0
      %v2085 = vadd.f32 0.0, %v2084
      %v2086 = vpop.f32.mrb[0].mxu0
      %v2087 = vpop.f32.mrb[0].mxu0
      %v2088 = vadd.f32 0.0, %v2087
      %v2089 = vpop.f32.mrb[0].mxu0
      %2090 = vmatprep.mubr.bf16.mxu0 0
      %2091 = vmatmul.mubr.bf16.gmra.mrb[0].mxu0 %v1929
      %v2092 = vpop.f32.mrb[0].mxu0
      %v2093 = vadd.f32 0.0, %v2092
      %v2094 = vpop.f32.mrb[0].mxu0
      %v2095 = vpop.f32.mrb[0].mxu0
      %v2096 = vadd.f32 0.0, %v2095
      %v2097 = vpop.f32.mrb[0].mxu0
      %2098 = vmatprep.mubr.bf16.mxu0 0
      %2099 = vmatmul.mubr.bf16.gmra.mrb[0].mxu0 %v1930
      %v2100 = vpop.f32.mrb[0].mxu0
      %v2101 = vadd.f32 0.0, %v2100
      %v2102 = vpop.f32.mrb[0].mxu0
      %v2103 = vpop.f32.mrb[0].mxu0
      %v2104 = vadd.f32 0.0, %v2103
      %v2105 = vpop.f32.mrb[0].mxu0
      %2106 = vmatprep.mubr.bf16.mxu0 0
      %2107 = vmatmul.mubr.bf16.gmra.mrb[0].mxu0 %v1931
      %v2108 = vpop.f32.mrb[0].mxu0
      %v2109 = vadd.f32 0.0, %v2108
      %v2110 = vpop.f32.mrb[0].mxu0
      %v2111 = vpop.f32.mrb[0].mxu0
      %v2112 = vadd.f32 0.0, %v2111
      %v2113 = vpop.f32.mrb[0].mxu0
      %2114 = vmatprep.mubr.bf16.mxu0 0
      %2115 = vmatmul.mubr.bf16.gmra.mrb[0].mxu0 %v1932
      %v2116 = vpop.f32.mrb[0].mxu0
      %v2117 = vadd.f32 0.0, %v2116
      %v2118 = vpop.f32.mrb[0].mxu0
      %v2119 = vpop.f32.mrb[0].mxu0
      %v2120 = vadd.f32 0.0, %v2119
      %v2121 = vpop.f32.mrb[0].mxu0
      %2122 = vmatprep.mubr.bf16.mxu0 0
      %2123 = vmatmul.mubr.bf16.gmra.mrb[0].mxu0 %v1933
      %v2124 = vpop.f32.mrb[0].mxu0
      %v2125 = vadd.f32 0.0, %v2124
      %v2126 = vpop.f32.mrb[0].mxu0
      %v2127 = vpop.f32.mrb[0].mxu0
      %v2128 = vadd.f32 0.0, %v2127
      %v2129 = vpop.f32.mrb[0].mxu0
      %2130 = vmatprep.mubr.bf16.mxu0 0
      %2131 = vmatmul.mubr.bf16.gmra.mrb[0].mxu0 %v1934
      %v2132 = vpop.f32.mrb[0].mxu0
      %v2133 = vadd.f32 0.0, %v2132
      %v2134 = vpop.f32.mrb[0].mxu0
      %v2135 = vpop.f32.mrb[0].mxu0
      %v2136 = vadd.f32 0.0, %v2135
      %v2137 = vpop.f32.mrb[0].mxu0
      %2138 = vmatprep.mubr.bf16.mxu0 0
      %2139 = vmatmul.mubr.bf16.gmra.mrb[0].mxu0 %v1935
      %v2140 = vpop.f32.mrb[0].mxu0
      %v2141 = vadd.f32 0.0, %v2140
      %v2142 = vpop.f32.mrb[0].mxu0
      %v2143 = vpop.f32.mrb[0].mxu0
      %v2144 = vadd.f32 0.0, %v2143
      %v2145 = vpop.f32.mrb[0].mxu0
      %2146 = vmatprep.mubr.bf16.mxu0 0
      %2147 = vmatmul.mubr.bf16.gmra.mrb[0].mxu0 %v1936
      %v2148 = vpop.f32.mrb[0].mxu0
      %v2149 = vadd.f32 0.0, %v2148
      %v2150 = vpop.f32.mrb[0].mxu0
      %v2151 = vpop.f32.mrb[0].mxu0
      %v2152 = vadd.f32 0.0, %v2151
      %v2153 = vpop.f32.mrb[0].mxu0
      %2154 = vmatprep.mubr.bf16.mxu0 0
      %2155 = vmatmul.mubr.bf16.gmra.mrb[0].mxu0 %v1937
      %v2156 = vpop.f32.mrb[0].mxu0
      %v2157 = vadd.f32 0.0, %v2156
      %v2158 = vpop.f32.mrb[0].mxu0
      %v2159 = vpop.f32.mrb[0].mxu0
      %v2160 = vadd.f32 0.0, %v2159
      %v2161 = vpop.f32.mrb[0].mxu0
      %2162 = vdwg.mxu0
      %v2163 = vadd.f32 %v1776, %v2037
      %v2164 = vadd.f32 %v1777, %v2040
      %v2165 = vadd.f32 %v1778, %v2045
      %v2166 = vadd.f32 %v1779, %v2048
      %v2167 = vadd.f32 %v1780, %v2053
      %v2168 = vadd.f32 %v1781, %v2056
      %v2169 = vadd.f32 %v1782, %v2061
      %v2170 = vadd.f32 %v1783, %v2064
      %v2171 = vadd.f32 %v1784, %v2069
      %v2172 = vadd.f32 %v1785, %v2072
      %v2173 = vadd.f32 %v1786, %v2077
      %v2174 = vadd.f32 %v1787, %v2080
      %v2175 = vadd.f32 %v1788, %v2085
      %v2176 = vadd.f32 %v1789, %v2088
      %v2177 = vadd.f32 %v1790, %v2093
      %v2178 = vadd.f32 %v1791, %v2096
      %v2179 = vadd.f32 %v1792, %v2101
      %v2180 = vadd.f32 %v1793, %v2104
      %v2181 = vadd.f32 %v1794, %v2109
      %v2182 = vadd.f32 %v1795, %v2112
      %v2183 = vadd.f32 %v1796, %v2117
      %v2184 = vadd.f32 %v1797, %v2120
      %v2185 = vadd.f32 %v1798, %v2125
      %v2186 = vadd.f32 %v1799, %v2128
      %v2187 = vadd.f32 %v1800, %v2133
      %v2188 = vadd.f32 %v1801, %v2136
      %v2189 = vadd.f32 %v1802, %v2141
      %v2190 = vadd.f32 %v1803, %v2144
      %v2191 = vadd.f32 %v1804, %v2149
      %v2192 = vadd.f32 %v1805, %v2152
      %v2193 = vadd.f32 %v1806, %v2157
      %v2194 = vadd.f32 %v1807, %v2160
      %v2195 = vld [vmem:[%s1808] sm:$0xf]
      %v2196 = vld [vmem:[%s1808 + $0x4] sm:$0xf]
      %v2197 = vld [vmem:[%s1808 + $0x8] sm:$0x1]
      %v2198 = vld [vmem:[%s1808 + $0xc] sm:$0xf]
      %v2199 = vld [vmem:[%s1808 + $0x10] sm:$0xf]
      %v2200 = vld [vmem:[%s1808 + $0x14] sm:$0x1]
      %v2201 = vld [vmem:[%s1808 + $0x18] sm:$0xf]
      %v2202 = vld [vmem:[%s1808 + $0x1c] sm:$0xf]
      %v2203 = vld [vmem:[%s1808 + $0x20] sm:$0x1]
      %v2204 = vld [vmem:[%s1808 + $0x24] sm:$0xf]
      %v2205 = vld [vmem:[%s1808 + $0x28] sm:$0xf]
      %v2206 = vld [vmem:[%s1808 + $0x2c] sm:$0x1]
      %v2207 = vld [vmem:[%s1808 + $0x30] sm:$0xf]
      %v2208 = vld [vmem:[%s1808 + $0x34] sm:$0xf]
      %v2209 = vld [vmem:[%s1808 + $0x38] sm:$0x1]
      %v2210 = vld [vmem:[%s1808 + $0x3c] sm:$0xf]
      %v2211 = vld [vmem:[%s1808 + $0x40] sm:$0xf]
      %v2212 = vld [vmem:[%s1808 + $0x44] sm:$0x1]
      %v2213 = vld [vmem:[%s1808 + $0x48] sm:$0xf]
      %v2214 = vld [vmem:[%s1808 + $0x4c] sm:$0xf]
      %v2215 = vld [vmem:[%s1808 + $0x50] sm:$0x1]
      %v2216 = vld [vmem:[%s1808 + $0x54] sm:$0xf]
      %v2217 = vld [vmem:[%s1808 + $0x58] sm:$0xf]
      %v2218 = vld [vmem:[%s1808 + $0x5c] sm:$0x1]
      %v2219 = vld [vmem:[%s1808 + $0x60] sm:$0xf]
      %v2220 = vld [vmem:[%s1808 + $0x64] sm:$0xf]
      %v2221 = vld [vmem:[%s1808 + $0x68] sm:$0x1]
      %v2222 = vld [vmem:[%s1808 + $0x6c] sm:$0xf]
      %v2223 = vld [vmem:[%s1808 + $0x70] sm:$0xf]
      %v2224 = vld [vmem:[%s1808 + $0x74] sm:$0x1]
      %v2225 = vld [vmem:[%s1808 + $0x78] sm:$0xf]
      %v2226 = vld [vmem:[%s1808 + $0x7c] sm:$0xf]
      %v2227 = vld [vmem:[%s1808 + $0x80] sm:$0x1]
      %v2228 = vld [vmem:[%s1808 + $0x84] sm:$0xf]
      %v2229 = vld [vmem:[%s1808 + $0x88] sm:$0xf]
      %v2230 = vld [vmem:[%s1808 + $0x8c] sm:$0x1]
      %v2231 = vld [vmem:[%s1808 + $0x90] sm:$0xf]
      %v2232 = vld [vmem:[%s1808 + $0x94] sm:$0xf]
      %v2233 = vld [vmem:[%s1808 + $0x98] sm:$0x1]
      %v2234 = vld [vmem:[%s1808 + $0x9c] sm:$0xf]
      %v2235 = vld [vmem:[%s1808 + $0xa0] sm:$0xf]
      %v2236 = vld [vmem:[%s1808 + $0xa4] sm:$0x1]
      %v2237 = vld [vmem:[%s1808 + $0xa8] sm:$0xf]
      %v2238 = vld [vmem:[%s1808 + $0xac] sm:$0xf]
      %v2239 = vld [vmem:[%s1808 + $0xb0] sm:$0x1]
      %v2240 = vld [vmem:[%s1808 + $0xb4] sm:$0xf]
      %v2241 = vld [vmem:[%s1808 + $0xb8] sm:$0xf]
      %v2242 = vld [vmem:[%s1808 + $0xbc] sm:$0x1]
      %v2244 = vshrl.u32 %v2195, 16
      %v2246 = vrot.slane %v2244, 4
      %v2247 = vshll.u32 %v2195, 16
      %v2249 = vrot.slane %v2247, 5
      %v2250 = vor.u32 %v2246, %v2249
      %v2251 = vrot.slane %v2250, 4
      %v2253 = vshll.u32 %v2196, 16
      %v2255 = vrot.slane %v2253, 5
      %v2256 = vsel %vm343, %v2251, %v2255
      %v2257 = vshrl.u32 %v2196, 16
      %v2259 = vrot.slane %v2257, 4
      %v2260 = vor.u32 %v2259, %v2255
      %v2261 = vrot.slane %v2260, 4
      %v2263 = vshll.u32 %v2197, 16
      %v2265 = vrot.slane %v2263, 5
      %v2266 = vsel %vm343, %v2261, %v2265
      %v2268 = vshrl.u32 %v2198, 16
      %v2270 = vrot.slane %v2268, 4
      %v2271 = vshll.u32 %v2198, 16
      %v2273 = vrot.slane %v2271, 5
      %v2274 = vor.u32 %v2270, %v2273
      %v2275 = vrot.slane %v2274, 4
      %v2277 = vshll.u32 %v2199, 16
      %v2279 = vrot.slane %v2277, 5
      %v2280 = vsel %vm343, %v2275, %v2279
      %v2281 = vshrl.u32 %v2199, 16
      %v2283 = vrot.slane %v2281, 4
      %v2284 = vor.u32 %v2283, %v2279
      %v2285 = vrot.slane %v2284, 4
      %v2287 = vshll.u32 %v2200, 16
      %v2289 = vrot.slane %v2287, 5
      %v2290 = vsel %vm343, %v2285, %v2289
      %v2292 = vshrl.u32 %v2201, 16
      %v2294 = vrot.slane %v2292, 4
      %v2295 = vshll.u32 %v2201, 16
      %v2297 = vrot.slane %v2295, 5
      %v2298 = vor.u32 %v2294, %v2297
      %v2299 = vrot.slane %v2298, 4
      %v2301 = vshll.u32 %v2202, 16
      %v2303 = vrot.slane %v2301, 5
      %v2304 = vsel %vm343, %v2299, %v2303
      %v2305 = vshrl.u32 %v2202, 16
      %v2307 = vrot.slane %v2305, 4
      %v2308 = vor.u32 %v2307, %v2303
      %v2309 = vrot.slane %v2308, 4
      %v2311 = vshll.u32 %v2203, 16
      %v2313 = vrot.slane %v2311, 5
      %v2314 = vsel %vm343, %v2309, %v2313
      %v2316 = vshrl.u32 %v2204, 16
      %v2318 = vrot.slane %v2316, 4
      %v2319 = vshll.u32 %v2204, 16
      %v2321 = vrot.slane %v2319, 5
      %v2322 = vor.u32 %v2318, %v2321
      %v2323 = vrot.slane %v2322, 4
      %v2325 = vshll.u32 %v2205, 16
      %v2327 = vrot.slane %v2325, 5
      %v2328 = vsel %vm343, %v2323, %v2327
      %v2329 = vshrl.u32 %v2205, 16
      %v2331 = vrot.slane %v2329, 4
      %v2332 = vor.u32 %v2331, %v2327
      %v2333 = vrot.slane %v2332, 4
      %v2335 = vshll.u32 %v2206, 16
      %v2337 = vrot.slane %v2335, 5
      %v2338 = vsel %vm343, %v2333, %v2337
      %v2340 = vshrl.u32 %v2207, 16
      %v2342 = vrot.slane %v2340, 4
      %v2343 = vshll.u32 %v2207, 16
      %v2345 = vrot.slane %v2343, 5
      %v2346 = vor.u32 %v2342, %v2345
      %v2347 = vrot.slane %v2346, 4
      %v2349 = vshll.u32 %v2208, 16
      %v2351 = vrot.slane %v2349, 5
      %v2352 = vsel %vm343, %v2347, %v2351
      %v2353 = vshrl.u32 %v2208, 16
      %v2355 = vrot.slane %v2353, 4
      %v2356 = vor.u32 %v2355, %v2351
      %v2357 = vrot.slane %v2356, 4
      %v2359 = vshll.u32 %v2209, 16
      %v2361 = vrot.slane %v2359, 5
      %v2362 = vsel %vm343, %v2357, %v2361
      %v2364 = vshrl.u32 %v2210, 16
      %v2366 = vrot.slane %v2364, 4
      %v2367 = vshll.u32 %v2210, 16
      %v2369 = vrot.slane %v2367, 5
      %v2370 = vor.u32 %v2366, %v2369
      %v2371 = vrot.slane %v2370, 4
      %v2373 = vshll.u32 %v2211, 16
      %v2375 = vrot.slane %v2373, 5
      %v2376 = vsel %vm343, %v2371, %v2375
      %v2377 = vshrl.u32 %v2211, 16
      %v2379 = vrot.slane %v2377, 4
      %v2380 = vor.u32 %v2379, %v2375
      %v2381 = vrot.slane %v2380, 4
      %v2383 = vshll.u32 %v2212, 16
      %v2385 = vrot.slane %v2383, 5
      %v2386 = vsel %vm343, %v2381, %v2385
      %v2388 = vshrl.u32 %v2213, 16
      %v2390 = vrot.slane %v2388, 4
      %v2391 = vshll.u32 %v2213, 16
      %v2393 = vrot.slane %v2391, 5
      %v2394 = vor.u32 %v2390, %v2393
      %v2395 = vrot.slane %v2394, 4
      %v2397 = vshll.u32 %v2214, 16
      %v2399 = vrot.slane %v2397, 5
      %v2400 = vsel %vm343, %v2395, %v2399
      %v2401 = vshrl.u32 %v2214, 16
      %v2403 = vrot.slane %v2401, 4
      %v2404 = vor.u32 %v2403, %v2399
      %v2405 = vrot.slane %v2404, 4
      %v2407 = vshll.u32 %v2215, 16
      %v2409 = vrot.slane %v2407, 5
      %v2410 = vsel %vm343, %v2405, %v2409
      %v2412 = vshrl.u32 %v2216, 16
      %v2414 = vrot.slane %v2412, 4
      %v2415 = vshll.u32 %v2216, 16
      %v2417 = vrot.slane %v2415, 5
      %v2418 = vor.u32 %v2414, %v2417
      %v2419 = vrot.slane %v2418, 4
      %v2421 = vshll.u32 %v2217, 16
      %v2423 = vrot.slane %v2421, 5
      %v2424 = vsel %vm343, %v2419, %v2423
      %v2425 = vshrl.u32 %v2217, 16
      %v2427 = vrot.slane %v2425, 4
      %v2428 = vor.u32 %v2427, %v2423
      %v2429 = vrot.slane %v2428, 4
      %v2431 = vshll.u32 %v2218, 16
      %v2433 = vrot.slane %v2431, 5
      %v2434 = vsel %vm343, %v2429, %v2433
      %v2436 = vshrl.u32 %v2219, 16
      %v2438 = vrot.slane %v2436, 4
      %v2439 = vshll.u32 %v2219, 16
      %v2441 = vrot.slane %v2439, 5
      %v2442 = vor.u32 %v2438, %v2441
      %v2443 = vrot.slane %v2442, 4
      %v2445 = vshll.u32 %v2220, 16
      %v2447 = vrot.slane %v2445, 5
      %v2448 = vsel %vm343, %v2443, %v2447
      %v2449 = vshrl.u32 %v2220, 16
      %v2451 = vrot.slane %v2449, 4
      %v2452 = vor.u32 %v2451, %v2447
      %v2453 = vrot.slane %v2452, 4
      %v2455 = vshll.u32 %v2221, 16
      %v2457 = vrot.slane %v2455, 5
      %v2458 = vsel %vm343, %v2453, %v2457
      %v2460 = vshrl.u32 %v2222, 16
      %v2462 = vrot.slane %v2460, 4
      %v2463 = vshll.u32 %v2222, 16
      %v2465 = vrot.slane %v2463, 5
      %v2466 = vor.u32 %v2462, %v2465
      %v2467 = vrot.slane %v2466, 4
      %v2469 = vshll.u32 %v2223, 16
      %v2471 = vrot.slane %v2469, 5
      %v2472 = vsel %vm343, %v2467, %v2471
      %v2473 = vshrl.u32 %v2223, 16
      %v2475 = vrot.slane %v2473, 4
      %v2476 = vor.u32 %v2475, %v2471
      %v2477 = vrot.slane %v2476, 4
      %v2479 = vshll.u32 %v2224, 16
      %v2481 = vrot.slane %v2479, 5
      %v2482 = vsel %vm343, %v2477, %v2481
      %v2484 = vshrl.u32 %v2225, 16
      %v2486 = vrot.slane %v2484, 4
      %v2487 = vshll.u32 %v2225, 16
      %v2489 = vrot.slane %v2487, 5
      %v2490 = vor.u32 %v2486, %v2489
      %v2491 = vrot.slane %v2490, 4
      %v2493 = vshll.u32 %v2226, 16
      %v2495 = vrot.slane %v2493, 5
      %v2496 = vsel %vm343, %v2491, %v2495
      %v2497 = vshrl.u32 %v2226, 16
      %v2499 = vrot.slane %v2497, 4
      %v2500 = vor.u32 %v2499, %v2495
      %v2501 = vrot.slane %v2500, 4
      %v2503 = vshll.u32 %v2227, 16
      %v2505 = vrot.slane %v2503, 5
      %v2506 = vsel %vm343, %v2501, %v2505
      %v2508 = vshrl.u32 %v2228, 16
      %v2510 = vrot.slane %v2508, 4
      %v2511 = vshll.u32 %v2228, 16
      %v2513 = vrot.slane %v2511, 5
      %v2514 = vor.u32 %v2510, %v2513
      %v2515 = vrot.slane %v2514, 4
      %v2517 = vshll.u32 %v2229, 16
      %v2519 = vrot.slane %v2517, 5
      %v2520 = vsel %vm343, %v2515, %v2519
      %v2521 = vshrl.u32 %v2229, 16
      %v2523 = vrot.slane %v2521, 4
      %v2524 = vor.u32 %v2523, %v2519
      %v2525 = vrot.slane %v2524, 4
      %v2527 = vshll.u32 %v2230, 16
      %v2529 = vrot.slane %v2527, 5
      %v2530 = vsel %vm343, %v2525, %v2529
      %v2532 = vshrl.u32 %v2231, 16
      %v2534 = vrot.slane %v2532, 4
      %v2535 = vshll.u32 %v2231, 16
      %v2537 = vrot.slane %v2535, 5
      %v2538 = vor.u32 %v2534, %v2537
      %v2539 = vrot.slane %v2538, 4
      %v2541 = vshll.u32 %v2232, 16
      %v2543 = vrot.slane %v2541, 5
      %v2544 = vsel %vm343, %v2539, %v2543
      %v2545 = vshrl.u32 %v2232, 16
      %v2547 = vrot.slane %v2545, 4
      %v2548 = vor.u32 %v2547, %v2543
      %v2549 = vrot.slane %v2548, 4
      %v2551 = vshll.u32 %v2233, 16
      %v2553 = vrot.slane %v2551, 5
      %v2554 = vsel %vm343, %v2549, %v2553
      %v2556 = vshrl.u32 %v2234, 16
      %v2558 = vrot.slane %v2556, 4
      %v2559 = vshll.u32 %v2234, 16
      %v2561 = vrot.slane %v2559, 5
      %v2562 = vor.u32 %v2558, %v2561
      %v2563 = vrot.slane %v2562, 4
      %v2565 = vshll.u32 %v2235, 16
      %v2567 = vrot.slane %v2565, 5
      %v2568 = vsel %vm343, %v2563, %v2567
      %v2569 = vshrl.u32 %v2235, 16
      %v2571 = vrot.slane %v2569, 4
      %v2572 = vor.u32 %v2571, %v2567
      %v2573 = vrot.slane %v2572, 4
      %v2575 = vshll.u32 %v2236, 16
      %v2577 = vrot.slane %v2575, 5
      %v2578 = vsel %vm343, %v2573, %v2577
      %v2580 = vshrl.u32 %v2237, 16
      %v2582 = vrot.slane %v2580, 4
      %v2583 = vshll.u32 %v2237, 16
      %v2585 = vrot.slane %v2583, 5
      %v2586 = vor.u32 %v2582, %v2585
      %v2587 = vrot.slane %v2586, 4
      %v2589 = vshll.u32 %v2238, 16
      %v2591 = vrot.slane %v2589, 5
      %v2592 = vsel %vm343, %v2587, %v2591
      %v2593 = vshrl.u32 %v2238, 16
      %v2595 = vrot.slane %v2593, 4
      %v2596 = vor.u32 %v2595, %v2591
      %v2597 = vrot.slane %v2596, 4
      %v2599 = vshll.u32 %v2239, 16
      %v2601 = vrot.slane %v2599, 5
      %v2602 = vsel %vm343, %v2597, %v2601
      %v2604 = vshrl.u32 %v2240, 16
      %v2606 = vrot.slane %v2604, 4
      %v2607 = vshll.u32 %v2240, 16
      %v2609 = vrot.slane %v2607, 5
      %v2610 = vor.u32 %v2606, %v2609
      %v2611 = vrot.slane %v2610, 4
      %v2613 = vshll.u32 %v2241, 16
      %v2615 = vrot.slane %v2613, 5
      %v2616 = vsel %vm343, %v2611, %v2615
      %v2617 = vshrl.u32 %v2241, 16
      %v2619 = vrot.slane %v2617, 4
      %v2620 = vor.u32 %v2619, %v2615
      %v2621 = vrot.slane %v2620, 4
      %v2623 = vshll.u32 %v2242, 16
      %v2625 = vrot.slane %v2623, 5
      %v2626 = vsel %vm343, %v2621, %v2625
      %s2627 = scalar_lea.vmem %s210, 256
      %v2628 = vld [vmem:[%s2627] sm:$0xf]
      %v2629 = vld [vmem:[%s2627 + $0x4] sm:$0xf]
      %v2630 = vld [vmem:[%s2627 + $0x8] sm:$0xf]
      %v2631 = vld [vmem:[%s2627 + $0xc] sm:$0xf]
      %v2632 = vld [vmem:[%s2627 + $0x10] sm:$0xf]
      %v2633 = vld [vmem:[%s2627 + $0x14] sm:$0xf]
      %v2634 = vld [vmem:[%s2627 + $0x18] sm:$0xf]
      %v2635 = vld [vmem:[%s2627 + $0x1c] sm:$0xf]
      %v2636 = vld [vmem:[%s2627 + $0x20] sm:$0xf]
      %v2637 = vld [vmem:[%s2627 + $0x24] sm:$0xf]
      %v2638 = vld [vmem:[%s2627 + $0x28] sm:$0xf]
      %v2639 = vld [vmem:[%s2627 + $0x2c] sm:$0xf]
      %v2640 = vld [vmem:[%s2627 + $0x30] sm:$0xf]
      %v2641 = vld [vmem:[%s2627 + $0x34] sm:$0xf]
      %v2642 = vld [vmem:[%s2627 + $0x38] sm:$0xf]
      %v2643 = vld [vmem:[%s2627 + $0x3c] sm:$0xf]
      %v2644 = vunpack.c.l.b16 %v2256
      %v2645 = vunpack.c.l.b16 %v2266
      %v2646 = vunpack.c.l.b16 %v2280
      %v2647 = vunpack.c.l.b16 %v2290
      %v2648 = vunpack.c.l.b16 %v2304
      %v2649 = vunpack.c.l.b16 %v2314
      %v2650 = vunpack.c.l.b16 %v2328
      %v2651 = vunpack.c.l.b16 %v2338
      %v2652 = vunpack.c.l.b16 %v2352
      %v2653 = vunpack.c.l.b16 %v2362
      %v2654 = vunpack.c.l.b16 %v2376
      %v2655 = vunpack.c.l.b16 %v2386
      %v2656 = vunpack.c.l.b16 %v2400
      %v2657 = vunpack.c.l.b16 %v2410
      %v2658 = vunpack.c.l.b16 %v2424
      %v2659 = vunpack.c.l.b16 %v2434
      %v2660 = vunpack.c.l.b16 %v2448
      %v2661 = vunpack.c.l.b16 %v2458
      %v2662 = vunpack.c.l.b16 %v2472
      %v2663 = vunpack.c.l.b16 %v2482
      %v2664 = vunpack.c.l.b16 %v2496
      %v2665 = vunpack.c.l.b16 %v2506
      %v2666 = vunpack.c.l.b16 %v2520
      %v2667 = vunpack.c.l.b16 %v2530
      %v2668 = vunpack.c.l.b16 %v2544
      %v2669 = vunpack.c.l.b16 %v2554
      %v2670 = vunpack.c.l.b16 %v2568
      %v2671 = vunpack.c.l.b16 %v2578
      %v2672 = vunpack.c.l.b16 %v2592
      %v2673 = vunpack.c.l.b16 %v2602
      %v2674 = vunpack.c.l.b16 %v2616
      %v2675 = vunpack.c.l.b16 %v2626
      %v2676 = vpack.c.b16 %v2645, %v2644
      %v2677 = vpack.c.b16 %v2647, %v2646
      %v2678 = vpack.c.b16 %v2649, %v2648
      %v2679 = vpack.c.b16 %v2651, %v2650
      %v2680 = vpack.c.b16 %v2653, %v2652
      %v2681 = vpack.c.b16 %v2655, %v2654
      %v2682 = vpack.c.b16 %v2657, %v2656
      %v2683 = vpack.c.b16 %v2659, %v2658
      %v2684 = vpack.c.b16 %v2661, %v2660
      %v2685 = vpack.c.b16 %v2663, %v2662
      %v2686 = vpack.c.b16 %v2665, %v2664
      %v2687 = vpack.c.b16 %v2667, %v2666
      %v2688 = vpack.c.b16 %v2669, %v2668
      %v2689 = vpack.c.b16 %v2671, %v2670
      %v2690 = vpack.c.b16 %v2673, %v2672
      %v2691 = vpack.c.b16 %v2675, %v2674
      %v2724 = vunpack.c.l.b16 %v2628
      %v2725 = vunpack.c.l.b16 %v2629
      %v2726 = vunpack.c.l.b16 %v2630
      %v2727 = vunpack.c.l.b16 %v2631
      %v2728 = vunpack.c.l.b16 %v2632
      %v2729 = vunpack.c.l.b16 %v2633
      %v2730 = vunpack.c.l.b16 %v2634
      %v2731 = vunpack.c.l.b16 %v2635
      %v2732 = vunpack.c.l.b16 %v2636
      %v2733 = vunpack.c.l.b16 %v2637
      %v2734 = vunpack.c.l.b16 %v2638
      %v2735 = vunpack.c.l.b16 %v2639
      %v2736 = vunpack.c.l.b16 %v2640
      %v2737 = vunpack.c.l.b16 %v2641
      %v2738 = vunpack.c.l.b16 %v2642
      %v2739 = vunpack.c.l.b16 %v2643
      %v2740 = vpack.c.b16 %v2725, %v2724
      %v2741 = vpack.c.b16 %v2727, %v2726
      %v2742 = vpack.c.b16 %v2729, %v2728
      %v2743 = vpack.c.b16 %v2731, %v2730
      %v2744 = vpack.c.b16 %v2733, %v2732
      %v2745 = vpack.c.b16 %v2735, %v2734
      %v2746 = vpack.c.b16 %v2737, %v2736
      %v2747 = vpack.c.b16 %v2739, %v2738
      %2756 = vmatprep.subr.bf16.mxu0 0
      %2757 = vmatpush1.bf16.msra.mxu0 %v2740
      %2758 = vmatprep.subr.bf16.mxu0 0
      %2759 = vmatpush1.bf16.msra.mxu0 %v2741
      %2760 = vmatprep.subr.bf16.mxu0 0
      %2761 = vmatpush1.bf16.msra.mxu0 %v2742
      %2762 = vmatprep.subr.bf16.mxu0 0
      %2763 = vmatpush1.bf16.msra.mxu0 %v2743
      %2764 = vmatprep.subr.bf16.mxu0 0
      %2765 = vmatpush1.bf16.msra.mxu0 %v2744
      %2766 = vmatprep.subr.bf16.mxu0 0
      %2767 = vmatpush1.bf16.msra.mxu0 %v2745
      %2768 = vmatprep.subr.bf16.mxu0 0
      %2769 = vmatpush1.bf16.msra.mxu0 %v2746
      %2770 = vmatprep.subr.bf16.mxu0 0
      %2771 = vmatpush1.bf16.msra.mxu0 %v2747
      %2772 = vmatprep.subr.bf16.mxu0 0
      %2773 = vmatpush1.bf16.msra.mxu0 0
      %2774 = vmatprep.subr.bf16.mxu0 0
      %2775 = vmatpush1.bf16.msra.mxu0 0
      %2776 = vmatprep.subr.bf16.mxu0 0
      %2777 = vmatpush1.bf16.msra.mxu0 0
      %2778 = vmatprep.subr.bf16.mxu0 0
      %2779 = vmatpush1.bf16.msra.mxu0 0
      %2780 = vmatprep.subr.bf16.mxu0 0
      %2781 = vmatpush1.bf16.msra.mxu0 0
      %2782 = vmatprep.subr.bf16.mxu0 0
      %2783 = vmatpush1.bf16.msra.mxu0 0
      %2784 = vmatprep.subr.bf16.mxu0 0
      %2785 = vmatpush1.bf16.msra.mxu0 0
      %2786 = vmatprep.subr.bf16.mxu0 0
      %2787 = vmatpush1.bf16.msra.mxu0 0
      %2788 = vmatprep.mubr.bf16.mxu0 0
      %2789 = vmatmul.mubr.bf16.gmra.mrb[0].mxu0 %v2676
      %v2790 = vpop.f32.mrb[0].mxu0
      %v2791 = vadd.f32 0.0, %v2790
      %v2792 = vpop.f32.mrb[0].mxu0
      %v2793 = vpop.f32.mrb[0].mxu0
      %v2794 = vadd.f32 0.0, %v2793
      %v2795 = vpop.f32.mrb[0].mxu0
      %2796 = vmatprep.mubr.bf16.mxu0 0
      %2797 = vmatmul.mubr.bf16.gmra.mrb[0].mxu0 %v2677
      %v2798 = vpop.f32.mrb[0].mxu0
      %v2799 = vadd.f32 0.0, %v2798
      %v2800 = vpop.f32.mrb[0].mxu0
      %v2801 = vpop.f32.mrb[0].mxu0
      %v2802 = vadd.f32 0.0, %v2801
      %v2803 = vpop.f32.mrb[0].mxu0
      %2804 = vmatprep.mubr.bf16.mxu0 0
      %2805 = vmatmul.mubr.bf16.gmra.mrb[0].mxu0 %v2678
      %v2806 = vpop.f32.mrb[0].mxu0
      %v2807 = vadd.f32 0.0, %v2806
      %v2808 = vpop.f32.mrb[0].mxu0
      %v2809 = vpop.f32.mrb[0].mxu0
      %v2810 = vadd.f32 0.0, %v2809
      %v2811 = vpop.f32.mrb[0].mxu0
      %2812 = vmatprep.mubr.bf16.mxu0 0
      %2813 = vmatmul.mubr.bf16.gmra.mrb[0].mxu0 %v2679
      %v2814 = vpop.f32.mrb[0].mxu0
      %v2815 = vadd.f32 0.0, %v2814
      %v2816 = vpop.f32.mrb[0].mxu0
      %v2817 = vpop.f32.mrb[0].mxu0
      %v2818 = vadd.f32 0.0, %v2817
      %v2819 = vpop.f32.mrb[0].mxu0
      %2820 = vmatprep.mubr.bf16.mxu0 0
      %2821 = vmatmul.mubr.bf16.gmra.mrb[0].mxu0 %v2680
      %v2822 = vpop.f32.mrb[0].mxu0
      %v2823 = vadd.f32 0.0, %v2822
      %v2824 = vpop.f32.mrb[0].mxu0
      %v2825 = vpop.f32.mrb[0].mxu0
      %v2826 = vadd.f32 0.0, %v2825
      %v2827 = vpop.f32.mrb[0].mxu0
      %2828 = vmatprep.mubr.bf16.mxu0 0
      %2829 = vmatmul.mubr.bf16.gmra.mrb[0].mxu0 %v2681
      %v2830 = vpop.f32.mrb[0].mxu0
      %v2831 = vadd.f32 0.0, %v2830
      %v2832 = vpop.f32.mrb[0].mxu0
      %v2833 = vpop.f32.mrb[0].mxu0
      %v2834 = vadd.f32 0.0, %v2833
      %v2835 = vpop.f32.mrb[0].mxu0
      %2836 = vmatprep.mubr.bf16.mxu0 0
      %2837 = vmatmul.mubr.bf16.gmra.mrb[0].mxu0 %v2682
      %v2838 = vpop.f32.mrb[0].mxu0
      %v2839 = vadd.f32 0.0, %v2838
      %v2840 = vpop.f32.mrb[0].mxu0
      %v2841 = vpop.f32.mrb[0].mxu0
      %v2842 = vadd.f32 0.0, %v2841
      %v2843 = vpop.f32.mrb[0].mxu0
      %2844 = vmatprep.mubr.bf16.mxu0 0
      %2845 = vmatmul.mubr.bf16.gmra.mrb[0].mxu0 %v2683
      %v2846 = vpop.f32.mrb[0].mxu0
      %v2847 = vadd.f32 0.0, %v2846
      %v2848 = vpop.f32.mrb[0].mxu0
      %v2849 = vpop.f32.mrb[0].mxu0
      %v2850 = vadd.f32 0.0, %v2849
      %v2851 = vpop.f32.mrb[0].mxu0
      %2852 = vmatprep.mubr.bf16.mxu0 0
      %2853 = vmatmul.mubr.bf16.gmra.mrb[0].mxu0 %v2684
      %v2854 = vpop.f32.mrb[0].mxu0
      %v2855 = vadd.f32 0.0, %v2854
      %v2856 = vpop.f32.mrb[0].mxu0
      %v2857 = vpop.f32.mrb[0].mxu0
      %v2858 = vadd.f32 0.0, %v2857
      %v2859 = vpop.f32.mrb[0].mxu0
      %2860 = vmatprep.mubr.bf16.mxu0 0
      %2861 = vmatmul.mubr.bf16.gmra.mrb[0].mxu0 %v2685
      %v2862 = vpop.f32.mrb[0].mxu0
      %v2863 = vadd.f32 0.0, %v2862
      %v2864 = vpop.f32.mrb[0].mxu0
      %v2865 = vpop.f32.mrb[0].mxu0
      %v2866 = vadd.f32 0.0, %v2865
      %v2867 = vpop.f32.mrb[0].mxu0
      %2868 = vmatprep.mubr.bf16.mxu0 0
      %2869 = vmatmul.mubr.bf16.gmra.mrb[0].mxu0 %v2686
      %v2870 = vpop.f32.mrb[0].mxu0
      %v2871 = vadd.f32 0.0, %v2870
      %v2872 = vpop.f32.mrb[0].mxu0
      %v2873 = vpop.f32.mrb[0].mxu0
      %v2874 = vadd.f32 0.0, %v2873
      %v2875 = vpop.f32.mrb[0].mxu0
      %2876 = vmatprep.mubr.bf16.mxu0 0
      %2877 = vmatmul.mubr.bf16.gmra.mrb[0].mxu0 %v2687
      %v2878 = vpop.f32.mrb[0].mxu0
      %v2879 = vadd.f32 0.0, %v2878
      %v2880 = vpop.f32.mrb[0].mxu0
      %v2881 = vpop.f32.mrb[0].mxu0
      %v2882 = vadd.f32 0.0, %v2881
      %v2883 = vpop.f32.mrb[0].mxu0
      %2884 = vmatprep.mubr.bf16.mxu0 0
      %2885 = vmatmul.mubr.bf16.gmra.mrb[0].mxu0 %v2688
      %v2886 = vpop.f32.mrb[0].mxu0
      %v2887 = vadd.f32 0.0, %v2886
      %v2888 = vpop.f32.mrb[0].mxu0
      %v2889 = vpop.f32.mrb[0].mxu0
      %v2890 = vadd.f32 0.0, %v2889
      %v2891 = vpop.f32.mrb[0].mxu0
      %2892 = vmatprep.mubr.bf16.mxu0 0
      %2893 = vmatmul.mubr.bf16.gmra.mrb[0].mxu0 %v2689
      %v2894 = vpop.f32.mrb[0].mxu0
      %v2895 = vadd.f32 0.0, %v2894
      %v2896 = vpop.f32.mrb[0].mxu0
      %v2897 = vpop.f32.mrb[0].mxu0
      %v2898 = vadd.f32 0.0, %v2897
      %v2899 = vpop.f32.mrb[0].mxu0
      %2900 = vmatprep.mubr.bf16.mxu0 0
      %2901 = vmatmul.mubr.bf16.gmra.mrb[0].mxu0 %v2690
      %v2902 = vpop.f32.mrb[0].mxu0
      %v2903 = vadd.f32 0.0, %v2902
      %v2904 = vpop.f32.mrb[0].mxu0
      %v2905 = vpop.f32.mrb[0].mxu0
      %v2906 = vadd.f32 0.0, %v2905
      %v2907 = vpop.f32.mrb[0].mxu0
      %2908 = vmatprep.mubr.bf16.mxu0 0
      %2909 = vmatmul.mubr.bf16.gmra.mrb[0].mxu0 %v2691
      %v2910 = vpop.f32.mrb[0].mxu0
      %v2911 = vadd.f32 0.0, %v2910
      %v2912 = vpop.f32.mrb[0].mxu0
      %v2913 = vpop.f32.mrb[0].mxu0
      %v2914 = vadd.f32 0.0, %v2913
      %v2915 = vpop.f32.mrb[0].mxu0
      %2916 = vdwg.mxu0
      %v2917 = vadd.f32 %v2163, %v2791
      %v2918 = vadd.f32 %v2164, %v2794
      %v2919 = vadd.f32 %v2165, %v2799
      %v2920 = vadd.f32 %v2166, %v2802
      %v2921 = vadd.f32 %v2167, %v2807
      %v2922 = vadd.f32 %v2168, %v2810
      %v2923 = vadd.f32 %v2169, %v2815
      %v2924 = vadd.f32 %v2170, %v2818
      %v2925 = vadd.f32 %v2171, %v2823
      %v2926 = vadd.f32 %v2172, %v2826
      %v2927 = vadd.f32 %v2173, %v2831
      %v2928 = vadd.f32 %v2174, %v2834
      %v2929 = vadd.f32 %v2175, %v2839
      %v2930 = vadd.f32 %v2176, %v2842
      %v2931 = vadd.f32 %v2177, %v2847
      %v2932 = vadd.f32 %v2178, %v2850
      %v2933 = vadd.f32 %v2179, %v2855
      %v2934 = vadd.f32 %v2180, %v2858
      %v2935 = vadd.f32 %v2181, %v2863
      %v2936 = vadd.f32 %v2182, %v2866
      %v2937 = vadd.f32 %v2183, %v2871
      %v2938 = vadd.f32 %v2184, %v2874
      %v2939 = vadd.f32 %v2185, %v2879
      %v2940 = vadd.f32 %v2186, %v2882
      %v2941 = vadd.f32 %v2187, %v2887
      %v2942 = vadd.f32 %v2188, %v2890
      %v2943 = vadd.f32 %v2189, %v2895
      %v2944 = vadd.f32 %v2190, %v2898
      %v2945 = vadd.f32 %v2191, %v2903
      %v2946 = vadd.f32 %v2192, %v2906
      %v2947 = vadd.f32 %v2193, %v2911
      %v2948 = vadd.f32 %v2194, %v2914
      %v2949 = vld [vmem:[%s1808] sm:$0xe]
      %v2950 = vld [vmem:[%s1808 + $0xc] sm:$0xe]
      %v2951 = vld [vmem:[%s1808 + $0x18] sm:$0xe]
      %v2952 = vld [vmem:[%s1808 + $0x24] sm:$0xe]
      %v2953 = vld [vmem:[%s1808 + $0x30] sm:$0xe]
      %v2954 = vld [vmem:[%s1808 + $0x3c] sm:$0xe]
      %v2955 = vld [vmem:[%s1808 + $0x48] sm:$0xe]
      %v2956 = vld [vmem:[%s1808 + $0x54] sm:$0xe]
      %v2957 = vld [vmem:[%s1808 + $0x60] sm:$0xe]
      %v2958 = vld [vmem:[%s1808 + $0x6c] sm:$0xe]
      %v2959 = vld [vmem:[%s1808 + $0x78] sm:$0xe]
      %v2960 = vld [vmem:[%s1808 + $0x84] sm:$0xe]
      %v2961 = vld [vmem:[%s1808 + $0x90] sm:$0xe]
      %v2962 = vld [vmem:[%s1808 + $0x9c] sm:$0xe]
      %v2963 = vld [vmem:[%s1808 + $0xa8] sm:$0xe]
      %v2964 = vld [vmem:[%s1808 + $0xb4] sm:$0xe]
      %v3013 = vrot.slane %v2949, 5
      %v3014 = vrot.slane %v3013, 4
      %v3015 = vrot.slane %v2196, 5
      %v3016 = vsel %vm1373, %v3014, %v3015
      %v3017 = vrot.slane %v3015, 4
      %v3018 = vrot.slane %v2197, 5
      %v3019 = vsel %vm1373, %v3017, %v3018
      %v3020 = vrot.slane %v2950, 5
      %v3021 = vrot.slane %v3020, 4
      %v3022 = vrot.slane %v2199, 5
      %v3023 = vsel %vm1373, %v3021, %v3022
      %v3024 = vrot.slane %v3022, 4
      %v3025 = vrot.slane %v2200, 5
      %v3026 = vsel %vm1373, %v3024, %v3025
      %v3027 = vrot.slane %v2951, 5
      %v3028 = vrot.slane %v3027, 4
      %v3029 = vrot.slane %v2202, 5
      %v3030 = vsel %vm1373, %v3028, %v3029
      %v3031 = vrot.slane %v3029, 4
      %v3032 = vrot.slane %v2203, 5
      %v3033 = vsel %vm1373, %v3031, %v3032
      %v3034 = vrot.slane %v2952, 5
      %v3035 = vrot.slane %v3034, 4
      %v3036 = vrot.slane %v2205, 5
      %v3037 = vsel %vm1373, %v3035, %v3036
      %v3038 = vrot.slane %v3036, 4
      %v3039 = vrot.slane %v2206, 5
      %v3040 = vsel %vm1373, %v3038, %v3039
      %v3041 = vrot.slane %v2953, 5
      %v3042 = vrot.slane %v3041, 4
      %v3043 = vrot.slane %v2208, 5
      %v3044 = vsel %vm1373, %v3042, %v3043
      %v3045 = vrot.slane %v3043, 4
      %v3046 = vrot.slane %v2209, 5
      %v3047 = vsel %vm1373, %v3045, %v3046
      %v3048 = vrot.slane %v2954, 5
      %v3049 = vrot.slane %v3048, 4
      %v3050 = vrot.slane %v2211, 5
      %v3051 = vsel %vm1373, %v3049, %v3050
      %v3052 = vrot.slane %v3050, 4
      %v3053 = vrot.slane %v2212, 5
      %v3054 = vsel %vm1373, %v3052, %v3053
      %v3055 = vrot.slane %v2955, 5
      %v3056 = vrot.slane %v3055, 4
      %v3057 = vrot.slane %v2214, 5
      %v3058 = vsel %vm1373, %v3056, %v3057
      %v3059 = vrot.slane %v3057, 4
      %v3060 = vrot.slane %v2215, 5
      %v3061 = vsel %vm1373, %v3059, %v3060
      %v3062 = vrot.slane %v2956, 5
      %v3063 = vrot.slane %v3062, 4
      %v3064 = vrot.slane %v2217, 5
      %v3065 = vsel %vm1373, %v3063, %v3064
      %v3066 = vrot.slane %v3064, 4
      %v3067 = vrot.slane %v2218, 5
      %v3068 = vsel %vm1373, %v3066, %v3067
      %v3069 = vrot.slane %v2957, 5
      %v3070 = vrot.slane %v3069, 4
      %v3071 = vrot.slane %v2220, 5
      %v3072 = vsel %vm1373, %v3070, %v3071
      %v3073 = vrot.slane %v3071, 4
      %v3074 = vrot.slane %v2221, 5
      %v3075 = vsel %vm1373, %v3073, %v3074
      %v3076 = vrot.slane %v2958, 5
      %v3077 = vrot.slane %v3076, 4
      %v3078 = vrot.slane %v2223, 5
      %v3079 = vsel %vm1373, %v3077, %v3078
      %v3080 = vrot.slane %v3078, 4
      %v3081 = vrot.slane %v2224, 5
      %v3082 = vsel %vm1373, %v3080, %v3081
      %v3083 = vrot.slane %v2959, 5
      %v3084 = vrot.slane %v3083, 4
      %v3085 = vrot.slane %v2226, 5
      %v3086 = vsel %vm1373, %v3084, %v3085
      %v3087 = vrot.slane %v3085, 4
      %v3088 = vrot.slane %v2227, 5
      %v3089 = vsel %vm1373, %v3087, %v3088
      %v3090 = vrot.slane %v2960, 5
      %v3091 = vrot.slane %v3090, 4
      %v3092 = vrot.slane %v2229, 5
      %v3093 = vsel %vm1373, %v3091, %v3092
      %v3094 = vrot.slane %v3092, 4
      %v3095 = vrot.slane %v2230, 5
      %v3096 = vsel %vm1373, %v3094, %v3095
      %v3097 = vrot.slane %v2961, 5
      %v3098 = vrot.slane %v3097, 4
      %v3099 = vrot.slane %v2232, 5
      %v3100 = vsel %vm1373, %v3098, %v3099
      %v3101 = vrot.slane %v3099, 4
      %v3102 = vrot.slane %v2233, 5
      %v3103 = vsel %vm1373, %v3101, %v3102
      %v3104 = vrot.slane %v2962, 5
      %v3105 = vrot.slane %v3104, 4
      %v3106 = vrot.slane %v2235, 5
      %v3107 = vsel %vm1373, %v3105, %v3106
      %v3108 = vrot.slane %v3106, 4
      %v3109 = vrot.slane %v2236, 5
      %v3110 = vsel %vm1373, %v3108, %v3109
      %v3111 = vrot.slane %v2963, 5
      %v3112 = vrot.slane %v3111, 4
      %v3113 = vrot.slane %v2238, 5
      %v3114 = vsel %vm1373, %v3112, %v3113
      %v3115 = vrot.slane %v3113, 4
      %v3116 = vrot.slane %v2239, 5
      %v3117 = vsel %vm1373, %v3115, %v3116
      %v3118 = vrot.slane %v2964, 5
      %v3119 = vrot.slane %v3118, 4
      %v3120 = vrot.slane %v2241, 5
      %v3121 = vsel %vm1373, %v3119, %v3120
      %v3122 = vrot.slane %v3120, 4
      %v3123 = vrot.slane %v2242, 5
      %v3124 = vsel %vm1373, %v3122, %v3123
      %s3125 = scalar_lea.vmem %s210, 320
      %v3126 = vld [vmem:[%s3125] sm:$0xf]
      %v3127 = vld [vmem:[%s3125 + $0x4] sm:$0xf]
      %v3128 = vld [vmem:[%s3125 + $0x8] sm:$0xf]
      %v3129 = vld [vmem:[%s3125 + $0xc] sm:$0xf]
      %v3130 = vld [vmem:[%s3125 + $0x10] sm:$0xf]
      %v3131 = vld [vmem:[%s3125 + $0x14] sm:$0xf]
      %v3132 = vld [vmem:[%s3125 + $0x18] sm:$0xf]
      %v3133 = vld [vmem:[%s3125 + $0x1c] sm:$0xf]
      %v3134 = vld [vmem:[%s3125 + $0x20] sm:$0xf]
      %v3135 = vld [vmem:[%s3125 + $0x24] sm:$0xf]
      %v3136 = vld [vmem:[%s3125 + $0x28] sm:$0xf]
      %v3137 = vld [vmem:[%s3125 + $0x2c] sm:$0xf]
      %v3138 = vld [vmem:[%s3125 + $0x30] sm:$0xf]
      %v3139 = vld [vmem:[%s3125 + $0x34] sm:$0xf]
      %v3140 = vld [vmem:[%s3125 + $0x38] sm:$0xf]
      %v3141 = vld [vmem:[%s3125 + $0x3c] sm:$0xf]
      %v3142 = vunpack.c.l.b16 %v3016
      %v3143 = vunpack.c.l.b16 %v3019
      %v3144 = vunpack.c.l.b16 %v3023
      %v3145 = vunpack.c.l.b16 %v3026
      %v3146 = vunpack.c.l.b16 %v3030
      %v3147 = vunpack.c.l.b16 %v3033
      %v3148 = vunpack.c.l.b16 %v3037
      %v3149 = vunpack.c.l.b16 %v3040
      %v3150 = vunpack.c.l.b16 %v3044
      %v3151 = vunpack.c.l.b16 %v3047
      %v3152 = vunpack.c.l.b16 %v3051
      %v3153 = vunpack.c.l.b16 %v3054
      %v3154 = vunpack.c.l.b16 %v3058
      %v3155 = vunpack.c.l.b16 %v3061
      %v3156 = vunpack.c.l.b16 %v3065
      %v3157 = vunpack.c.l.b16 %v3068
      %v3158 = vunpack.c.l.b16 %v3072
      %v3159 = vunpack.c.l.b16 %v3075
      %v3160 = vunpack.c.l.b16 %v3079
      %v3161 = vunpack.c.l.b16 %v3082
      %v3162 = vunpack.c.l.b16 %v3086
      %v3163 = vunpack.c.l.b16 %v3089
      %v3164 = vunpack.c.l.b16 %v3093
      %v3165 = vunpack.c.l.b16 %v3096
      %v3166 = vunpack.c.l.b16 %v3100
      %v3167 = vunpack.c.l.b16 %v3103
      %v3168 = vunpack.c.l.b16 %v3107
      %v3169 = vunpack.c.l.b16 %v3110
      %v3170 = vunpack.c.l.b16 %v3114
      %v3171 = vunpack.c.l.b16 %v3117
      %v3172 = vunpack.c.l.b16 %v3121
      %v3173 = vunpack.c.l.b16 %v3124
      %v3174 = vpack.c.b16 %v3143, %v3142
      %v3175 = vpack.c.b16 %v3145, %v3144
      %v3176 = vpack.c.b16 %v3147, %v3146
      %v3177 = vpack.c.b16 %v3149, %v3148
      %v3178 = vpack.c.b16 %v3151, %v3150
      %v3179 = vpack.c.b16 %v3153, %v3152
      %v3180 = vpack.c.b16 %v3155, %v3154
      %v3181 = vpack.c.b16 %v3157, %v3156
      %v3182 = vpack.c.b16 %v3159, %v3158
      %v3183 = vpack.c.b16 %v3161, %v3160
      %v3184 = vpack.c.b16 %v3163, %v3162
      %v3185 = vpack.c.b16 %v3165, %v3164
      %v3186 = vpack.c.b16 %v3167, %v3166
      %v3187 = vpack.c.b16 %v3169, %v3168
      %v3188 = vpack.c.b16 %v3171, %v3170
      %v3189 = vpack.c.b16 %v3173, %v3172
      %v3222 = vunpack.c.l.b16 %v3126
      %v3223 = vunpack.c.l.b16 %v3127
      %v3224 = vunpack.c.l.b16 %v3128
      %v3225 = vunpack.c.l.b16 %v3129
      %v3226 = vunpack.c.l.b16 %v3130
      %v3227 = vunpack.c.l.b16 %v3131
      %v3228 = vunpack.c.l.b16 %v3132
      %v3229 = vunpack.c.l.b16 %v3133
      %v3230 = vunpack.c.l.b16 %v3134
      %v3231 = vunpack.c.l.b16 %v3135
      %v3232 = vunpack.c.l.b16 %v3136
      %v3233 = vunpack.c.l.b16 %v3137
      %v3234 = vunpack.c.l.b16 %v3138
      %v3235 = vunpack.c.l.b16 %v3139
      %v3236 = vunpack.c.l.b16 %v3140
      %v3237 = vunpack.c.l.b16 %v3141
      %v3238 = vpack.c.b16 %v3223, %v3222
      %v3239 = vpack.c.b16 %v3225, %v3224
      %v3240 = vpack.c.b16 %v3227, %v3226
      %v3241 = vpack.c.b16 %v3229, %v3228
      %v3242 = vpack.c.b16 %v3231, %v3230
      %v3243 = vpack.c.b16 %v3233, %v3232
      %v3244 = vpack.c.b16 %v3235, %v3234
      %v3245 = vpack.c.b16 %v3237, %v3236
      %3254 = vmatprep.subr.bf16.mxu0 0
      %3255 = vmatpush1.bf16.msra.mxu0 %v3238
      %3256 = vmatprep.subr.bf16.mxu0 0
      %3257 = vmatpush1.bf16.msra.mxu0 %v3239
      %3258 = vmatprep.subr.bf16.mxu0 0
      %3259 = vmatpush1.bf16.msra.mxu0 %v3240
      %3260 = vmatprep.subr.bf16.mxu0 0
      %3261 = vmatpush1.bf16.msra.mxu0 %v3241
      %3262 = vmatprep.subr.bf16.mxu0 0
      %3263 = vmatpush1.bf16.msra.mxu0 %v3242
      %3264 = vmatprep.subr.bf16.mxu0 0
      %3265 = vmatpush1.bf16.msra.mxu0 %v3243
      %3266 = vmatprep.subr.bf16.mxu0 0
      %3267 = vmatpush1.bf16.msra.mxu0 %v3244
      %3268 = vmatprep.subr.bf16.mxu0 0
      %3269 = vmatpush1.bf16.msra.mxu0 %v3245
      %3270 = vmatprep.subr.bf16.mxu0 0
      %3271 = vmatpush1.bf16.msra.mxu0 0
      %3272 = vmatprep.subr.bf16.mxu0 0
      %3273 = vmatpush1.bf16.msra.mxu0 0
      %3274 = vmatprep.subr.bf16.mxu0 0
      %3275 = vmatpush1.bf16.msra.mxu0 0
      %3276 = vmatprep.subr.bf16.mxu0 0
      %3277 = vmatpush1.bf16.msra.mxu0 0
      %3278 = vmatprep.subr.bf16.mxu0 0
      %3279 = vmatpush1.bf16.msra.mxu0 0
      %3280 = vmatprep.subr.bf16.mxu0 0
      %3281 = vmatpush1.bf16.msra.mxu0 0
      %3282 = vmatprep.subr.bf16.mxu0 0
      %3283 = vmatpush1.bf16.msra.mxu0 0
      %3284 = vmatprep.subr.bf16.mxu0 0
      %3285 = vmatpush1.bf16.msra.mxu0 0
      %3286 = vmatprep.mubr.bf16.mxu0 0
      %3287 = vmatmul.mubr.bf16.gmra.mrb[0].mxu0 %v3174
      %v3288 = vpop.f32.mrb[0].mxu0
      %v3289 = vadd.f32 0.0, %v3288
      %v3290 = vpop.f32.mrb[0].mxu0
      %v3291 = vpop.f32.mrb[0].mxu0
      %v3292 = vadd.f32 0.0, %v3291
      %v3293 = vpop.f32.mrb[0].mxu0
      %3294 = vmatprep.mubr.bf16.mxu0 0
      %3295 = vmatmul.mubr.bf16.gmra.mrb[0].mxu0 %v3175
      %v3296 = vpop.f32.mrb[0].mxu0
      %v3297 = vadd.f32 0.0, %v3296
      %v3298 = vpop.f32.mrb[0].mxu0
      %v3299 = vpop.f32.mrb[0].mxu0
      %v3300 = vadd.f32 0.0, %v3299
      %v3301 = vpop.f32.mrb[0].mxu0
      %3302 = vmatprep.mubr.bf16.mxu0 0
      %3303 = vmatmul.mubr.bf16.gmra.mrb[0].mxu0 %v3176
      %v3304 = vpop.f32.mrb[0].mxu0
      %v3305 = vadd.f32 0.0, %v3304
      %v3306 = vpop.f32.mrb[0].mxu0
      %v3307 = vpop.f32.mrb[0].mxu0
      %v3308 = vadd.f32 0.0, %v3307
      %v3309 = vpop.f32.mrb[0].mxu0
      %3310 = vmatprep.mubr.bf16.mxu0 0
      %3311 = vmatmul.mubr.bf16.gmra.mrb[0].mxu0 %v3177
      %v3312 = vpop.f32.mrb[0].mxu0
      %v3313 = vadd.f32 0.0, %v3312
      %v3314 = vpop.f32.mrb[0].mxu0
      %v3315 = vpop.f32.mrb[0].mxu0
      %v3316 = vadd.f32 0.0, %v3315
      %v3317 = vpop.f32.mrb[0].mxu0
      %3318 = vmatprep.mubr.bf16.mxu0 0
      %3319 = vmatmul.mubr.bf16.gmra.mrb[0].mxu0 %v3178
      %v3320 = vpop.f32.mrb[0].mxu0
      %v3321 = vadd.f32 0.0, %v3320
      %v3322 = vpop.f32.mrb[0].mxu0
      %v3323 = vpop.f32.mrb[0].mxu0
      %v3324 = vadd.f32 0.0, %v3323
      %v3325 = vpop.f32.mrb[0].mxu0
      %3326 = vmatprep.mubr.bf16.mxu0 0
      %3327 = vmatmul.mubr.bf16.gmra.mrb[0].mxu0 %v3179
      %v3328 = vpop.f32.mrb[0].mxu0
      %v3329 = vadd.f32 0.0, %v3328
      %v3330 = vpop.f32.mrb[0].mxu0
      %v3331 = vpop.f32.mrb[0].mxu0
      %v3332 = vadd.f32 0.0, %v3331
      %v3333 = vpop.f32.mrb[0].mxu0
      %3334 = vmatprep.mubr.bf16.mxu0 0
      %3335 = vmatmul.mubr.bf16.gmra.mrb[0].mxu0 %v3180
      %v3336 = vpop.f32.mrb[0].mxu0
      %v3337 = vadd.f32 0.0, %v3336
      %v3338 = vpop.f32.mrb[0].mxu0
      %v3339 = vpop.f32.mrb[0].mxu0
      %v3340 = vadd.f32 0.0, %v3339
      %v3341 = vpop.f32.mrb[0].mxu0
      %3342 = vmatprep.mubr.bf16.mxu0 0
      %3343 = vmatmul.mubr.bf16.gmra.mrb[0].mxu0 %v3181
      %v3344 = vpop.f32.mrb[0].mxu0
      %v3345 = vadd.f32 0.0, %v3344
      %v3346 = vpop.f32.mrb[0].mxu0
      %v3347 = vpop.f32.mrb[0].mxu0
      %v3348 = vadd.f32 0.0, %v3347
      %v3349 = vpop.f32.mrb[0].mxu0
      %3350 = vmatprep.mubr.bf16.mxu0 0
      %3351 = vmatmul.mubr.bf16.gmra.mrb[0].mxu0 %v3182
      %v3352 = vpop.f32.mrb[0].mxu0
      %v3353 = vadd.f32 0.0, %v3352
      %v3354 = vpop.f32.mrb[0].mxu0
      %v3355 = vpop.f32.mrb[0].mxu0
      %v3356 = vadd.f32 0.0, %v3355
      %v3357 = vpop.f32.mrb[0].mxu0
      %3358 = vmatprep.mubr.bf16.mxu0 0
      %3359 = vmatmul.mubr.bf16.gmra.mrb[0].mxu0 %v3183
      %v3360 = vpop.f32.mrb[0].mxu0
      %v3361 = vadd.f32 0.0, %v3360
      %v3362 = vpop.f32.mrb[0].mxu0
      %v3363 = vpop.f32.mrb[0].mxu0
      %v3364 = vadd.f32 0.0, %v3363
      %v3365 = vpop.f32.mrb[0].mxu0
      %3366 = vmatprep.mubr.bf16.mxu0 0
      %3367 = vmatmul.mubr.bf16.gmra.mrb[0].mxu0 %v3184
      %v3368 = vpop.f32.mrb[0].mxu0
      %v3369 = vadd.f32 0.0, %v3368
      %v3370 = vpop.f32.mrb[0].mxu0
      %v3371 = vpop.f32.mrb[0].mxu0
      %v3372 = vadd.f32 0.0, %v3371
      %v3373 = vpop.f32.mrb[0].mxu0
      %3374 = vmatprep.mubr.bf16.mxu0 0
      %3375 = vmatmul.mubr.bf16.gmra.mrb[0].mxu0 %v3185
      %v3376 = vpop.f32.mrb[0].mxu0
      %v3377 = vadd.f32 0.0, %v3376
      %v3378 = vpop.f32.mrb[0].mxu0
      %v3379 = vpop.f32.mrb[0].mxu0
      %v3380 = vadd.f32 0.0, %v3379
      %v3381 = vpop.f32.mrb[0].mxu0
      %3382 = vmatprep.mubr.bf16.mxu0 0
      %3383 = vmatmul.mubr.bf16.gmra.mrb[0].mxu0 %v3186
      %v3384 = vpop.f32.mrb[0].mxu0
      %v3385 = vadd.f32 0.0, %v3384
      %v3386 = vpop.f32.mrb[0].mxu0
      %v3387 = vpop.f32.mrb[0].mxu0
      %v3388 = vadd.f32 0.0, %v3387
      %v3389 = vpop.f32.mrb[0].mxu0
      %3390 = vmatprep.mubr.bf16.mxu0 0
      %3391 = vmatmul.mubr.bf16.gmra.mrb[0].mxu0 %v3187
      %v3392 = vpop.f32.mrb[0].mxu0
      %v3393 = vadd.f32 0.0, %v3392
      %v3394 = vpop.f32.mrb[0].mxu0
      %v3395 = vpop.f32.mrb[0].mxu0
      %v3396 = vadd.f32 0.0, %v3395
      %v3397 = vpop.f32.mrb[0].mxu0
      %3398 = vmatprep.mubr.bf16.mxu0 0
      %3399 = vmatmul.mubr.bf16.gmra.mrb[0].mxu0 %v3188
      %v3400 = vpop.f32.mrb[0].mxu0
      %v3401 = vadd.f32 0.0, %v3400
      %v3402 = vpop.f32.mrb[0].mxu0
      %v3403 = vpop.f32.mrb[0].mxu0
      %v3404 = vadd.f32 0.0, %v3403
      %v3405 = vpop.f32.mrb[0].mxu0
      %3406 = vmatprep.mubr.bf16.mxu0 0
      %3407 = vmatmul.mubr.bf16.gmra.mrb[0].mxu0 %v3189
      %v3408 = vpop.f32.mrb[0].mxu0
      %v3409 = vadd.f32 0.0, %v3408
      %v3410 = vpop.f32.mrb[0].mxu0
      %v3411 = vpop.f32.mrb[0].mxu0
      %v3412 = vadd.f32 0.0, %v3411
      %v3413 = vpop.f32.mrb[0].mxu0
      %3414 = vdwg.mxu0
      %v3415 = vadd.f32 %v2917, %v3289
      %v3416 = vadd.f32 %v2918, %v3292
      %v3417 = vadd.f32 %v2919, %v3297
      %v3418 = vadd.f32 %v2920, %v3300
      %v3419 = vadd.f32 %v2921, %v3305
      %v3420 = vadd.f32 %v2922, %v3308
      %v3421 = vadd.f32 %v2923, %v3313
      %v3422 = vadd.f32 %v2924, %v3316
      %v3423 = vadd.f32 %v2925, %v3321
      %v3424 = vadd.f32 %v2926, %v3324
      %v3425 = vadd.f32 %v2927, %v3329
      %v3426 = vadd.f32 %v2928, %v3332
      %v3427 = vadd.f32 %v2929, %v3337
      %v3428 = vadd.f32 %v2930, %v3340
      %v3429 = vadd.f32 %v2931, %v3345
      %v3430 = vadd.f32 %v2932, %v3348
      %v3431 = vadd.f32 %v2933, %v3353
      %v3432 = vadd.f32 %v2934, %v3356
      %v3433 = vadd.f32 %v2935, %v3361
      %v3434 = vadd.f32 %v2936, %v3364
      %v3435 = vadd.f32 %v2937, %v3369
      %v3436 = vadd.f32 %v2938, %v3372
      %v3437 = vadd.f32 %v2939, %v3377
      %v3438 = vadd.f32 %v2940, %v3380
      %v3439 = vadd.f32 %v2941, %v3385
      %v3440 = vadd.f32 %v2942, %v3388
      %v3441 = vadd.f32 %v2943, %v3393
      %v3442 = vadd.f32 %v2944, %v3396
      %v3443 = vadd.f32 %v2945, %v3401
      %v3444 = vadd.f32 %v2946, %v3404
      %v3445 = vadd.f32 %v2947, %v3409
      %v3446 = vadd.f32 %v2948, %v3412
      %s3447 = scalar_lea.vmem %s206, 24
      %v3448 = vld [vmem:[%s3447] sm:$0xf]
      %v3449 = vld [vmem:[%s3447 + $0x4] sm:$0xf]
      %v3450 = vld [vmem:[%s3447 + $0xc] sm:$0xf]
      %v3451 = vld [vmem:[%s3447 + $0x10] sm:$0xf]
      %v3452 = vld [vmem:[%s3447 + $0x18] sm:$0xf]
      %v3453 = vld [vmem:[%s3447 + $0x1c] sm:$0xf]
      %v3454 = vld [vmem:[%s3447 + $0x24] sm:$0xf]
      %v3455 = vld [vmem:[%s3447 + $0x28] sm:$0xf]
      %v3456 = vld [vmem:[%s3447 + $0x30] sm:$0xf]
      %v3457 = vld [vmem:[%s3447 + $0x34] sm:$0xf]
      %v3458 = vld [vmem:[%s3447 + $0x3c] sm:$0xf]
      %v3459 = vld [vmem:[%s3447 + $0x40] sm:$0xf]
      %v3460 = vld [vmem:[%s3447 + $0x48] sm:$0xf]
      %v3461 = vld [vmem:[%s3447 + $0x4c] sm:$0xf]
      %v3462 = vld [vmem:[%s3447 + $0x54] sm:$0xf]
      %v3463 = vld [vmem:[%s3447 + $0x58] sm:$0xf]
      %v3464 = vld [vmem:[%s3447 + $0x60] sm:$0xf]
      %v3465 = vld [vmem:[%s3447 + $0x64] sm:$0xf]
      %v3466 = vld [vmem:[%s3447 + $0x6c] sm:$0xf]
      %v3467 = vld [vmem:[%s3447 + $0x70] sm:$0xf]
      %v3468 = vld [vmem:[%s3447 + $0x78] sm:$0xf]
      %v3469 = vld [vmem:[%s3447 + $0x7c] sm:$0xf]
      %v3470 = vld [vmem:[%s3447 + $0x84] sm:$0xf]
      %v3471 = vld [vmem:[%s3447 + $0x88] sm:$0xf]
      %v3472 = vld [vmem:[%s3447 + $0x90] sm:$0xf]
      %v3473 = vld [vmem:[%s3447 + $0x94] sm:$0xf]
      %v3474 = vld [vmem:[%s3447 + $0x9c] sm:$0xf]
      %v3475 = vld [vmem:[%s3447 + $0xa0] sm:$0xf]
      %v3476 = vld [vmem:[%s3447 + $0xa8] sm:$0xf]
      %v3477 = vld [vmem:[%s3447 + $0xac] sm:$0xf]
      %v3478 = vld [vmem:[%s3447 + $0xb4] sm:$0xf]
      %v3479 = vld [vmem:[%s3447 + $0xb8] sm:$0xf]
      %s3480 = scalar_lea.vmem %s210, 384
      %v3481 = vld [vmem:[%s3480] sm:$0xf]
      %v3482 = vld [vmem:[%s3480 + $0x4] sm:$0xf]
      %v3483 = vld [vmem:[%s3480 + $0x8] sm:$0xf]
      %v3484 = vld [vmem:[%s3480 + $0xc] sm:$0xf]
      %v3485 = vld [vmem:[%s3480 + $0x10] sm:$0xf]
      %v3486 = vld [vmem:[%s3480 + $0x14] sm:$0xf]
      %v3487 = vld [vmem:[%s3480 + $0x18] sm:$0xf]
      %v3488 = vld [vmem:[%s3480 + $0x1c] sm:$0xf]
      %v3489 = vld [vmem:[%s3480 + $0x20] sm:$0xf]
      %v3490 = vld [vmem:[%s3480 + $0x24] sm:$0xf]
      %v3491 = vld [vmem:[%s3480 + $0x28] sm:$0xf]
      %v3492 = vld [vmem:[%s3480 + $0x2c] sm:$0xf]
      %v3493 = vld [vmem:[%s3480 + $0x30] sm:$0xf]
      %v3494 = vld [vmem:[%s3480 + $0x34] sm:$0xf]
      %v3495 = vld [vmem:[%s3480 + $0x38] sm:$0xf]
      %v3496 = vld [vmem:[%s3480 + $0x3c] sm:$0xf]
      %v3529 = vunpack.c.l.b16 %v3448
      %v3530 = vunpack.c.l.b16 %v3449
      %v3531 = vunpack.c.l.b16 %v3450
      %v3532 = vunpack.c.l.b16 %v3451
      %v3533 = vunpack.c.l.b16 %v3452
      %v3534 = vunpack.c.l.b16 %v3453
      %v3535 = vunpack.c.l.b16 %v3454
      %v3536 = vunpack.c.l.b16 %v3455
      %v3537 = vunpack.c.l.b16 %v3456
      %v3538 = vunpack.c.l.b16 %v3457
      %v3539 = vunpack.c.l.b16 %v3458
      %v3540 = vunpack.c.l.b16 %v3459
      %v3541 = vunpack.c.l.b16 %v3460
      %v3542 = vunpack.c.l.b16 %v3461
      %v3543 = vunpack.c.l.b16 %v3462
      %v3544 = vunpack.c.l.b16 %v3463
      %v3545 = vunpack.c.l.b16 %v3464
      %v3546 = vunpack.c.l.b16 %v3465
      %v3547 = vunpack.c.l.b16 %v3466
      %v3548 = vunpack.c.l.b16 %v3467
      %v3549 = vunpack.c.l.b16 %v3468
      %v3550 = vunpack.c.l.b16 %v3469
      %v3551 = vunpack.c.l.b16 %v3470
      %v3552 = vunpack.c.l.b16 %v3471
      %v3553 = vunpack.c.l.b16 %v3472
      %v3554 = vunpack.c.l.b16 %v3473
      %v3555 = vunpack.c.l.b16 %v3474
      %v3556 = vunpack.c.l.b16 %v3475
      %v3557 = vunpack.c.l.b16 %v3476
      %v3558 = vunpack.c.l.b16 %v3477
      %v3559 = vunpack.c.l.b16 %v3478
      %v3560 = vunpack.c.l.b16 %v3479
      %v3561 = vpack.c.b16 %v3530, %v3529
      %v3562 = vpack.c.b16 %v3532, %v3531
      %v3563 = vpack.c.b16 %v3534, %v3533
      %v3564 = vpack.c.b16 %v3536, %v3535
      %v3565 = vpack.c.b16 %v3538, %v3537
      %v3566 = vpack.c.b16 %v3540, %v3539
      %v3567 = vpack.c.b16 %v3542, %v3541
      %v3568 = vpack.c.b16 %v3544, %v3543
      %v3569 = vpack.c.b16 %v3546, %v3545
      %v3570 = vpack.c.b16 %v3548, %v3547
      %v3571 = vpack.c.b16 %v3550, %v3549
      %v3572 = vpack.c.b16 %v3552, %v3551
      %v3573 = vpack.c.b16 %v3554, %v3553
      %v3574 = vpack.c.b16 %v3556, %v3555
      %v3575 = vpack.c.b16 %v3558, %v3557
      %v3576 = vpack.c.b16 %v3560, %v3559
      %v3609 = vunpack.c.l.b16 %v3481
      %v3610 = vunpack.c.l.b16 %v3482
      %v3611 = vunpack.c.l.b16 %v3483
      %v3612 = vunpack.c.l.b16 %v3484
      %v3613 = vunpack.c.l.b16 %v3485
      %v3614 = vunpack.c.l.b16 %v3486
      %v3615 = vunpack.c.l.b16 %v3487
      %v3616 = vunpack.c.l.b16 %v3488
      %v3617 = vunpack.c.l.b16 %v3489
      %v3618 = vunpack.c.l.b16 %v3490
      %v3619 = vunpack.c.l.b16 %v3491
      %v3620 = vunpack.c.l.b16 %v3492
      %v3621 = vunpack.c.l.b16 %v3493
      %v3622 = vunpack.c.l.b16 %v3494
      %v3623 = vunpack.c.l.b16 %v3495
      %v3624 = vunpack.c.l.b16 %v3496
      %v3625 = vpack.c.b16 %v3610, %v3609
      %v3626 = vpack.c.b16 %v3612, %v3611
      %v3627 = vpack.c.b16 %v3614, %v3613
      %v3628 = vpack.c.b16 %v3616, %v3615
      %v3629 = vpack.c.b16 %v3618, %v3617
      %v3630 = vpack.c.b16 %v3620, %v3619
      %v3631 = vpack.c.b16 %v3622, %v3621
      %v3632 = vpack.c.b16 %v3624, %v3623
      %3641 = vmatprep.subr.bf16.mxu0 0
      %3642 = vmatpush1.bf16.msra.mxu0 %v3625
      %3643 = vmatprep.subr.bf16.mxu0 0
      %3644 = vmatpush1.bf16.msra.mxu0 %v3626
      %3645 = vmatprep.subr.bf16.mxu0 0
      %3646 = vmatpush1.bf16.msra.mxu0 %v3627
      %3647 = vmatprep.subr.bf16.mxu0 0
      %3648 = vmatpush1.bf16.msra.mxu0 %v3628
      %3649 = vmatprep.subr.bf16.mxu0 0
      %3650 = vmatpush1.bf16.msra.mxu0 %v3629
      %3651 = vmatprep.subr.bf16.mxu0 0
      %3652 = vmatpush1.bf16.msra.mxu0 %v3630
      %3653 = vmatprep.subr.bf16.mxu0 0
      %3654 = vmatpush1.bf16.msra.mxu0 %v3631
      %3655 = vmatprep.subr.bf16.mxu0 0
      %3656 = vmatpush1.bf16.msra.mxu0 %v3632
      %3657 = vmatprep.subr.bf16.mxu0 0
      %3658 = vmatpush1.bf16.msra.mxu0 0
      %3659 = vmatprep.subr.bf16.mxu0 0
      %3660 = vmatpush1.bf16.msra.mxu0 0
      %3661 = vmatprep.subr.bf16.mxu0 0
      %3662 = vmatpush1.bf16.msra.mxu0 0
      %3663 = vmatprep.subr.bf16.mxu0 0
      %3664 = vmatpush1.bf16.msra.mxu0 0
      %3665 = vmatprep.subr.bf16.mxu0 0
      %3666 = vmatpush1.bf16.msra.mxu0 0
      %3667 = vmatprep.subr.bf16.mxu0 0
      %3668 = vmatpush1.bf16.msra.mxu0 0
      %3669 = vmatprep.subr.bf16.mxu0 0
      %3670 = vmatpush1.bf16.msra.mxu0 0
      %3671 = vmatprep.subr.bf16.mxu0 0
      %3672 = vmatpush1.bf16.msra.mxu0 0
      %3673 = vmatprep.mubr.bf16.mxu0 0
      %3674 = vmatmul.mubr.bf16.gmra.mrb[0].mxu0 %v3561
      %v3675 = vpop.f32.mrb[0].mxu0
      %v3676 = vadd.f32 0.0, %v3675
      %v3677 = vpop.f32.mrb[0].mxu0
      %v3678 = vpop.f32.mrb[0].mxu0
      %v3679 = vadd.f32 0.0, %v3678
      %v3680 = vpop.f32.mrb[0].mxu0
      %3681 = vmatprep.mubr.bf16.mxu0 0
      %3682 = vmatmul.mubr.bf16.gmra.mrb[0].mxu0 %v3562
      %v3683 = vpop.f32.mrb[0].mxu0
      %v3684 = vadd.f32 0.0, %v3683
      %v3685 = vpop.f32.mrb[0].mxu0
      %v3686 = vpop.f32.mrb[0].mxu0
      %v3687 = vadd.f32 0.0, %v3686
      %v3688 = vpop.f32.mrb[0].mxu0
      %3689 = vmatprep.mubr.bf16.mxu0 0
      %3690 = vmatmul.mubr.bf16.gmra.mrb[0].mxu0 %v3563
      %v3691 = vpop.f32.mrb[0].mxu0
      %v3692 = vadd.f32 0.0, %v3691
      %v3693 = vpop.f32.mrb[0].mxu0
      %v3694 = vpop.f32.mrb[0].mxu0
      %v3695 = vadd.f32 0.0, %v3694
      %v3696 = vpop.f32.mrb[0].mxu0
      %3697 = vmatprep.mubr.bf16.mxu0 0
      %3698 = vmatmul.mubr.bf16.gmra.mrb[0].mxu0 %v3564
      %v3699 = vpop.f32.mrb[0].mxu0
      %v3700 = vadd.f32 0.0, %v3699
      %v3701 = vpop.f32.mrb[0].mxu0
      %v3702 = vpop.f32.mrb[0].mxu0
      %v3703 = vadd.f32 0.0, %v3702
      %v3704 = vpop.f32.mrb[0].mxu0
      %3705 = vmatprep.mubr.bf16.mxu0 0
      %3706 = vmatmul.mubr.bf16.gmra.mrb[0].mxu0 %v3565
      %v3707 = vpop.f32.mrb[0].mxu0
      %v3708 = vadd.f32 0.0, %v3707
      %v3709 = vpop.f32.mrb[0].mxu0
      %v3710 = vpop.f32.mrb[0].mxu0
      %v3711 = vadd.f32 0.0, %v3710
      %v3712 = vpop.f32.mrb[0].mxu0
      %3713 = vmatprep.mubr.bf16.mxu0 0
      %3714 = vmatmul.mubr.bf16.gmra.mrb[0].mxu0 %v3566
      %v3715 = vpop.f32.mrb[0].mxu0
      %v3716 = vadd.f32 0.0, %v3715
      %v3717 = vpop.f32.mrb[0].mxu0
      %v3718 = vpop.f32.mrb[0].mxu0
      %v3719 = vadd.f32 0.0, %v3718
      %v3720 = vpop.f32.mrb[0].mxu0
      %3721 = vmatprep.mubr.bf16.mxu0 0
      %3722 = vmatmul.mubr.bf16.gmra.mrb[0].mxu0 %v3567
      %v3723 = vpop.f32.mrb[0].mxu0
      %v3724 = vadd.f32 0.0, %v3723
      %v3725 = vpop.f32.mrb[0].mxu0
      %v3726 = vpop.f32.mrb[0].mxu0
      %v3727 = vadd.f32 0.0, %v3726
      %v3728 = vpop.f32.mrb[0].mxu0
      %3729 = vmatprep.mubr.bf16.mxu0 0
      %3730 = vmatmul.mubr.bf16.gmra.mrb[0].mxu0 %v3568
      %v3731 = vpop.f32.mrb[0].mxu0
      %v3732 = vadd.f32 0.0, %v3731
      %v3733 = vpop.f32.mrb[0].mxu0
      %v3734 = vpop.f32.mrb[0].mxu0
      %v3735 = vadd.f32 0.0, %v3734
      %v3736 = vpop.f32.mrb[0].mxu0
      %3737 = vmatprep.mubr.bf16.mxu0 0
      %3738 = vmatmul.mubr.bf16.gmra.mrb[0].mxu0 %v3569
      %v3739 = vpop.f32.mrb[0].mxu0
      %v3740 = vadd.f32 0.0, %v3739
      %v3741 = vpop.f32.mrb[0].mxu0
      %v3742 = vpop.f32.mrb[0].mxu0
      %v3743 = vadd.f32 0.0, %v3742
      %v3744 = vpop.f32.mrb[0].mxu0
      %3745 = vmatprep.mubr.bf16.mxu0 0
      %3746 = vmatmul.mubr.bf16.gmra.mrb[0].mxu0 %v3570
      %v3747 = vpop.f32.mrb[0].mxu0
      %v3748 = vadd.f32 0.0, %v3747
      %v3749 = vpop.f32.mrb[0].mxu0
      %v3750 = vpop.f32.mrb[0].mxu0
      %v3751 = vadd.f32 0.0, %v3750
      %v3752 = vpop.f32.mrb[0].mxu0
      %3753 = vmatprep.mubr.bf16.mxu0 0
      %3754 = vmatmul.mubr.bf16.gmra.mrb[0].mxu0 %v3571
      %v3755 = vpop.f32.mrb[0].mxu0
      %v3756 = vadd.f32 0.0, %v3755
      %v3757 = vpop.f32.mrb[0].mxu0
      %v3758 = vpop.f32.mrb[0].mxu0
      %v3759 = vadd.f32 0.0, %v3758
      %v3760 = vpop.f32.mrb[0].mxu0
      %3761 = vmatprep.mubr.bf16.mxu0 0
      %3762 = vmatmul.mubr.bf16.gmra.mrb[0].mxu0 %v3572
      %v3763 = vpop.f32.mrb[0].mxu0
      %v3764 = vadd.f32 0.0, %v3763
      %v3765 = vpop.f32.mrb[0].mxu0
      %v3766 = vpop.f32.mrb[0].mxu0
      %v3767 = vadd.f32 0.0, %v3766
      %v3768 = vpop.f32.mrb[0].mxu0
      %3769 = vmatprep.mubr.bf16.mxu0 0
      %3770 = vmatmul.mubr.bf16.gmra.mrb[0].mxu0 %v3573
      %v3771 = vpop.f32.mrb[0].mxu0
      %v3772 = vadd.f32 0.0, %v3771
      %v3773 = vpop.f32.mrb[0].mxu0
      %v3774 = vpop.f32.mrb[0].mxu0
      %v3775 = vadd.f32 0.0, %v3774
      %v3776 = vpop.f32.mrb[0].mxu0
      %3777 = vmatprep.mubr.bf16.mxu0 0
      %3778 = vmatmul.mubr.bf16.gmra.mrb[0].mxu0 %v3574
      %v3779 = vpop.f32.mrb[0].mxu0
      %v3780 = vadd.f32 0.0, %v3779
      %v3781 = vpop.f32.mrb[0].mxu0
      %v3782 = vpop.f32.mrb[0].mxu0
      %v3783 = vadd.f32 0.0, %v3782
      %v3784 = vpop.f32.mrb[0].mxu0
      %3785 = vmatprep.mubr.bf16.mxu0 0
      %3786 = vmatmul.mubr.bf16.gmra.mrb[0].mxu0 %v3575
      %v3787 = vpop.f32.mrb[0].mxu0
      %v3788 = vadd.f32 0.0, %v3787
      %v3789 = vpop.f32.mrb[0].mxu0
      %v3790 = vpop.f32.mrb[0].mxu0
      %v3791 = vadd.f32 0.0, %v3790
      %v3792 = vpop.f32.mrb[0].mxu0
      %3793 = vmatprep.mubr.bf16.mxu0 0
      %3794 = vmatmul.mubr.bf16.gmra.mrb[0].mxu0 %v3576
      %v3795 = vpop.f32.mrb[0].mxu0
      %v3796 = vadd.f32 0.0, %v3795
      %v3797 = vpop.f32.mrb[0].mxu0
      %v3798 = vpop.f32.mrb[0].mxu0
      %v3799 = vadd.f32 0.0, %v3798
      %v3800 = vpop.f32.mrb[0].mxu0
      %3801 = vdwg.mxu0
      %v3802 = vadd.f32 %v3415, %v3676
      %v3803 = vadd.f32 %v3416, %v3679
      %v3804 = vadd.f32 %v3417, %v3684
      %v3805 = vadd.f32 %v3418, %v3687
      %v3806 = vadd.f32 %v3419, %v3692
      %v3807 = vadd.f32 %v3420, %v3695
      %v3808 = vadd.f32 %v3421, %v3700
      %v3809 = vadd.f32 %v3422, %v3703
      %v3810 = vadd.f32 %v3423, %v3708
      %v3811 = vadd.f32 %v3424, %v3711
      %v3812 = vadd.f32 %v3425, %v3716
      %v3813 = vadd.f32 %v3426, %v3719
      %v3814 = vadd.f32 %v3427, %v3724
      %v3815 = vadd.f32 %v3428, %v3727
      %v3816 = vadd.f32 %v3429, %v3732
      %v3817 = vadd.f32 %v3430, %v3735
      %v3818 = vadd.f32 %v3431, %v3740
      %v3819 = vadd.f32 %v3432, %v3743
      %v3820 = vadd.f32 %v3433, %v3748
      %v3821 = vadd.f32 %v3434, %v3751
      %v3822 = vadd.f32 %v3435, %v3756
      %v3823 = vadd.f32 %v3436, %v3759
      %v3824 = vadd.f32 %v3437, %v3764
      %v3825 = vadd.f32 %v3438, %v3767
      %v3826 = vadd.f32 %v3439, %v3772
      %v3827 = vadd.f32 %v3440, %v3775
      %v3828 = vadd.f32 %v3441, %v3780
      %v3829 = vadd.f32 %v3442, %v3783
      %v3830 = vadd.f32 %v3443, %v3788
      %v3831 = vadd.f32 %v3444, %v3791
      %v3832 = vadd.f32 %v3445, %v3796
      %v3833 = vadd.f32 %v3446, %v3799
      %v3834 = vld [vmem:[%s3447] sm:$0xf]
      %v3835 = vld [vmem:[%s3447 + $0x4] sm:$0xf]
      %v3836 = vld [vmem:[%s3447 + $0x8] sm:$0x1]
      %v3837 = vld [vmem:[%s3447 + $0xc] sm:$0xf]
      %v3838 = vld [vmem:[%s3447 + $0x10] sm:$0xf]
      %v3839 = vld [vmem:[%s3447 + $0x14] sm:$0x1]
      %v3840 = vld [vmem:[%s3447 + $0x18] sm:$0xf]
      %v3841 = vld [vmem:[%s3447 + $0x1c] sm:$0xf]
      %v3842 = vld [vmem:[%s3447 + $0x20] sm:$0x1]
      %v3843 = vld [vmem:[%s3447 + $0x24] sm:$0xf]
      %v3844 = vld [vmem:[%s3447 + $0x28] sm:$0xf]
      %v3845 = vld [vmem:[%s3447 + $0x2c] sm:$0x1]
      %v3846 = vld [vmem:[%s3447 + $0x30] sm:$0xf]
      %v3847 = vld [vmem:[%s3447 + $0x34] sm:$0xf]
      %v3848 = vld [vmem:[%s3447 + $0x38] sm:$0x1]
      %v3849 = vld [vmem:[%s3447 + $0x3c] sm:$0xf]
      %v3850 = vld [vmem:[%s3447 + $0x40] sm:$0xf]
      %v3851 = vld [vmem:[%s3447 + $0x44] sm:$0x1]
      %v3852 = vld [vmem:[%s3447 + $0x48] sm:$0xf]
      %v3853 = vld [vmem:[%s3447 + $0x4c] sm:$0xf]
      %v3854 = vld [vmem:[%s3447 + $0x50] sm:$0x1]
      %v3855 = vld [vmem:[%s3447 + $0x54] sm:$0xf]
      %v3856 = vld [vmem:[%s3447 + $0x58] sm:$0xf]
      %v3857 = vld [vmem:[%s3447 + $0x5c] sm:$0x1]
      %v3858 = vld [vmem:[%s3447 + $0x60] sm:$0xf]
      %v3859 = vld [vmem:[%s3447 + $0x64] sm:$0xf]
      %v3860 = vld [vmem:[%s3447 + $0x68] sm:$0x1]
      %v3861 = vld [vmem:[%s3447 + $0x6c] sm:$0xf]
      %v3862 = vld [vmem:[%s3447 + $0x70] sm:$0xf]
      %v3863 = vld [vmem:[%s3447 + $0x74] sm:$0x1]
      %v3864 = vld [vmem:[%s3447 + $0x78] sm:$0xf]
      %v3865 = vld [vmem:[%s3447 + $0x7c] sm:$0xf]
      %v3866 = vld [vmem:[%s3447 + $0x80] sm:$0x1]
      %v3867 = vld [vmem:[%s3447 + $0x84] sm:$0xf]
      %v3868 = vld [vmem:[%s3447 + $0x88] sm:$0xf]
      %v3869 = vld [vmem:[%s3447 + $0x8c] sm:$0x1]
      %v3870 = vld [vmem:[%s3447 + $0x90] sm:$0xf]
      %v3871 = vld [vmem:[%s3447 + $0x94] sm:$0xf]
      %v3872 = vld [vmem:[%s3447 + $0x98] sm:$0x1]
      %v3873 = vld [vmem:[%s3447 + $0x9c] sm:$0xf]
      %v3874 = vld [vmem:[%s3447 + $0xa0] sm:$0xf]
      %v3875 = vld [vmem:[%s3447 + $0xa4] sm:$0x1]
      %v3876 = vld [vmem:[%s3447 + $0xa8] sm:$0xf]
      %v3877 = vld [vmem:[%s3447 + $0xac] sm:$0xf]
      %v3878 = vld [vmem:[%s3447 + $0xb0] sm:$0x1]
      %v3879 = vld [vmem:[%s3447 + $0xb4] sm:$0xf]
      %v3880 = vld [vmem:[%s3447 + $0xb8] sm:$0xf]
      %v3881 = vld [vmem:[%s3447 + $0xbc] sm:$0x1]
      %v3883 = vshrl.u32 %v3834, 16
      %v3885 = vrot.slane %v3883, 4
      %v3886 = vshll.u32 %v3834, 16
      %v3888 = vrot.slane %v3886, 5
      %v3889 = vor.u32 %v3885, %v3888
      %v3890 = vrot.slane %v3889, 4
      %v3892 = vshll.u32 %v3835, 16
      %v3894 = vrot.slane %v3892, 5
      %v3895 = vsel %vm343, %v3890, %v3894
      %v3896 = vshrl.u32 %v3835, 16
      %v3898 = vrot.slane %v3896, 4
      %v3899 = vor.u32 %v3898, %v3894
      %v3900 = vrot.slane %v3899, 4
      %v3902 = vshll.u32 %v3836, 16
      %v3904 = vrot.slane %v3902, 5
      %v3905 = vsel %vm343, %v3900, %v3904
      %v3907 = vshrl.u32 %v3837, 16
      %v3909 = vrot.slane %v3907, 4
      %v3910 = vshll.u32 %v3837, 16
      %v3912 = vrot.slane %v3910, 5
      %v3913 = vor.u32 %v3909, %v3912
      %v3914 = vrot.slane %v3913, 4
      %v3916 = vshll.u32 %v3838, 16
      %v3918 = vrot.slane %v3916, 5
      %v3919 = vsel %vm343, %v3914, %v3918
      %v3920 = vshrl.u32 %v3838, 16
      %v3922 = vrot.slane %v3920, 4
      %v3923 = vor.u32 %v3922, %v3918
      %v3924 = vrot.slane %v3923, 4
      %v3926 = vshll.u32 %v3839, 16
      %v3928 = vrot.slane %v3926, 5
      %v3929 = vsel %vm343, %v3924, %v3928
      %v3931 = vshrl.u32 %v3840, 16
      %v3933 = vrot.slane %v3931, 4
      %v3934 = vshll.u32 %v3840, 16
      %v3936 = vrot.slane %v3934, 5
      %v3937 = vor.u32 %v3933, %v3936
      %v3938 = vrot.slane %v3937, 4
      %v3940 = vshll.u32 %v3841, 16
      %v3942 = vrot.slane %v3940, 5
      %v3943 = vsel %vm343, %v3938, %v3942
      %v3944 = vshrl.u32 %v3841, 16
      %v3946 = vrot.slane %v3944, 4
      %v3947 = vor.u32 %v3946, %v3942
      %v3948 = vrot.slane %v3947, 4
      %v3950 = vshll.u32 %v3842, 16
      %v3952 = vrot.slane %v3950, 5
      %v3953 = vsel %vm343, %v3948, %v3952
      %v3955 = vshrl.u32 %v3843, 16
      %v3957 = vrot.slane %v3955, 4
      %v3958 = vshll.u32 %v3843, 16
      %v3960 = vrot.slane %v3958, 5
      %v3961 = vor.u32 %v3957, %v3960
      %v3962 = vrot.slane %v3961, 4
      %v3964 = vshll.u32 %v3844, 16
      %v3966 = vrot.slane %v3964, 5
      %v3967 = vsel %vm343, %v3962, %v3966
      %v3968 = vshrl.u32 %v3844, 16
      %v3970 = vrot.slane %v3968, 4
      %v3971 = vor.u32 %v3970, %v3966
      %v3972 = vrot.slane %v3971, 4
      %v3974 = vshll.u32 %v3845, 16
      %v3976 = vrot.slane %v3974, 5
      %v3977 = vsel %vm343, %v3972, %v3976
      %v3979 = vshrl.u32 %v3846, 16
      %v3981 = vrot.slane %v3979, 4
      %v3982 = vshll.u32 %v3846, 16
      %v3984 = vrot.slane %v3982, 5
      %v3985 = vor.u32 %v3981, %v3984
      %v3986 = vrot.slane %v3985, 4
      %v3988 = vshll.u32 %v3847, 16
      %v3990 = vrot.slane %v3988, 5
      %v3991 = vsel %vm343, %v3986, %v3990
      %v3992 = vshrl.u32 %v3847, 16
      %v3994 = vrot.slane %v3992, 4
      %v3995 = vor.u32 %v3994, %v3990
      %v3996 = vrot.slane %v3995, 4
      %v3998 = vshll.u32 %v3848, 16
      %v4000 = vrot.slane %v3998, 5
      %v4001 = vsel %vm343, %v3996, %v4000
      %v4003 = vshrl.u32 %v3849, 16
      %v4005 = vrot.slane %v4003, 4
      %v4006 = vshll.u32 %v3849, 16
      %v4008 = vrot.slane %v4006, 5
      %v4009 = vor.u32 %v4005, %v4008
      %v4010 = vrot.slane %v4009, 4
      %v4012 = vshll.u32 %v3850, 16
      %v4014 = vrot.slane %v4012, 5
      %v4015 = vsel %vm343, %v4010, %v4014
      %v4016 = vshrl.u32 %v3850, 16
      %v4018 = vrot.slane %v4016, 4
      %v4019 = vor.u32 %v4018, %v4014
      %v4020 = vrot.slane %v4019, 4
      %v4022 = vshll.u32 %v3851, 16
      %v4024 = vrot.slane %v4022, 5
      %v4025 = vsel %vm343, %v4020, %v4024
      %v4027 = vshrl.u32 %v3852, 16
      %v4029 = vrot.slane %v4027, 4
      %v4030 = vshll.u32 %v3852, 16
      %v4032 = vrot.slane %v4030, 5
      %v4033 = vor.u32 %v4029, %v4032
      %v4034 = vrot.slane %v4033, 4
      %v4036 = vshll.u32 %v3853, 16
      %v4038 = vrot.slane %v4036, 5
      %v4039 = vsel %vm343, %v4034, %v4038
      %v4040 = vshrl.u32 %v3853, 16
      %v4042 = vrot.slane %v4040, 4
      %v4043 = vor.u32 %v4042, %v4038
      %v4044 = vrot.slane %v4043, 4
      %v4046 = vshll.u32 %v3854, 16
      %v4048 = vrot.slane %v4046, 5
      %v4049 = vsel %vm343, %v4044, %v4048
      %v4051 = vshrl.u32 %v3855, 16
      %v4053 = vrot.slane %v4051, 4
      %v4054 = vshll.u32 %v3855, 16
      %v4056 = vrot.slane %v4054, 5
      %v4057 = vor.u32 %v4053, %v4056
      %v4058 = vrot.slane %v4057, 4
      %v4060 = vshll.u32 %v3856, 16
      %v4062 = vrot.slane %v4060, 5
      %v4063 = vsel %vm343, %v4058, %v4062
      %v4064 = vshrl.u32 %v3856, 16
      %v4066 = vrot.slane %v4064, 4
      %v4067 = vor.u32 %v4066, %v4062
      %v4068 = vrot.slane %v4067, 4
      %v4070 = vshll.u32 %v3857, 16
      %v4072 = vrot.slane %v4070, 5
      %v4073 = vsel %vm343, %v4068, %v4072
      %v4075 = vshrl.u32 %v3858, 16
      %v4077 = vrot.slane %v4075, 4
      %v4078 = vshll.u32 %v3858, 16
      %v4080 = vrot.slane %v4078, 5
      %v4081 = vor.u32 %v4077, %v4080
      %v4082 = vrot.slane %v4081, 4
      %v4084 = vshll.u32 %v3859, 16
      %v4086 = vrot.slane %v4084, 5
      %v4087 = vsel %vm343, %v4082, %v4086
      %v4088 = vshrl.u32 %v3859, 16
      %v4090 = vrot.slane %v4088, 4
      %v4091 = vor.u32 %v4090, %v4086
      %v4092 = vrot.slane %v4091, 4
      %v4094 = vshll.u32 %v3860, 16
      %v4096 = vrot.slane %v4094, 5
      %v4097 = vsel %vm343, %v4092, %v4096
      %v4099 = vshrl.u32 %v3861, 16
      %v4101 = vrot.slane %v4099, 4
      %v4102 = vshll.u32 %v3861, 16
      %v4104 = vrot.slane %v4102, 5
      %v4105 = vor.u32 %v4101, %v4104
      %v4106 = vrot.slane %v4105, 4
      %v4108 = vshll.u32 %v3862, 16
      %v4110 = vrot.slane %v4108, 5
      %v4111 = vsel %vm343, %v4106, %v4110
      %v4112 = vshrl.u32 %v3862, 16
      %v4114 = vrot.slane %v4112, 4
      %v4115 = vor.u32 %v4114, %v4110
      %v4116 = vrot.slane %v4115, 4
      %v4118 = vshll.u32 %v3863, 16
      %v4120 = vrot.slane %v4118, 5
      %v4121 = vsel %vm343, %v4116, %v4120
      %v4123 = vshrl.u32 %v3864, 16
      %v4125 = vrot.slane %v4123, 4
      %v4126 = vshll.u32 %v3864, 16
      %v4128 = vrot.slane %v4126, 5
      %v4129 = vor.u32 %v4125, %v4128
      %v4130 = vrot.slane %v4129, 4
      %v4132 = vshll.u32 %v3865, 16
      %v4134 = vrot.slane %v4132, 5
      %v4135 = vsel %vm343, %v4130, %v4134
      %v4136 = vshrl.u32 %v3865, 16
      %v4138 = vrot.slane %v4136, 4
      %v4139 = vor.u32 %v4138, %v4134
      %v4140 = vrot.slane %v4139, 4
      %v4142 = vshll.u32 %v3866, 16
      %v4144 = vrot.slane %v4142, 5
      %v4145 = vsel %vm343, %v4140, %v4144
      %v4147 = vshrl.u32 %v3867, 16
      %v4149 = vrot.slane %v4147, 4
      %v4150 = vshll.u32 %v3867, 16
      %v4152 = vrot.slane %v4150, 5
      %v4153 = vor.u32 %v4149, %v4152
      %v4154 = vrot.slane %v4153, 4
      %v4156 = vshll.u32 %v3868, 16
      %v4158 = vrot.slane %v4156, 5
      %v4159 = vsel %vm343, %v4154, %v4158
      %v4160 = vshrl.u32 %v3868, 16
      %v4162 = vrot.slane %v4160, 4
      %v4163 = vor.u32 %v4162, %v4158
      %v4164 = vrot.slane %v4163, 4
      %v4166 = vshll.u32 %v3869, 16
      %v4168 = vrot.slane %v4166, 5
      %v4169 = vsel %vm343, %v4164, %v4168
      %v4171 = vshrl.u32 %v3870, 16
      %v4173 = vrot.slane %v4171, 4
      %v4174 = vshll.u32 %v3870, 16
      %v4176 = vrot.slane %v4174, 5
      %v4177 = vor.u32 %v4173, %v4176
      %v4178 = vrot.slane %v4177, 4
      %v4180 = vshll.u32 %v3871, 16
      %v4182 = vrot.slane %v4180, 5
      %v4183 = vsel %vm343, %v4178, %v4182
      %v4184 = vshrl.u32 %v3871, 16
      %v4186 = vrot.slane %v4184, 4
      %v4187 = vor.u32 %v4186, %v4182
      %v4188 = vrot.slane %v4187, 4
      %v4190 = vshll.u32 %v3872, 16
      %v4192 = vrot.slane %v4190, 5
      %v4193 = vsel %vm343, %v4188, %v4192
      %v4195 = vshrl.u32 %v3873, 16
      %v4197 = vrot.slane %v4195, 4
      %v4198 = vshll.u32 %v3873, 16
      %v4200 = vrot.slane %v4198, 5
      %v4201 = vor.u32 %v4197, %v4200
      %v4202 = vrot.slane %v4201, 4
      %v4204 = vshll.u32 %v3874, 16
      %v4206 = vrot.slane %v4204, 5
      %v4207 = vsel %vm343, %v4202, %v4206
      %v4208 = vshrl.u32 %v3874, 16
      %v4210 = vrot.slane %v4208, 4
      %v4211 = vor.u32 %v4210, %v4206
      %v4212 = vrot.slane %v4211, 4
      %v4214 = vshll.u32 %v3875, 16
      %v4216 = vrot.slane %v4214, 5
      %v4217 = vsel %vm343, %v4212, %v4216
      %v4219 = vshrl.u32 %v3876, 16
      %v4221 = vrot.slane %v4219, 4
      %v4222 = vshll.u32 %v3876, 16
      %v4224 = vrot.slane %v4222, 5
      %v4225 = vor.u32 %v4221, %v4224
      %v4226 = vrot.slane %v4225, 4
      %v4228 = vshll.u32 %v3877, 16
      %v4230 = vrot.slane %v4228, 5
      %v4231 = vsel %vm343, %v4226, %v4230
      %v4232 = vshrl.u32 %v3877, 16
      %v4234 = vrot.slane %v4232, 4
      %v4235 = vor.u32 %v4234, %v4230
      %v4236 = vrot.slane %v4235, 4
      %v4238 = vshll.u32 %v3878, 16
      %v4240 = vrot.slane %v4238, 5
      %v4241 = vsel %vm343, %v4236, %v4240
      %v4243 = vshrl.u32 %v3879, 16
      %v4245 = vrot.slane %v4243, 4
      %v4246 = vshll.u32 %v3879, 16
      %v4248 = vrot.slane %v4246, 5
      %v4249 = vor.u32 %v4245, %v4248
      %v4250 = vrot.slane %v4249, 4
      %v4252 = vshll.u32 %v3880, 16
      %v4254 = vrot.slane %v4252, 5
      %v4255 = vsel %vm343, %v4250, %v4254
      %v4256 = vshrl.u32 %v3880, 16
      %v4258 = vrot.slane %v4256, 4
      %v4259 = vor.u32 %v4258, %v4254
      %v4260 = vrot.slane %v4259, 4
      %v4262 = vshll.u32 %v3881, 16
      %v4264 = vrot.slane %v4262, 5
      %v4265 = vsel %vm343, %v4260, %v4264
      %s4266 = scalar_lea.vmem %s210, 448
      %v4267 = vld [vmem:[%s4266] sm:$0xf]
      %v4268 = vld [vmem:[%s4266 + $0x4] sm:$0xf]
      %v4269 = vld [vmem:[%s4266 + $0x8] sm:$0xf]
      %v4270 = vld [vmem:[%s4266 + $0xc] sm:$0xf]
      %v4271 = vld [vmem:[%s4266 + $0x10] sm:$0xf]
      %v4272 = vld [vmem:[%s4266 + $0x14] sm:$0xf]
      %v4273 = vld [vmem:[%s4266 + $0x18] sm:$0xf]
      %v4274 = vld [vmem:[%s4266 + $0x1c] sm:$0xf]
      %v4275 = vld [vmem:[%s4266 + $0x20] sm:$0xf]
      %v4276 = vld [vmem:[%s4266 + $0x24] sm:$0xf]
      %v4277 = vld [vmem:[%s4266 + $0x28] sm:$0xf]
      %v4278 = vld [vmem:[%s4266 + $0x2c] sm:$0xf]
      %v4279 = vld [vmem:[%s4266 + $0x30] sm:$0xf]
      %v4280 = vld [vmem:[%s4266 + $0x34] sm:$0xf]
      %v4281 = vld [vmem:[%s4266 + $0x38] sm:$0xf]
      %v4282 = vld [vmem:[%s4266 + $0x3c] sm:$0xf]
      %v4283 = vunpack.c.l.b16 %v3895
      %v4284 = vunpack.c.l.b16 %v3905
      %v4285 = vunpack.c.l.b16 %v3919
      %v4286 = vunpack.c.l.b16 %v3929
      %v4287 = vunpack.c.l.b16 %v3943
      %v4288 = vunpack.c.l.b16 %v3953
      %v4289 = vunpack.c.l.b16 %v3967
      %v4290 = vunpack.c.l.b16 %v3977
      %v4291 = vunpack.c.l.b16 %v3991
      %v4292 = vunpack.c.l.b16 %v4001
      %v4293 = vunpack.c.l.b16 %v4015
      %v4294 = vunpack.c.l.b16 %v4025
      %v4295 = vunpack.c.l.b16 %v4039
      %v4296 = vunpack.c.l.b16 %v4049
      %v4297 = vunpack.c.l.b16 %v4063
      %v4298 = vunpack.c.l.b16 %v4073
      %v4299 = vunpack.c.l.b16 %v4087
      %v4300 = vunpack.c.l.b16 %v4097
      %v4301 = vunpack.c.l.b16 %v4111
      %v4302 = vunpack.c.l.b16 %v4121
      %v4303 = vunpack.c.l.b16 %v4135
      %v4304 = vunpack.c.l.b16 %v4145
      %v4305 = vunpack.c.l.b16 %v4159
      %v4306 = vunpack.c.l.b16 %v4169
      %v4307 = vunpack.c.l.b16 %v4183
      %v4308 = vunpack.c.l.b16 %v4193
      %v4309 = vunpack.c.l.b16 %v4207
      %v4310 = vunpack.c.l.b16 %v4217
      %v4311 = vunpack.c.l.b16 %v4231
      %v4312 = vunpack.c.l.b16 %v4241
      %v4313 = vunpack.c.l.b16 %v4255
      %v4314 = vunpack.c.l.b16 %v4265
      %v4315 = vpack.c.b16 %v4284, %v4283
      %v4316 = vpack.c.b16 %v4286, %v4285
      %v4317 = vpack.c.b16 %v4288, %v4287
      %v4318 = vpack.c.b16 %v4290, %v4289
      %v4319 = vpack.c.b16 %v4292, %v4291
      %v4320 = vpack.c.b16 %v4294, %v4293
      %v4321 = vpack.c.b16 %v4296, %v4295
      %v4322 = vpack.c.b16 %v4298, %v4297
      %v4323 = vpack.c.b16 %v4300, %v4299
      %v4324 = vpack.c.b16 %v4302, %v4301
      %v4325 = vpack.c.b16 %v4304, %v4303
      %v4326 = vpack.c.b16 %v4306, %v4305
      %v4327 = vpack.c.b16 %v4308, %v4307
      %v4328 = vpack.c.b16 %v4310, %v4309
      %v4329 = vpack.c.b16 %v4312, %v4311
      %v4330 = vpack.c.b16 %v4314, %v4313
      %v4363 = vunpack.c.l.b16 %v4267
      %v4364 = vunpack.c.l.b16 %v4268
      %v4365 = vunpack.c.l.b16 %v4269
      %v4366 = vunpack.c.l.b16 %v4270
      %v4367 = vunpack.c.l.b16 %v4271
      %v4368 = vunpack.c.l.b16 %v4272
      %v4369 = vunpack.c.l.b16 %v4273
      %v4370 = vunpack.c.l.b16 %v4274
      %v4371 = vunpack.c.l.b16 %v4275
      %v4372 = vunpack.c.l.b16 %v4276
      %v4373 = vunpack.c.l.b16 %v4277
      %v4374 = vunpack.c.l.b16 %v4278
      %v4375 = vunpack.c.l.b16 %v4279
      %v4376 = vunpack.c.l.b16 %v4280
      %v4377 = vunpack.c.l.b16 %v4281
      %v4378 = vunpack.c.l.b16 %v4282
      %v4379 = vpack.c.b16 %v4364, %v4363
      %v4380 = vpack.c.b16 %v4366, %v4365
      %v4381 = vpack.c.b16 %v4368, %v4367
      %v4382 = vpack.c.b16 %v4370, %v4369
      %v4383 = vpack.c.b16 %v4372, %v4371
      %v4384 = vpack.c.b16 %v4374, %v4373
      %v4385 = vpack.c.b16 %v4376, %v4375
      %v4386 = vpack.c.b16 %v4378, %v4377
      %4395 = vmatprep.subr.bf16.mxu0 0
      %4396 = vmatpush1.bf16.msra.mxu0 %v4379
      %4397 = vmatprep.subr.bf16.mxu0 0
      %4398 = vmatpush1.bf16.msra.mxu0 %v4380
      %4399 = vmatprep.subr.bf16.mxu0 0
      %4400 = vmatpush1.bf16.msra.mxu0 %v4381
      %4401 = vmatprep.subr.bf16.mxu0 0
      %4402 = vmatpush1.bf16.msra.mxu0 %v4382
      %4403 = vmatprep.subr.bf16.mxu0 0
      %4404 = vmatpush1.bf16.msra.mxu0 %v4383
      %4405 = vmatprep.subr.bf16.mxu0 0
      %4406 = vmatpush1.bf16.msra.mxu0 %v4384
      %4407 = vmatprep.subr.bf16.mxu0 0
      %4408 = vmatpush1.bf16.msra.mxu0 %v4385
      %4409 = vmatprep.subr.bf16.mxu0 0
      %4410 = vmatpush1.bf16.msra.mxu0 %v4386
      %4411 = vmatprep.subr.bf16.mxu0 0
      %4412 = vmatpush1.bf16.msra.mxu0 0
      %4413 = vmatprep.subr.bf16.mxu0 0
      %4414 = vmatpush1.bf16.msra.mxu0 0
      %4415 = vmatprep.subr.bf16.mxu0 0
      %4416 = vmatpush1.bf16.msra.mxu0 0
      %4417 = vmatprep.subr.bf16.mxu0 0
      %4418 = vmatpush1.bf16.msra.mxu0 0
      %4419 = vmatprep.subr.bf16.mxu0 0
      %4420 = vmatpush1.bf16.msra.mxu0 0
      %4421 = vmatprep.subr.bf16.mxu0 0
      %4422 = vmatpush1.bf16.msra.mxu0 0
      %4423 = vmatprep.subr.bf16.mxu0 0
      %4424 = vmatpush1.bf16.msra.mxu0 0
      %4425 = vmatprep.subr.bf16.mxu0 0
      %4426 = vmatpush1.bf16.msra.mxu0 0
      %4427 = vmatprep.mubr.bf16.mxu0 0
      %4428 = vmatmul.mubr.bf16.gmra.mrb[0].mxu0 %v4315
      %v4429 = vpop.f32.mrb[0].mxu0
      %v4430 = vadd.f32 0.0, %v4429
      %v4431 = vpop.f32.mrb[0].mxu0
      %v4432 = vpop.f32.mrb[0].mxu0
      %v4433 = vadd.f32 0.0, %v4432
      %v4434 = vpop.f32.mrb[0].mxu0
      %4435 = vmatprep.mubr.bf16.mxu0 0
      %4436 = vmatmul.mubr.bf16.gmra.mrb[0].mxu0 %v4316
      %v4437 = vpop.f32.mrb[0].mxu0
      %v4438 = vadd.f32 0.0, %v4437
      %v4439 = vpop.f32.mrb[0].mxu0
      %v4440 = vpop.f32.mrb[0].mxu0
      %v4441 = vadd.f32 0.0, %v4440
      %v4442 = vpop.f32.mrb[0].mxu0
      %4443 = vmatprep.mubr.bf16.mxu0 0
      %4444 = vmatmul.mubr.bf16.gmra.mrb[0].mxu0 %v4317
      %v4445 = vpop.f32.mrb[0].mxu0
      %v4446 = vadd.f32 0.0, %v4445
      %v4447 = vpop.f32.mrb[0].mxu0
      %v4448 = vpop.f32.mrb[0].mxu0
      %v4449 = vadd.f32 0.0, %v4448
      %v4450 = vpop.f32.mrb[0].mxu0
      %4451 = vmatprep.mubr.bf16.mxu0 0
      %4452 = vmatmul.mubr.bf16.gmra.mrb[0].mxu0 %v4318
      %v4453 = vpop.f32.mrb[0].mxu0
      %v4454 = vadd.f32 0.0, %v4453
      %v4455 = vpop.f32.mrb[0].mxu0
      %v4456 = vpop.f32.mrb[0].mxu0
      %v4457 = vadd.f32 0.0, %v4456
      %v4458 = vpop.f32.mrb[0].mxu0
      %4459 = vmatprep.mubr.bf16.mxu0 0
      %4460 = vmatmul.mubr.bf16.gmra.mrb[0].mxu0 %v4319
      %v4461 = vpop.f32.mrb[0].mxu0
      %v4462 = vadd.f32 0.0, %v4461
      %v4463 = vpop.f32.mrb[0].mxu0
      %v4464 = vpop.f32.mrb[0].mxu0
      %v4465 = vadd.f32 0.0, %v4464
      %v4466 = vpop.f32.mrb[0].mxu0
      %4467 = vmatprep.mubr.bf16.mxu0 0
      %4468 = vmatmul.mubr.bf16.gmra.mrb[0].mxu0 %v4320
      %v4469 = vpop.f32.mrb[0].mxu0
      %v4470 = vadd.f32 0.0, %v4469
      %v4471 = vpop.f32.mrb[0].mxu0
      %v4472 = vpop.f32.mrb[0].mxu0
      %v4473 = vadd.f32 0.0, %v4472
      %v4474 = vpop.f32.mrb[0].mxu0
      %4475 = vmatprep.mubr.bf16.mxu0 0
      %4476 = vmatmul.mubr.bf16.gmra.mrb[0].mxu0 %v4321
      %v4477 = vpop.f32.mrb[0].mxu0
      %v4478 = vadd.f32 0.0, %v4477
      %v4479 = vpop.f32.mrb[0].mxu0
      %v4480 = vpop.f32.mrb[0].mxu0
      %v4481 = vadd.f32 0.0, %v4480
      %v4482 = vpop.f32.mrb[0].mxu0
      %4483 = vmatprep.mubr.bf16.mxu0 0
      %4484 = vmatmul.mubr.bf16.gmra.mrb[0].mxu0 %v4322
      %v4485 = vpop.f32.mrb[0].mxu0
      %v4486 = vadd.f32 0.0, %v4485
      %v4487 = vpop.f32.mrb[0].mxu0
      %v4488 = vpop.f32.mrb[0].mxu0
      %v4489 = vadd.f32 0.0, %v4488
      %v4490 = vpop.f32.mrb[0].mxu0
      %4491 = vmatprep.mubr.bf16.mxu0 0
      %4492 = vmatmul.mubr.bf16.gmra.mrb[0].mxu0 %v4323
      %v4493 = vpop.f32.mrb[0].mxu0
      %v4494 = vadd.f32 0.0, %v4493
      %v4495 = vpop.f32.mrb[0].mxu0
      %v4496 = vpop.f32.mrb[0].mxu0
      %v4497 = vadd.f32 0.0, %v4496
      %v4498 = vpop.f32.mrb[0].mxu0
      %4499 = vmatprep.mubr.bf16.mxu0 0
      %4500 = vmatmul.mubr.bf16.gmra.mrb[0].mxu0 %v4324
      %v4501 = vpop.f32.mrb[0].mxu0
      %v4502 = vadd.f32 0.0, %v4501
      %v4503 = vpop.f32.mrb[0].mxu0
      %v4504 = vpop.f32.mrb[0].mxu0
      %v4505 = vadd.f32 0.0, %v4504
      %v4506 = vpop.f32.mrb[0].mxu0
      %4507 = vmatprep.mubr.bf16.mxu0 0
      %4508 = vmatmul.mubr.bf16.gmra.mrb[0].mxu0 %v4325
      %v4509 = vpop.f32.mrb[0].mxu0
      %v4510 = vadd.f32 0.0, %v4509
      %v4511 = vpop.f32.mrb[0].mxu0
      %v4512 = vpop.f32.mrb[0].mxu0
      %v4513 = vadd.f32 0.0, %v4512
      %v4514 = vpop.f32.mrb[0].mxu0
      %4515 = vmatprep.mubr.bf16.mxu0 0
      %4516 = vmatmul.mubr.bf16.gmra.mrb[0].mxu0 %v4326
      %v4517 = vpop.f32.mrb[0].mxu0
      %v4518 = vadd.f32 0.0, %v4517
      %v4519 = vpop.f32.mrb[0].mxu0
      %v4520 = vpop.f32.mrb[0].mxu0
      %v4521 = vadd.f32 0.0, %v4520
      %v4522 = vpop.f32.mrb[0].mxu0
      %4523 = vmatprep.mubr.bf16.mxu0 0
      %4524 = vmatmul.mubr.bf16.gmra.mrb[0].mxu0 %v4327
      %v4525 = vpop.f32.mrb[0].mxu0
      %v4526 = vadd.f32 0.0, %v4525
      %v4527 = vpop.f32.mrb[0].mxu0
      %v4528 = vpop.f32.mrb[0].mxu0
      %v4529 = vadd.f32 0.0, %v4528
      %v4530 = vpop.f32.mrb[0].mxu0
      %4531 = vmatprep.mubr.bf16.mxu0 0
      %4532 = vmatmul.mubr.bf16.gmra.mrb[0].mxu0 %v4328
      %v4533 = vpop.f32.mrb[0].mxu0
      %v4534 = vadd.f32 0.0, %v4533
      %v4535 = vpop.f32.mrb[0].mxu0
      %v4536 = vpop.f32.mrb[0].mxu0
      %v4537 = vadd.f32 0.0, %v4536
      %v4538 = vpop.f32.mrb[0].mxu0
      %4539 = vmatprep.mubr.bf16.mxu0 0
      %4540 = vmatmul.mubr.bf16.gmra.mrb[0].mxu0 %v4329
      %v4541 = vpop.f32.mrb[0].mxu0
      %v4542 = vadd.f32 0.0, %v4541
      %v4543 = vpop.f32.mrb[0].mxu0
      %v4544 = vpop.f32.mrb[0].mxu0
      %v4545 = vadd.f32 0.0, %v4544
      %v4546 = vpop.f32.mrb[0].mxu0
      %4547 = vmatprep.mubr.bf16.mxu0 0
      %4548 = vmatmul.mubr.bf16.gmra.mrb[0].mxu0 %v4330
      %v4549 = vpop.f32.mrb[0].mxu0
      %v4550 = vadd.f32 0.0, %v4549
      %v4551 = vpop.f32.mrb[0].mxu0
      %v4552 = vpop.f32.mrb[0].mxu0
      %v4553 = vadd.f32 0.0, %v4552
      %v4554 = vpop.f32.mrb[0].mxu0
      %4555 = vdwg.mxu0
      %v4556 = vadd.f32 %v3802, %v4430
      %v4557 = vadd.f32 %v3803, %v4433
      %v4558 = vadd.f32 %v3804, %v4438
      %v4559 = vadd.f32 %v3805, %v4441
      %v4560 = vadd.f32 %v3806, %v4446
      %v4561 = vadd.f32 %v3807, %v4449
      %v4562 = vadd.f32 %v3808, %v4454
      %v4563 = vadd.f32 %v3809, %v4457
      %v4564 = vadd.f32 %v3810, %v4462
      %v4565 = vadd.f32 %v3811, %v4465
      %v4566 = vadd.f32 %v3812, %v4470
      %v4567 = vadd.f32 %v3813, %v4473
      %v4568 = vadd.f32 %v3814, %v4478
      %v4569 = vadd.f32 %v3815, %v4481
      %v4570 = vadd.f32 %v3816, %v4486
      %v4571 = vadd.f32 %v3817, %v4489
      %v4572 = vadd.f32 %v3818, %v4494
      %v4573 = vadd.f32 %v3819, %v4497
      %v4574 = vadd.f32 %v3820, %v4502
      %v4575 = vadd.f32 %v3821, %v4505
      %v4576 = vadd.f32 %v3822, %v4510
      %v4577 = vadd.f32 %v3823, %v4513
      %v4578 = vadd.f32 %v3824, %v4518
      %v4579 = vadd.f32 %v3825, %v4521
      %v4580 = vadd.f32 %v3826, %v4526
      %v4581 = vadd.f32 %v3827, %v4529
      %v4582 = vadd.f32 %v3828, %v4534
      %v4583 = vadd.f32 %v3829, %v4537
      %v4584 = vadd.f32 %v3830, %v4542
      %v4585 = vadd.f32 %v3831, %v4545
      %v4586 = vadd.f32 %v3832, %v4550
      %v4587 = vadd.f32 %v3833, %v4553
      %v4588 = vld [vmem:[%s3447] sm:$0xe]
      %v4589 = vld [vmem:[%s3447 + $0xc] sm:$0xe]
      %v4590 = vld [vmem:[%s3447 + $0x18] sm:$0xe]
      %v4591 = vld [vmem:[%s3447 + $0x24] sm:$0xe]
      %v4592 = vld [vmem:[%s3447 + $0x30] sm:$0xe]
      %v4593 = vld [vmem:[%s3447 + $0x3c] sm:$0xe]
      %v4594 = vld [vmem:[%s3447 + $0x48] sm:$0xe]
      %v4595 = vld [vmem:[%s3447 + $0x54] sm:$0xe]
      %v4596 = vld [vmem:[%s3447 + $0x60] sm:$0xe]
      %v4597 = vld [vmem:[%s3447 + $0x6c] sm:$0xe]
      %v4598 = vld [vmem:[%s3447 + $0x78] sm:$0xe]
      %v4599 = vld [vmem:[%s3447 + $0x84] sm:$0xe]
      %v4600 = vld [vmem:[%s3447 + $0x90] sm:$0xe]
      %v4601 = vld [vmem:[%s3447 + $0x9c] sm:$0xe]
      %v4602 = vld [vmem:[%s3447 + $0xa8] sm:$0xe]
      %v4603 = vld [vmem:[%s3447 + $0xb4] sm:$0xe]
      %v4652 = vrot.slane %v4588, 5
      %v4653 = vrot.slane %v4652, 4
      %v4654 = vrot.slane %v3835, 5
      %v4655 = vsel %vm1373, %v4653, %v4654
      %v4656 = vrot.slane %v4654, 4
      %v4657 = vrot.slane %v3836, 5
      %v4658 = vsel %vm1373, %v4656, %v4657
      %v4659 = vrot.slane %v4589, 5
      %v4660 = vrot.slane %v4659, 4
      %v4661 = vrot.slane %v3838, 5
      %v4662 = vsel %vm1373, %v4660, %v4661
      %v4663 = vrot.slane %v4661, 4
      %v4664 = vrot.slane %v3839, 5
      %v4665 = vsel %vm1373, %v4663, %v4664
      %v4666 = vrot.slane %v4590, 5
      %v4667 = vrot.slane %v4666, 4
      %v4668 = vrot.slane %v3841, 5
      %v4669 = vsel %vm1373, %v4667, %v4668
      %v4670 = vrot.slane %v4668, 4
      %v4671 = vrot.slane %v3842, 5
      %v4672 = vsel %vm1373, %v4670, %v4671
      %v4673 = vrot.slane %v4591, 5
      %v4674 = vrot.slane %v4673, 4
      %v4675 = vrot.slane %v3844, 5
      %v4676 = vsel %vm1373, %v4674, %v4675
      %v4677 = vrot.slane %v4675, 4
      %v4678 = vrot.slane %v3845, 5
      %v4679 = vsel %vm1373, %v4677, %v4678
      %v4680 = vrot.slane %v4592, 5
      %v4681 = vrot.slane %v4680, 4
      %v4682 = vrot.slane %v3847, 5
      %v4683 = vsel %vm1373, %v4681, %v4682
      %v4684 = vrot.slane %v4682, 4
      %v4685 = vrot.slane %v3848, 5
      %v4686 = vsel %vm1373, %v4684, %v4685
      %v4687 = vrot.slane %v4593, 5
      %v4688 = vrot.slane %v4687, 4
      %v4689 = vrot.slane %v3850, 5
      %v4690 = vsel %vm1373, %v4688, %v4689
      %v4691 = vrot.slane %v4689, 4
      %v4692 = vrot.slane %v3851, 5
      %v4693 = vsel %vm1373, %v4691, %v4692
      %v4694 = vrot.slane %v4594, 5
      %v4695 = vrot.slane %v4694, 4
      %v4696 = vrot.slane %v3853, 5
      %v4697 = vsel %vm1373, %v4695, %v4696
      %v4698 = vrot.slane %v4696, 4
      %v4699 = vrot.slane %v3854, 5
      %v4700 = vsel %vm1373, %v4698, %v4699
      %v4701 = vrot.slane %v4595, 5
      %v4702 = vrot.slane %v4701, 4
      %v4703 = vrot.slane %v3856, 5
      %v4704 = vsel %vm1373, %v4702, %v4703
      %v4705 = vrot.slane %v4703, 4
      %v4706 = vrot.slane %v3857, 5
      %v4707 = vsel %vm1373, %v4705, %v4706
      %v4708 = vrot.slane %v4596, 5
      %v4709 = vrot.slane %v4708, 4
      %v4710 = vrot.slane %v3859, 5
      %v4711 = vsel %vm1373, %v4709, %v4710
      %v4712 = vrot.slane %v4710, 4
      %v4713 = vrot.slane %v3860, 5
      %v4714 = vsel %vm1373, %v4712, %v4713
      %v4715 = vrot.slane %v4597, 5
      %v4716 = vrot.slane %v4715, 4
      %v4717 = vrot.slane %v3862, 5
      %v4718 = vsel %vm1373, %v4716, %v4717
      %v4719 = vrot.slane %v4717, 4
      %v4720 = vrot.slane %v3863, 5
      %v4721 = vsel %vm1373, %v4719, %v4720
      %v4722 = vrot.slane %v4598, 5
      %v4723 = vrot.slane %v4722, 4
      %v4724 = vrot.slane %v3865, 5
      %v4725 = vsel %vm1373, %v4723, %v4724
      %v4726 = vrot.slane %v4724, 4
      %v4727 = vrot.slane %v3866, 5
      %v4728 = vsel %vm1373, %v4726, %v4727
      %v4729 = vrot.slane %v4599, 5
      %v4730 = vrot.slane %v4729, 4
      %v4731 = vrot.slane %v3868, 5
      %v4732 = vsel %vm1373, %v4730, %v4731
      %v4733 = vrot.slane %v4731, 4
      %v4734 = vrot.slane %v3869, 5
      %v4735 = vsel %vm1373, %v4733, %v4734
      %v4736 = vrot.slane %v4600, 5
      %v4737 = vrot.slane %v4736, 4
      %v4738 = vrot.slane %v3871, 5
      %v4739 = vsel %vm1373, %v4737, %v4738
      %v4740 = vrot.slane %v4738, 4
      %v4741 = vrot.slane %v3872, 5
      %v4742 = vsel %vm1373, %v4740, %v4741
      %v4743 = vrot.slane %v4601, 5
      %v4744 = vrot.slane %v4743, 4
      %v4745 = vrot.slane %v3874, 5
      %v4746 = vsel %vm1373, %v4744, %v4745
      %v4747 = vrot.slane %v4745, 4
      %v4748 = vrot.slane %v3875, 5
      %v4749 = vsel %vm1373, %v4747, %v4748
      %v4750 = vrot.slane %v4602, 5
      %v4751 = vrot.slane %v4750, 4
      %v4752 = vrot.slane %v3877, 5
      %v4753 = vsel %vm1373, %v4751, %v4752
      %v4754 = vrot.slane %v4752, 4
      %v4755 = vrot.slane %v3878, 5
      %v4756 = vsel %vm1373, %v4754, %v4755
      %v4757 = vrot.slane %v4603, 5
      %v4758 = vrot.slane %v4757, 4
      %v4759 = vrot.slane %v3880, 5
      %v4760 = vsel %vm1373, %v4758, %v4759
      %v4761 = vrot.slane %v4759, 4
      %v4762 = vrot.slane %v3881, 5
      %v4763 = vsel %vm1373, %v4761, %v4762
      %s4764 = scalar_lea.vmem %s210, 512
      %v4765 = vld [vmem:[%s4764] sm:$0xf]
      %v4766 = vld [vmem:[%s4764 + $0x4] sm:$0xf]
      %v4767 = vld [vmem:[%s4764 + $0x8] sm:$0xf]
      %v4768 = vld [vmem:[%s4764 + $0xc] sm:$0xf]
      %v4769 = vld [vmem:[%s4764 + $0x10] sm:$0xf]
      %v4770 = vld [vmem:[%s4764 + $0x14] sm:$0xf]
      %v4771 = vld [vmem:[%s4764 + $0x18] sm:$0xf]
      %v4772 = vld [vmem:[%s4764 + $0x1c] sm:$0xf]
      %v4773 = vld [vmem:[%s4764 + $0x20] sm:$0xf]
      %v4774 = vld [vmem:[%s4764 + $0x24] sm:$0xf]
      %v4775 = vld [vmem:[%s4764 + $0x28] sm:$0xf]
      %v4776 = vld [vmem:[%s4764 + $0x2c] sm:$0xf]
      %v4777 = vld [vmem:[%s4764 + $0x30] sm:$0xf]
      %v4778 = vld [vmem:[%s4764 + $0x34] sm:$0xf]
      %v4779 = vld [vmem:[%s4764 + $0x38] sm:$0xf]
      %v4780 = vld [vmem:[%s4764 + $0x3c] sm:$0xf]
      %v4781 = vunpack.c.l.b16 %v4655
      %v4782 = vunpack.c.l.b16 %v4658
      %v4783 = vunpack.c.l.b16 %v4662
      %v4784 = vunpack.c.l.b16 %v4665
      %v4785 = vunpack.c.l.b16 %v4669
      %v4786 = vunpack.c.l.b16 %v4672
      %v4787 = vunpack.c.l.b16 %v4676
      %v4788 = vunpack.c.l.b16 %v4679
      %v4789 = vunpack.c.l.b16 %v4683
      %v4790 = vunpack.c.l.b16 %v4686
      %v4791 = vunpack.c.l.b16 %v4690
      %v4792 = vunpack.c.l.b16 %v4693
      %v4793 = vunpack.c.l.b16 %v4697
      %v4794 = vunpack.c.l.b16 %v4700
      %v4795 = vunpack.c.l.b16 %v4704
      %v4796 = vunpack.c.l.b16 %v4707
      %v4797 = vunpack.c.l.b16 %v4711
      %v4798 = vunpack.c.l.b16 %v4714
      %v4799 = vunpack.c.l.b16 %v4718
      %v4800 = vunpack.c.l.b16 %v4721
      %v4801 = vunpack.c.l.b16 %v4725
      %v4802 = vunpack.c.l.b16 %v4728
      %v4803 = vunpack.c.l.b16 %v4732
      %v4804 = vunpack.c.l.b16 %v4735
      %v4805 = vunpack.c.l.b16 %v4739
      %v4806 = vunpack.c.l.b16 %v4742
      %v4807 = vunpack.c.l.b16 %v4746
      %v4808 = vunpack.c.l.b16 %v4749
      %v4809 = vunpack.c.l.b16 %v4753
      %v4810 = vunpack.c.l.b16 %v4756
      %v4811 = vunpack.c.l.b16 %v4760
      %v4812 = vunpack.c.l.b16 %v4763
      %v4813 = vpack.c.b16 %v4782, %v4781
      %v4814 = vpack.c.b16 %v4784, %v4783
      %v4815 = vpack.c.b16 %v4786, %v4785
      %v4816 = vpack.c.b16 %v4788, %v4787
      %v4817 = vpack.c.b16 %v4790, %v4789
      %v4818 = vpack.c.b16 %v4792, %v4791
      %v4819 = vpack.c.b16 %v4794, %v4793
      %v4820 = vpack.c.b16 %v4796, %v4795
      %v4821 = vpack.c.b16 %v4798, %v4797
      %v4822 = vpack.c.b16 %v4800, %v4799
      %v4823 = vpack.c.b16 %v4802, %v4801
      %v4824 = vpack.c.b16 %v4804, %v4803
      %v4825 = vpack.c.b16 %v4806, %v4805
      %v4826 = vpack.c.b16 %v4808, %v4807
      %v4827 = vpack.c.b16 %v4810, %v4809
      %v4828 = vpack.c.b16 %v4812, %v4811
      %v4861 = vunpack.c.l.b16 %v4765
      %v4862 = vunpack.c.l.b16 %v4766
      %v4863 = vunpack.c.l.b16 %v4767
      %v4864 = vunpack.c.l.b16 %v4768
      %v4865 = vunpack.c.l.b16 %v4769
      %v4866 = vunpack.c.l.b16 %v4770
      %v4867 = vunpack.c.l.b16 %v4771
      %v4868 = vunpack.c.l.b16 %v4772
      %v4869 = vunpack.c.l.b16 %v4773
      %v4870 = vunpack.c.l.b16 %v4774
      %v4871 = vunpack.c.l.b16 %v4775
      %v4872 = vunpack.c.l.b16 %v4776
      %v4873 = vunpack.c.l.b16 %v4777
      %v4874 = vunpack.c.l.b16 %v4778
      %v4875 = vunpack.c.l.b16 %v4779
      %v4876 = vunpack.c.l.b16 %v4780
      %v4877 = vpack.c.b16 %v4862, %v4861
      %v4878 = vpack.c.b16 %v4864, %v4863
      %v4879 = vpack.c.b16 %v4866, %v4865
      %v4880 = vpack.c.b16 %v4868, %v4867
      %v4881 = vpack.c.b16 %v4870, %v4869
      %v4882 = vpack.c.b16 %v4872, %v4871
      %v4883 = vpack.c.b16 %v4874, %v4873
      %v4884 = vpack.c.b16 %v4876, %v4875
      %4893 = vmatprep.subr.bf16.mxu0 0
      %4894 = vmatpush1.bf16.msra.mxu0 %v4877
      %4895 = vmatprep.subr.bf16.mxu0 0
      %4896 = vmatpush1.bf16.msra.mxu0 %v4878
      %4897 = vmatprep.subr.bf16.mxu0 0
      %4898 = vmatpush1.bf16.msra.mxu0 %v4879
      %4899 = vmatprep.subr.bf16.mxu0 0
      %4900 = vmatpush1.bf16.msra.mxu0 %v4880
      %4901 = vmatprep.subr.bf16.mxu0 0
      %4902 = vmatpush1.bf16.msra.mxu0 %v4881
      %4903 = vmatprep.subr.bf16.mxu0 0
      %4904 = vmatpush1.bf16.msra.mxu0 %v4882
      %4905 = vmatprep.subr.bf16.mxu0 0
      %4906 = vmatpush1.bf16.msra.mxu0 %v4883
      %4907 = vmatprep.subr.bf16.mxu0 0
      %4908 = vmatpush1.bf16.msra.mxu0 %v4884
      %4909 = vmatprep.subr.bf16.mxu0 0
      %4910 = vmatpush1.bf16.msra.mxu0 0
      %4911 = vmatprep.subr.bf16.mxu0 0
      %4912 = vmatpush1.bf16.msra.mxu0 0
      %4913 = vmatprep.subr.bf16.mxu0 0
      %4914 = vmatpush1.bf16.msra.mxu0 0
      %4915 = vmatprep.subr.bf16.mxu0 0
      %4916 = vmatpush1.bf16.msra.mxu0 0
      %4917 = vmatprep.subr.bf16.mxu0 0
      %4918 = vmatpush1.bf16.msra.mxu0 0
      %4919 = vmatprep.subr.bf16.mxu0 0
      %4920 = vmatpush1.bf16.msra.mxu0 0
      %4921 = vmatprep.subr.bf16.mxu0 0
      %4922 = vmatpush1.bf16.msra.mxu0 0
      %4923 = vmatprep.subr.bf16.mxu0 0
      %4924 = vmatpush1.bf16.msra.mxu0 0
      %4925 = vmatprep.mubr.bf16.mxu0 0
      %4926 = vmatmul.mubr.bf16.gmra.mrb[0].mxu0 %v4813
      %v4927 = vpop.f32.mrb[0].mxu0
      %v4928 = vadd.f32 0.0, %v4927
      %v4929 = vpop.f32.mrb[0].mxu0
      %v4930 = vpop.f32.mrb[0].mxu0
      %v4931 = vadd.f32 0.0, %v4930
      %v4932 = vpop.f32.mrb[0].mxu0
      %4933 = vmatprep.mubr.bf16.mxu0 0
      %4934 = vmatmul.mubr.bf16.gmra.mrb[0].mxu0 %v4814
      %v4935 = vpop.f32.mrb[0].mxu0
      %v4936 = vadd.f32 0.0, %v4935
      %v4937 = vpop.f32.mrb[0].mxu0
      %v4938 = vpop.f32.mrb[0].mxu0
      %v4939 = vadd.f32 0.0, %v4938
      %v4940 = vpop.f32.mrb[0].mxu0
      %4941 = vmatprep.mubr.bf16.mxu0 0
      %4942 = vmatmul.mubr.bf16.gmra.mrb[0].mxu0 %v4815
      %v4943 = vpop.f32.mrb[0].mxu0
      %v4944 = vadd.f32 0.0, %v4943
      %v4945 = vpop.f32.mrb[0].mxu0
      %v4946 = vpop.f32.mrb[0].mxu0
      %v4947 = vadd.f32 0.0, %v4946
      %v4948 = vpop.f32.mrb[0].mxu0
      %4949 = vmatprep.mubr.bf16.mxu0 0
      %4950 = vmatmul.mubr.bf16.gmra.mrb[0].mxu0 %v4816
      %v4951 = vpop.f32.mrb[0].mxu0
      %v4952 = vadd.f32 0.0, %v4951
      %v4953 = vpop.f32.mrb[0].mxu0
      %v4954 = vpop.f32.mrb[0].mxu0
      %v4955 = vadd.f32 0.0, %v4954
      %v4956 = vpop.f32.mrb[0].mxu0
      %4957 = vmatprep.mubr.bf16.mxu0 0
      %4958 = vmatmul.mubr.bf16.gmra.mrb[0].mxu0 %v4817
      %v4959 = vpop.f32.mrb[0].mxu0
      %v4960 = vadd.f32 0.0, %v4959
      %v4961 = vpop.f32.mrb[0].mxu0
      %v4962 = vpop.f32.mrb[0].mxu0
      %v4963 = vadd.f32 0.0, %v4962
      %v4964 = vpop.f32.mrb[0].mxu0
      %4965 = vmatprep.mubr.bf16.mxu0 0
      %4966 = vmatmul.mubr.bf16.gmra.mrb[0].mxu0 %v4818
      %v4967 = vpop.f32.mrb[0].mxu0
      %v4968 = vadd.f32 0.0, %v4967
      %v4969 = vpop.f32.mrb[0].mxu0
      %v4970 = vpop.f32.mrb[0].mxu0
      %v4971 = vadd.f32 0.0, %v4970
      %v4972 = vpop.f32.mrb[0].mxu0
      %4973 = vmatprep.mubr.bf16.mxu0 0
      %4974 = vmatmul.mubr.bf16.gmra.mrb[0].mxu0 %v4819
      %v4975 = vpop.f32.mrb[0].mxu0
      %v4976 = vadd.f32 0.0, %v4975
      %v4977 = vpop.f32.mrb[0].mxu0
      %v4978 = vpop.f32.mrb[0].mxu0
      %v4979 = vadd.f32 0.0, %v4978
      %v4980 = vpop.f32.mrb[0].mxu0
      %4981 = vmatprep.mubr.bf16.mxu0 0
      %4982 = vmatmul.mubr.bf16.gmra.mrb[0].mxu0 %v4820
      %v4983 = vpop.f32.mrb[0].mxu0
      %v4984 = vadd.f32 0.0, %v4983
      %v4985 = vpop.f32.mrb[0].mxu0
      %v4986 = vpop.f32.mrb[0].mxu0
      %v4987 = vadd.f32 0.0, %v4986
      %v4988 = vpop.f32.mrb[0].mxu0
      %4989 = vmatprep.mubr.bf16.mxu0 0
      %4990 = vmatmul.mubr.bf16.gmra.mrb[0].mxu0 %v4821
      %v4991 = vpop.f32.mrb[0].mxu0
      %v4992 = vadd.f32 0.0, %v4991
      %v4993 = vpop.f32.mrb[0].mxu0
      %v4994 = vpop.f32.mrb[0].mxu0
      %v4995 = vadd.f32 0.0, %v4994
      %v4996 = vpop.f32.mrb[0].mxu0
      %4997 = vmatprep.mubr.bf16.mxu0 0
      %4998 = vmatmul.mubr.bf16.gmra.mrb[0].mxu0 %v4822
      %v4999 = vpop.f32.mrb[0].mxu0
      %v5000 = vadd.f32 0.0, %v4999
      %v5001 = vpop.f32.mrb[0].mxu0
      %v5002 = vpop.f32.mrb[0].mxu0
      %v5003 = vadd.f32 0.0, %v5002
      %v5004 = vpop.f32.mrb[0].mxu0
      %5005 = vmatprep.mubr.bf16.mxu0 0
      %5006 = vmatmul.mubr.bf16.gmra.mrb[0].mxu0 %v4823
      %v5007 = vpop.f32.mrb[0].mxu0
      %v5008 = vadd.f32 0.0, %v5007
      %v5009 = vpop.f32.mrb[0].mxu0
      %v5010 = vpop.f32.mrb[0].mxu0
      %v5011 = vadd.f32 0.0, %v5010
      %v5012 = vpop.f32.mrb[0].mxu0
      %5013 = vmatprep.mubr.bf16.mxu0 0
      %5014 = vmatmul.mubr.bf16.gmra.mrb[0].mxu0 %v4824
      %v5015 = vpop.f32.mrb[0].mxu0
      %v5016 = vadd.f32 0.0, %v5015
      %v5017 = vpop.f32.mrb[0].mxu0
      %v5018 = vpop.f32.mrb[0].mxu0
      %v5019 = vadd.f32 0.0, %v5018
      %v5020 = vpop.f32.mrb[0].mxu0
      %5021 = vmatprep.mubr.bf16.mxu0 0
      %5022 = vmatmul.mubr.bf16.gmra.mrb[0].mxu0 %v4825
      %v5023 = vpop.f32.mrb[0].mxu0
      %v5024 = vadd.f32 0.0, %v5023
      %v5025 = vpop.f32.mrb[0].mxu0
      %v5026 = vpop.f32.mrb[0].mxu0
      %v5027 = vadd.f32 0.0, %v5026
      %v5028 = vpop.f32.mrb[0].mxu0
      %5029 = vmatprep.mubr.bf16.mxu0 0
      %5030 = vmatmul.mubr.bf16.gmra.mrb[0].mxu0 %v4826
      %v5031 = vpop.f32.mrb[0].mxu0
      %v5032 = vadd.f32 0.0, %v5031
      %v5033 = vpop.f32.mrb[0].mxu0
      %v5034 = vpop.f32.mrb[0].mxu0
      %v5035 = vadd.f32 0.0, %v5034
      %v5036 = vpop.f32.mrb[0].mxu0
      %5037 = vmatprep.mubr.bf16.mxu0 0
      %5038 = vmatmul.mubr.bf16.gmra.mrb[0].mxu0 %v4827
      %v5039 = vpop.f32.mrb[0].mxu0
      %v5040 = vadd.f32 0.0, %v5039
      %v5041 = vpop.f32.mrb[0].mxu0
      %v5042 = vpop.f32.mrb[0].mxu0
      %v5043 = vadd.f32 0.0, %v5042
      %v5044 = vpop.f32.mrb[0].mxu0
      %5045 = vmatprep.mubr.bf16.mxu0 0
      %5046 = vmatmul.mubr.bf16.gmra.mrb[0].mxu0 %v4828
      %v5047 = vpop.f32.mrb[0].mxu0
      %v5048 = vadd.f32 0.0, %v5047
      %v5049 = vpop.f32.mrb[0].mxu0
      %v5050 = vpop.f32.mrb[0].mxu0
      %v5051 = vadd.f32 0.0, %v5050
      %v5052 = vpop.f32.mrb[0].mxu0
      %5053 = vdwg.mxu0
      %v5054 = vadd.f32 %v4556, %v4928
      %v5055 = vadd.f32 %v4557, %v4931
      %v5056 = vadd.f32 %v4558, %v4936
      %v5057 = vadd.f32 %v4559, %v4939
      %v5058 = vadd.f32 %v4560, %v4944
      %v5059 = vadd.f32 %v4561, %v4947
      %v5060 = vadd.f32 %v4562, %v4952
      %v5061 = vadd.f32 %v4563, %v4955
      %v5062 = vadd.f32 %v4564, %v4960
      %v5063 = vadd.f32 %v4565, %v4963
      %v5064 = vadd.f32 %v4566, %v4968
      %v5065 = vadd.f32 %v4567, %v4971
      %v5066 = vadd.f32 %v4568, %v4976
      %v5067 = vadd.f32 %v4569, %v4979
      %v5068 = vadd.f32 %v4570, %v4984
      %v5069 = vadd.f32 %v4571, %v4987
      %v5070 = vadd.f32 %v4572, %v4992
      %v5071 = vadd.f32 %v4573, %v4995
      %v5072 = vadd.f32 %v4574, %v5000
      %v5073 = vadd.f32 %v4575, %v5003
      %v5074 = vadd.f32 %v4576, %v5008
      %v5075 = vadd.f32 %v4577, %v5011
      %v5076 = vadd.f32 %v4578, %v5016
      %v5077 = vadd.f32 %v4579, %v5019
      %v5078 = vadd.f32 %v4580, %v5024
      %v5079 = vadd.f32 %v4581, %v5027
      %v5080 = vadd.f32 %v4582, %v5032
      %v5081 = vadd.f32 %v4583, %v5035
      %v5082 = vadd.f32 %v4584, %v5040
      %v5083 = vadd.f32 %v4585, %v5043
      %v5084 = vadd.f32 %v4586, %v5048
      %v5085 = vadd.f32 %v4587, %v5051
      %v5086 = vld [vmem:[%s213] sm:$0x1]
      %v5088 = vlaneseq
      %v5089 = vshrl.u32 %v5088, 7
      %v5090 = vsub.s32 0, %v5089
      %v5091 = vrot.slane %v5086, %v5090
      %v5093 = vadd.f32 %v5054, %v5091
      %v5094 = vadd.f32 %v5055, %v5091
      %v5095 = vadd.f32 %v5056, %v5091
      %v5096 = vadd.f32 %v5057, %v5091
      %v5097 = vadd.f32 %v5058, %v5091
      %v5098 = vadd.f32 %v5059, %v5091
      %v5099 = vadd.f32 %v5060, %v5091
      %v5100 = vadd.f32 %v5061, %v5091
      %v5101 = vadd.f32 %v5062, %v5091
      %v5102 = vadd.f32 %v5063, %v5091
      %v5103 = vadd.f32 %v5064, %v5091
      %v5104 = vadd.f32 %v5065, %v5091
      %v5105 = vadd.f32 %v5066, %v5091
      %v5106 = vadd.f32 %v5067, %v5091
      %v5107 = vadd.f32 %v5068, %v5091
      %v5108 = vadd.f32 %v5069, %v5091
      %v5109 = vadd.f32 %v5070, %v5091
      %v5110 = vadd.f32 %v5071, %v5091
      %v5111 = vadd.f32 %v5072, %v5091
      %v5112 = vadd.f32 %v5073, %v5091
      %v5113 = vadd.f32 %v5074, %v5091
      %v5114 = vadd.f32 %v5075, %v5091
      %v5115 = vadd.f32 %v5076, %v5091
      %v5116 = vadd.f32 %v5077, %v5091
      %v5117 = vadd.f32 %v5078, %v5091
      %v5118 = vadd.f32 %v5079, %v5091
      %v5119 = vadd.f32 %v5080, %v5091
      %v5120 = vadd.f32 %v5081, %v5091
      %v5121 = vadd.f32 %v5082, %v5091
      %v5122 = vadd.f32 %v5083, %v5091
      %v5123 = vadd.f32 %v5084, %v5091
      %v5124 = vadd.f32 %v5085, %v5091
      %v5125 = vmax.f32 %v5093, 0.0
      %v5126 = vmax.f32 %v5094, 0.0
      %v5127 = vmax.f32 %v5095, 0.0
      %v5128 = vmax.f32 %v5096, 0.0
      %v5129 = vmax.f32 %v5097, 0.0
      %v5130 = vmax.f32 %v5098, 0.0
      %v5131 = vmax.f32 %v5099, 0.0
      %v5132 = vmax.f32 %v5100, 0.0
      %v5133 = vmax.f32 %v5101, 0.0
      %v5134 = vmax.f32 %v5102, 0.0
      %v5135 = vmax.f32 %v5103, 0.0
      %v5136 = vmax.f32 %v5104, 0.0
      %v5137 = vmax.f32 %v5105, 0.0
      %v5138 = vmax.f32 %v5106, 0.0
      %v5139 = vmax.f32 %v5107, 0.0
      %v5140 = vmax.f32 %v5108, 0.0
      %v5141 = vmax.f32 %v5109, 0.0
      %v5142 = vmax.f32 %v5110, 0.0
      %v5143 = vmax.f32 %v5111, 0.0
      %v5144 = vmax.f32 %v5112, 0.0
      %v5145 = vmax.f32 %v5113, 0.0
      %v5146 = vmax.f32 %v5114, 0.0
      %v5147 = vmax.f32 %v5115, 0.0
      %v5148 = vmax.f32 %v5116, 0.0
      %v5149 = vmax.f32 %v5117, 0.0
      %v5150 = vmax.f32 %v5118, 0.0
      %v5151 = vmax.f32 %v5119, 0.0
      %v5152 = vmax.f32 %v5120, 0.0
      %v5153 = vmax.f32 %v5121, 0.0
      %v5154 = vmax.f32 %v5122, 0.0
      %v5155 = vmax.f32 %v5123, 0.0
      %v5156 = vmax.f32 %v5124, 0.0
      %v5157 = vpack.c.bf16 %v5126, %v5125
      %v5158 = vpack.c.bf16 %v5128, %v5127
      %v5159 = vpack.c.bf16 %v5130, %v5129
      %v5160 = vpack.c.bf16 %v5132, %v5131
      %v5161 = vpack.c.bf16 %v5134, %v5133
      %v5162 = vpack.c.bf16 %v5136, %v5135
      %v5163 = vpack.c.bf16 %v5138, %v5137
      %v5164 = vpack.c.bf16 %v5140, %v5139
      %v5165 = vpack.c.bf16 %v5142, %v5141
      %v5166 = vpack.c.bf16 %v5144, %v5143
      %v5167 = vpack.c.bf16 %v5146, %v5145
      %v5168 = vpack.c.bf16 %v5148, %v5147
      %v5169 = vpack.c.bf16 %v5150, %v5149
      %v5170 = vpack.c.bf16 %v5152, %v5151
      %v5171 = vpack.c.bf16 %v5154, %v5153
      %v5172 = vpack.c.bf16 %v5156, %v5155
      %v5189 = vunpack.c.l.b16 %v5157
      %v5190 = vunpack.c.h.b16 %v5157
      %v5191 = vunpack.c.l.b16 %v5158
      %v5192 = vunpack.c.h.b16 %v5158
      %v5193 = vunpack.c.l.b16 %v5159
      %v5194 = vunpack.c.h.b16 %v5159
      %v5195 = vunpack.c.l.b16 %v5160
      %v5196 = vunpack.c.h.b16 %v5160
      %v5197 = vunpack.c.l.b16 %v5161
      %v5198 = vunpack.c.h.b16 %v5161
      %v5199 = vunpack.c.l.b16 %v5162
      %v5200 = vunpack.c.h.b16 %v5162
      %v5201 = vunpack.c.l.b16 %v5163
      %v5202 = vunpack.c.h.b16 %v5163
      %v5203 = vunpack.c.l.b16 %v5164
      %v5204 = vunpack.c.h.b16 %v5164
      %v5205 = vunpack.c.l.b16 %v5165
      %v5206 = vunpack.c.h.b16 %v5165
      %v5207 = vunpack.c.l.b16 %v5166
      %v5208 = vunpack.c.h.b16 %v5166
      %v5209 = vunpack.c.l.b16 %v5167
      %v5210 = vunpack.c.h.b16 %v5167
      %v5211 = vunpack.c.l.b16 %v5168
      %v5212 = vunpack.c.h.b16 %v5168
      %v5213 = vunpack.c.l.b16 %v5169
      %v5214 = vunpack.c.h.b16 %v5169
      %v5215 = vunpack.c.l.b16 %v5170
      %v5216 = vunpack.c.h.b16 %v5170
      %v5217 = vunpack.c.l.b16 %v5171
      %v5218 = vunpack.c.h.b16 %v5171
      %v5219 = vunpack.c.l.b16 %v5172
      %v5220 = vunpack.c.h.b16 %v5172
      %v5221 = vpack.c.b16 %v5189, %v5189
      %v5222 = vpack.c.b16 %v5190, %v5190
      %v5223 = vpack.c.b16 %v5191, %v5191
      %v5224 = vpack.c.b16 %v5192, %v5192
      %v5225 = vpack.c.b16 %v5193, %v5193
      %v5226 = vpack.c.b16 %v5194, %v5194
      %v5227 = vpack.c.b16 %v5195, %v5195
      %v5228 = vpack.c.b16 %v5196, %v5196
      %v5229 = vpack.c.b16 %v5197, %v5197
      %v5230 = vpack.c.b16 %v5198, %v5198
      %v5231 = vpack.c.b16 %v5199, %v5199
      %v5232 = vpack.c.b16 %v5200, %v5200
      %v5233 = vpack.c.b16 %v5201, %v5201
      %v5234 = vpack.c.b16 %v5202, %v5202
      %v5235 = vpack.c.b16 %v5203, %v5203
      %v5236 = vpack.c.b16 %v5204, %v5204
      %v5237 = vpack.c.b16 %v5205, %v5205
      %v5238 = vpack.c.b16 %v5206, %v5206
      %v5239 = vpack.c.b16 %v5207, %v5207
      %v5240 = vpack.c.b16 %v5208, %v5208
      %v5241 = vpack.c.b16 %v5209, %v5209
      %v5242 = vpack.c.b16 %v5210, %v5210
      %v5243 = vpack.c.b16 %v5211, %v5211
      %v5244 = vpack.c.b16 %v5212, %v5212
      %v5245 = vpack.c.b16 %v5213, %v5213
      %v5246 = vpack.c.b16 %v5214, %v5214
      %v5247 = vpack.c.b16 %v5215, %v5215
      %v5248 = vpack.c.b16 %v5216, %v5216
      %v5249 = vpack.c.b16 %v5217, %v5217
      %v5250 = vpack.c.b16 %v5218, %v5218
      %v5251 = vpack.c.b16 %v5219, %v5219
      %v5252 = vpack.c.b16 %v5220, %v5220
      %vm5253 = vsmask.f32 256
      %vm5254 = vsmask.f32 4368
      %vm5255 = vmor %vm5253, %vm5254
      %v5257 = vshrl.u32 %v5221, 16
      %v5259 = vrot.slane %v5257, 7
      %v5260 = vshll.u32 %v5221, 16
      %v5262 = vor.u32 %v5259, %v5260
      %v5263 = vrot.slane %v5259, 4
      %v5265 = vshrl.u32 %v5222, 16
      %v5267 = vrot.slane %v5265, 7
      %v5268 = vshll.u32 %v5222, 16
      %v5270 = vor.u32 %v5267, %v5268
      %v5271 = vsel %vm5255, %v5263, %v5270
      %v5272 = vrot.slane %v5267, 4
      %v5274 = vshrl.u32 %v5223, 16
      %v5276 = vrot.slane %v5274, 7
      %v5277 = vshll.u32 %v5223, 16
      %v5279 = vor.u32 %v5276, %v5277
      %v5280 = vrot.slane %v5276, 4
      %v5282 = vshrl.u32 %v5224, 16
      %v5284 = vrot.slane %v5282, 7
      %v5285 = vshll.u32 %v5224, 16
      %v5287 = vor.u32 %v5284, %v5285
      %v5288 = vsel %vm5255, %v5280, %v5287
      %v5289 = vrot.slane %v5284, 4
      %v5291 = vshrl.u32 %v5225, 16
      %v5293 = vrot.slane %v5291, 7
      %v5294 = vshll.u32 %v5225, 16
      %v5296 = vor.u32 %v5293, %v5294
      %v5297 = vrot.slane %v5293, 4
      %v5299 = vshrl.u32 %v5226, 16
      %v5301 = vrot.slane %v5299, 7
      %v5302 = vshll.u32 %v5226, 16
      %v5304 = vor.u32 %v5301, %v5302
      %v5305 = vsel %vm5255, %v5297, %v5304
      %v5306 = vrot.slane %v5301, 4
      %v5308 = vshrl.u32 %v5227, 16
      %v5310 = vrot.slane %v5308, 7
      %v5311 = vshll.u32 %v5227, 16
      %v5313 = vor.u32 %v5310, %v5311
      %v5314 = vrot.slane %v5310, 4
      %v5316 = vshrl.u32 %v5228, 16
      %v5318 = vrot.slane %v5316, 7
      %v5319 = vshll.u32 %v5228, 16
      %v5321 = vor.u32 %v5318, %v5319
      %v5322 = vsel %vm5255, %v5314, %v5321
      %v5323 = vrot.slane %v5318, 4
      %v5325 = vshrl.u32 %v5229, 16
      %v5327 = vrot.slane %v5325, 7
      %v5328 = vshll.u32 %v5229, 16
      %v5330 = vor.u32 %v5327, %v5328
      %v5331 = vrot.slane %v5327, 4
      %v5333 = vshrl.u32 %v5230, 16
      %v5335 = vrot.slane %v5333, 7
      %v5336 = vshll.u32 %v5230, 16
      %v5338 = vor.u32 %v5335, %v5336
      %v5339 = vsel %vm5255, %v5331, %v5338
      %v5340 = vrot.slane %v5335, 4
      %v5342 = vshrl.u32 %v5231, 16
      %v5344 = vrot.slane %v5342, 7
      %v5345 = vshll.u32 %v5231, 16
      %v5347 = vor.u32 %v5344, %v5345
      %v5348 = vrot.slane %v5344, 4
      %v5350 = vshrl.u32 %v5232, 16
      %v5352 = vrot.slane %v5350, 7
      %v5353 = vshll.u32 %v5232, 16
      %v5355 = vor.u32 %v5352, %v5353
      %v5356 = vsel %vm5255, %v5348, %v5355
      %v5357 = vrot.slane %v5352, 4
      %v5359 = vshrl.u32 %v5233, 16
      %v5361 = vrot.slane %v5359, 7
      %v5362 = vshll.u32 %v5233, 16
      %v5364 = vor.u32 %v5361, %v5362
      %v5365 = vrot.slane %v5361, 4
      %v5367 = vshrl.u32 %v5234, 16
      %v5369 = vrot.slane %v5367, 7
      %v5370 = vshll.u32 %v5234, 16
      %v5372 = vor.u32 %v5369, %v5370
      %v5373 = vsel %vm5255, %v5365, %v5372
      %v5374 = vrot.slane %v5369, 4
      %v5376 = vshrl.u32 %v5235, 16
      %v5378 = vrot.slane %v5376, 7
      %v5379 = vshll.u32 %v5235, 16
      %v5381 = vor.u32 %v5378, %v5379
      %v5382 = vrot.slane %v5378, 4
      %v5384 = vshrl.u32 %v5236, 16
      %v5386 = vrot.slane %v5384, 7
      %v5387 = vshll.u32 %v5236, 16
      %v5389 = vor.u32 %v5386, %v5387
      %v5390 = vsel %vm5255, %v5382, %v5389
      %v5391 = vrot.slane %v5386, 4
      %v5393 = vshrl.u32 %v5237, 16
      %v5395 = vrot.slane %v5393, 7
      %v5396 = vshll.u32 %v5237, 16
      %v5398 = vor.u32 %v5395, %v5396
      %v5399 = vrot.slane %v5395, 4
      %v5401 = vshrl.u32 %v5238, 16
      %v5403 = vrot.slane %v5401, 7
      %v5404 = vshll.u32 %v5238, 16
      %v5406 = vor.u32 %v5403, %v5404
      %v5407 = vsel %vm5255, %v5399, %v5406
      %v5408 = vrot.slane %v5403, 4
      %v5410 = vshrl.u32 %v5239, 16
      %v5412 = vrot.slane %v5410, 7
      %v5413 = vshll.u32 %v5239, 16
      %v5415 = vor.u32 %v5412, %v5413
      %v5416 = vrot.slane %v5412, 4
      %v5418 = vshrl.u32 %v5240, 16
      %v5420 = vrot.slane %v5418, 7
      %v5421 = vshll.u32 %v5240, 16
      %v5423 = vor.u32 %v5420, %v5421
      %v5424 = vsel %vm5255, %v5416, %v5423
      %v5425 = vrot.slane %v5420, 4
      %v5427 = vshrl.u32 %v5241, 16
      %v5429 = vrot.slane %v5427, 7
      %v5430 = vshll.u32 %v5241, 16
      %v5432 = vor.u32 %v5429, %v5430
      %v5433 = vrot.slane %v5429, 4
      %v5435 = vshrl.u32 %v5242, 16
      %v5437 = vrot.slane %v5435, 7
      %v5438 = vshll.u32 %v5242, 16
      %v5440 = vor.u32 %v5437, %v5438
      %v5441 = vsel %vm5255, %v5433, %v5440
      %v5442 = vrot.slane %v5437, 4
      %v5444 = vshrl.u32 %v5243, 16
      %v5446 = vrot.slane %v5444, 7
      %v5447 = vshll.u32 %v5243, 16
      %v5449 = vor.u32 %v5446, %v5447
      %v5450 = vrot.slane %v5446, 4
      %v5452 = vshrl.u32 %v5244, 16
      %v5454 = vrot.slane %v5452, 7
      %v5455 = vshll.u32 %v5244, 16
      %v5457 = vor.u32 %v5454, %v5455
      %v5458 = vsel %vm5255, %v5450, %v5457
      %v5459 = vrot.slane %v5454, 4
      %v5461 = vshrl.u32 %v5245, 16
      %v5463 = vrot.slane %v5461, 7
      %v5464 = vshll.u32 %v5245, 16
      %v5466 = vor.u32 %v5463, %v5464
      %v5467 = vrot.slane %v5463, 4
      %v5469 = vshrl.u32 %v5246, 16
      %v5471 = vrot.slane %v5469, 7
      %v5472 = vshll.u32 %v5246, 16
      %v5474 = vor.u32 %v5471, %v5472
      %v5475 = vsel %vm5255, %v5467, %v5474
      %v5476 = vrot.slane %v5471, 4
      %v5478 = vshrl.u32 %v5247, 16
      %v5480 = vrot.slane %v5478, 7
      %v5481 = vshll.u32 %v5247, 16
      %v5483 = vor.u32 %v5480, %v5481
      %v5484 = vrot.slane %v5480, 4
      %v5486 = vshrl.u32 %v5248, 16
      %v5488 = vrot.slane %v5486, 7
      %v5489 = vshll.u32 %v5248, 16
      %v5491 = vor.u32 %v5488, %v5489
      %v5492 = vsel %vm5255, %v5484, %v5491
      %v5493 = vrot.slane %v5488, 4
      %v5495 = vshrl.u32 %v5249, 16
      %v5497 = vrot.slane %v5495, 7
      %v5498 = vshll.u32 %v5249, 16
      %v5500 = vor.u32 %v5497, %v5498
      %v5501 = vrot.slane %v5497, 4
      %v5503 = vshrl.u32 %v5250, 16
      %v5505 = vrot.slane %v5503, 7
      %v5506 = vshll.u32 %v5250, 16
      %v5508 = vor.u32 %v5505, %v5506
      %v5509 = vsel %vm5255, %v5501, %v5508
      %v5510 = vrot.slane %v5505, 4
      %v5512 = vshrl.u32 %v5251, 16
      %v5514 = vrot.slane %v5512, 7
      %v5515 = vshll.u32 %v5251, 16
      %v5517 = vor.u32 %v5514, %v5515
      %v5518 = vrot.slane %v5514, 4
      %v5520 = vshrl.u32 %v5252, 16
      %v5522 = vrot.slane %v5520, 7
      %v5523 = vshll.u32 %v5252, 16
      %v5525 = vor.u32 %v5522, %v5523
      %v5526 = vsel %vm5255, %v5518, %v5525
      %v5527 = vrot.slane %v5522, 4
      %s5576 = scalar_lea.vmem %s221, 12
      %vm5577 = vcmask 1043456
      %vm5578 = vsmask.f32 7938
      %vm5579 = vmand %vm5577, %vm5578
      %v5580 = vld [vmem:[%s5576] sm:$0xf]
      %v5581 = vsel %vm5579, %v5262, %v5580
      %5582 = vst [vmem:[%s5576] sm:$0xf] %v5581
      %5583 = vst [vmem:[%s5576 + $0x4] sm:$0xf] %v5271
      %vm5584 = vcmask 1040384
      %vm5585 = vmand %vm5584, %vm5253
      %v5586 = vld [vmem:[%s5576 + $0x8] sm:$0x1]
      %v5587 = vsel %vm5585, %v5272, %v5586
      %5588 = vst [vmem:[%s5576 + $0x8] sm:$0x1] %v5587
      %v5589 = vld [vmem:[%s5576 + $0xc] sm:$0xf]
      %v5590 = vsel %vm5579, %v5279, %v5589
      %5591 = vst [vmem:[%s5576 + $0xc] sm:$0xf] %v5590
      %5592 = vst [vmem:[%s5576 + $0x10] sm:$0xf] %v5288
      %v5593 = vld [vmem:[%s5576 + $0x14] sm:$0x1]
      %v5594 = vsel %vm5585, %v5289, %v5593
      %5595 = vst [vmem:[%s5576 + $0x14] sm:$0x1] %v5594
      %v5596 = vld [vmem:[%s5576 + $0x18] sm:$0xf]
      %v5597 = vsel %vm5579, %v5296, %v5596
      %5598 = vst [vmem:[%s5576 + $0x18] sm:$0xf] %v5597
      %5599 = vst [vmem:[%s5576 + $0x1c] sm:$0xf] %v5305
      %v5600 = vld [vmem:[%s5576 + $0x20] sm:$0x1]
      %v5601 = vsel %vm5585, %v5306, %v5600
      %5602 = vst [vmem:[%s5576 + $0x20] sm:$0x1] %v5601
      %v5603 = vld [vmem:[%s5576 + $0x24] sm:$0xf]
      %v5604 = vsel %vm5579, %v5313, %v5603
      %5605 = vst [vmem:[%s5576 + $0x24] sm:$0xf] %v5604
      %5606 = vst [vmem:[%s5576 + $0x28] sm:$0xf] %v5322
      %v5607 = vld [vmem:[%s5576 + $0x2c] sm:$0x1]
      %v5608 = vsel %vm5585, %v5323, %v5607
      %5609 = vst [vmem:[%s5576 + $0x2c] sm:$0x1] %v5608
      %v5610 = vld [vmem:[%s5576 + $0x30] sm:$0xf]
      %v5611 = vsel %vm5579, %v5330, %v5610
      %5612 = vst [vmem:[%s5576 + $0x30] sm:$0xf] %v5611
      %5613 = vst [vmem:[%s5576 + $0x34] sm:$0xf] %v5339
      %v5614 = vld [vmem:[%s5576 + $0x38] sm:$0x1]
      %v5615 = vsel %vm5585, %v5340, %v5614
      %5616 = vst [vmem:[%s5576 + $0x38] sm:$0x1] %v5615
      %v5617 = vld [vmem:[%s5576 + $0x3c] sm:$0xf]
      %v5618 = vsel %vm5579, %v5347, %v5617
      %5619 = vst [vmem:[%s5576 + $0x3c] sm:$0xf] %v5618
      %5620 = vst [vmem:[%s5576 + $0x40] sm:$0xf] %v5356
      %v5621 = vld [vmem:[%s5576 + $0x44] sm:$0x1]
      %v5622 = vsel %vm5585, %v5357, %v5621
      %5623 = vst [vmem:[%s5576 + $0x44] sm:$0x1] %v5622
      %v5624 = vld [vmem:[%s5576 + $0x48] sm:$0xf]
      %v5625 = vsel %vm5579, %v5364, %v5624
      %5626 = vst [vmem:[%s5576 + $0x48] sm:$0xf] %v5625
      %5627 = vst [vmem:[%s5576 + $0x4c] sm:$0xf] %v5373
      %v5628 = vld [vmem:[%s5576 + $0x50] sm:$0x1]
      %v5629 = vsel %vm5585, %v5374, %v5628
      %5630 = vst [vmem:[%s5576 + $0x50] sm:$0x1] %v5629
      %v5631 = vld [vmem:[%s5576 + $0x54] sm:$0xf]
      %v5632 = vsel %vm5579, %v5381, %v5631
      %5633 = vst [vmem:[%s5576 + $0x54] sm:$0xf] %v5632
      %5634 = vst [vmem:[%s5576 + $0x58] sm:$0xf] %v5390
      %v5635 = vld [vmem:[%s5576 + $0x5c] sm:$0x1]
      %v5636 = vsel %vm5585, %v5391, %v5635
      %5637 = vst [vmem:[%s5576 + $0x5c] sm:$0x1] %v5636
      %v5638 = vld [vmem:[%s5576 + $0x60] sm:$0xf]
      %v5639 = vsel %vm5579, %v5398, %v5638
      %5640 = vst [vmem:[%s5576 + $0x60] sm:$0xf] %v5639
      %5641 = vst [vmem:[%s5576 + $0x64] sm:$0xf] %v5407
      %v5642 = vld [vmem:[%s5576 + $0x68] sm:$0x1]
      %v5643 = vsel %vm5585, %v5408, %v5642
      %5644 = vst [vmem:[%s5576 + $0x68] sm:$0x1] %v5643
      %v5645 = vld [vmem:[%s5576 + $0x6c] sm:$0xf]
      %v5646 = vsel %vm5579, %v5415, %v5645
      %5647 = vst [vmem:[%s5576 + $0x6c] sm:$0xf] %v5646
      %5648 = vst [vmem:[%s5576 + $0x70] sm:$0xf] %v5424
      %v5649 = vld [vmem:[%s5576 + $0x74] sm:$0x1]
      %v5650 = vsel %vm5585, %v5425, %v5649
      %5651 = vst [vmem:[%s5576 + $0x74] sm:$0x1] %v5650
      %v5652 = vld [vmem:[%s5576 + $0x78] sm:$0xf]
      %v5653 = vsel %vm5579, %v5432, %v5652
      %5654 = vst [vmem:[%s5576 + $0x78] sm:$0xf] %v5653
      %5655 = vst [vmem:[%s5576 + $0x7c] sm:$0xf] %v5441
      %v5656 = vld [vmem:[%s5576 + $0x80] sm:$0x1]
      %v5657 = vsel %vm5585, %v5442, %v5656
      %5658 = vst [vmem:[%s5576 + $0x80] sm:$0x1] %v5657
      %v5659 = vld [vmem:[%s5576 + $0x84] sm:$0xf]
      %v5660 = vsel %vm5579, %v5449, %v5659
      %5661 = vst [vmem:[%s5576 + $0x84] sm:$0xf] %v5660
      %5662 = vst [vmem:[%s5576 + $0x88] sm:$0xf] %v5458
      %v5663 = vld [vmem:[%s5576 + $0x8c] sm:$0x1]
      %v5664 = vsel %vm5585, %v5459, %v5663
      %5665 = vst [vmem:[%s5576 + $0x8c] sm:$0x1] %v5664
      %v5666 = vld [vmem:[%s5576 + $0x90] sm:$0xf]
      %v5667 = vsel %vm5579, %v5466, %v5666
      %5668 = vst [vmem:[%s5576 + $0x90] sm:$0xf] %v5667
      %5669 = vst [vmem:[%s5576 + $0x94] sm:$0xf] %v5475
      %v5670 = vld [vmem:[%s5576 + $0x98] sm:$0x1]
      %v5671 = vsel %vm5585, %v5476, %v5670
      %5672 = vst [vmem:[%s5576 + $0x98] sm:$0x1] %v5671
      %v5673 = vld [vmem:[%s5576 + $0x9c] sm:$0xf]
      %v5674 = vsel %vm5579, %v5483, %v5673
      %5675 = vst [vmem:[%s5576 + $0x9c] sm:$0xf] %v5674
      %5676 = vst [vmem:[%s5576 + $0xa0] sm:$0xf] %v5492
      %v5677 = vld [vmem:[%s5576 + $0xa4] sm:$0x1]
      %v5678 = vsel %vm5585, %v5493, %v5677
      %5679 = vst [vmem:[%s5576 + $0xa4] sm:$0x1] %v5678
      %v5680 = vld [vmem:[%s5576 + $0xa8] sm:$0xf]
      %v5681 = vsel %vm5579, %v5500, %v5680
      %5682 = vst [vmem:[%s5576 + $0xa8] sm:$0xf] %v5681
      %5683 = vst [vmem:[%s5576 + $0xac] sm:$0xf] %v5509
      %v5684 = vld [vmem:[%s5576 + $0xb0] sm:$0x1]
      %v5685 = vsel %vm5585, %v5510, %v5684
      %5686 = vst [vmem:[%s5576 + $0xb0] sm:$0x1] %v5685
      %v5687 = vld [vmem:[%s5576 + $0xb4] sm:$0xf]
      %v5688 = vsel %vm5579, %v5517, %v5687
      %5689 = vst [vmem:[%s5576 + $0xb4] sm:$0xf] %v5688
      %5690 = vst [vmem:[%s5576 + $0xb8] sm:$0xf] %v5526
      %v5691 = vld [vmem:[%s5576 + $0xbc] sm:$0x1]
      %v5692 = vsel %vm5585, %v5527, %v5691
      %5693 = vst [vmem:[%s5576 + $0xbc] sm:$0x1] %v5692
      %p5694 = scmp.lt.s32.totalorder %s18, 1
      %s5695 = scalar_select %p5694, %s18, 1
      %p5696 = scmp.lt.s32.totalorder %s19, 0
      %s5697 = scalar_select %p5696, %s19, 0
      %s5698 = smul.addr %s5695, 54
      %s5699 = sadd.s32 %s5697, %s5698
      %s5700 = smul.addr %s5699, 4
      %s5701 = scalar_lea.vmem %s3, %s5700
      // Predicated region
      $region33: #{basic_block.2} parent=31 // pred_check
        %p5702 = pneg %p124
      $region34: #{basic_block.2} parent=31 // pred_check_branch
        %5704 = sbr.rel (%p5702) target = $region36
      $region35: #{basic_block.2} parent=31 // pred_region
        _
      $region36: #{basic_block.2} parent=31 // pred_fallthru
        _
    $region32: #{basic_block.2} parent=5 // pred_fallthru
      _
    %p5705 = scmp.le.s32.totalorder 2, %s9
    // Predicated region
    $region37: #{basic_block.2} parent=5 // pred_check
      %p5706 = pneg %p5705
    $region38: #{basic_block.2} parent=5 // pred_check_branch
      %5708 = sbr.rel (%p5706) target = $region40
    $region39: #{basic_block.2} parent=5 // pred_region
      %s5709 = ssub.s32 %s9, 2
      // Predicated region
      $region41: #{basic_block.2} parent=39 // pred_check
        %p5710 = pneg %p130
      $region42: #{basic_block.2} parent=39 // pred_check_branch
        %5712 = sbr.rel (%p5710) target = $region44
      $region43: #{basic_block.2} parent=39 // pred_region
        %p5713 = scmp.lt.s32.totalorder %s20, 1
        %s5714 = scalar_select %p5713, %s20, 1
        %p5715 = scmp.lt.s32.totalorder %s21, 0
        %s5716 = scalar_select %p5715, %s21, 0
        %s5717 = smul.addr %s5714, 54
        %s5718 = sadd.s32 %s5716, %s5717
        %s5719 = smul.addr %s5718, 4
        %s5720 = scalar_lea.vmem %s3, %s5719
      $region44: #{basic_block.2} parent=39 // pred_fallthru
        _
    $region40: #{basic_block.2} parent=5 // pred_fallthru
      _
  $region6: #{basic_block.2} parent=0 // loop_footer
    %s13 = sadd.s32 1, %s9
  $region7: #{basic_block.2} parent=0 // loop_footer_branch
    %8 = sbr.rel target = $region3
  $region8: #{basic_block.2} parent=0 // loop_exit
    _

</llo_original>
